<compile_context>
chip_gen: v7x
topology: tpu7x:2x2x1
jax: 0.10.0
libtpu: 0.0.40
codegen_flags: <defaults>
</compile_context>

<pallas_src>
import functools

import jax
import jax.numpy as jnp
from jax.experimental import pallas as pl
from jax.experimental.pallas import tpu as pltpu


# ----------------------------------------------------------------------------
# Pallas kernel: tiled matmul + fused bias + LeakyReLU epilogue
# ----------------------------------------------------------------------------
def _mm_bias_lrelu_kernel(a_ref, b_ref, bias_ref, o_ref, acc_ref, *, slope, apply_act):
    """acc[m,n] += a[m,k] @ b[k,n] (bf16 x bf16 -> f32); on last K step:
       out = leaky_relu(acc + bias) cast to the output dtype."""
    k = pl.program_id(2)

    @pl.when(k == 0)
    def _():
        acc_ref[...] = jnp.zeros_like(acc_ref)

    acc_ref[...] += jnp.dot(a_ref[...], b_ref[...],
                            preferred_element_type=jnp.float32)

    @pl.when(k == pl.num_programs(2) - 1)
    def _():
        y = acc_ref[...] + bias_ref[...]          # f32 epilogue
        if apply_act:
            y = jnp.where(y > 0, y, slope * y)    # LeakyReLU(0.2)
        o_ref[...] = y.astype(o_ref.dtype)


def _pick_tile(dim, cap, align):
    """Largest tile <= cap that divides `dim` and is a multiple of `align`
    (or the full dim when dim <= cap / no aligned divisor exists)."""
    if dim <= cap:
        return dim
    t = (cap // align) * align
    while t >= align:
        if dim % t == 0:
            return t
        t -= align
    return dim


def matmul_bias_act(a, b, bias, *, out_dtype=jnp.bfloat16, act=True, slope=0.2,
                    tm_cap=256, tn_cap=256, tk_cap=512):
    """out[m, n] = leaky_relu( sum_k a[m,k] * b[k,n] + bias[n] )."""
    M, K = a.shape
    K2, N = b.shape
    assert K == K2 and bias.shape == (N,)

    tm = _pick_tile(M, tm_cap, 8)
    tn = _pick_tile(N, tn_cap, 128)
    tk = _pick_tile(K, tk_cap, 128)
    grid = (M // tm, N // tn, K // tk)

    a_bf = a.astype(jnp.bfloat16)
    b_bf = b.astype(jnp.bfloat16)
    bias2 = bias.astype(jnp.float32).reshape(1, N)

    kern = functools.partial(_mm_bias_lrelu_kernel, slope=slope, apply_act=act)
    return pl.pallas_call(
        kern,
        out_shape=jax.ShapeDtypeStruct((M, N), out_dtype),
        grid_spec=pltpu.PrefetchScalarGridSpec(
            num_scalar_prefetch=0,
            grid=grid,
            in_specs=[
                pl.BlockSpec((tm, tk), lambda i, j, k: (i, k)),
                pl.BlockSpec((tk, tn), lambda i, j, k: (k, j)),
                pl.BlockSpec((1, tn), lambda i, j, k: (0, j)),
            ],
            out_specs=pl.BlockSpec((tm, tn), lambda i, j, k: (i, j)),
            scratch_shapes=[pltpu.VMEM((tm, tn), jnp.float32)],
        ),
        compiler_params=pltpu.CompilerParams(
            dimension_semantics=("parallel", "parallel", "arbitrary"),
            vmem_limit_bytes=32 * 1024 * 1024,
        ),
    )(a_bf, b_bf, bias2)


# ----------------------------------------------------------------------------
# Conv = im2col (XLA glue, bf16) + Pallas matmul with fused bias + LeakyReLU
# ----------------------------------------------------------------------------
# TODO(synk): the im2col patch tensor is still materialized in HBM (bf16, <=2 MB per layer at
#             these sizes); folding the kh*kw taps into the kernel's K reduction would remove
#             that round trip but is not needed at this problem size.
def conv2d_lrelu(x, w, bias, *, stride, padding, out_dtype=jnp.bfloat16):
    """x: (B,H,W,Cin) NHWC (bf16), w: (kh,kw,Cin,Cout), bias: (Cout,).
    Conv2d(bias=True) followed by LeakyReLU(0.2)."""
    B, H, W, Cin = x.shape
    kh, kw, _, Cout = w.shape
    sh, sw = stride
    ph, pw = padding
    if ph or pw:
        x = jnp.pad(x, ((0, 0), (ph, ph), (pw, pw), (0, 0)))
    Ho = (H + 2 * ph - kh) // sh + 1
    Wo = (W + 2 * pw - kw) // sw + 1
    cols = [x[:, di:di + (Ho - 1) * sh + 1:sh, dj:dj + (Wo - 1) * sw + 1:sw, :]
            for di in range(kh) for dj in range(kw)]
    patches = jnp.concatenate(cols, axis=-1).reshape(B * Ho * Wo, kh * kw * Cin)
    bmat = w.reshape(kh * kw * Cin, Cout)
    out = matmul_bias_act(patches, bmat, bias, out_dtype=out_dtype, act=True, slope=0.2)
    return out.reshape(B, Ho, Wo, Cout)


# ----------------------------------------------------------------------------
# Parameters (synthesized; original module uses SpectralNorm-wrapped convs)
# ----------------------------------------------------------------------------
# TODO(synk): SpectralNorm's power-iteration weight rescale is omitted; weights here are
#             synthesized, so the rescale would only change a constant scale factor.
def _make_conv(key, kh, kw, cin, cout):
    kw_, kb_ = jax.random.split(key)
    fan_in = kh * kw * cin
    w = jax.random.normal(kw_, (kh, kw, cin, cout), jnp.float32) * jnp.sqrt(2.0 / fan_in)
    b = jax.random.uniform(kb_, (cout,), jnp.float32, -0.01, 0.01)
    return dict(w=w.astype(jnp.bfloat16), b=b)


def init_params(key, ndf):
    keys = jax.random.split(key, 6)
    return dict(
        c1=_make_conv(keys[0], 4, 4, 3, ndf),              # img_code_s16[0]
        c2=_make_conv(keys[1], 4, 4, ndf, ndf * 2),         # img_code_s16[2]
        c3=_make_conv(keys[2], 4, 4, ndf * 2, ndf * 4),     # img_code_s16[4]
        c4=_make_conv(keys[3], 4, 4, ndf * 4, ndf * 8),     # img_code_s16[6]
        s32=_make_conv(keys[4], 4, 4, ndf * 8, ndf * 16),   # img_code_s32 (downBlock)
        s32_1=_make_conv(keys[5], 3, 3, ndf * 16, ndf * 8), # img_code_s32_1 (Block3x3_leakRelu)
    )


# ----------------------------------------------------------------------------
# Forward pass (matches D_NET128.forward: returns x_code4 only)
# ----------------------------------------------------------------------------
def d_net128_forward(params, x_nchw):
    x = jnp.transpose(x_nchw, (0, 2, 3, 1)).astype(jnp.bfloat16)          # NCHW -> NHWC, bf16
    h = conv2d_lrelu(x, params['c1']['w'], params['c1']['b'], stride=(2, 2), padding=(1, 1))
    h = conv2d_lrelu(h, params['c2']['w'], params['c2']['b'], stride=(2, 2), padding=(1, 1))
    h = conv2d_lrelu(h, params['c3']['w'], params['c3']['b'], stride=(2, 2), padding=(1, 1))
    h = conv2d_lrelu(h, params['c4']['w'], params['c4']['b'], stride=(2, 2), padding=(1, 1))
    # h == x_code8: (B, 8, 8, 8*ndf)
    h = conv2d_lrelu(h, params['s32']['w'], params['s32']['b'], stride=(2, 2), padding=(1, 1))
    h = conv2d_lrelu(h, params['s32_1']['w'], params['s32_1']['b'],
                     stride=(1, 1), padding=(1, 1), out_dtype=jnp.float32)
    # h == x_code4: (B, 4, 4, 8*ndf)
    return jnp.transpose(h, (0, 3, 1, 2))                                  # -> (B, 8*ndf, 4, 4)


if __name__ == "__main__":
    ndf = 32          # cfg.GAN.DF_DIM (reduced from 64 for a small test)
    key = jax.random.PRNGKey(0)
    kp, kx = jax.random.split(key)
    params = init_params(kp, ndf)
    x_var = jax.random.normal(kx, (2, 3, 128, 128), jnp.float32)           # NCHW like PyTorch

    fwd = jax.jit(d_net128_forward)
    x_code4 = fwd(params, x_var)
    jax.block_until_ready(x_code4)

    assert x_code4.shape == (2, ndf * 8, 4, 4), x_code4.shape
    assert x_code4.dtype == jnp.float32
    assert bool(jnp.isfinite(x_code4).all())
    print("KERNEL_OK")
</pallas_src>

<mosaic_0001>
module attributes {stable_mosaic.version = 11 : i64} {
  func.func @_mm_bias_lrelu_kernel(%arg0: i32, %arg1: i32, %arg2: i32, %arg3: memref<256x48xbf16, #tpu.memory_space<vmem>>, %arg4: memref<48x32xbf16, #tpu.memory_space<vmem>>, %arg5: memref<1x32xf32, #tpu.memory_space<vmem>>, %arg6: memref<256x32xbf16, #tpu.memory_space<vmem>>, %arg7: memref<256x32xf32, #tpu.memory_space<vmem>>) attributes {dimension_semantics = [#tpu.dimension_semantics<parallel>, #tpu.dimension_semantics<parallel>, #tpu.dimension_semantics<arbitrary>], iteration_bounds = array<i64: 32, 1, 1>, scalar_prefetch = 0 : i64, scratch_operands = 1 : i64, tpu.core_type = #tpu.core_type<tc>, window_params = [{transform_indices = @transform_0, window_bounds = array<i64: 256, 48>}, {transform_indices = @transform_1, window_bounds = array<i64: 48, 32>}, {transform_indices = @transform_2, window_bounds = array<i64: 1, 32>}, {transform_indices = @transform_3, window_bounds = array<i64: 256, 32>}]} {
    %c0_i32 = arith.constant 0 : i32
    %0 = arith.cmpi eq, %arg2, %c0_i32 : i32
    %1 = arith.extui %0 : i1 to i32
    %c0_i32_0 = arith.constant 0 : i32
    %2 = arith.cmpi ne, %1, %c0_i32_0 : i32
    scf.if %2 {
      %cst_10 = arith.constant 0.000000e+00 : f32
      %12 = vector.broadcast %cst_10 : f32 to vector<256x32xf32>
      %c0_11 = arith.constant 0 : index
      %c0_12 = arith.constant 0 : index
      %13 = vector.load %arg7[%c0_11, %c0_12] : memref<256x32xf32, #tpu.memory_space<vmem>>, vector<256x32xf32>
      tpu.vector_store %arg7[%c0_11, %c0_12], %12 {strides = array<i32>} : memref<256x32xf32, #tpu.memory_space<vmem>>, vector<256x32xf32>,
    } else {
    }
    %c0 = arith.constant 0 : index
    %c0_1 = arith.constant 0 : index
    %3 = vector.load %arg7[%c0, %c0_1] : memref<256x32xf32, #tpu.memory_space<vmem>>, vector<256x32xf32>
    %c0_2 = arith.constant 0 : index
    %c0_3 = arith.constant 0 : index
    %4 = vector.load %arg3[%c0_2, %c0_3] : memref<256x48xbf16, #tpu.memory_space<vmem>>, vector<256x48xbf16>
    %c0_4 = arith.constant 0 : index
    %c0_5 = arith.constant 0 : index
    %5 = vector.load %arg4[%c0_4, %c0_5] : memref<48x32xbf16, #tpu.memory_space<vmem>>, vector<48x32xbf16>
    %cst = arith.constant dense<0.000000e+00> : vector<256x32xf32>
    %6 = tpu.matmul %4, %5, %cst {dimension_numbers = #tpu.dot_dimension_numbers<[1], [0], [0], [1], [0, 0, 1, 1], [], []>} : vector<256x48xbf16>, vector<48x32xbf16>, vector<256x32xf32> -> vector<256x32xf32>
    %7 = arith.addf %3, %6 : vector<256x32xf32>
    %c0_6 = arith.constant 0 : index
    %c0_7 = arith.constant 0 : index
    %8 = vector.load %arg7[%c0_6, %c0_7] : memref<256x32xf32, #tpu.memory_space<vmem>>, vector<256x32xf32>
    tpu.vector_store %arg7[%c0_6, %c0_7], %7 {strides = array<i32>} : memref<256x32xf32, #tpu.memory_space<vmem>>, vector<256x32xf32>,
    %c0_i32_8 = arith.constant 0 : i32
    %9 = arith.cmpi eq, %arg2, %c0_i32_8 : i32
    %10 = arith.extui %9 : i1 to i32
    %c0_i32_9 = arith.constant 0 : i32
    %11 = arith.cmpi ne, %10, %c0_i32_9 : i32
    scf.if %11 {
      %c0_10 = arith.constant 0 : index
      %c0_11 = arith.constant 0 : index
      %12 = vector.load %arg7[%c0_10, %c0_11] : memref<256x32xf32, #tpu.memory_space<vmem>>, vector<256x32xf32>
      %c0_12 = arith.constant 0 : index
      %c0_13 = arith.constant 0 : index
      %13 = vector.load %arg5[%c0_12, %c0_13] : memref<1x32xf32, #tpu.memory_space<vmem>>, vector<1x32xf32>
      %14 = vector.broadcast %13 : vector<1x32xf32> to vector<256x32xf32>
      %15 = arith.addf %12, %14 : vector<256x32xf32>
      %cst_14 = arith.constant 0.000000e+00 : f32
      %16 = vector.broadcast %cst_14 : f32 to vector<256x32xf32>
      %17 = arith.cmpf ogt, %15, %16 : vector<256x32xf32>
      %cst_15 = arith.constant 2.000000e-01 : f32
      %18 = vector.broadcast %cst_15 : f32 to vector<256x32xf32>
      %19 = arith.mulf %18, %15 : vector<256x32xf32>
      %20 = arith.select %17, %15, %19 : vector<256x32xi1>, vector<256x32xf32>
      %21 = arith.truncf %20 : vector<256x32xf32> to vector<256x32xbf16>
      %c0_16 = arith.constant 0 : index
      %c0_17 = arith.constant 0 : index
      %22 = vector.load %arg6[%c0_16, %c0_17] : memref<256x32xbf16, #tpu.memory_space<vmem>>, vector<256x32xbf16>
      tpu.vector_store %arg6[%c0_16, %c0_17], %21 {strides = array<i32>} : memref<256x32xbf16, #tpu.memory_space<vmem>>, vector<256x32xbf16>,
    } else {
    }
    return
  }
  func.func @transform_0(%arg0: i32, %arg1: i32, %arg2: i32) -> (i32, i32) {
    %c0_i32 = arith.constant 0 : i32
    return %arg0, %arg2 : i32, i32
  }
  func.func @transform_1(%arg0: i32, %arg1: i32, %arg2: i32) -> (i32, i32) {
    %c0_i32 = arith.constant 0 : i32
    return %arg2, %arg1 : i32, i32
  }
  func.func @transform_2(%arg0: i32, %arg1: i32, %arg2: i32) -> (i32, i32) {
    %c0_i32 = arith.constant 0 : i32
    %c0_i32_0 = arith.constant 0 : i32
    return %c0_i32, %arg1 : i32, i32
  }
  func.func @transform_3(%arg0: i32, %arg1: i32, %arg2: i32) -> (i32, i32) {
    %c0_i32 = arith.constant 0 : i32
    return %arg0, %arg1 : i32, i32
  }
}

module attributes {stable_mosaic.version = 11 : i64} {
  func.func @_mm_bias_lrelu_kernel(%arg0: i32, %arg1: i32, %arg2: i32, %arg3: memref<256x512xbf16, #tpu.memory_space<vmem>>, %arg4: memref<512x64xbf16, #tpu.memory_space<vmem>>, %arg5: memref<1x64xf32, #tpu.memory_space<vmem>>, %arg6: memref<256x64xbf16, #tpu.memory_space<vmem>>, %arg7: memref<256x64xf32, #tpu.memory_space<vmem>>) attributes {dimension_semantics = [#tpu.dimension_semantics<parallel>, #tpu.dimension_semantics<parallel>, #tpu.dimension_semantics<arbitrary>], iteration_bounds = array<i64: 8, 1, 1>, scalar_prefetch = 0 : i64, scratch_operands = 1 : i64, tpu.core_type = #tpu.core_type<tc>, window_params = [{transform_indices = @transform_0, window_bounds = array<i64: 256, 512>}, {transform_indices = @transform_1, window_bounds = array<i64: 512, 64>}, {transform_indices = @transform_2, window_bounds = array<i64: 1, 64>}, {transform_indices = @transform_3, window_bounds = array<i64: 256, 64>}]} {
    %c0_i32 = arith.constant 0 : i32
    %0 = arith.cmpi eq, %arg2, %c0_i32 : i32
    %1 = arith.extui %0 : i1 to i32
    %c0_i32_0 = arith.constant 0 : i32
    %2 = arith.cmpi ne, %1, %c0_i32_0 : i32
    scf.if %2 {
      %cst_10 = arith.constant 0.000000e+00 : f32
      %12 = vector.broadcast %cst_10 : f32 to vector<256x64xf32>
      %c0_11 = arith.constant 0 : index
      %c0_12 = arith.constant 0 : index
      %13 = vector.load %arg7[%c0_11, %c0_12] : memref<256x64xf32, #tpu.memory_space<vmem>>, vector<256x64xf32>
      tpu.vector_store %arg7[%c0_11, %c0_12], %12 {strides = array<i32>} : memref<256x64xf32, #tpu.memory_space<vmem>>, vector<256x64xf32>,
    } else {
    }
    %c0 = arith.constant 0 : index
    %c0_1 = arith.constant 0 : index
    %3 = vector.load %arg7[%c0, %c0_1] : memref<256x64xf32, #tpu.memory_space<vmem>>, vector<256x64xf32>
    %c0_2 = arith.constant 0 : index
    %c0_3 = arith.constant 0 : index
    %4 = vector.load %arg3[%c0_2, %c0_3] : memref<256x512xbf16, #tpu.memory_space<vmem>>, vector<256x512xbf16>
    %c0_4 = arith.constant 0 : index
    %c0_5 = arith.constant 0 : index
    %5 = vector.load %arg4[%c0_4, %c0_5] : memref<512x64xbf16, #tpu.memory_space<vmem>>, vector<512x64xbf16>
    %cst = arith.constant dense<0.000000e+00> : vector<256x64xf32>
    %6 = tpu.matmul %4, %5, %cst {dimension_numbers = #tpu.dot_dimension_numbers<[1], [0], [0], [1], [0, 0, 1, 1], [], []>} : vector<256x512xbf16>, vector<512x64xbf16>, vector<256x64xf32> -> vector<256x64xf32>
    %7 = arith.addf %3, %6 : vector<256x64xf32>
    %c0_6 = arith.constant 0 : index
    %c0_7 = arith.constant 0 : index
    %8 = vector.load %arg7[%c0_6, %c0_7] : memref<256x64xf32, #tpu.memory_space<vmem>>, vector<256x64xf32>
    tpu.vector_store %arg7[%c0_6, %c0_7], %7 {strides = array<i32>} : memref<256x64xf32, #tpu.memory_space<vmem>>, vector<256x64xf32>,
    %c0_i32_8 = arith.constant 0 : i32
    %9 = arith.cmpi eq, %arg2, %c0_i32_8 : i32
    %10 = arith.extui %9 : i1 to i32
    %c0_i32_9 = arith.constant 0 : i32
    %11 = arith.cmpi ne, %10, %c0_i32_9 : i32
    scf.if %11 {
      %c0_10 = arith.constant 0 : index
      %c0_11 = arith.constant 0 : index
      %12 = vector.load %arg7[%c0_10, %c0_11] : memref<256x64xf32, #tpu.memory_space<vmem>>, vector<256x64xf32>
      %c0_12 = arith.constant 0 : index
      %c0_13 = arith.constant 0 : index
      %13 = vector.load %arg5[%c0_12, %c0_13] : memref<1x64xf32, #tpu.memory_space<vmem>>, vector<1x64xf32>
      %14 = vector.broadcast %13 : vector<1x64xf32> to vector<256x64xf32>
      %15 = arith.addf %12, %14 : vector<256x64xf32>
      %cst_14 = arith.constant 0.000000e+00 : f32
      %16 = vector.broadcast %cst_14 : f32 to vector<256x64xf32>
      %17 = arith.cmpf ogt, %15, %16 : vector<256x64xf32>
      %cst_15 = arith.constant 2.000000e-01 : f32
      %18 = vector.broadcast %cst_15 : f32 to vector<256x64xf32>
      %19 = arith.mulf %18, %15 : vector<256x64xf32>
      %20 = arith.select %17, %15, %19 : vector<256x64xi1>, vector<256x64xf32>
      %21 = arith.truncf %20 : vector<256x64xf32> to vector<256x64xbf16>
      %c0_16 = arith.constant 0 : index
      %c0_17 = arith.constant 0 : index
      %22 = vector.load %arg6[%c0_16, %c0_17] : memref<256x64xbf16, #tpu.memory_space<vmem>>, vector<256x64xbf16>
      tpu.vector_store %arg6[%c0_16, %c0_17], %21 {strides = array<i32>} : memref<256x64xbf16, #tpu.memory_space<vmem>>, vector<256x64xbf16>,
    } else {
    }
    return
  }
  func.func @transform_0(%arg0: i32, %arg1: i32, %arg2: i32) -> (i32, i32) {
    %c0_i32 = arith.constant 0 : i32
    return %arg0, %arg2 : i32, i32
  }
  func.func @transform_1(%arg0: i32, %arg1: i32, %arg2: i32) -> (i32, i32) {
    %c0_i32 = arith.constant 0 : i32
    return %arg2, %arg1 : i32, i32
  }
  func.func @transform_2(%arg0: i32, %arg1: i32, %arg2: i32) -> (i32, i32) {
    %c0_i32 = arith.constant 0 : i32
    %c0_i32_0 = arith.constant 0 : i32
    return %c0_i32, %arg1 : i32, i32
  }
  func.func @transform_3(%arg0: i32, %arg1: i32, %arg2: i32) -> (i32, i32) {
    %c0_i32 = arith.constant 0 : i32
    return %arg0, %arg1 : i32, i32
  }
}

module attributes {stable_mosaic.version = 11 : i64} {
  func.func @_mm_bias_lrelu_kernel(%arg0: i32, %arg1: i32, %arg2: i32, %arg3: memref<256x512xbf16, #tpu.memory_space<vmem>>, %arg4: memref<512x128xbf16, #tpu.memory_space<vmem>>, %arg5: memref<1x128xf32, #tpu.memory_space<vmem>>, %arg6: memref<256x128xbf16, #tpu.memory_space<vmem>>, %arg7: memref<256x128xf32, #tpu.memory_space<vmem>>) attributes {dimension_semantics = [#tpu.dimension_semantics<parallel>, #tpu.dimension_semantics<parallel>, #tpu.dimension_semantics<arbitrary>], iteration_bounds = array<i64: 2, 1, 2>, scalar_prefetch = 0 : i64, scratch_operands = 1 : i64, tpu.core_type = #tpu.core_type<tc>, window_params = [{transform_indices = @transform_0, window_bounds = array<i64: 256, 512>}, {transform_indices = @transform_1, window_bounds = array<i64: 512, 128>}, {transform_indices = @transform_2, window_bounds = array<i64: 1, 128>}, {transform_indices = @transform_3, window_bounds = array<i64: 256, 128>}]} {
    %c0_i32 = arith.constant 0 : i32
    %0 = arith.cmpi eq, %arg2, %c0_i32 : i32
    %1 = arith.extui %0 : i1 to i32
    %c0_i32_0 = arith.constant 0 : i32
    %2 = arith.cmpi ne, %1, %c0_i32_0 : i32
    scf.if %2 {
      %cst_9 = arith.constant 0.000000e+00 : f32
      %12 = vector.broadcast %cst_9 : f32 to vector<256x128xf32>
      %c0_10 = arith.constant 0 : index
      %c0_11 = arith.constant 0 : index
      %13 = vector.load %arg7[%c0_10, %c0_11] : memref<256x128xf32, #tpu.memory_space<vmem>>, vector<256x128xf32>
      tpu.vector_store %arg7[%c0_10, %c0_11], %12 {strides = array<i32>} : memref<256x128xf32, #tpu.memory_space<vmem>>, vector<256x128xf32>,
    } else {
    }
    %c0 = arith.constant 0 : index
    %c0_1 = arith.constant 0 : index
    %3 = vector.load %arg7[%c0, %c0_1] : memref<256x128xf32, #tpu.memory_space<vmem>>, vector<256x128xf32>
    %c0_2 = arith.constant 0 : index
    %c0_3 = arith.constant 0 : index
    %4 = vector.load %arg3[%c0_2, %c0_3] : memref<256x512xbf16, #tpu.memory_space<vmem>>, vector<256x512xbf16>
    %c0_4 = arith.constant 0 : index
    %c0_5 = arith.constant 0 : index
    %5 = vector.load %arg4[%c0_4, %c0_5] : memref<512x128xbf16, #tpu.memory_space<vmem>>, vector<512x128xbf16>
    %cst = arith.constant dense<0.000000e+00> : vector<256x128xf32>
    %6 = tpu.matmul %4, %5, %cst {dimension_numbers = #tpu.dot_dimension_numbers<[1], [0], [0], [1], [0, 0, 1, 1], [], []>} : vector<256x512xbf16>, vector<512x128xbf16>, vector<256x128xf32> -> vector<256x128xf32>
    %7 = arith.addf %3, %6 : vector<256x128xf32>
    %c0_6 = arith.constant 0 : index
    %c0_7 = arith.constant 0 : index
    %8 = vector.load %arg7[%c0_6, %c0_7] : memref<256x128xf32, #tpu.memory_space<vmem>>, vector<256x128xf32>
    tpu.vector_store %arg7[%c0_6, %c0_7], %7 {strides = array<i32>} : memref<256x128xf32, #tpu.memory_space<vmem>>, vector<256x128xf32>,
    %c1_i32 = arith.constant 1 : i32
    %9 = arith.cmpi eq, %arg2, %c1_i32 : i32
    %10 = arith.extui %9 : i1 to i32
    %c0_i32_8 = arith.constant 0 : i32
    %11 = arith.cmpi ne, %10, %c0_i32_8 : i32
    scf.if %11 {
      %c0_9 = arith.constant 0 : index
      %c0_10 = arith.constant 0 : index
      %12 = vector.load %arg7[%c0_9, %c0_10] : memref<256x128xf32, #tpu.memory_space<vmem>>, vector<256x128xf32>
      %c0_11 = arith.constant 0 : index
      %c0_12 = arith.constant 0 : index
      %13 = vector.load %arg5[%c0_11, %c0_12] : memref<1x128xf32, #tpu.memory_space<vmem>>, vector<1x128xf32>
      %14 = vector.broadcast %13 : vector<1x128xf32> to vector<256x128xf32>
      %15 = arith.addf %12, %14 : vector<256x128xf32>
      %cst_13 = arith.constant 0.000000e+00 : f32
      %16 = vector.broadcast %cst_13 : f32 to vector<256x128xf32>
      %17 = arith.cmpf ogt, %15, %16 : vector<256x128xf32>
      %cst_14 = arith.constant 2.000000e-01 : f32
      %18 = vector.broadcast %cst_14 : f32 to vector<256x128xf32>
      %19 = arith.mulf %18, %15 : vector<256x128xf32>
      %20 = arith.select %17, %15, %19 : vector<256x128xi1>, vector<256x128xf32>
      %21 = arith.truncf %20 : vector<256x128xf32> to vector<256x128xbf16>
      %c0_15 = arith.constant 0 : index
      %c0_16 = arith.constant 0 : index
      %22 = vector.load %arg6[%c0_15, %c0_16] : memref<256x128xbf16, #tpu.memory_space<vmem>>, vector<256x128xbf16>
      tpu.vector_store %arg6[%c0_15, %c0_16], %21 {strides = array<i32>} : memref<256x128xbf16, #tpu.memory_space<vmem>>, vector<256x128xbf16>,
    } else {
    }
    return
  }
  func.func @transform_0(%arg0: i32, %arg1: i32, %arg2: i32) -> (i32, i32) {
    %c0_i32 = arith.constant 0 : i32
    return %arg0, %arg2 : i32, i32
  }
  func.func @transform_1(%arg0: i32, %arg1: i32, %arg2: i32) -> (i32, i32) {
    %c0_i32 = arith.constant 0 : i32
    return %arg2, %arg1 : i32, i32
  }
  func.func @transform_2(%arg0: i32, %arg1: i32, %arg2: i32) -> (i32, i32) {
    %c0_i32 = arith.constant 0 : i32
    %c0_i32_0 = arith.constant 0 : i32
    return %c0_i32, %arg1 : i32, i32
  }
  func.func @transform_3(%arg0: i32, %arg1: i32, %arg2: i32) -> (i32, i32) {
    %c0_i32 = arith.constant 0 : i32
    return %arg0, %arg1 : i32, i32
  }
}

module attributes {stable_mosaic.version = 11 : i64} {
  func.func @_mm_bias_lrelu_kernel(%arg0: i32, %arg1: i32, %arg2: i32, %arg3: memref<128x512xbf16, #tpu.memory_space<vmem>>, %arg4: memref<512x256xbf16, #tpu.memory_space<vmem>>, %arg5: memref<1x256xf32, #tpu.memory_space<vmem>>, %arg6: memref<128x256xbf16, #tpu.memory_space<vmem>>, %arg7: memref<128x256xf32, #tpu.memory_space<vmem>>) attributes {dimension_semantics = [#tpu.dimension_semantics<parallel>, #tpu.dimension_semantics<parallel>, #tpu.dimension_semantics<arbitrary>], iteration_bounds = array<i64: 1, 1, 4>, scalar_prefetch = 0 : i64, scratch_operands = 1 : i64, tpu.core_type = #tpu.core_type<tc>, window_params = [{transform_indices = @transform_0, window_bounds = array<i64: 128, 512>}, {transform_indices = @transform_1, window_bounds = array<i64: 512, 256>}, {transform_indices = @transform_2, window_bounds = array<i64: 1, 256>}, {transform_indices = @transform_3, window_bounds = array<i64: 128, 256>}]} {
    %c0_i32 = arith.constant 0 : i32
    %0 = arith.cmpi eq, %arg2, %c0_i32 : i32
    %1 = arith.extui %0 : i1 to i32
    %c0_i32_0 = arith.constant 0 : i32
    %2 = arith.cmpi ne, %1, %c0_i32_0 : i32
    scf.if %2 {
      %cst_9 = arith.constant 0.000000e+00 : f32
      %12 = vector.broadcast %cst_9 : f32 to vector<128x256xf32>
      %c0_10 = arith.constant 0 : index
      %c0_11 = arith.constant 0 : index
      %13 = vector.load %arg7[%c0_10, %c0_11] : memref<128x256xf32, #tpu.memory_space<vmem>>, vector<128x256xf32>
      tpu.vector_store %arg7[%c0_10, %c0_11], %12 {strides = array<i32>} : memref<128x256xf32, #tpu.memory_space<vmem>>, vector<128x256xf32>,
    } else {
    }
    %c0 = arith.constant 0 : index
    %c0_1 = arith.constant 0 : index
    %3 = vector.load %arg7[%c0, %c0_1] : memref<128x256xf32, #tpu.memory_space<vmem>>, vector<128x256xf32>
    %c0_2 = arith.constant 0 : index
    %c0_3 = arith.constant 0 : index
    %4 = vector.load %arg3[%c0_2, %c0_3] : memref<128x512xbf16, #tpu.memory_space<vmem>>, vector<128x512xbf16>
    %c0_4 = arith.constant 0 : index
    %c0_5 = arith.constant 0 : index
    %5 = vector.load %arg4[%c0_4, %c0_5] : memref<512x256xbf16, #tpu.memory_space<vmem>>, vector<512x256xbf16>
    %cst = arith.constant dense<0.000000e+00> : vector<128x256xf32>
    %6 = tpu.matmul %4, %5, %cst {dimension_numbers = #tpu.dot_dimension_numbers<[1], [0], [0], [1], [0, 0, 1, 1], [], []>} : vector<128x512xbf16>, vector<512x256xbf16>, vector<128x256xf32> -> vector<128x256xf32>
    %7 = arith.addf %3, %6 : vector<128x256xf32>
    %c0_6 = arith.constant 0 : index
    %c0_7 = arith.constant 0 : index
    %8 = vector.load %arg7[%c0_6, %c0_7] : memref<128x256xf32, #tpu.memory_space<vmem>>, vector<128x256xf32>
    tpu.vector_store %arg7[%c0_6, %c0_7], %7 {strides = array<i32>} : memref<128x256xf32, #tpu.memory_space<vmem>>, vector<128x256xf32>,
    %c3_i32 = arith.constant 3 : i32
    %9 = arith.cmpi eq, %arg2, %c3_i32 : i32
    %10 = arith.extui %9 : i1 to i32
    %c0_i32_8 = arith.constant 0 : i32
    %11 = arith.cmpi ne, %10, %c0_i32_8 : i32
    scf.if %11 {
      %c0_9 = arith.constant 0 : index
      %c0_10 = arith.constant 0 : index
      %12 = vector.load %arg7[%c0_9, %c0_10] : memref<128x256xf32, #tpu.memory_space<vmem>>, vector<128x256xf32>
      %c0_11 = arith.constant 0 : index
      %c0_12 = arith.constant 0 : index
      %13 = vector.load %arg5[%c0_11, %c0_12] : memref<1x256xf32, #tpu.memory_space<vmem>>, vector<1x256xf32>
      %14 = vector.broadcast %13 : vector<1x256xf32> to vector<128x256xf32>
      %15 = arith.addf %12, %14 : vector<128x256xf32>
      %cst_13 = arith.constant 0.000000e+00 : f32
      %16 = vector.broadcast %cst_13 : f32 to vector<128x256xf32>
      %17 = arith.cmpf ogt, %15, %16 : vector<128x256xf32>
      %cst_14 = arith.constant 2.000000e-01 : f32
      %18 = vector.broadcast %cst_14 : f32 to vector<128x256xf32>
      %19 = arith.mulf %18, %15 : vector<128x256xf32>
      %20 = arith.select %17, %15, %19 : vector<128x256xi1>, vector<128x256xf32>
      %21 = arith.truncf %20 : vector<128x256xf32> to vector<128x256xbf16>
      %c0_15 = arith.constant 0 : index
      %c0_16 = arith.constant 0 : index
      %22 = vector.load %arg6[%c0_15, %c0_16] : memref<128x256xbf16, #tpu.memory_space<vmem>>, vector<128x256xbf16>
      tpu.vector_store %arg6[%c0_15, %c0_16], %21 {strides = array<i32>} : memref<128x256xbf16, #tpu.memory_space<vmem>>, vector<128x256xbf16>,
    } else {
    }
    return
  }
  func.func @transform_0(%arg0: i32, %arg1: i32, %arg2: i32) -> (i32, i32) {
    %c0_i32 = arith.constant 0 : i32
    return %arg0, %arg2 : i32, i32
  }
  func.func @transform_1(%arg0: i32, %arg1: i32, %arg2: i32) -> (i32, i32) {
    %c0_i32 = arith.constant 0 : i32
    return %arg2, %arg1 : i32, i32
  }
  func.func @transform_2(%arg0: i32, %arg1: i32, %arg2: i32) -> (i32, i32) {
    %c0_i32 = arith.constant 0 : i32
    %c0_i32_0 = arith.constant 0 : i32
    return %c0_i32, %arg1 : i32, i32
  }
  func.func @transform_3(%arg0: i32, %arg1: i32, %arg2: i32) -> (i32, i32) {
    %c0_i32 = arith.constant 0 : i32
    return %arg0, %arg1 : i32, i32
  }
}

module attributes {stable_mosaic.version = 11 : i64} {
  func.func @_mm_bias_lrelu_kernel(%arg0: i32, %arg1: i32, %arg2: i32, %arg3: memref<32x512xbf16, #tpu.memory_space<vmem>>, %arg4: memref<512x256xbf16, #tpu.memory_space<vmem>>, %arg5: memref<1x256xf32, #tpu.memory_space<vmem>>, %arg6: memref<32x256xbf16, #tpu.memory_space<vmem>>, %arg7: memref<32x256xf32, #tpu.memory_space<vmem>>) attributes {dimension_semantics = [#tpu.dimension_semantics<parallel>, #tpu.dimension_semantics<parallel>, #tpu.dimension_semantics<arbitrary>], iteration_bounds = array<i64: 1, 2, 8>, scalar_prefetch = 0 : i64, scratch_operands = 1 : i64, tpu.core_type = #tpu.core_type<tc>, window_params = [{transform_indices = @transform_0, window_bounds = array<i64: 32, 512>}, {transform_indices = @transform_1, window_bounds = array<i64: 512, 256>}, {transform_indices = @transform_2, window_bounds = array<i64: 1, 256>}, {transform_indices = @transform_3, window_bounds = array<i64: 32, 256>}]} {
    %c0_i32 = arith.constant 0 : i32
    %0 = arith.cmpi eq, %arg2, %c0_i32 : i32
    %1 = arith.extui %0 : i1 to i32
    %c0_i32_0 = arith.constant 0 : i32
    %2 = arith.cmpi ne, %1, %c0_i32_0 : i32
    scf.if %2 {
      %cst_9 = arith.constant 0.000000e+00 : f32
      %12 = vector.broadcast %cst_9 : f32 to vector<32x256xf32>
      %c0_10 = arith.constant 0 : index
      %c0_11 = arith.constant 0 : index
      %13 = vector.load %arg7[%c0_10, %c0_11] : memref<32x256xf32, #tpu.memory_space<vmem>>, vector<32x256xf32>
      tpu.vector_store %arg7[%c0_10, %c0_11], %12 {strides = array<i32>} : memref<32x256xf32, #tpu.memory_space<vmem>>, vector<32x256xf32>,
    } else {
    }
    %c0 = arith.constant 0 : index
    %c0_1 = arith.constant 0 : index
    %3 = vector.load %arg7[%c0, %c0_1] : memref<32x256xf32, #tpu.memory_space<vmem>>, vector<32x256xf32>
    %c0_2 = arith.constant 0 : index
    %c0_3 = arith.constant 0 : index
    %4 = vector.load %arg3[%c0_2, %c0_3] : memref<32x512xbf16, #tpu.memory_space<vmem>>, vector<32x512xbf16>
    %c0_4 = arith.constant 0 : index
    %c0_5 = arith.constant 0 : index
    %5 = vector.load %arg4[%c0_4, %c0_5] : memref<512x256xbf16, #tpu.memory_space<vmem>>, vector<512x256xbf16>
    %cst = arith.constant dense<0.000000e+00> : vector<32x256xf32>
    %6 = tpu.matmul %4, %5, %cst {dimension_numbers = #tpu.dot_dimension_numbers<[1], [0], [0], [1], [0, 0, 1, 1], [], []>} : vector<32x512xbf16>, vector<512x256xbf16>, vector<32x256xf32> -> vector<32x256xf32>
    %7 = arith.addf %3, %6 : vector<32x256xf32>
    %c0_6 = arith.constant 0 : index
    %c0_7 = arith.constant 0 : index
    %8 = vector.load %arg7[%c0_6, %c0_7] : memref<32x256xf32, #tpu.memory_space<vmem>>, vector<32x256xf32>
    tpu.vector_store %arg7[%c0_6, %c0_7], %7 {strides = array<i32>} : memref<32x256xf32, #tpu.memory_space<vmem>>, vector<32x256xf32>,
    %c7_i32 = arith.constant 7 : i32
    %9 = arith.cmpi eq, %arg2, %c7_i32 : i32
    %10 = arith.extui %9 : i1 to i32
    %c0_i32_8 = arith.constant 0 : i32
    %11 = arith.cmpi ne, %10, %c0_i32_8 : i32
    scf.if %11 {
      %c0_9 = arith.constant 0 : index
      %c0_10 = arith.constant 0 : index
      %12 = vector.load %arg7[%c0_9, %c0_10] : memref<32x256xf32, #tpu.memory_space<vmem>>, vector<32x256xf32>
      %c0_11 = arith.constant 0 : index
      %c0_12 = arith.constant 0 : index
      %13 = vector.load %arg5[%c0_11, %c0_12] : memref<1x256xf32, #tpu.memory_space<vmem>>, vector<1x256xf32>
      %14 = vector.broadcast %13 : vector<1x256xf32> to vector<32x256xf32>
      %15 = arith.addf %12, %14 : vector<32x256xf32>
      %cst_13 = arith.constant 0.000000e+00 : f32
      %16 = vector.broadcast %cst_13 : f32 to vector<32x256xf32>
      %17 = arith.cmpf ogt, %15, %16 : vector<32x256xf32>
      %cst_14 = arith.constant 2.000000e-01 : f32
      %18 = vector.broadcast %cst_14 : f32 to vector<32x256xf32>
      %19 = arith.mulf %18, %15 : vector<32x256xf32>
      %20 = arith.select %17, %15, %19 : vector<32x256xi1>, vector<32x256xf32>
      %21 = arith.truncf %20 : vector<32x256xf32> to vector<32x256xbf16>
      %c0_15 = arith.constant 0 : index
      %c0_16 = arith.constant 0 : index
      %22 = vector.load %arg6[%c0_15, %c0_16] : memref<32x256xbf16, #tpu.memory_space<vmem>>, vector<32x256xbf16>
      tpu.vector_store %arg6[%c0_15, %c0_16], %21 {strides = array<i32>} : memref<32x256xbf16, #tpu.memory_space<vmem>>, vector<32x256xbf16>,
    } else {
    }
    return
  }
  func.func @transform_0(%arg0: i32, %arg1: i32, %arg2: i32) -> (i32, i32) {
    %c0_i32 = arith.constant 0 : i32
    return %arg0, %arg2 : i32, i32
  }
  func.func @transform_1(%arg0: i32, %arg1: i32, %arg2: i32) -> (i32, i32) {
    %c0_i32 = arith.constant 0 : i32
    return %arg2, %arg1 : i32, i32
  }
  func.func @transform_2(%arg0: i32, %arg1: i32, %arg2: i32) -> (i32, i32) {
    %c0_i32 = arith.constant 0 : i32
    %c0_i32_0 = arith.constant 0 : i32
    return %c0_i32, %arg1 : i32, i32
  }
  func.func @transform_3(%arg0: i32, %arg1: i32, %arg2: i32) -> (i32, i32) {
    %c0_i32 = arith.constant 0 : i32
    return %arg0, %arg1 : i32, i32
  }
}

module attributes {stable_mosaic.version = 11 : i64} {
  func.func @_mm_bias_lrelu_kernel(%arg0: i32, %arg1: i32, %arg2: i32, %arg3: memref<32x512xbf16, #tpu.memory_space<vmem>>, %arg4: memref<512x256xbf16, #tpu.memory_space<vmem>>, %arg5: memref<1x256xf32, #tpu.memory_space<vmem>>, %arg6: memref<32x256xf32, #tpu.memory_space<vmem>>, %arg7: memref<32x256xf32, #tpu.memory_space<vmem>>) attributes {dimension_semantics = [#tpu.dimension_semantics<parallel>, #tpu.dimension_semantics<parallel>, #tpu.dimension_semantics<arbitrary>], iteration_bounds = array<i64: 1, 1, 9>, scalar_prefetch = 0 : i64, scratch_operands = 1 : i64, tpu.core_type = #tpu.core_type<tc>, window_params = [{transform_indices = @transform_0, window_bounds = array<i64: 32, 512>}, {transform_indices = @transform_1, window_bounds = array<i64: 512, 256>}, {transform_indices = @transform_2, window_bounds = array<i64: 1, 256>}, {transform_indices = @transform_3, window_bounds = array<i64: 32, 256>}]} {
    %c0_i32 = arith.constant 0 : i32
    %0 = arith.cmpi eq, %arg2, %c0_i32 : i32
    %1 = arith.extui %0 : i1 to i32
    %c0_i32_0 = arith.constant 0 : i32
    %2 = arith.cmpi ne, %1, %c0_i32_0 : i32
    scf.if %2 {
      %cst_9 = arith.constant 0.000000e+00 : f32
      %12 = vector.broadcast %cst_9 : f32 to vector<32x256xf32>
      %c0_10 = arith.constant 0 : index
      %c0_11 = arith.constant 0 : index
      %13 = vector.load %arg7[%c0_10, %c0_11] : memref<32x256xf32, #tpu.memory_space<vmem>>, vector<32x256xf32>
      tpu.vector_store %arg7[%c0_10, %c0_11], %12 {strides = array<i32>} : memref<32x256xf32, #tpu.memory_space<vmem>>, vector<32x256xf32>,
    } else {
    }
    %c0 = arith.constant 0 : index
    %c0_1 = arith.constant 0 : index
    %3 = vector.load %arg7[%c0, %c0_1] : memref<32x256xf32, #tpu.memory_space<vmem>>, vector<32x256xf32>
    %c0_2 = arith.constant 0 : index
    %c0_3 = arith.constant 0 : index
    %4 = vector.load %arg3[%c0_2, %c0_3] : memref<32x512xbf16, #tpu.memory_space<vmem>>, vector<32x512xbf16>
    %c0_4 = arith.constant 0 : index
    %c0_5 = arith.constant 0 : index
    %5 = vector.load %arg4[%c0_4, %c0_5] : memref<512x256xbf16, #tpu.memory_space<vmem>>, vector<512x256xbf16>
    %cst = arith.constant dense<0.000000e+00> : vector<32x256xf32>
    %6 = tpu.matmul %4, %5, %cst {dimension_numbers = #tpu.dot_dimension_numbers<[1], [0], [0], [1], [0, 0, 1, 1], [], []>} : vector<32x512xbf16>, vector<512x256xbf16>, vector<32x256xf32> -> vector<32x256xf32>
    %7 = arith.addf %3, %6 : vector<32x256xf32>
    %c0_6 = arith.constant 0 : index
    %c0_7 = arith.constant 0 : index
    %8 = vector.load %arg7[%c0_6, %c0_7] : memref<32x256xf32, #tpu.memory_space<vmem>>, vector<32x256xf32>
    tpu.vector_store %arg7[%c0_6, %c0_7], %7 {strides = array<i32>} : memref<32x256xf32, #tpu.memory_space<vmem>>, vector<32x256xf32>,
    %c8_i32 = arith.constant 8 : i32
    %9 = arith.cmpi eq, %arg2, %c8_i32 : i32
    %10 = arith.extui %9 : i1 to i32
    %c0_i32_8 = arith.constant 0 : i32
    %11 = arith.cmpi ne, %10, %c0_i32_8 : i32
    scf.if %11 {
      %c0_9 = arith.constant 0 : index
      %c0_10 = arith.constant 0 : index
      %12 = vector.load %arg7[%c0_9, %c0_10] : memref<32x256xf32, #tpu.memory_space<vmem>>, vector<32x256xf32>
      %c0_11 = arith.constant 0 : index
      %c0_12 = arith.constant 0 : index
      %13 = vector.load %arg5[%c0_11, %c0_12] : memref<1x256xf32, #tpu.memory_space<vmem>>, vector<1x256xf32>
      %14 = vector.broadcast %13 : vector<1x256xf32> to vector<32x256xf32>
      %15 = arith.addf %12, %14 : vector<32x256xf32>
      %cst_13 = arith.constant 0.000000e+00 : f32
      %16 = vector.broadcast %cst_13 : f32 to vector<32x256xf32>
      %17 = arith.cmpf ogt, %15, %16 : vector<32x256xf32>
      %cst_14 = arith.constant 2.000000e-01 : f32
      %18 = vector.broadcast %cst_14 : f32 to vector<32x256xf32>
      %19 = arith.mulf %18, %15 : vector<32x256xf32>
      %20 = arith.select %17, %15, %19 : vector<32x256xi1>, vector<32x256xf32>
      %c0_15 = arith.constant 0 : index
      %c0_16 = arith.constant 0 : index
      %21 = vector.load %arg6[%c0_15, %c0_16] : memref<32x256xf32, #tpu.memory_space<vmem>>, vector<32x256xf32>
      tpu.vector_store %arg6[%c0_15, %c0_16], %20 {strides = array<i32>} : memref<32x256xf32, #tpu.memory_space<vmem>>, vector<32x256xf32>,
    } else {
    }
    return
  }
  func.func @transform_0(%arg0: i32, %arg1: i32, %arg2: i32) -> (i32, i32) {
    %c0_i32 = arith.constant 0 : i32
    return %arg0, %arg2 : i32, i32
  }
  func.func @transform_1(%arg0: i32, %arg1: i32, %arg2: i32) -> (i32, i32) {
    %c0_i32 = arith.constant 0 : i32
    return %arg2, %arg1 : i32, i32
  }
  func.func @transform_2(%arg0: i32, %arg1: i32, %arg2: i32) -> (i32, i32) {
    %c0_i32 = arith.constant 0 : i32
    %c0_i32_0 = arith.constant 0 : i32
    return %c0_i32, %arg1 : i32, i32
  }
  func.func @transform_3(%arg0: i32, %arg1: i32, %arg2: i32) -> (i32, i32) {
    %c0_i32 = arith.constant 0 : i32
    return %arg0, %arg1 : i32, i32
  }
}

</mosaic_0001>

<llo_original>
// kernel: d_net128_forward.6
$region0: #{d_net128_forward.6}
  #allocation0 [shape = 'u32[]', space=smem, size = 0x4, offset = 0x4, fixed_abs, tag = 'smem constant byte address 0x4 - core index']
  #allocation1 [shape = 'u32[144,128]{1,0:T(1,128)}', space=vmem, size = 0x12000, scoped, tag = 'internal scratch']
  #allocation2 [shape = 'f32[256,32]{1,0:T(8,128)}', space=vmem, size = 0x20000, scoped, tag = 'scratch operand']
  %s0 = inlined_call_operand.vmem [shape: bf16[8192,48], index: 0, kind: input, shape index: {}]
  %s1 = inlined_call_operand.vmem [shape: bf16[48,32], index: 1, kind: input, shape index: {}]
  %s2 = inlined_call_operand.vmem [shape: f32[1,32], index: 2, kind: input, shape index: {}]
  %s3 = inlined_call_operand.vmem [shape: bf16[8192,32], index: 3, kind: output, shape index: {}]
  %s4 = sld [smem:[#allocation0]]
  $region53: #{d_net128_forward.6} parent=0
    _
  %s6 = ssub.s32 1, %s4
  %s7 = scalar_select 0, %s6, %s4
  loop: start=0, step=1, limit=34
  $region2: #{d_net128_forward.6} parent=0 // loop_pre_header
    _
  $region3: #{d_net128_forward.6} parent=0 // loop_header
    %s9 = sphi 0, %s13
    %p10 = scmp.ge.s32.totalorder %s9, 34
    %s16 = sphi 0, %s35
    %s17 = sphi 0, %s31
    %s18 = sphi 0, %s27
    %s19 = sphi 0, %s16
    %s20 = sphi 0, %s17
    %s21 = sphi 0, %s18
    %s22 = sphi 0, %s19
    %s23 = sphi 0, %s20
    %s24 = sphi 0, %s21
    %s40 = sphi 0, %s42
    %s43 = sphi 0, %s40
    %s44 = sphi 0, %s43
    %s60 = sphi 0, %s44
    %s68 = sphi 0, %s70
    %s71 = sphi 0, %s68
    %s72 = sphi 0, %s71
    %s88 = sphi 0, %s72
    %s94 = sphi 0, %s96
    %s97 = sphi 0, %s94
    %s98 = sphi 0, %s97
    %s114 = sphi 0, %s98
    %s122 = sphi 0, %s124
    %s125 = sphi 0, %s122
    %s126 = sphi 0, %s125
    %s142 = sphi 0, %s126
  $region4: #{d_net128_forward.6} parent=0 // loop_header_branch
    %12 = sbr.rel (%p10) target = $region8
  $region5: #{d_net128_forward.6} parent=0 // loop_body
    %s14 = ssub.s32 %s9, 1
    %s15 = ssub.s32 %s9, 2
    %s25 = sadd.s32 1, %s18
    %p26 = scmp.ge.s32.totalorder %s25, 1
    %s27 = scalar_select %p26, 0, %s25
    %s28 = sadd.s32 1, %s17
    %s29 = scalar_select %p26, %s28, %s17
    %p30 = scmp.ge.s32.totalorder %s29, 1
    %s31 = scalar_select %p30, 0, %s29
    %s32 = sadd.s32 1, %s16
    %s33 = scalar_select %p30, %s32, %s16
    %p34 = scmp.ge.s32.totalorder %s33, 32
    %s35 = scalar_select %p34, 0, %s33
    %s36 = ssub.s32 %s16, %s35
    %s37 = ssub.s32 %s18, %s27
    %s38 = sor.u32 %s36, %s37
    %p39 = scmp.eq.s32.totalorder %s38, 0
    %s41 = sadd.s32 %s40, 1
    %s42 = scalar_select %p39, %s40, %s41
    %p45 = pneg %p39
    %p46 = scmp.eq.s32.totalorder %s9, 31
    %p47 = por %p45, %p46
    %p48 = scmp.ne.s32.totalorder %s40, %s43
    %p49 = scmp.eq.s32.totalorder %s9, 0
    %p50 = por %p48, %p49
    %p51 = scmp.ne.s32.totalorder %s40, %s43
    %p52 = scmp.eq.s32.totalorder %s14, 31
    %p53 = por %p51, %p52
    %p54 = scmp.ne.s32.totalorder %s43, %s44
    %p55 = scmp.eq.s32.totalorder %s14, 0
    %p56 = por %p54, %p55
    %p57 = scmp.ne.s32.totalorder %s43, %s44
    %p58 = scmp.eq.s32.totalorder %s15, 31
    %p59 = por %p57, %p58
    %p61 = scmp.ne.s32.totalorder %s44, %s60
    %p62 = scmp.eq.s32.totalorder %s15, 0
    %p63 = por %p61, %p62
    %s64 = ssub.s32 %s18, %s27
    %s65 = ssub.s32 %s17, %s31
    %s66 = sor.u32 %s64, %s65
    %p67 = scmp.eq.s32.totalorder %s66, 0
    %s69 = sadd.s32 %s68, 1
    %s70 = scalar_select %p67, %s68, %s69
    %p73 = pneg %p67
    %p74 = scmp.eq.s32.totalorder %s9, 31
    %p75 = por %p73, %p74
    %p76 = scmp.ne.s32.totalorder %s68, %s71
    %p77 = scmp.eq.s32.totalorder %s9, 0
    %p78 = por %p76, %p77
    %p79 = scmp.ne.s32.totalorder %s68, %s71
    %p80 = scmp.eq.s32.totalorder %s14, 31
    %p81 = por %p79, %p80
    %p82 = scmp.ne.s32.totalorder %s71, %s72
    %p83 = scmp.eq.s32.totalorder %s14, 0
    %p84 = por %p82, %p83
    %p85 = scmp.ne.s32.totalorder %s71, %s72
    %p86 = scmp.eq.s32.totalorder %s15, 31
    %p87 = por %p85, %p86
    %p89 = scmp.ne.s32.totalorder %s72, %s88
    %p90 = scmp.eq.s32.totalorder %s15, 0
    %p91 = por %p89, %p90
    %s92 = ssub.s32 %s17, %s31
    %p93 = scmp.eq.s32.totalorder %s92, 0
    %s95 = sadd.s32 %s94, 1
    %s96 = scalar_select %p93, %s94, %s95
    %p99 = pneg %p93
    %p100 = scmp.eq.s32.totalorder %s9, 31
    %p101 = por %p99, %p100
    %p102 = scmp.ne.s32.totalorder %s94, %s97
    %p103 = scmp.eq.s32.totalorder %s9, 0
    %p104 = por %p102, %p103
    %p105 = scmp.ne.s32.totalorder %s94, %s97
    %p106 = scmp.eq.s32.totalorder %s14, 31
    %p107 = por %p105, %p106
    %p108 = scmp.ne.s32.totalorder %s97, %s98
    %p109 = scmp.eq.s32.totalorder %s14, 0
    %p110 = por %p108, %p109
    %p111 = scmp.ne.s32.totalorder %s97, %s98
    %p112 = scmp.eq.s32.totalorder %s15, 31
    %p113 = por %p111, %p112
    %p115 = scmp.ne.s32.totalorder %s98, %s114
    %p116 = scmp.eq.s32.totalorder %s15, 0
    %p117 = por %p115, %p116
    %s118 = ssub.s32 %s16, %s35
    %s119 = ssub.s32 %s17, %s31
    %s120 = sor.u32 %s118, %s119
    %p121 = scmp.eq.s32.totalorder %s120, 0
    %s123 = sadd.s32 %s122, 1
    %s124 = scalar_select %p121, %s122, %s123
    %p127 = pneg %p121
    %p128 = scmp.eq.s32.totalorder %s9, 31
    %p129 = por %p127, %p128
    %p130 = scmp.ne.s32.totalorder %s122, %s125
    %p131 = scmp.eq.s32.totalorder %s9, 0
    %p132 = por %p130, %p131
    %p133 = scmp.ne.s32.totalorder %s122, %s125
    %p134 = scmp.eq.s32.totalorder %s14, 31
    %p135 = por %p133, %p134
    %p136 = scmp.ne.s32.totalorder %s125, %s126
    %p137 = scmp.eq.s32.totalorder %s14, 0
    %p138 = por %p136, %p137
    %p139 = scmp.ne.s32.totalorder %s125, %s126
    %p140 = scmp.eq.s32.totalorder %s15, 31
    %p141 = por %p139, %p140
    %p143 = scmp.ne.s32.totalorder %s126, %s142
    %p144 = scmp.eq.s32.totalorder %s15, 0
    %p145 = por %p143, %p144
    %p146 = scmp.le.s32.totalorder 1, %s9
    %p147 = scmp.lt.s32.totalorder %s9, 33
    %p148 = pnand %p146, %p147
    %p149 = pneg %p148
    // Predicated region
    $region9: #{d_net128_forward.6} parent=5 // pred_check
      _
    $region10: #{d_net128_forward.6} parent=5 // pred_check_branch
      %151 = sbr.rel (%p148) target = $region12
    $region11: #{d_net128_forward.6} parent=5 // pred_region
      %s152 = ssub.s32 %s9, 1
      // Predicated region
      $region13: #{d_net128_forward.6} parent=11 // pred_check
        %p153 = pneg %p84
      $region14: #{d_net128_forward.6} parent=11 // pred_check_branch
        %155 = sbr.rel (%p153) target = $region16
      $region15: #{d_net128_forward.6} parent=11 // pred_region
        %s156 = smul.u32 6, %s21
        %p157 = scmp.lt.s32.totalorder %s156, 5
        %s158 = scalar_select %p157, %s156, 5
        %p159 = scmp.lt.s32.totalorder %s20, 0
        %s160 = scalar_select %p159, %s20, 0
        %s161 = sadd.s32 %s160, %s158
        %s162 = smul.addr %s161, 4
        %s163 = scalar_lea.vmem %s1, %s162
        %s164 = smul.u32 6, %s21
      $region16: #{d_net128_forward.6} parent=11 // pred_fallthru
        _
      // Predicated region
      $region17: #{d_net128_forward.6} parent=11 // pred_check
        %p165 = pneg %p110
      $region18: #{d_net128_forward.6} parent=11 // pred_check_branch
        %167 = sbr.rel (%p165) target = $region20
      $region19: #{d_net128_forward.6} parent=11 // pred_region
        %p168 = scmp.lt.s32.totalorder %s20, 0
        %s169 = scalar_select %p168, %s20, 0
        %s170 = scalar_lea.vmem %s2, %s169
      $region20: #{d_net128_forward.6} parent=11 // pred_fallthru
        _
    $region12: #{d_net128_forward.6} parent=5 // pred_fallthru
      _
    %p171 = scmp.lt.s32.totalorder %s9, 32
    // Predicated region
    $region21: #{d_net128_forward.6} parent=5 // pred_check
      %p172 = pneg %p171
    $region22: #{d_net128_forward.6} parent=5 // pred_check_branch
      %174 = sbr.rel (%p172) target = $region24
    $region23: #{d_net128_forward.6} parent=5 // pred_region
      // Predicated region
      $region25: #{d_net128_forward.6} parent=23 // pred_check
        %p175 = pneg %p50
      $region26: #{d_net128_forward.6} parent=23 // pred_check_branch
        %177 = sbr.rel (%p175) target = $region28
      $region27: #{d_net128_forward.6} parent=23 // pred_region
        %s178 = smul.u32 32, %s16
        %p179 = scmp.lt.s32.totalorder %s178, 1023
        %s180 = scalar_select %p179, %s178, 1023
        %p181 = scmp.lt.s32.totalorder %s18, 0
        %s182 = scalar_select %p181, %s18, 0
        %s183 = sadd.s32 %s182, %s180
        %s184 = smul.addr %s183, 4
        %s185 = scalar_lea.vmem %s0, %s184
        %s186 = smul.u32 32, %s16
      $region28: #{d_net128_forward.6} parent=23 // pred_fallthru
        _
    $region24: #{d_net128_forward.6} parent=5 // pred_fallthru
      _
    %p187 = scmp.le.s32.totalorder 1, %s9
    %p188 = scmp.lt.s32.totalorder %s9, 33
    %p189 = pnand %p187, %p188
    %p190 = pneg %p189
    // Predicated region
    $region29: #{d_net128_forward.6} parent=5 // pred_check
      _
    $region30: #{d_net128_forward.6} parent=5 // pred_check_branch
      %192 = sbr.rel (%p189) target = $region32
    $region31: #{d_net128_forward.6} parent=5 // pred_region
      %s193 = ssub.s32 %s9, 1
      %s194 = smul.u32 32, %s19
      %p195 = scmp.lt.s32.totalorder %s194, 1023
      %s196 = scalar_select %p195, %s194, 1023
      %p197 = scmp.lt.s32.totalorder %s21, 0
      %s198 = scalar_select %p197, %s21, 0
      %s199 = sadd.s32 %s198, %s196
      %s200 = smul.addr %s199, 4
      %s201 = scalar_lea.vmem %s0, %s200
      %p202 = pneg %p56
      %p203 = pneg %p53
      %s204 = smul.u32 6, %s21
      %p205 = scmp.lt.s32.totalorder %s204, 5
      %s206 = scalar_select %p205, %s204, 5
      %p207 = scmp.lt.s32.totalorder %s20, 0
      %s208 = scalar_select %p207, %s20, 0
      %s209 = sadd.s32 %s208, %s206
      %s210 = smul.addr %s209, 4
      %s211 = scalar_lea.vmem %s1, %s210
      %p212 = pneg %p84
      %p213 = pneg %p81
      %p214 = scmp.lt.s32.totalorder %s20, 0
      %s215 = scalar_select %p214, %s20, 0
      %s216 = scalar_lea.vmem %s2, %s215
      %p217 = pneg %p110
      %p218 = pneg %p107
      %p219 = pneg %p138
      %p220 = pneg %p135
      %s221 = smul.u32 32, %s19
      %p222 = scmp.lt.s32.totalorder %s221, 1023
      %s223 = scalar_select %p222, %s221, 1023
      %p224 = scmp.lt.s32.totalorder %s20, 0
      %s225 = scalar_select %p224, %s20, 0
      %s226 = sadd.s32 %s225, %s223
      %s227 = smul.addr %s226, 4
      %s228 = scalar_lea.vmem %s3, %s227
      %s229 = smul.u32 32, %s19
      %p230 = scmp.lt.s32.totalorder %s229, 1023
      %s231 = scalar_select %p230, %s229, 1023
      %p232 = scmp.lt.s32.totalorder %s21, 0
      %s233 = scalar_select %p232, %s21, 0
      %s234 = sadd.s32 %s233, %s231
      %s235 = smul.addr %s234, 4
      %s236 = scalar_lea.vmem %s0, %s235
      %s237 = smul.u32 32, %s19
      %s238 = smul.u32 6, %s21
      %p239 = scmp.lt.s32.totalorder %s238, 5
      %s240 = scalar_select %p239, %s238, 5
      %p241 = scmp.lt.s32.totalorder %s20, 0
      %s242 = scalar_select %p241, %s20, 0
      %s243 = sadd.s32 %s242, %s240
      %s244 = smul.addr %s243, 4
      %s245 = scalar_lea.vmem %s1, %s244
      %s246 = smul.u32 6, %s21
      %p247 = scmp.lt.s32.totalorder %s20, 0
      %s248 = scalar_select %p247, %s20, 0
      %s249 = scalar_lea.vmem %s2, %s248
      %s250 = smul.u32 32, %s19
      %p251 = scmp.lt.s32.totalorder %s250, 1023
      %s252 = scalar_select %p251, %s250, 1023
      %p253 = scmp.lt.s32.totalorder %s20, 0
      %s254 = scalar_select %p253, %s20, 0
      %s255 = sadd.s32 %s254, %s252
      %s256 = smul.addr %s255, 4
      %s257 = scalar_lea.vmem %s3, %s256
      %s258 = smul.u32 32, %s19
      %p260 = scmp.eq.s32.totalorder %s21, 0
      // Predicated region
      $region33: #{d_net128_forward.6} parent=31 // pred_check
        %p261 = pneg %p260
      $region34: #{d_net128_forward.6} parent=31 // pred_check_branch
        %263 = sbr.rel (%p261) target = $region36
      $region35: #{d_net128_forward.6} parent=31 // pred_region
        %vm264 = vcmask 261120
        %265 = vst.msk [vmem:[#allocation2] sm:$0xff] %vm264, 0.0
        %266 = vst.msk [vmem:[#allocation2 + $0x8] sm:$0xff] %vm264, 0.0
        %267 = vst.msk [vmem:[#allocation2 + $0x10] sm:$0xff] %vm264, 0.0
        %268 = vst.msk [vmem:[#allocation2 + $0x18] sm:$0xff] %vm264, 0.0
        %269 = vst.msk [vmem:[#allocation2 + $0x20] sm:$0xff] %vm264, 0.0
        %270 = vst.msk [vmem:[#allocation2 + $0x28] sm:$0xff] %vm264, 0.0
        %271 = vst.msk [vmem:[#allocation2 + $0x30] sm:$0xff] %vm264, 0.0
        %272 = vst.msk [vmem:[#allocation2 + $0x38] sm:$0xff] %vm264, 0.0
        %273 = vst.msk [vmem:[#allocation2 + $0x40] sm:$0xff] %vm264, 0.0
        %274 = vst.msk [vmem:[#allocation2 + $0x48] sm:$0xff] %vm264, 0.0
        %275 = vst.msk [vmem:[#allocation2 + $0x50] sm:$0xff] %vm264, 0.0
        %276 = vst.msk [vmem:[#allocation2 + $0x58] sm:$0xff] %vm264, 0.0
        %277 = vst.msk [vmem:[#allocation2 + $0x60] sm:$0xff] %vm264, 0.0
        %278 = vst.msk [vmem:[#allocation2 + $0x68] sm:$0xff] %vm264, 0.0
        %279 = vst.msk [vmem:[#allocation2 + $0x70] sm:$0xff] %vm264, 0.0
        %280 = vst.msk [vmem:[#allocation2 + $0x78] sm:$0xff] %vm264, 0.0
        %281 = vst.msk [vmem:[#allocation2 + $0x80] sm:$0xff] %vm264, 0.0
        %282 = vst.msk [vmem:[#allocation2 + $0x88] sm:$0xff] %vm264, 0.0
        %283 = vst.msk [vmem:[#allocation2 + $0x90] sm:$0xff] %vm264, 0.0
        %284 = vst.msk [vmem:[#allocation2 + $0x98] sm:$0xff] %vm264, 0.0
        %285 = vst.msk [vmem:[#allocation2 + $0xa0] sm:$0xff] %vm264, 0.0
        %286 = vst.msk [vmem:[#allocation2 + $0xa8] sm:$0xff] %vm264, 0.0
        %287 = vst.msk [vmem:[#allocation2 + $0xb0] sm:$0xff] %vm264, 0.0
        %288 = vst.msk [vmem:[#allocation2 + $0xb8] sm:$0xff] %vm264, 0.0
        %289 = vst.msk [vmem:[#allocation2 + $0xc0] sm:$0xff] %vm264, 0.0
        %290 = vst.msk [vmem:[#allocation2 + $0xc8] sm:$0xff] %vm264, 0.0
        %291 = vst.msk [vmem:[#allocation2 + $0xd0] sm:$0xff] %vm264, 0.0
        %292 = vst.msk [vmem:[#allocation2 + $0xd8] sm:$0xff] %vm264, 0.0
        %293 = vst.msk [vmem:[#allocation2 + $0xe0] sm:$0xff] %vm264, 0.0
        %294 = vst.msk [vmem:[#allocation2 + $0xe8] sm:$0xff] %vm264, 0.0
        %295 = vst.msk [vmem:[#allocation2 + $0xf0] sm:$0xff] %vm264, 0.0
        %296 = vst.msk [vmem:[#allocation2 + $0xf8] sm:$0xff] %vm264, 0.0
      $region36: #{d_net128_forward.6} parent=31 // pred_fallthru
        _
      %v297 = vld [vmem:[#allocation2] sm:$0xff]
      %v298 = vld [vmem:[#allocation2 + $0x8] sm:$0xff]
      %v299 = vld [vmem:[#allocation2 + $0x10] sm:$0xff]
      %v300 = vld [vmem:[#allocation2 + $0x18] sm:$0xff]
      %v301 = vld [vmem:[#allocation2 + $0x20] sm:$0xff]
      %v302 = vld [vmem:[#allocation2 + $0x28] sm:$0xff]
      %v303 = vld [vmem:[#allocation2 + $0x30] sm:$0xff]
      %v304 = vld [vmem:[#allocation2 + $0x38] sm:$0xff]
      %v305 = vld [vmem:[#allocation2 + $0x40] sm:$0xff]
      %v306 = vld [vmem:[#allocation2 + $0x48] sm:$0xff]
      %v307 = vld [vmem:[#allocation2 + $0x50] sm:$0xff]
      %v308 = vld [vmem:[#allocation2 + $0x58] sm:$0xff]
      %v309 = vld [vmem:[#allocation2 + $0x60] sm:$0xff]
      %v310 = vld [vmem:[#allocation2 + $0x68] sm:$0xff]
      %v311 = vld [vmem:[#allocation2 + $0x70] sm:$0xff]
      %v312 = vld [vmem:[#allocation2 + $0x78] sm:$0xff]
      %v313 = vld [vmem:[#allocation2 + $0x80] sm:$0xff]
      %v314 = vld [vmem:[#allocation2 + $0x88] sm:$0xff]
      %v315 = vld [vmem:[#allocation2 + $0x90] sm:$0xff]
      %v316 = vld [vmem:[#allocation2 + $0x98] sm:$0xff]
      %v317 = vld [vmem:[#allocation2 + $0xa0] sm:$0xff]
      %v318 = vld [vmem:[#allocation2 + $0xa8] sm:$0xff]
      %v319 = vld [vmem:[#allocation2 + $0xb0] sm:$0xff]
      %v320 = vld [vmem:[#allocation2 + $0xb8] sm:$0xff]
      %v321 = vld [vmem:[#allocation2 + $0xc0] sm:$0xff]
      %v322 = vld [vmem:[#allocation2 + $0xc8] sm:$0xff]
      %v323 = vld [vmem:[#allocation2 + $0xd0] sm:$0xff]
      %v324 = vld [vmem:[#allocation2 + $0xd8] sm:$0xff]
      %v325 = vld [vmem:[#allocation2 + $0xe0] sm:$0xff]
      %v326 = vld [vmem:[#allocation2 + $0xe8] sm:$0xff]
      %v327 = vld [vmem:[#allocation2 + $0xf0] sm:$0xff]
      %v328 = vld [vmem:[#allocation2 + $0xf8] sm:$0xff]
      %v329 = vld [vmem:[%s236] sm:$0xf]
      %v330 = vld [vmem:[%s236 + $0x4] sm:$0xf]
      %v331 = vld [vmem:[%s236 + $0x8] sm:$0xf]
      %v332 = vld [vmem:[%s236 + $0xc] sm:$0xf]
      %v333 = vld [vmem:[%s236 + $0x10] sm:$0xf]
      %v334 = vld [vmem:[%s236 + $0x14] sm:$0xf]
      %v335 = vld [vmem:[%s236 + $0x18] sm:$0xf]
      %v336 = vld [vmem:[%s236 + $0x1c] sm:$0xf]
      %v337 = vld [vmem:[%s236 + $0x20] sm:$0xf]
      %v338 = vld [vmem:[%s236 + $0x24] sm:$0xf]
      %v339 = vld [vmem:[%s236 + $0x28] sm:$0xf]
      %v340 = vld [vmem:[%s236 + $0x2c] sm:$0xf]
      %v341 = vld [vmem:[%s236 + $0x30] sm:$0xf]
      %v342 = vld [vmem:[%s236 + $0x34] sm:$0xf]
      %v343 = vld [vmem:[%s236 + $0x38] sm:$0xf]
      %v344 = vld [vmem:[%s236 + $0x3c] sm:$0xf]
      %v345 = vld [vmem:[%s236 + $0x40] sm:$0xf]
      %v346 = vld [vmem:[%s236 + $0x44] sm:$0xf]
      %v347 = vld [vmem:[%s236 + $0x48] sm:$0xf]
      %v348 = vld [vmem:[%s236 + $0x4c] sm:$0xf]
      %v349 = vld [vmem:[%s236 + $0x50] sm:$0xf]
      %v350 = vld [vmem:[%s236 + $0x54] sm:$0xf]
      %v351 = vld [vmem:[%s236 + $0x58] sm:$0xf]
      %v352 = vld [vmem:[%s236 + $0x5c] sm:$0xf]
      %v353 = vld [vmem:[%s236 + $0x60] sm:$0xf]
      %v354 = vld [vmem:[%s236 + $0x64] sm:$0xf]
      %v355 = vld [vmem:[%s236 + $0x68] sm:$0xf]
      %v356 = vld [vmem:[%s236 + $0x6c] sm:$0xf]
      %v357 = vld [vmem:[%s236 + $0x70] sm:$0xf]
      %v358 = vld [vmem:[%s236 + $0x74] sm:$0xf]
      %v359 = vld [vmem:[%s236 + $0x78] sm:$0xf]
      %v360 = vld [vmem:[%s236 + $0x7c] sm:$0xf]
      %v361 = vld [vmem:[%s245] sm:$0xf]
      %v362 = vld [vmem:[%s245 + $0x4] sm:$0xf]
      %v363 = vld [vmem:[%s245 + $0x8] sm:$0xf]
      %v364 = vld [vmem:[%s245 + $0xc] sm:$0xf]
      %v365 = vld [vmem:[%s245 + $0x10] sm:$0xf]
      %v366 = vld [vmem:[%s245 + $0x14] sm:$0xf]
      %v399 = vunpack.c.l.b16 %v329
      %v400 = vunpack.c.l.b16 %v330
      %v401 = vunpack.c.l.b16 %v331
      %v402 = vunpack.c.l.b16 %v332
      %v403 = vunpack.c.l.b16 %v333
      %v404 = vunpack.c.l.b16 %v334
      %v405 = vunpack.c.l.b16 %v335
      %v406 = vunpack.c.l.b16 %v336
      %v407 = vunpack.c.l.b16 %v337
      %v408 = vunpack.c.l.b16 %v338
      %v409 = vunpack.c.l.b16 %v339
      %v410 = vunpack.c.l.b16 %v340
      %v411 = vunpack.c.l.b16 %v341
      %v412 = vunpack.c.l.b16 %v342
      %v413 = vunpack.c.l.b16 %v343
      %v414 = vunpack.c.l.b16 %v344
      %v415 = vunpack.c.l.b16 %v345
      %v416 = vunpack.c.l.b16 %v346
      %v417 = vunpack.c.l.b16 %v347
      %v418 = vunpack.c.l.b16 %v348
      %v419 = vunpack.c.l.b16 %v349
      %v420 = vunpack.c.l.b16 %v350
      %v421 = vunpack.c.l.b16 %v351
      %v422 = vunpack.c.l.b16 %v352
      %v423 = vunpack.c.l.b16 %v353
      %v424 = vunpack.c.l.b16 %v354
      %v425 = vunpack.c.l.b16 %v355
      %v426 = vunpack.c.l.b16 %v356
      %v427 = vunpack.c.l.b16 %v357
      %v428 = vunpack.c.l.b16 %v358
      %v429 = vunpack.c.l.b16 %v359
      %v430 = vunpack.c.l.b16 %v360
      %v431 = vpack.c.b16 %v400, %v399
      %v432 = vpack.c.b16 %v402, %v401
      %v433 = vpack.c.b16 %v404, %v403
      %v434 = vpack.c.b16 %v406, %v405
      %v435 = vpack.c.b16 %v408, %v407
      %v436 = vpack.c.b16 %v410, %v409
      %v437 = vpack.c.b16 %v412, %v411
      %v438 = vpack.c.b16 %v414, %v413
      %v439 = vpack.c.b16 %v416, %v415
      %v440 = vpack.c.b16 %v418, %v417
      %v441 = vpack.c.b16 %v420, %v419
      %v442 = vpack.c.b16 %v422, %v421
      %v443 = vpack.c.b16 %v424, %v423
      %v444 = vpack.c.b16 %v426, %v425
      %v445 = vpack.c.b16 %v428, %v427
      %v446 = vpack.c.b16 %v430, %v429
      %v453 = vunpack.c.l.b16 %v361
      %v454 = vunpack.c.l.b16 %v362
      %v455 = vunpack.c.l.b16 %v363
      %v456 = vunpack.c.l.b16 %v364
      %v457 = vunpack.c.l.b16 %v365
      %v458 = vunpack.c.l.b16 %v366
      %v459 = vpack.c.b16 %v454, %v453
      %v460 = vpack.c.b16 %v456, %v455
      %v461 = vpack.c.b16 %v458, %v457
      %vm465 = vcmask 392192
      %v467 = vsel %vm465, %v431, 0
      %v470 = vsel %vm465, %v432, 0
      %v473 = vsel %vm465, %v433, 0
      %v476 = vsel %vm465, %v434, 0
      %v479 = vsel %vm465, %v435, 0
      %v482 = vsel %vm465, %v436, 0
      %v485 = vsel %vm465, %v437, 0
      %v488 = vsel %vm465, %v438, 0
      %v491 = vsel %vm465, %v439, 0
      %v494 = vsel %vm465, %v440, 0
      %v497 = vsel %vm465, %v441, 0
      %v500 = vsel %vm465, %v442, 0
      %v503 = vsel %vm465, %v443, 0
      %v506 = vsel %vm465, %v444, 0
      %v509 = vsel %vm465, %v445, 0
      %v512 = vsel %vm465, %v446, 0
      %514 = vmatprep.subr.bf16.mxu0 0
      %515 = vmatpush1.bf16.msra.mxu0 %v459
      %516 = vmatprep.subr.bf16.mxu0 0
      %517 = vmatpush1.bf16.msra.mxu0 %v460
      %518 = vmatprep.subr.bf16.mxu0 0
      %519 = vmatpush1.bf16.msra.mxu0 %v461
      %520 = vmatprep.subr.bf16.mxu0 0
      %521 = vmatpush1.bf16.msra.mxu0 0
      %522 = vmatprep.subr.bf16.mxu0 0
      %523 = vmatpush1.bf16.msra.mxu0 0
      %524 = vmatprep.subr.bf16.mxu0 0
      %525 = vmatpush1.bf16.msra.mxu0 0
      %526 = vmatprep.subr.bf16.mxu0 0
      %527 = vmatpush1.bf16.msra.mxu0 0
      %528 = vmatprep.subr.bf16.mxu0 0
      %529 = vmatpush1.bf16.msra.mxu0 0
      %530 = vmatprep.subr.bf16.mxu0 0
      %531 = vmatpush1.bf16.msra.mxu0 0
      %532 = vmatprep.subr.bf16.mxu0 0
      %533 = vmatpush1.bf16.msra.mxu0 0
      %534 = vmatprep.subr.bf16.mxu0 0
      %535 = vmatpush1.bf16.msra.mxu0 0
      %536 = vmatprep.subr.bf16.mxu0 0
      %537 = vmatpush1.bf16.msra.mxu0 0
      %538 = vmatprep.subr.bf16.mxu0 0
      %539 = vmatpush1.bf16.msra.mxu0 0
      %540 = vmatprep.subr.bf16.mxu0 0
      %541 = vmatpush1.bf16.msra.mxu0 0
      %542 = vmatprep.subr.bf16.mxu0 0
      %543 = vmatpush1.bf16.msra.mxu0 0
      %544 = vmatprep.subr.bf16.mxu0 0
      %545 = vmatpush1.bf16.msra.mxu0 0
      %546 = vmatprep.mubr.bf16.mxu0 0
      %547 = vmatmul.mubr.bf16.gmra.mrb[0].mxu0 %v467
      %v548 = vpop.f32.mrb[0].mxu0
      %v549 = vadd.f32 0.0, %v548
      %v550 = vpop.f32.mrb[0].mxu0
      %v551 = vpop.f32.mrb[0].mxu0
      %v552 = vadd.f32 0.0, %v551
      %v553 = vpop.f32.mrb[0].mxu0
      %554 = vmatprep.mubr.bf16.mxu0 0
      %555 = vmatmul.mubr.bf16.gmra.mrb[0].mxu0 %v470
      %v556 = vpop.f32.mrb[0].mxu0
      %v557 = vadd.f32 0.0, %v556
      %v558 = vpop.f32.mrb[0].mxu0
      %v559 = vpop.f32.mrb[0].mxu0
      %v560 = vadd.f32 0.0, %v559
      %v561 = vpop.f32.mrb[0].mxu0
      %562 = vmatprep.mubr.bf16.mxu0 0
      %563 = vmatmul.mubr.bf16.gmra.mrb[0].mxu0 %v473
      %v564 = vpop.f32.mrb[0].mxu0
      %v565 = vadd.f32 0.0, %v564
      %v566 = vpop.f32.mrb[0].mxu0
      %v567 = vpop.f32.mrb[0].mxu0
      %v568 = vadd.f32 0.0, %v567
      %v569 = vpop.f32.mrb[0].mxu0
      %570 = vmatprep.mubr.bf16.mxu0 0
      %571 = vmatmul.mubr.bf16.gmra.mrb[0].mxu0 %v476
      %v572 = vpop.f32.mrb[0].mxu0
      %v573 = vadd.f32 0.0, %v572
      %v574 = vpop.f32.mrb[0].mxu0
      %v575 = vpop.f32.mrb[0].mxu0
      %v576 = vadd.f32 0.0, %v575
      %v577 = vpop.f32.mrb[0].mxu0
      %578 = vmatprep.mubr.bf16.mxu0 0
      %579 = vmatmul.mubr.bf16.gmra.mrb[0].mxu0 %v479
      %v580 = vpop.f32.mrb[0].mxu0
      %v581 = vadd.f32 0.0, %v580
      %v582 = vpop.f32.mrb[0].mxu0
      %v583 = vpop.f32.mrb[0].mxu0
      %v584 = vadd.f32 0.0, %v583
      %v585 = vpop.f32.mrb[0].mxu0
      %586 = vmatprep.mubr.bf16.mxu0 0
      %587 = vmatmul.mubr.bf16.gmra.mrb[0].mxu0 %v482
      %v588 = vpop.f32.mrb[0].mxu0
      %v589 = vadd.f32 0.0, %v588
      %v590 = vpop.f32.mrb[0].mxu0
      %v591 = vpop.f32.mrb[0].mxu0
      %v592 = vadd.f32 0.0, %v591
      %v593 = vpop.f32.mrb[0].mxu0
      %594 = vmatprep.mubr.bf16.mxu0 0
      %595 = vmatmul.mubr.bf16.gmra.mrb[0].mxu0 %v485
      %v596 = vpop.f32.mrb[0].mxu0
      %v597 = vadd.f32 0.0, %v596
      %v598 = vpop.f32.mrb[0].mxu0
      %v599 = vpop.f32.mrb[0].mxu0
      %v600 = vadd.f32 0.0, %v599
      %v601 = vpop.f32.mrb[0].mxu0
      %602 = vmatprep.mubr.bf16.mxu0 0
      %603 = vmatmul.mubr.bf16.gmra.mrb[0].mxu0 %v488
      %v604 = vpop.f32.mrb[0].mxu0
      %v605 = vadd.f32 0.0, %v604
      %v606 = vpop.f32.mrb[0].mxu0
      %v607 = vpop.f32.mrb[0].mxu0
      %v608 = vadd.f32 0.0, %v607
      %v609 = vpop.f32.mrb[0].mxu0
      %610 = vmatprep.mubr.bf16.mxu0 0
      %611 = vmatmul.mubr.bf16.gmra.mrb[0].mxu0 %v491
      %v612 = vpop.f32.mrb[0].mxu0
      %v613 = vadd.f32 0.0, %v612
      %v614 = vpop.f32.mrb[0].mxu0
      %v615 = vpop.f32.mrb[0].mxu0
      %v616 = vadd.f32 0.0, %v615
      %v617 = vpop.f32.mrb[0].mxu0
      %618 = vmatprep.mubr.bf16.mxu0 0
      %619 = vmatmul.mubr.bf16.gmra.mrb[0].mxu0 %v494
      %v620 = vpop.f32.mrb[0].mxu0
      %v621 = vadd.f32 0.0, %v620
      %v622 = vpop.f32.mrb[0].mxu0
      %v623 = vpop.f32.mrb[0].mxu0
      %v624 = vadd.f32 0.0, %v623
      %v625 = vpop.f32.mrb[0].mxu0
      %626 = vmatprep.mubr.bf16.mxu0 0
      %627 = vmatmul.mubr.bf16.gmra.mrb[0].mxu0 %v497
      %v628 = vpop.f32.mrb[0].mxu0
      %v629 = vadd.f32 0.0, %v628
      %v630 = vpop.f32.mrb[0].mxu0
      %v631 = vpop.f32.mrb[0].mxu0
      %v632 = vadd.f32 0.0, %v631
      %v633 = vpop.f32.mrb[0].mxu0
      %634 = vmatprep.mubr.bf16.mxu0 0
      %635 = vmatmul.mubr.bf16.gmra.mrb[0].mxu0 %v500
      %v636 = vpop.f32.mrb[0].mxu0
      %v637 = vadd.f32 0.0, %v636
      %v638 = vpop.f32.mrb[0].mxu0
      %v639 = vpop.f32.mrb[0].mxu0
      %v640 = vadd.f32 0.0, %v639
      %v641 = vpop.f32.mrb[0].mxu0
      %642 = vmatprep.mubr.bf16.mxu0 0
      %643 = vmatmul.mubr.bf16.gmra.mrb[0].mxu0 %v503
      %v644 = vpop.f32.mrb[0].mxu0
      %v645 = vadd.f32 0.0, %v644
      %v646 = vpop.f32.mrb[0].mxu0
      %v647 = vpop.f32.mrb[0].mxu0
      %v648 = vadd.f32 0.0, %v647
      %v649 = vpop.f32.mrb[0].mxu0
      %650 = vmatprep.mubr.bf16.mxu0 0
      %651 = vmatmul.mubr.bf16.gmra.mrb[0].mxu0 %v506
      %v652 = vpop.f32.mrb[0].mxu0
      %v653 = vadd.f32 0.0, %v652
      %v654 = vpop.f32.mrb[0].mxu0
      %v655 = vpop.f32.mrb[0].mxu0
      %v656 = vadd.f32 0.0, %v655
      %v657 = vpop.f32.mrb[0].mxu0
      %658 = vmatprep.mubr.bf16.mxu0 0
      %659 = vmatmul.mubr.bf16.gmra.mrb[0].mxu0 %v509
      %v660 = vpop.f32.mrb[0].mxu0
      %v661 = vadd.f32 0.0, %v660
      %v662 = vpop.f32.mrb[0].mxu0
      %v663 = vpop.f32.mrb[0].mxu0
      %v664 = vadd.f32 0.0, %v663
      %v665 = vpop.f32.mrb[0].mxu0
      %666 = vmatprep.mubr.bf16.mxu0 0
      %667 = vmatmul.mubr.bf16.gmra.mrb[0].mxu0 %v512
      %v668 = vpop.f32.mrb[0].mxu0
      %v669 = vadd.f32 0.0, %v668
      %v670 = vpop.f32.mrb[0].mxu0
      %v671 = vpop.f32.mrb[0].mxu0
      %v672 = vadd.f32 0.0, %v671
      %v673 = vpop.f32.mrb[0].mxu0
      %674 = vdwg.mxu0
      %v675 = vadd.f32 %v297, %v549
      %v676 = vadd.f32 %v298, %v552
      %v677 = vadd.f32 %v299, %v557
      %v678 = vadd.f32 %v300, %v560
      %v679 = vadd.f32 %v301, %v565
      %v680 = vadd.f32 %v302, %v568
      %v681 = vadd.f32 %v303, %v573
      %v682 = vadd.f32 %v304, %v576
      %v683 = vadd.f32 %v305, %v581
      %v684 = vadd.f32 %v306, %v584
      %v685 = vadd.f32 %v307, %v589
      %v686 = vadd.f32 %v308, %v592
      %v687 = vadd.f32 %v309, %v597
      %v688 = vadd.f32 %v310, %v600
      %v689 = vadd.f32 %v311, %v605
      %v690 = vadd.f32 %v312, %v608
      %v691 = vadd.f32 %v313, %v613
      %v692 = vadd.f32 %v314, %v616
      %v693 = vadd.f32 %v315, %v621
      %v694 = vadd.f32 %v316, %v624
      %v695 = vadd.f32 %v317, %v629
      %v696 = vadd.f32 %v318, %v632
      %v697 = vadd.f32 %v319, %v637
      %v698 = vadd.f32 %v320, %v640
      %v699 = vadd.f32 %v321, %v645
      %v700 = vadd.f32 %v322, %v648
      %v701 = vadd.f32 %v323, %v653
      %v702 = vadd.f32 %v324, %v656
      %v703 = vadd.f32 %v325, %v661
      %v704 = vadd.f32 %v326, %v664
      %v705 = vadd.f32 %v327, %v669
      %v706 = vadd.f32 %v328, %v672
      %vm707 = vcmask 261120
      %708 = vst.msk [vmem:[#allocation2] sm:$0xff] %vm707, %v675
      %709 = vst.msk [vmem:[#allocation2 + $0x8] sm:$0xff] %vm707, %v676
      %710 = vst.msk [vmem:[#allocation2 + $0x10] sm:$0xff] %vm707, %v677
      %711 = vst.msk [vmem:[#allocation2 + $0x18] sm:$0xff] %vm707, %v678
      %712 = vst.msk [vmem:[#allocation2 + $0x20] sm:$0xff] %vm707, %v679
      %713 = vst.msk [vmem:[#allocation2 + $0x28] sm:$0xff] %vm707, %v680
      %714 = vst.msk [vmem:[#allocation2 + $0x30] sm:$0xff] %vm707, %v681
      %715 = vst.msk [vmem:[#allocation2 + $0x38] sm:$0xff] %vm707, %v682
      %716 = vst.msk [vmem:[#allocation2 + $0x40] sm:$0xff] %vm707, %v683
      %717 = vst.msk [vmem:[#allocation2 + $0x48] sm:$0xff] %vm707, %v684
      %718 = vst.msk [vmem:[#allocation2 + $0x50] sm:$0xff] %vm707, %v685
      %719 = vst.msk [vmem:[#allocation2 + $0x58] sm:$0xff] %vm707, %v686
      %720 = vst.msk [vmem:[#allocation2 + $0x60] sm:$0xff] %vm707, %v687
      %721 = vst.msk [vmem:[#allocation2 + $0x68] sm:$0xff] %vm707, %v688
      %722 = vst.msk [vmem:[#allocation2 + $0x70] sm:$0xff] %vm707, %v689
      %723 = vst.msk [vmem:[#allocation2 + $0x78] sm:$0xff] %vm707, %v690
      %724 = vst.msk [vmem:[#allocation2 + $0x80] sm:$0xff] %vm707, %v691
      %725 = vst.msk [vmem:[#allocation2 + $0x88] sm:$0xff] %vm707, %v692
      %726 = vst.msk [vmem:[#allocation2 + $0x90] sm:$0xff] %vm707, %v693
      %727 = vst.msk [vmem:[#allocation2 + $0x98] sm:$0xff] %vm707, %v694
      %728 = vst.msk [vmem:[#allocation2 + $0xa0] sm:$0xff] %vm707, %v695
      %729 = vst.msk [vmem:[#allocation2 + $0xa8] sm:$0xff] %vm707, %v696
      %730 = vst.msk [vmem:[#allocation2 + $0xb0] sm:$0xff] %vm707, %v697
      %731 = vst.msk [vmem:[#allocation2 + $0xb8] sm:$0xff] %vm707, %v698
      %732 = vst.msk [vmem:[#allocation2 + $0xc0] sm:$0xff] %vm707, %v699
      %733 = vst.msk [vmem:[#allocation2 + $0xc8] sm:$0xff] %vm707, %v700
      %734 = vst.msk [vmem:[#allocation2 + $0xd0] sm:$0xff] %vm707, %v701
      %735 = vst.msk [vmem:[#allocation2 + $0xd8] sm:$0xff] %vm707, %v702
      %736 = vst.msk [vmem:[#allocation2 + $0xe0] sm:$0xff] %vm707, %v703
      %737 = vst.msk [vmem:[#allocation2 + $0xe8] sm:$0xff] %vm707, %v704
      %738 = vst.msk [vmem:[#allocation2 + $0xf0] sm:$0xff] %vm707, %v705
      %739 = vst.msk [vmem:[#allocation2 + $0xf8] sm:$0xff] %vm707, %v706
      // Predicated region
      $region37: #{d_net128_forward.6} parent=31 // pred_check
        %p740 = pneg %p260
      $region38: #{d_net128_forward.6} parent=31 // pred_check_branch
        %742 = sbr.rel (%p740) target = $region40
      $region39: #{d_net128_forward.6} parent=31 // pred_region
        %v743 = vld [vmem:[#allocation2] sm:$0xff]
        %v744 = vld [vmem:[#allocation2 + $0x8] sm:$0xff]
        %v745 = vld [vmem:[#allocation2 + $0x10] sm:$0xff]
        %v746 = vld [vmem:[#allocation2 + $0x18] sm:$0xff]
        %v747 = vld [vmem:[#allocation2 + $0x20] sm:$0xff]
        %v748 = vld [vmem:[#allocation2 + $0x28] sm:$0xff]
        %v749 = vld [vmem:[#allocation2 + $0x30] sm:$0xff]
        %v750 = vld [vmem:[#allocation2 + $0x38] sm:$0xff]
        %v751 = vld [vmem:[#allocation2 + $0x40] sm:$0xff]
        %v752 = vld [vmem:[#allocation2 + $0x48] sm:$0xff]
        %v753 = vld [vmem:[#allocation2 + $0x50] sm:$0xff]
        %v754 = vld [vmem:[#allocation2 + $0x58] sm:$0xff]
        %v755 = vld [vmem:[#allocation2 + $0x60] sm:$0xff]
        %v756 = vld [vmem:[#allocation2 + $0x68] sm:$0xff]
        %v757 = vld [vmem:[#allocation2 + $0x70] sm:$0xff]
        %v758 = vld [vmem:[#allocation2 + $0x78] sm:$0xff]
        %v759 = vld [vmem:[#allocation2 + $0x80] sm:$0xff]
        %v760 = vld [vmem:[#allocation2 + $0x88] sm:$0xff]
        %v761 = vld [vmem:[#allocation2 + $0x90] sm:$0xff]
        %v762 = vld [vmem:[#allocation2 + $0x98] sm:$0xff]
        %v763 = vld [vmem:[#allocation2 + $0xa0] sm:$0xff]
        %v764 = vld [vmem:[#allocation2 + $0xa8] sm:$0xff]
        %v765 = vld [vmem:[#allocation2 + $0xb0] sm:$0xff]
        %v766 = vld [vmem:[#allocation2 + $0xb8] sm:$0xff]
        %v767 = vld [vmem:[#allocation2 + $0xc0] sm:$0xff]
        %v768 = vld [vmem:[#allocation2 + $0xc8] sm:$0xff]
        %v769 = vld [vmem:[#allocation2 + $0xd0] sm:$0xff]
        %v770 = vld [vmem:[#allocation2 + $0xd8] sm:$0xff]
        %v771 = vld [vmem:[#allocation2 + $0xe0] sm:$0xff]
        %v772 = vld [vmem:[#allocation2 + $0xe8] sm:$0xff]
        %v773 = vld [vmem:[#allocation2 + $0xf0] sm:$0xff]
        %v774 = vld [vmem:[#allocation2 + $0xf8] sm:$0xff]
        %v775 = vld [vmem:[%s249] sm:$0x1]
        %v777 = vlaneseq
        %v778 = vshrl.u32 %v777, 7
        %v779 = vsub.s32 0, %v778
        %v780 = vrot.slane %v775, %v779
        %v782 = vadd.f32 %v743, %v780
        %v783 = vadd.f32 %v744, %v780
        %v784 = vadd.f32 %v745, %v780
        %v785 = vadd.f32 %v746, %v780
        %v786 = vadd.f32 %v747, %v780
        %v787 = vadd.f32 %v748, %v780
        %v788 = vadd.f32 %v749, %v780
        %v789 = vadd.f32 %v750, %v780
        %v790 = vadd.f32 %v751, %v780
        %v791 = vadd.f32 %v752, %v780
        %v792 = vadd.f32 %v753, %v780
        %v793 = vadd.f32 %v754, %v780
        %v794 = vadd.f32 %v755, %v780
        %v795 = vadd.f32 %v756, %v780
        %v796 = vadd.f32 %v757, %v780
        %v797 = vadd.f32 %v758, %v780
        %v798 = vadd.f32 %v759, %v780
        %v799 = vadd.f32 %v760, %v780
        %v800 = vadd.f32 %v761, %v780
        %v801 = vadd.f32 %v762, %v780
        %v802 = vadd.f32 %v763, %v780
        %v803 = vadd.f32 %v764, %v780
        %v804 = vadd.f32 %v765, %v780
        %v805 = vadd.f32 %v766, %v780
        %v806 = vadd.f32 %v767, %v780
        %v807 = vadd.f32 %v768, %v780
        %v808 = vadd.f32 %v769, %v780
        %v809 = vadd.f32 %v770, %v780
        %v810 = vadd.f32 %v771, %v780
        %v811 = vadd.f32 %v772, %v780
        %v812 = vadd.f32 %v773, %v780
        %v813 = vadd.f32 %v774, %v780
        %vm814 = vcmp.gt.f32.partialorder %v782, 0.0
        %vm815 = vcmp.gt.f32.partialorder %v783, 0.0
        %vm816 = vcmp.gt.f32.partialorder %v784, 0.0
        %vm817 = vcmp.gt.f32.partialorder %v785, 0.0
        %vm818 = vcmp.gt.f32.partialorder %v786, 0.0
        %vm819 = vcmp.gt.f32.partialorder %v787, 0.0
        %vm820 = vcmp.gt.f32.partialorder %v788, 0.0
        %vm821 = vcmp.gt.f32.partialorder %v789, 0.0
        %vm822 = vcmp.gt.f32.partialorder %v790, 0.0
        %vm823 = vcmp.gt.f32.partialorder %v791, 0.0
        %vm824 = vcmp.gt.f32.partialorder %v792, 0.0
        %vm825 = vcmp.gt.f32.partialorder %v793, 0.0
        %vm826 = vcmp.gt.f32.partialorder %v794, 0.0
        %vm827 = vcmp.gt.f32.partialorder %v795, 0.0
        %vm828 = vcmp.gt.f32.partialorder %v796, 0.0
        %vm829 = vcmp.gt.f32.partialorder %v797, 0.0
        %vm830 = vcmp.gt.f32.partialorder %v798, 0.0
        %vm831 = vcmp.gt.f32.partialorder %v799, 0.0
        %vm832 = vcmp.gt.f32.partialorder %v800, 0.0
        %vm833 = vcmp.gt.f32.partialorder %v801, 0.0
        %vm834 = vcmp.gt.f32.partialorder %v802, 0.0
        %vm835 = vcmp.gt.f32.partialorder %v803, 0.0
        %vm836 = vcmp.gt.f32.partialorder %v804, 0.0
        %vm837 = vcmp.gt.f32.partialorder %v805, 0.0
        %vm838 = vcmp.gt.f32.partialorder %v806, 0.0
        %vm839 = vcmp.gt.f32.partialorder %v807, 0.0
        %vm840 = vcmp.gt.f32.partialorder %v808, 0.0
        %vm841 = vcmp.gt.f32.partialorder %v809, 0.0
        %vm842 = vcmp.gt.f32.partialorder %v810, 0.0
        %vm843 = vcmp.gt.f32.partialorder %v811, 0.0
        %vm844 = vcmp.gt.f32.partialorder %v812, 0.0
        %vm845 = vcmp.gt.f32.partialorder %v813, 0.0
        %v846 = vmul.f32 %v782, 0.2
        %v847 = vmul.f32 %v783, 0.2
        %v848 = vmul.f32 %v784, 0.2
        %v849 = vmul.f32 %v785, 0.2
        %v850 = vmul.f32 %v786, 0.2
        %v851 = vmul.f32 %v787, 0.2
        %v852 = vmul.f32 %v788, 0.2
        %v853 = vmul.f32 %v789, 0.2
        %v854 = vmul.f32 %v790, 0.2
        %v855 = vmul.f32 %v791, 0.2
        %v856 = vmul.f32 %v792, 0.2
        %v857 = vmul.f32 %v793, 0.2
        %v858 = vmul.f32 %v794, 0.2
        %v859 = vmul.f32 %v795, 0.2
        %v860 = vmul.f32 %v796, 0.2
        %v861 = vmul.f32 %v797, 0.2
        %v862 = vmul.f32 %v798, 0.2
        %v863 = vmul.f32 %v799, 0.2
        %v864 = vmul.f32 %v800, 0.2
        %v865 = vmul.f32 %v801, 0.2
        %v866 = vmul.f32 %v802, 0.2
        %v867 = vmul.f32 %v803, 0.2
        %v868 = vmul.f32 %v804, 0.2
        %v869 = vmul.f32 %v805, 0.2
        %v870 = vmul.f32 %v806, 0.2
        %v871 = vmul.f32 %v807, 0.2
        %v872 = vmul.f32 %v808, 0.2
        %v873 = vmul.f32 %v809, 0.2
        %v874 = vmul.f32 %v810, 0.2
        %v875 = vmul.f32 %v811, 0.2
        %v876 = vmul.f32 %v812, 0.2
        %v877 = vmul.f32 %v813, 0.2
        %v878 = vsel %vm814, %v782, %v846
        %v879 = vsel %vm815, %v783, %v847
        %v880 = vsel %vm816, %v784, %v848
        %v881 = vsel %vm817, %v785, %v849
        %v882 = vsel %vm818, %v786, %v850
        %v883 = vsel %vm819, %v787, %v851
        %v884 = vsel %vm820, %v788, %v852
        %v885 = vsel %vm821, %v789, %v853
        %v886 = vsel %vm822, %v790, %v854
        %v887 = vsel %vm823, %v791, %v855
        %v888 = vsel %vm824, %v792, %v856
        %v889 = vsel %vm825, %v793, %v857
        %v890 = vsel %vm826, %v794, %v858
        %v891 = vsel %vm827, %v795, %v859
        %v892 = vsel %vm828, %v796, %v860
        %v893 = vsel %vm829, %v797, %v861
        %v894 = vsel %vm830, %v798, %v862
        %v895 = vsel %vm831, %v799, %v863
        %v896 = vsel %vm832, %v800, %v864
        %v897 = vsel %vm833, %v801, %v865
        %v898 = vsel %vm834, %v802, %v866
        %v899 = vsel %vm835, %v803, %v867
        %v900 = vsel %vm836, %v804, %v868
        %v901 = vsel %vm837, %v805, %v869
        %v902 = vsel %vm838, %v806, %v870
        %v903 = vsel %vm839, %v807, %v871
        %v904 = vsel %vm840, %v808, %v872
        %v905 = vsel %vm841, %v809, %v873
        %v906 = vsel %vm842, %v810, %v874
        %v907 = vsel %vm843, %v811, %v875
        %v908 = vsel %vm844, %v812, %v876
        %v909 = vsel %vm845, %v813, %v877
        %v910 = vpack.c.bf16 %v879, %v878
        %v911 = vpack.c.bf16 %v881, %v880
        %v912 = vpack.c.bf16 %v883, %v882
        %v913 = vpack.c.bf16 %v885, %v884
        %v914 = vpack.c.bf16 %v887, %v886
        %v915 = vpack.c.bf16 %v889, %v888
        %v916 = vpack.c.bf16 %v891, %v890
        %v917 = vpack.c.bf16 %v893, %v892
        %v918 = vpack.c.bf16 %v895, %v894
        %v919 = vpack.c.bf16 %v897, %v896
        %v920 = vpack.c.bf16 %v899, %v898
        %v921 = vpack.c.bf16 %v901, %v900
        %v922 = vpack.c.bf16 %v903, %v902
        %v923 = vpack.c.bf16 %v905, %v904
        %v924 = vpack.c.bf16 %v907, %v906
        %v925 = vpack.c.bf16 %v909, %v908
        %v942 = vunpack.c.l.b16 %v910
        %v943 = vunpack.c.h.b16 %v910
        %v944 = vunpack.c.l.b16 %v911
        %v945 = vunpack.c.h.b16 %v911
        %v946 = vunpack.c.l.b16 %v912
        %v947 = vunpack.c.h.b16 %v912
        %v948 = vunpack.c.l.b16 %v913
        %v949 = vunpack.c.h.b16 %v913
        %v950 = vunpack.c.l.b16 %v914
        %v951 = vunpack.c.h.b16 %v914
        %v952 = vunpack.c.l.b16 %v915
        %v953 = vunpack.c.h.b16 %v915
        %v954 = vunpack.c.l.b16 %v916
        %v955 = vunpack.c.h.b16 %v916
        %v956 = vunpack.c.l.b16 %v917
        %v957 = vunpack.c.h.b16 %v917
        %v958 = vunpack.c.l.b16 %v918
        %v959 = vunpack.c.h.b16 %v918
        %v960 = vunpack.c.l.b16 %v919
        %v961 = vunpack.c.h.b16 %v919
        %v962 = vunpack.c.l.b16 %v920
        %v963 = vunpack.c.h.b16 %v920
        %v964 = vunpack.c.l.b16 %v921
        %v965 = vunpack.c.h.b16 %v921
        %v966 = vunpack.c.l.b16 %v922
        %v967 = vunpack.c.h.b16 %v922
        %v968 = vunpack.c.l.b16 %v923
        %v969 = vunpack.c.h.b16 %v923
        %v970 = vunpack.c.l.b16 %v924
        %v971 = vunpack.c.h.b16 %v924
        %v972 = vunpack.c.l.b16 %v925
        %v973 = vunpack.c.h.b16 %v925
        %v974 = vpack.c.b16 %v942, %v942
        %v975 = vpack.c.b16 %v943, %v943
        %v976 = vpack.c.b16 %v944, %v944
        %v977 = vpack.c.b16 %v945, %v945
        %v978 = vpack.c.b16 %v946, %v946
        %v979 = vpack.c.b16 %v947, %v947
        %v980 = vpack.c.b16 %v948, %v948
        %v981 = vpack.c.b16 %v949, %v949
        %v982 = vpack.c.b16 %v950, %v950
        %v983 = vpack.c.b16 %v951, %v951
        %v984 = vpack.c.b16 %v952, %v952
        %v985 = vpack.c.b16 %v953, %v953
        %v986 = vpack.c.b16 %v954, %v954
        %v987 = vpack.c.b16 %v955, %v955
        %v988 = vpack.c.b16 %v956, %v956
        %v989 = vpack.c.b16 %v957, %v957
        %v990 = vpack.c.b16 %v958, %v958
        %v991 = vpack.c.b16 %v959, %v959
        %v992 = vpack.c.b16 %v960, %v960
        %v993 = vpack.c.b16 %v961, %v961
        %v994 = vpack.c.b16 %v962, %v962
        %v995 = vpack.c.b16 %v963, %v963
        %v996 = vpack.c.b16 %v964, %v964
        %v997 = vpack.c.b16 %v965, %v965
        %v998 = vpack.c.b16 %v966, %v966
        %v999 = vpack.c.b16 %v967, %v967
        %v1000 = vpack.c.b16 %v968, %v968
        %v1001 = vpack.c.b16 %v969, %v969
        %v1002 = vpack.c.b16 %v970, %v970
        %v1003 = vpack.c.b16 %v971, %v971
        %v1004 = vpack.c.b16 %v972, %v972
        %v1005 = vpack.c.b16 %v973, %v973
        %vm1038 = vcmask 257024
        %1039 = vst.msk [vmem:[%s257] sm:$0xf] %vm1038, %v974
        %1040 = vst.msk [vmem:[%s257 + $0x4] sm:$0xf] %vm1038, %v975
        %1041 = vst.msk [vmem:[%s257 + $0x8] sm:$0xf] %vm1038, %v976
        %1042 = vst.msk [vmem:[%s257 + $0xc] sm:$0xf] %vm1038, %v977
        %1043 = vst.msk [vmem:[%s257 + $0x10] sm:$0xf] %vm1038, %v978
        %1044 = vst.msk [vmem:[%s257 + $0x14] sm:$0xf] %vm1038, %v979
        %1045 = vst.msk [vmem:[%s257 + $0x18] sm:$0xf] %vm1038, %v980
        %1046 = vst.msk [vmem:[%s257 + $0x1c] sm:$0xf] %vm1038, %v981
        %1047 = vst.msk [vmem:[%s257 + $0x20] sm:$0xf] %vm1038, %v982
        %1048 = vst.msk [vmem:[%s257 + $0x24] sm:$0xf] %vm1038, %v983
        %1049 = vst.msk [vmem:[%s257 + $0x28] sm:$0xf] %vm1038, %v984
        %1050 = vst.msk [vmem:[%s257 + $0x2c] sm:$0xf] %vm1038, %v985
        %1051 = vst.msk [vmem:[%s257 + $0x30] sm:$0xf] %vm1038, %v986
        %1052 = vst.msk [vmem:[%s257 + $0x34] sm:$0xf] %vm1038, %v987
        %1053 = vst.msk [vmem:[%s257 + $0x38] sm:$0xf] %vm1038, %v988
        %1054 = vst.msk [vmem:[%s257 + $0x3c] sm:$0xf] %vm1038, %v989
        %1055 = vst.msk [vmem:[%s257 + $0x40] sm:$0xf] %vm1038, %v990
        %1056 = vst.msk [vmem:[%s257 + $0x44] sm:$0xf] %vm1038, %v991
        %1057 = vst.msk [vmem:[%s257 + $0x48] sm:$0xf] %vm1038, %v992
        %1058 = vst.msk [vmem:[%s257 + $0x4c] sm:$0xf] %vm1038, %v993
        %1059 = vst.msk [vmem:[%s257 + $0x50] sm:$0xf] %vm1038, %v994
        %1060 = vst.msk [vmem:[%s257 + $0x54] sm:$0xf] %vm1038, %v995
        %1061 = vst.msk [vmem:[%s257 + $0x58] sm:$0xf] %vm1038, %v996
        %1062 = vst.msk [vmem:[%s257 + $0x5c] sm:$0xf] %vm1038, %v997
        %1063 = vst.msk [vmem:[%s257 + $0x60] sm:$0xf] %vm1038, %v998
        %1064 = vst.msk [vmem:[%s257 + $0x64] sm:$0xf] %vm1038, %v999
        %1065 = vst.msk [vmem:[%s257 + $0x68] sm:$0xf] %vm1038, %v1000
        %1066 = vst.msk [vmem:[%s257 + $0x6c] sm:$0xf] %vm1038, %v1001
        %1067 = vst.msk [vmem:[%s257 + $0x70] sm:$0xf] %vm1038, %v1002
        %1068 = vst.msk [vmem:[%s257 + $0x74] sm:$0xf] %vm1038, %v1003
        %1069 = vst.msk [vmem:[%s257 + $0x78] sm:$0xf] %vm1038, %v1004
        %1070 = vst.msk [vmem:[%s257 + $0x7c] sm:$0xf] %vm1038, %v1005
      $region40: #{d_net128_forward.6} parent=31 // pred_fallthru
        _
      %s1071 = smul.u32 32, %s19
      %p1072 = scmp.lt.s32.totalorder %s1071, 1023
      %s1073 = scalar_select %p1072, %s1071, 1023
      %p1074 = scmp.lt.s32.totalorder %s20, 0
      %s1075 = scalar_select %p1074, %s20, 0
      %s1076 = sadd.s32 %s1075, %s1073
      %s1077 = smul.addr %s1076, 4
      %s1078 = scalar_lea.vmem %s3, %s1077
      // Predicated region
      $region41: #{d_net128_forward.6} parent=31 // pred_check
        %p1079 = pneg %p135
      $region42: #{d_net128_forward.6} parent=31 // pred_check_branch
        %1081 = sbr.rel (%p1079) target = $region44
      $region43: #{d_net128_forward.6} parent=31 // pred_region
        %s1082 = smul.u32 32, %s19
      $region44: #{d_net128_forward.6} parent=31 // pred_fallthru
        _
    $region32: #{d_net128_forward.6} parent=5 // pred_fallthru
      _
    %p1083 = scmp.le.s32.totalorder 2, %s9
    // Predicated region
    $region45: #{d_net128_forward.6} parent=5 // pred_check
      %p1084 = pneg %p1083
    $region46: #{d_net128_forward.6} parent=5 // pred_check_branch
      %1086 = sbr.rel (%p1084) target = $region48
    $region47: #{d_net128_forward.6} parent=5 // pred_region
      %s1087 = ssub.s32 %s9, 2
      // Predicated region
      $region49: #{d_net128_forward.6} parent=47 // pred_check
        %p1088 = pneg %p141
      $region50: #{d_net128_forward.6} parent=47 // pred_check_branch
        %1090 = sbr.rel (%p1088) target = $region52
      $region51: #{d_net128_forward.6} parent=47 // pred_region
        %s1091 = smul.u32 32, %s22
        %p1092 = scmp.lt.s32.totalorder %s1091, 1023
        %s1093 = scalar_select %p1092, %s1091, 1023
        %p1094 = scmp.lt.s32.totalorder %s23, 0
        %s1095 = scalar_select %p1094, %s23, 0
        %s1096 = sadd.s32 %s1095, %s1093
        %s1097 = smul.addr %s1096, 4
        %s1098 = scalar_lea.vmem %s3, %s1097
      $region52: #{d_net128_forward.6} parent=47 // pred_fallthru
        _
    $region48: #{d_net128_forward.6} parent=5 // pred_fallthru
      _
  $region6: #{d_net128_forward.6} parent=0 // loop_footer
    %s13 = sadd.s32 1, %s9
  $region7: #{d_net128_forward.6} parent=0 // loop_footer_branch
    %8 = sbr.rel target = $region3
  $region8: #{d_net128_forward.6} parent=0 // loop_exit
    _

// kernel: d_net128_forward.7
$region0: #{d_net128_forward.7}
  #allocation0 [shape = 'u32[]', space=smem, size = 0x4, offset = 0x4, fixed_abs, tag = 'smem constant byte address 0x4 - core index']
  #allocation1 [shape = 'u32[144,128]{1,0:T(1,128)}', space=vmem, size = 0x12000, scoped, tag = 'internal scratch']
  #allocation2 [shape = 'f32[256,64]{1,0:T(8,128)}', space=vmem, size = 0x20000, scoped, tag = 'scratch operand']
  %s0 = inlined_call_operand.vmem [shape: bf16[2048,512], index: 0, kind: input, shape index: {}]
  %s1 = inlined_call_operand.vmem [shape: bf16[512,64], index: 1, kind: input, shape index: {}]
  %s2 = inlined_call_operand.vmem [shape: f32[1,64], index: 2, kind: input, shape index: {}]
  %s3 = inlined_call_operand.vmem [shape: bf16[2048,64], index: 3, kind: output, shape index: {}]
  %s4 = sld [smem:[#allocation0]]
  $region53: #{d_net128_forward.7} parent=0
    _
  %s6 = ssub.s32 1, %s4
  %s7 = scalar_select 0, %s6, %s4
  loop: start=0, step=1, limit=10
  $region2: #{d_net128_forward.7} parent=0 // loop_pre_header
    _
  $region3: #{d_net128_forward.7} parent=0 // loop_header
    %s9 = sphi 0, %s13
    %p10 = scmp.ge.s32.totalorder %s9, 10
    %s16 = sphi 0, %s35
    %s17 = sphi 0, %s31
    %s18 = sphi 0, %s27
    %s19 = sphi 0, %s16
    %s20 = sphi 0, %s17
    %s21 = sphi 0, %s18
    %s22 = sphi 0, %s19
    %s23 = sphi 0, %s20
    %s24 = sphi 0, %s21
    %s40 = sphi 0, %s42
    %s43 = sphi 0, %s40
    %s44 = sphi 0, %s43
    %s60 = sphi 0, %s44
    %s68 = sphi 0, %s70
    %s71 = sphi 0, %s68
    %s72 = sphi 0, %s71
    %s88 = sphi 0, %s72
    %s94 = sphi 0, %s96
    %s97 = sphi 0, %s94
    %s98 = sphi 0, %s97
    %s114 = sphi 0, %s98
    %s122 = sphi 0, %s124
    %s125 = sphi 0, %s122
    %s126 = sphi 0, %s125
    %s142 = sphi 0, %s126
  $region4: #{d_net128_forward.7} parent=0 // loop_header_branch
    %12 = sbr.rel (%p10) target = $region8
  $region5: #{d_net128_forward.7} parent=0 // loop_body
    %s14 = ssub.s32 %s9, 1
    %s15 = ssub.s32 %s9, 2
    %s25 = sadd.s32 1, %s18
    %p26 = scmp.ge.s32.totalorder %s25, 1
    %s27 = scalar_select %p26, 0, %s25
    %s28 = sadd.s32 1, %s17
    %s29 = scalar_select %p26, %s28, %s17
    %p30 = scmp.ge.s32.totalorder %s29, 1
    %s31 = scalar_select %p30, 0, %s29
    %s32 = sadd.s32 1, %s16
    %s33 = scalar_select %p30, %s32, %s16
    %p34 = scmp.ge.s32.totalorder %s33, 8
    %s35 = scalar_select %p34, 0, %s33
    %s36 = ssub.s32 %s16, %s35
    %s37 = ssub.s32 %s18, %s27
    %s38 = sor.u32 %s36, %s37
    %p39 = scmp.eq.s32.totalorder %s38, 0
    %s41 = sadd.s32 %s40, 1
    %s42 = scalar_select %p39, %s40, %s41
    %p45 = pneg %p39
    %p46 = scmp.eq.s32.totalorder %s9, 7
    %p47 = por %p45, %p46
    %p48 = scmp.ne.s32.totalorder %s40, %s43
    %p49 = scmp.eq.s32.totalorder %s9, 0
    %p50 = por %p48, %p49
    %p51 = scmp.ne.s32.totalorder %s40, %s43
    %p52 = scmp.eq.s32.totalorder %s14, 7
    %p53 = por %p51, %p52
    %p54 = scmp.ne.s32.totalorder %s43, %s44
    %p55 = scmp.eq.s32.totalorder %s14, 0
    %p56 = por %p54, %p55
    %p57 = scmp.ne.s32.totalorder %s43, %s44
    %p58 = scmp.eq.s32.totalorder %s15, 7
    %p59 = por %p57, %p58
    %p61 = scmp.ne.s32.totalorder %s44, %s60
    %p62 = scmp.eq.s32.totalorder %s15, 0
    %p63 = por %p61, %p62
    %s64 = ssub.s32 %s18, %s27
    %s65 = ssub.s32 %s17, %s31
    %s66 = sor.u32 %s64, %s65
    %p67 = scmp.eq.s32.totalorder %s66, 0
    %s69 = sadd.s32 %s68, 1
    %s70 = scalar_select %p67, %s68, %s69
    %p73 = pneg %p67
    %p74 = scmp.eq.s32.totalorder %s9, 7
    %p75 = por %p73, %p74
    %p76 = scmp.ne.s32.totalorder %s68, %s71
    %p77 = scmp.eq.s32.totalorder %s9, 0
    %p78 = por %p76, %p77
    %p79 = scmp.ne.s32.totalorder %s68, %s71
    %p80 = scmp.eq.s32.totalorder %s14, 7
    %p81 = por %p79, %p80
    %p82 = scmp.ne.s32.totalorder %s71, %s72
    %p83 = scmp.eq.s32.totalorder %s14, 0
    %p84 = por %p82, %p83
    %p85 = scmp.ne.s32.totalorder %s71, %s72
    %p86 = scmp.eq.s32.totalorder %s15, 7
    %p87 = por %p85, %p86
    %p89 = scmp.ne.s32.totalorder %s72, %s88
    %p90 = scmp.eq.s32.totalorder %s15, 0
    %p91 = por %p89, %p90
    %s92 = ssub.s32 %s17, %s31
    %p93 = scmp.eq.s32.totalorder %s92, 0
    %s95 = sadd.s32 %s94, 1
    %s96 = scalar_select %p93, %s94, %s95
    %p99 = pneg %p93
    %p100 = scmp.eq.s32.totalorder %s9, 7
    %p101 = por %p99, %p100
    %p102 = scmp.ne.s32.totalorder %s94, %s97
    %p103 = scmp.eq.s32.totalorder %s9, 0
    %p104 = por %p102, %p103
    %p105 = scmp.ne.s32.totalorder %s94, %s97
    %p106 = scmp.eq.s32.totalorder %s14, 7
    %p107 = por %p105, %p106
    %p108 = scmp.ne.s32.totalorder %s97, %s98
    %p109 = scmp.eq.s32.totalorder %s14, 0
    %p110 = por %p108, %p109
    %p111 = scmp.ne.s32.totalorder %s97, %s98
    %p112 = scmp.eq.s32.totalorder %s15, 7
    %p113 = por %p111, %p112
    %p115 = scmp.ne.s32.totalorder %s98, %s114
    %p116 = scmp.eq.s32.totalorder %s15, 0
    %p117 = por %p115, %p116
    %s118 = ssub.s32 %s16, %s35
    %s119 = ssub.s32 %s17, %s31
    %s120 = sor.u32 %s118, %s119
    %p121 = scmp.eq.s32.totalorder %s120, 0
    %s123 = sadd.s32 %s122, 1
    %s124 = scalar_select %p121, %s122, %s123
    %p127 = pneg %p121
    %p128 = scmp.eq.s32.totalorder %s9, 7
    %p129 = por %p127, %p128
    %p130 = scmp.ne.s32.totalorder %s122, %s125
    %p131 = scmp.eq.s32.totalorder %s9, 0
    %p132 = por %p130, %p131
    %p133 = scmp.ne.s32.totalorder %s122, %s125
    %p134 = scmp.eq.s32.totalorder %s14, 7
    %p135 = por %p133, %p134
    %p136 = scmp.ne.s32.totalorder %s125, %s126
    %p137 = scmp.eq.s32.totalorder %s14, 0
    %p138 = por %p136, %p137
    %p139 = scmp.ne.s32.totalorder %s125, %s126
    %p140 = scmp.eq.s32.totalorder %s15, 7
    %p141 = por %p139, %p140
    %p143 = scmp.ne.s32.totalorder %s126, %s142
    %p144 = scmp.eq.s32.totalorder %s15, 0
    %p145 = por %p143, %p144
    %p146 = scmp.le.s32.totalorder 1, %s9
    %p147 = scmp.lt.s32.totalorder %s9, 9
    %p148 = pnand %p146, %p147
    %p149 = pneg %p148
    // Predicated region
    $region9: #{d_net128_forward.7} parent=5 // pred_check
      _
    $region10: #{d_net128_forward.7} parent=5 // pred_check_branch
      %151 = sbr.rel (%p148) target = $region12
    $region11: #{d_net128_forward.7} parent=5 // pred_region
      %s152 = ssub.s32 %s9, 1
      // Predicated region
      $region13: #{d_net128_forward.7} parent=11 // pred_check
        %p153 = pneg %p84
      $region14: #{d_net128_forward.7} parent=11 // pred_check_branch
        %155 = sbr.rel (%p153) target = $region16
      $region15: #{d_net128_forward.7} parent=11 // pred_region
        %s156 = smul.u32 64, %s21
        %p157 = scmp.lt.s32.totalorder %s156, 63
        %s158 = scalar_select %p157, %s156, 63
        %p159 = scmp.lt.s32.totalorder %s20, 0
        %s160 = scalar_select %p159, %s20, 0
        %s161 = sadd.s32 %s160, %s158
        %s162 = smul.addr %s161, 4
        %s163 = scalar_lea.vmem %s1, %s162
        %s164 = smul.u32 64, %s21
      $region16: #{d_net128_forward.7} parent=11 // pred_fallthru
        _
      // Predicated region
      $region17: #{d_net128_forward.7} parent=11 // pred_check
        %p165 = pneg %p110
      $region18: #{d_net128_forward.7} parent=11 // pred_check_branch
        %167 = sbr.rel (%p165) target = $region20
      $region19: #{d_net128_forward.7} parent=11 // pred_region
        %p168 = scmp.lt.s32.totalorder %s20, 0
        %s169 = scalar_select %p168, %s20, 0
        %s170 = scalar_lea.vmem %s2, %s169
      $region20: #{d_net128_forward.7} parent=11 // pred_fallthru
        _
    $region12: #{d_net128_forward.7} parent=5 // pred_fallthru
      _
    %p171 = scmp.lt.s32.totalorder %s9, 8
    // Predicated region
    $region21: #{d_net128_forward.7} parent=5 // pred_check
      %p172 = pneg %p171
    $region22: #{d_net128_forward.7} parent=5 // pred_check_branch
      %174 = sbr.rel (%p172) target = $region24
    $region23: #{d_net128_forward.7} parent=5 // pred_region
      // Predicated region
      $region25: #{d_net128_forward.7} parent=23 // pred_check
        %p175 = pneg %p50
      $region26: #{d_net128_forward.7} parent=23 // pred_check_branch
        %177 = sbr.rel (%p175) target = $region28
      $region27: #{d_net128_forward.7} parent=23 // pred_region
        %s178 = smul.u32 32, %s16
        %s179 = smul.u32 4, %s18
        %p180 = scmp.lt.s32.totalorder %s178, 255
        %s181 = scalar_select %p180, %s178, 255
        %p182 = scmp.lt.s32.totalorder %s179, 3
        %s183 = scalar_select %p182, %s179, 3
        %s184 = smul.addr %s181, 4
        %s185 = sadd.s32 %s183, %s184
        %s186 = smul.addr %s185, 4
        %s187 = scalar_lea.vmem %s0, %s186
        %s188 = smul.u32 32, %s16
        %s189 = smul.u32 4, %s18
      $region28: #{d_net128_forward.7} parent=23 // pred_fallthru
        _
    $region24: #{d_net128_forward.7} parent=5 // pred_fallthru
      _
    %p190 = scmp.le.s32.totalorder 1, %s9
    %p191 = scmp.lt.s32.totalorder %s9, 9
    %p192 = pnand %p190, %p191
    %p193 = pneg %p192
    // Predicated region
    $region29: #{d_net128_forward.7} parent=5 // pred_check
      _
    $region30: #{d_net128_forward.7} parent=5 // pred_check_branch
      %195 = sbr.rel (%p192) target = $region32
    $region31: #{d_net128_forward.7} parent=5 // pred_region
      %s196 = ssub.s32 %s9, 1
      %s197 = smul.u32 32, %s19
      %s198 = smul.u32 4, %s21
      %p199 = scmp.lt.s32.totalorder %s197, 255
      %s200 = scalar_select %p199, %s197, 255
      %p201 = scmp.lt.s32.totalorder %s198, 3
      %s202 = scalar_select %p201, %s198, 3
      %s203 = smul.addr %s200, 4
      %s204 = sadd.s32 %s202, %s203
      %s205 = smul.addr %s204, 4
      %s206 = scalar_lea.vmem %s0, %s205
      %p207 = pneg %p56
      %p208 = pneg %p53
      %s209 = smul.u32 64, %s21
      %p210 = scmp.lt.s32.totalorder %s209, 63
      %s211 = scalar_select %p210, %s209, 63
      %p212 = scmp.lt.s32.totalorder %s20, 0
      %s213 = scalar_select %p212, %s20, 0
      %s214 = sadd.s32 %s213, %s211
      %s215 = smul.addr %s214, 4
      %s216 = scalar_lea.vmem %s1, %s215
      %p217 = pneg %p84
      %p218 = pneg %p81
      %p219 = scmp.lt.s32.totalorder %s20, 0
      %s220 = scalar_select %p219, %s20, 0
      %s221 = scalar_lea.vmem %s2, %s220
      %p222 = pneg %p110
      %p223 = pneg %p107
      %p224 = pneg %p138
      %p225 = pneg %p135
      %s226 = smul.u32 32, %s19
      %p227 = scmp.lt.s32.totalorder %s226, 255
      %s228 = scalar_select %p227, %s226, 255
      %p229 = scmp.lt.s32.totalorder %s20, 0
      %s230 = scalar_select %p229, %s20, 0
      %s231 = sadd.s32 %s230, %s228
      %s232 = smul.addr %s231, 4
      %s233 = scalar_lea.vmem %s3, %s232
      %s234 = smul.u32 32, %s19
      %s235 = smul.u32 4, %s21
      %p236 = scmp.lt.s32.totalorder %s234, 255
      %s237 = scalar_select %p236, %s234, 255
      %p238 = scmp.lt.s32.totalorder %s235, 3
      %s239 = scalar_select %p238, %s235, 3
      %s240 = smul.addr %s237, 4
      %s241 = sadd.s32 %s239, %s240
      %s242 = smul.addr %s241, 4
      %s243 = scalar_lea.vmem %s0, %s242
      %s244 = smul.u32 32, %s19
      %s245 = smul.u32 4, %s21
      %s246 = smul.u32 64, %s21
      %p247 = scmp.lt.s32.totalorder %s246, 63
      %s248 = scalar_select %p247, %s246, 63
      %p249 = scmp.lt.s32.totalorder %s20, 0
      %s250 = scalar_select %p249, %s20, 0
      %s251 = sadd.s32 %s250, %s248
      %s252 = smul.addr %s251, 4
      %s253 = scalar_lea.vmem %s1, %s252
      %s254 = smul.u32 64, %s21
      %p255 = scmp.lt.s32.totalorder %s20, 0
      %s256 = scalar_select %p255, %s20, 0
      %s257 = scalar_lea.vmem %s2, %s256
      %s258 = smul.u32 32, %s19
      %p259 = scmp.lt.s32.totalorder %s258, 255
      %s260 = scalar_select %p259, %s258, 255
      %p261 = scmp.lt.s32.totalorder %s20, 0
      %s262 = scalar_select %p261, %s20, 0
      %s263 = sadd.s32 %s262, %s260
      %s264 = smul.addr %s263, 4
      %s265 = scalar_lea.vmem %s3, %s264
      %s266 = smul.u32 32, %s19
      %p268 = scmp.eq.s32.totalorder %s21, 0
      // Predicated region
      $region33: #{d_net128_forward.7} parent=31 // pred_check
        %p269 = pneg %p268
      $region34: #{d_net128_forward.7} parent=31 // pred_check_branch
        %271 = sbr.rel (%p269) target = $region36
      $region35: #{d_net128_forward.7} parent=31 // pred_region
        %vm272 = vcmask 523264
        %273 = vst.msk [vmem:[#allocation2] sm:$0xff] %vm272, 0.0
        %274 = vst.msk [vmem:[#allocation2 + $0x8] sm:$0xff] %vm272, 0.0
        %275 = vst.msk [vmem:[#allocation2 + $0x10] sm:$0xff] %vm272, 0.0
        %276 = vst.msk [vmem:[#allocation2 + $0x18] sm:$0xff] %vm272, 0.0
        %277 = vst.msk [vmem:[#allocation2 + $0x20] sm:$0xff] %vm272, 0.0
        %278 = vst.msk [vmem:[#allocation2 + $0x28] sm:$0xff] %vm272, 0.0
        %279 = vst.msk [vmem:[#allocation2 + $0x30] sm:$0xff] %vm272, 0.0
        %280 = vst.msk [vmem:[#allocation2 + $0x38] sm:$0xff] %vm272, 0.0
        %281 = vst.msk [vmem:[#allocation2 + $0x40] sm:$0xff] %vm272, 0.0
        %282 = vst.msk [vmem:[#allocation2 + $0x48] sm:$0xff] %vm272, 0.0
        %283 = vst.msk [vmem:[#allocation2 + $0x50] sm:$0xff] %vm272, 0.0
        %284 = vst.msk [vmem:[#allocation2 + $0x58] sm:$0xff] %vm272, 0.0
        %285 = vst.msk [vmem:[#allocation2 + $0x60] sm:$0xff] %vm272, 0.0
        %286 = vst.msk [vmem:[#allocation2 + $0x68] sm:$0xff] %vm272, 0.0
        %287 = vst.msk [vmem:[#allocation2 + $0x70] sm:$0xff] %vm272, 0.0
        %288 = vst.msk [vmem:[#allocation2 + $0x78] sm:$0xff] %vm272, 0.0
        %289 = vst.msk [vmem:[#allocation2 + $0x80] sm:$0xff] %vm272, 0.0
        %290 = vst.msk [vmem:[#allocation2 + $0x88] sm:$0xff] %vm272, 0.0
        %291 = vst.msk [vmem:[#allocation2 + $0x90] sm:$0xff] %vm272, 0.0
        %292 = vst.msk [vmem:[#allocation2 + $0x98] sm:$0xff] %vm272, 0.0
        %293 = vst.msk [vmem:[#allocation2 + $0xa0] sm:$0xff] %vm272, 0.0
        %294 = vst.msk [vmem:[#allocation2 + $0xa8] sm:$0xff] %vm272, 0.0
        %295 = vst.msk [vmem:[#allocation2 + $0xb0] sm:$0xff] %vm272, 0.0
        %296 = vst.msk [vmem:[#allocation2 + $0xb8] sm:$0xff] %vm272, 0.0
        %297 = vst.msk [vmem:[#allocation2 + $0xc0] sm:$0xff] %vm272, 0.0
        %298 = vst.msk [vmem:[#allocation2 + $0xc8] sm:$0xff] %vm272, 0.0
        %299 = vst.msk [vmem:[#allocation2 + $0xd0] sm:$0xff] %vm272, 0.0
        %300 = vst.msk [vmem:[#allocation2 + $0xd8] sm:$0xff] %vm272, 0.0
        %301 = vst.msk [vmem:[#allocation2 + $0xe0] sm:$0xff] %vm272, 0.0
        %302 = vst.msk [vmem:[#allocation2 + $0xe8] sm:$0xff] %vm272, 0.0
        %303 = vst.msk [vmem:[#allocation2 + $0xf0] sm:$0xff] %vm272, 0.0
        %304 = vst.msk [vmem:[#allocation2 + $0xf8] sm:$0xff] %vm272, 0.0
      $region36: #{d_net128_forward.7} parent=31 // pred_fallthru
        _
      %v305 = vld [vmem:[#allocation2] sm:$0xff]
      %v306 = vld [vmem:[#allocation2 + $0x8] sm:$0xff]
      %v307 = vld [vmem:[#allocation2 + $0x10] sm:$0xff]
      %v308 = vld [vmem:[#allocation2 + $0x18] sm:$0xff]
      %v309 = vld [vmem:[#allocation2 + $0x20] sm:$0xff]
      %v310 = vld [vmem:[#allocation2 + $0x28] sm:$0xff]
      %v311 = vld [vmem:[#allocation2 + $0x30] sm:$0xff]
      %v312 = vld [vmem:[#allocation2 + $0x38] sm:$0xff]
      %v313 = vld [vmem:[#allocation2 + $0x40] sm:$0xff]
      %v314 = vld [vmem:[#allocation2 + $0x48] sm:$0xff]
      %v315 = vld [vmem:[#allocation2 + $0x50] sm:$0xff]
      %v316 = vld [vmem:[#allocation2 + $0x58] sm:$0xff]
      %v317 = vld [vmem:[#allocation2 + $0x60] sm:$0xff]
      %v318 = vld [vmem:[#allocation2 + $0x68] sm:$0xff]
      %v319 = vld [vmem:[#allocation2 + $0x70] sm:$0xff]
      %v320 = vld [vmem:[#allocation2 + $0x78] sm:$0xff]
      %v321 = vld [vmem:[#allocation2 + $0x80] sm:$0xff]
      %v322 = vld [vmem:[#allocation2 + $0x88] sm:$0xff]
      %v323 = vld [vmem:[#allocation2 + $0x90] sm:$0xff]
      %v324 = vld [vmem:[#allocation2 + $0x98] sm:$0xff]
      %v325 = vld [vmem:[#allocation2 + $0xa0] sm:$0xff]
      %v326 = vld [vmem:[#allocation2 + $0xa8] sm:$0xff]
      %v327 = vld [vmem:[#allocation2 + $0xb0] sm:$0xff]
      %v328 = vld [vmem:[#allocation2 + $0xb8] sm:$0xff]
      %v329 = vld [vmem:[#allocation2 + $0xc0] sm:$0xff]
      %v330 = vld [vmem:[#allocation2 + $0xc8] sm:$0xff]
      %v331 = vld [vmem:[#allocation2 + $0xd0] sm:$0xff]
      %v332 = vld [vmem:[#allocation2 + $0xd8] sm:$0xff]
      %v333 = vld [vmem:[#allocation2 + $0xe0] sm:$0xff]
      %v334 = vld [vmem:[#allocation2 + $0xe8] sm:$0xff]
      %v335 = vld [vmem:[#allocation2 + $0xf0] sm:$0xff]
      %v336 = vld [vmem:[#allocation2 + $0xf8] sm:$0xff]
      %v337 = vld [vmem:[%s243] sm:$0xff]
      %v338 = vld [vmem:[%s243 + $0x8] sm:$0xff]
      %v339 = vld [vmem:[%s243 + $0x10] sm:$0xff]
      %v340 = vld [vmem:[%s243 + $0x18] sm:$0xff]
      %v341 = vld [vmem:[%s243 + $0x20] sm:$0xff]
      %v342 = vld [vmem:[%s243 + $0x28] sm:$0xff]
      %v343 = vld [vmem:[%s243 + $0x30] sm:$0xff]
      %v344 = vld [vmem:[%s243 + $0x38] sm:$0xff]
      %v345 = vld [vmem:[%s243 + $0x40] sm:$0xff]
      %v346 = vld [vmem:[%s243 + $0x48] sm:$0xff]
      %v347 = vld [vmem:[%s243 + $0x50] sm:$0xff]
      %v348 = vld [vmem:[%s243 + $0x58] sm:$0xff]
      %v349 = vld [vmem:[%s243 + $0x60] sm:$0xff]
      %v350 = vld [vmem:[%s243 + $0x68] sm:$0xff]
      %v351 = vld [vmem:[%s243 + $0x70] sm:$0xff]
      %v352 = vld [vmem:[%s243 + $0x78] sm:$0xff]
      %v353 = vld [vmem:[%s243 + $0x80] sm:$0xff]
      %v354 = vld [vmem:[%s243 + $0x88] sm:$0xff]
      %v355 = vld [vmem:[%s243 + $0x90] sm:$0xff]
      %v356 = vld [vmem:[%s243 + $0x98] sm:$0xff]
      %v357 = vld [vmem:[%s243 + $0xa0] sm:$0xff]
      %v358 = vld [vmem:[%s243 + $0xa8] sm:$0xff]
      %v359 = vld [vmem:[%s243 + $0xb0] sm:$0xff]
      %v360 = vld [vmem:[%s243 + $0xb8] sm:$0xff]
      %v361 = vld [vmem:[%s243 + $0xc0] sm:$0xff]
      %v362 = vld [vmem:[%s243 + $0xc8] sm:$0xff]
      %v363 = vld [vmem:[%s243 + $0xd0] sm:$0xff]
      %v364 = vld [vmem:[%s243 + $0xd8] sm:$0xff]
      %v365 = vld [vmem:[%s243 + $0xe0] sm:$0xff]
      %v366 = vld [vmem:[%s243 + $0xe8] sm:$0xff]
      %v367 = vld [vmem:[%s243 + $0xf0] sm:$0xff]
      %v368 = vld [vmem:[%s243 + $0xf8] sm:$0xff]
      %v369 = vld [vmem:[%s243 + $0x100] sm:$0xff]
      %v370 = vld [vmem:[%s243 + $0x108] sm:$0xff]
      %v371 = vld [vmem:[%s243 + $0x110] sm:$0xff]
      %v372 = vld [vmem:[%s243 + $0x118] sm:$0xff]
      %v373 = vld [vmem:[%s243 + $0x120] sm:$0xff]
      %v374 = vld [vmem:[%s243 + $0x128] sm:$0xff]
      %v375 = vld [vmem:[%s243 + $0x130] sm:$0xff]
      %v376 = vld [vmem:[%s243 + $0x138] sm:$0xff]
      %v377 = vld [vmem:[%s243 + $0x140] sm:$0xff]
      %v378 = vld [vmem:[%s243 + $0x148] sm:$0xff]
      %v379 = vld [vmem:[%s243 + $0x150] sm:$0xff]
      %v380 = vld [vmem:[%s243 + $0x158] sm:$0xff]
      %v381 = vld [vmem:[%s243 + $0x160] sm:$0xff]
      %v382 = vld [vmem:[%s243 + $0x168] sm:$0xff]
      %v383 = vld [vmem:[%s243 + $0x170] sm:$0xff]
      %v384 = vld [vmem:[%s243 + $0x178] sm:$0xff]
      %v385 = vld [vmem:[%s243 + $0x180] sm:$0xff]
      %v386 = vld [vmem:[%s243 + $0x188] sm:$0xff]
      %v387 = vld [vmem:[%s243 + $0x190] sm:$0xff]
      %v388 = vld [vmem:[%s243 + $0x198] sm:$0xff]
      %v389 = vld [vmem:[%s243 + $0x1a0] sm:$0xff]
      %v390 = vld [vmem:[%s243 + $0x1a8] sm:$0xff]
      %v391 = vld [vmem:[%s243 + $0x1b0] sm:$0xff]
      %v392 = vld [vmem:[%s243 + $0x1b8] sm:$0xff]
      %v393 = vld [vmem:[%s243 + $0x1c0] sm:$0xff]
      %v394 = vld [vmem:[%s243 + $0x1c8] sm:$0xff]
      %v395 = vld [vmem:[%s243 + $0x1d0] sm:$0xff]
      %v396 = vld [vmem:[%s243 + $0x1d8] sm:$0xff]
      %v397 = vld [vmem:[%s243 + $0x1e0] sm:$0xff]
      %v398 = vld [vmem:[%s243 + $0x1e8] sm:$0xff]
      %v399 = vld [vmem:[%s243 + $0x1f0] sm:$0xff]
      %v400 = vld [vmem:[%s243 + $0x1f8] sm:$0xff]
      %v401 = vld [vmem:[%s253] sm:$0xf]
      %v402 = vld [vmem:[%s253 + $0x4] sm:$0xf]
      %v403 = vld [vmem:[%s253 + $0x8] sm:$0xf]
      %v404 = vld [vmem:[%s253 + $0xc] sm:$0xf]
      %v405 = vld [vmem:[%s253 + $0x10] sm:$0xf]
      %v406 = vld [vmem:[%s253 + $0x14] sm:$0xf]
      %v407 = vld [vmem:[%s253 + $0x18] sm:$0xf]
      %v408 = vld [vmem:[%s253 + $0x1c] sm:$0xf]
      %v409 = vld [vmem:[%s253 + $0x20] sm:$0xf]
      %v410 = vld [vmem:[%s253 + $0x24] sm:$0xf]
      %v411 = vld [vmem:[%s253 + $0x28] sm:$0xf]
      %v412 = vld [vmem:[%s253 + $0x2c] sm:$0xf]
      %v413 = vld [vmem:[%s253 + $0x30] sm:$0xf]
      %v414 = vld [vmem:[%s253 + $0x34] sm:$0xf]
      %v415 = vld [vmem:[%s253 + $0x38] sm:$0xf]
      %v416 = vld [vmem:[%s253 + $0x3c] sm:$0xf]
      %v417 = vld [vmem:[%s253 + $0x40] sm:$0xf]
      %v418 = vld [vmem:[%s253 + $0x44] sm:$0xf]
      %v419 = vld [vmem:[%s253 + $0x48] sm:$0xf]
      %v420 = vld [vmem:[%s253 + $0x4c] sm:$0xf]
      %v421 = vld [vmem:[%s253 + $0x50] sm:$0xf]
      %v422 = vld [vmem:[%s253 + $0x54] sm:$0xf]
      %v423 = vld [vmem:[%s253 + $0x58] sm:$0xf]
      %v424 = vld [vmem:[%s253 + $0x5c] sm:$0xf]
      %v425 = vld [vmem:[%s253 + $0x60] sm:$0xf]
      %v426 = vld [vmem:[%s253 + $0x64] sm:$0xf]
      %v427 = vld [vmem:[%s253 + $0x68] sm:$0xf]
      %v428 = vld [vmem:[%s253 + $0x6c] sm:$0xf]
      %v429 = vld [vmem:[%s253 + $0x70] sm:$0xf]
      %v430 = vld [vmem:[%s253 + $0x74] sm:$0xf]
      %v431 = vld [vmem:[%s253 + $0x78] sm:$0xf]
      %v432 = vld [vmem:[%s253 + $0x7c] sm:$0xf]
      %v433 = vld [vmem:[%s253 + $0x80] sm:$0xf]
      %v434 = vld [vmem:[%s253 + $0x84] sm:$0xf]
      %v435 = vld [vmem:[%s253 + $0x88] sm:$0xf]
      %v436 = vld [vmem:[%s253 + $0x8c] sm:$0xf]
      %v437 = vld [vmem:[%s253 + $0x90] sm:$0xf]
      %v438 = vld [vmem:[%s253 + $0x94] sm:$0xf]
      %v439 = vld [vmem:[%s253 + $0x98] sm:$0xf]
      %v440 = vld [vmem:[%s253 + $0x9c] sm:$0xf]
      %v441 = vld [vmem:[%s253 + $0xa0] sm:$0xf]
      %v442 = vld [vmem:[%s253 + $0xa4] sm:$0xf]
      %v443 = vld [vmem:[%s253 + $0xa8] sm:$0xf]
      %v444 = vld [vmem:[%s253 + $0xac] sm:$0xf]
      %v445 = vld [vmem:[%s253 + $0xb0] sm:$0xf]
      %v446 = vld [vmem:[%s253 + $0xb4] sm:$0xf]
      %v447 = vld [vmem:[%s253 + $0xb8] sm:$0xf]
      %v448 = vld [vmem:[%s253 + $0xbc] sm:$0xf]
      %v449 = vld [vmem:[%s253 + $0xc0] sm:$0xf]
      %v450 = vld [vmem:[%s253 + $0xc4] sm:$0xf]
      %v451 = vld [vmem:[%s253 + $0xc8] sm:$0xf]
      %v452 = vld [vmem:[%s253 + $0xcc] sm:$0xf]
      %v453 = vld [vmem:[%s253 + $0xd0] sm:$0xf]
      %v454 = vld [vmem:[%s253 + $0xd4] sm:$0xf]
      %v455 = vld [vmem:[%s253 + $0xd8] sm:$0xf]
      %v456 = vld [vmem:[%s253 + $0xdc] sm:$0xf]
      %v457 = vld [vmem:[%s253 + $0xe0] sm:$0xf]
      %v458 = vld [vmem:[%s253 + $0xe4] sm:$0xf]
      %v459 = vld [vmem:[%s253 + $0xe8] sm:$0xf]
      %v460 = vld [vmem:[%s253 + $0xec] sm:$0xf]
      %v461 = vld [vmem:[%s253 + $0xf0] sm:$0xf]
      %v462 = vld [vmem:[%s253 + $0xf4] sm:$0xf]
      %v463 = vld [vmem:[%s253 + $0xf8] sm:$0xf]
      %v464 = vld [vmem:[%s253 + $0xfc] sm:$0xf]
      %v529 = vunpack.c.l.b16 %v337
      %v530 = vunpack.c.h.b16 %v337
      %v531 = vunpack.c.l.b16 %v338
      %v532 = vunpack.c.h.b16 %v338
      %v533 = vunpack.c.l.b16 %v339
      %v534 = vunpack.c.h.b16 %v339
      %v535 = vunpack.c.l.b16 %v340
      %v536 = vunpack.c.h.b16 %v340
      %v537 = vunpack.c.l.b16 %v341
      %v538 = vunpack.c.h.b16 %v341
      %v539 = vunpack.c.l.b16 %v342
      %v540 = vunpack.c.h.b16 %v342
      %v541 = vunpack.c.l.b16 %v343
      %v542 = vunpack.c.h.b16 %v343
      %v543 = vunpack.c.l.b16 %v344
      %v544 = vunpack.c.h.b16 %v344
      %v545 = vunpack.c.l.b16 %v345
      %v546 = vunpack.c.h.b16 %v345
      %v547 = vunpack.c.l.b16 %v346
      %v548 = vunpack.c.h.b16 %v346
      %v549 = vunpack.c.l.b16 %v347
      %v550 = vunpack.c.h.b16 %v347
      %v551 = vunpack.c.l.b16 %v348
      %v552 = vunpack.c.h.b16 %v348
      %v553 = vunpack.c.l.b16 %v349
      %v554 = vunpack.c.h.b16 %v349
      %v555 = vunpack.c.l.b16 %v350
      %v556 = vunpack.c.h.b16 %v350
      %v557 = vunpack.c.l.b16 %v351
      %v558 = vunpack.c.h.b16 %v351
      %v559 = vunpack.c.l.b16 %v352
      %v560 = vunpack.c.h.b16 %v352
      %v561 = vunpack.c.l.b16 %v353
      %v562 = vunpack.c.h.b16 %v353
      %v563 = vunpack.c.l.b16 %v354
      %v564 = vunpack.c.h.b16 %v354
      %v565 = vunpack.c.l.b16 %v355
      %v566 = vunpack.c.h.b16 %v355
      %v567 = vunpack.c.l.b16 %v356
      %v568 = vunpack.c.h.b16 %v356
      %v569 = vunpack.c.l.b16 %v357
      %v570 = vunpack.c.h.b16 %v357
      %v571 = vunpack.c.l.b16 %v358
      %v572 = vunpack.c.h.b16 %v358
      %v573 = vunpack.c.l.b16 %v359
      %v574 = vunpack.c.h.b16 %v359
      %v575 = vunpack.c.l.b16 %v360
      %v576 = vunpack.c.h.b16 %v360
      %v577 = vunpack.c.l.b16 %v361
      %v578 = vunpack.c.h.b16 %v361
      %v579 = vunpack.c.l.b16 %v362
      %v580 = vunpack.c.h.b16 %v362
      %v581 = vunpack.c.l.b16 %v363
      %v582 = vunpack.c.h.b16 %v363
      %v583 = vunpack.c.l.b16 %v364
      %v584 = vunpack.c.h.b16 %v364
      %v585 = vunpack.c.l.b16 %v365
      %v586 = vunpack.c.h.b16 %v365
      %v587 = vunpack.c.l.b16 %v366
      %v588 = vunpack.c.h.b16 %v366
      %v589 = vunpack.c.l.b16 %v367
      %v590 = vunpack.c.h.b16 %v367
      %v591 = vunpack.c.l.b16 %v368
      %v592 = vunpack.c.h.b16 %v368
      %v593 = vunpack.c.l.b16 %v369
      %v594 = vunpack.c.h.b16 %v369
      %v595 = vunpack.c.l.b16 %v370
      %v596 = vunpack.c.h.b16 %v370
      %v597 = vunpack.c.l.b16 %v371
      %v598 = vunpack.c.h.b16 %v371
      %v599 = vunpack.c.l.b16 %v372
      %v600 = vunpack.c.h.b16 %v372
      %v601 = vunpack.c.l.b16 %v373
      %v602 = vunpack.c.h.b16 %v373
      %v603 = vunpack.c.l.b16 %v374
      %v604 = vunpack.c.h.b16 %v374
      %v605 = vunpack.c.l.b16 %v375
      %v606 = vunpack.c.h.b16 %v375
      %v607 = vunpack.c.l.b16 %v376
      %v608 = vunpack.c.h.b16 %v376
      %v609 = vunpack.c.l.b16 %v377
      %v610 = vunpack.c.h.b16 %v377
      %v611 = vunpack.c.l.b16 %v378
      %v612 = vunpack.c.h.b16 %v378
      %v613 = vunpack.c.l.b16 %v379
      %v614 = vunpack.c.h.b16 %v379
      %v615 = vunpack.c.l.b16 %v380
      %v616 = vunpack.c.h.b16 %v380
      %v617 = vunpack.c.l.b16 %v381
      %v618 = vunpack.c.h.b16 %v381
      %v619 = vunpack.c.l.b16 %v382
      %v620 = vunpack.c.h.b16 %v382
      %v621 = vunpack.c.l.b16 %v383
      %v622 = vunpack.c.h.b16 %v383
      %v623 = vunpack.c.l.b16 %v384
      %v624 = vunpack.c.h.b16 %v384
      %v625 = vunpack.c.l.b16 %v385
      %v626 = vunpack.c.h.b16 %v385
      %v627 = vunpack.c.l.b16 %v386
      %v628 = vunpack.c.h.b16 %v386
      %v629 = vunpack.c.l.b16 %v387
      %v630 = vunpack.c.h.b16 %v387
      %v631 = vunpack.c.l.b16 %v388
      %v632 = vunpack.c.h.b16 %v388
      %v633 = vunpack.c.l.b16 %v389
      %v634 = vunpack.c.h.b16 %v389
      %v635 = vunpack.c.l.b16 %v390
      %v636 = vunpack.c.h.b16 %v390
      %v637 = vunpack.c.l.b16 %v391
      %v638 = vunpack.c.h.b16 %v391
      %v639 = vunpack.c.l.b16 %v392
      %v640 = vunpack.c.h.b16 %v392
      %v641 = vunpack.c.l.b16 %v393
      %v642 = vunpack.c.h.b16 %v393
      %v643 = vunpack.c.l.b16 %v394
      %v644 = vunpack.c.h.b16 %v394
      %v645 = vunpack.c.l.b16 %v395
      %v646 = vunpack.c.h.b16 %v395
      %v647 = vunpack.c.l.b16 %v396
      %v648 = vunpack.c.h.b16 %v396
      %v649 = vunpack.c.l.b16 %v397
      %v650 = vunpack.c.h.b16 %v397
      %v651 = vunpack.c.l.b16 %v398
      %v652 = vunpack.c.h.b16 %v398
      %v653 = vunpack.c.l.b16 %v399
      %v654 = vunpack.c.h.b16 %v399
      %v655 = vunpack.c.l.b16 %v400
      %v656 = vunpack.c.h.b16 %v400
      %v657 = vpack.c.b16 %v533, %v529
      %v658 = vpack.c.b16 %v534, %v530
      %v659 = vpack.c.b16 %v535, %v531
      %v660 = vpack.c.b16 %v536, %v532
      %v661 = vpack.c.b16 %v541, %v537
      %v662 = vpack.c.b16 %v542, %v538
      %v663 = vpack.c.b16 %v543, %v539
      %v664 = vpack.c.b16 %v544, %v540
      %v665 = vpack.c.b16 %v549, %v545
      %v666 = vpack.c.b16 %v550, %v546
      %v667 = vpack.c.b16 %v551, %v547
      %v668 = vpack.c.b16 %v552, %v548
      %v669 = vpack.c.b16 %v557, %v553
      %v670 = vpack.c.b16 %v558, %v554
      %v671 = vpack.c.b16 %v559, %v555
      %v672 = vpack.c.b16 %v560, %v556
      %v673 = vpack.c.b16 %v565, %v561
      %v674 = vpack.c.b16 %v566, %v562
      %v675 = vpack.c.b16 %v567, %v563
      %v676 = vpack.c.b16 %v568, %v564
      %v677 = vpack.c.b16 %v573, %v569
      %v678 = vpack.c.b16 %v574, %v570
      %v679 = vpack.c.b16 %v575, %v571
      %v680 = vpack.c.b16 %v576, %v572
      %v681 = vpack.c.b16 %v581, %v577
      %v682 = vpack.c.b16 %v582, %v578
      %v683 = vpack.c.b16 %v583, %v579
      %v684 = vpack.c.b16 %v584, %v580
      %v685 = vpack.c.b16 %v589, %v585
      %v686 = vpack.c.b16 %v590, %v586
      %v687 = vpack.c.b16 %v591, %v587
      %v688 = vpack.c.b16 %v592, %v588
      %v689 = vpack.c.b16 %v597, %v593
      %v690 = vpack.c.b16 %v598, %v594
      %v691 = vpack.c.b16 %v599, %v595
      %v692 = vpack.c.b16 %v600, %v596
      %v693 = vpack.c.b16 %v605, %v601
      %v694 = vpack.c.b16 %v606, %v602
      %v695 = vpack.c.b16 %v607, %v603
      %v696 = vpack.c.b16 %v608, %v604
      %v697 = vpack.c.b16 %v613, %v609
      %v698 = vpack.c.b16 %v614, %v610
      %v699 = vpack.c.b16 %v615, %v611
      %v700 = vpack.c.b16 %v616, %v612
      %v701 = vpack.c.b16 %v621, %v617
      %v702 = vpack.c.b16 %v622, %v618
      %v703 = vpack.c.b16 %v623, %v619
      %v704 = vpack.c.b16 %v624, %v620
      %v705 = vpack.c.b16 %v629, %v625
      %v706 = vpack.c.b16 %v630, %v626
      %v707 = vpack.c.b16 %v631, %v627
      %v708 = vpack.c.b16 %v632, %v628
      %v709 = vpack.c.b16 %v637, %v633
      %v710 = vpack.c.b16 %v638, %v634
      %v711 = vpack.c.b16 %v639, %v635
      %v712 = vpack.c.b16 %v640, %v636
      %v713 = vpack.c.b16 %v645, %v641
      %v714 = vpack.c.b16 %v646, %v642
      %v715 = vpack.c.b16 %v647, %v643
      %v716 = vpack.c.b16 %v648, %v644
      %v717 = vpack.c.b16 %v653, %v649
      %v718 = vpack.c.b16 %v654, %v650
      %v719 = vpack.c.b16 %v655, %v651
      %v720 = vpack.c.b16 %v656, %v652
      %v849 = vunpack.c.l.b16 %v401
      %v850 = vunpack.c.l.b16 %v402
      %v851 = vunpack.c.l.b16 %v403
      %v852 = vunpack.c.l.b16 %v404
      %v853 = vunpack.c.l.b16 %v405
      %v854 = vunpack.c.l.b16 %v406
      %v855 = vunpack.c.l.b16 %v407
      %v856 = vunpack.c.l.b16 %v408
      %v857 = vunpack.c.l.b16 %v409
      %v858 = vunpack.c.l.b16 %v410
      %v859 = vunpack.c.l.b16 %v411
      %v860 = vunpack.c.l.b16 %v412
      %v861 = vunpack.c.l.b16 %v413
      %v862 = vunpack.c.l.b16 %v414
      %v863 = vunpack.c.l.b16 %v415
      %v864 = vunpack.c.l.b16 %v416
      %v865 = vunpack.c.l.b16 %v417
      %v866 = vunpack.c.l.b16 %v418
      %v867 = vunpack.c.l.b16 %v419
      %v868 = vunpack.c.l.b16 %v420
      %v869 = vunpack.c.l.b16 %v421
      %v870 = vunpack.c.l.b16 %v422
      %v871 = vunpack.c.l.b16 %v423
      %v872 = vunpack.c.l.b16 %v424
      %v873 = vunpack.c.l.b16 %v425
      %v874 = vunpack.c.l.b16 %v426
      %v875 = vunpack.c.l.b16 %v427
      %v876 = vunpack.c.l.b16 %v428
      %v877 = vunpack.c.l.b16 %v429
      %v878 = vunpack.c.l.b16 %v430
      %v879 = vunpack.c.l.b16 %v431
      %v880 = vunpack.c.l.b16 %v432
      %v881 = vunpack.c.l.b16 %v433
      %v882 = vunpack.c.l.b16 %v434
      %v883 = vunpack.c.l.b16 %v435
      %v884 = vunpack.c.l.b16 %v436
      %v885 = vunpack.c.l.b16 %v437
      %v886 = vunpack.c.l.b16 %v438
      %v887 = vunpack.c.l.b16 %v439
      %v888 = vunpack.c.l.b16 %v440
      %v889 = vunpack.c.l.b16 %v441
      %v890 = vunpack.c.l.b16 %v442
      %v891 = vunpack.c.l.b16 %v443
      %v892 = vunpack.c.l.b16 %v444
      %v893 = vunpack.c.l.b16 %v445
      %v894 = vunpack.c.l.b16 %v446
      %v895 = vunpack.c.l.b16 %v447
      %v896 = vunpack.c.l.b16 %v448
      %v897 = vunpack.c.l.b16 %v449
      %v898 = vunpack.c.l.b16 %v450
      %v899 = vunpack.c.l.b16 %v451
      %v900 = vunpack.c.l.b16 %v452
      %v901 = vunpack.c.l.b16 %v453
      %v902 = vunpack.c.l.b16 %v454
      %v903 = vunpack.c.l.b16 %v455
      %v904 = vunpack.c.l.b16 %v456
      %v905 = vunpack.c.l.b16 %v457
      %v906 = vunpack.c.l.b16 %v458
      %v907 = vunpack.c.l.b16 %v459
      %v908 = vunpack.c.l.b16 %v460
      %v909 = vunpack.c.l.b16 %v461
      %v910 = vunpack.c.l.b16 %v462
      %v911 = vunpack.c.l.b16 %v463
      %v912 = vunpack.c.l.b16 %v464
      %v913 = vpack.c.b16 %v850, %v849
      %v914 = vpack.c.b16 %v852, %v851
      %v915 = vpack.c.b16 %v854, %v853
      %v916 = vpack.c.b16 %v856, %v855
      %v917 = vpack.c.b16 %v858, %v857
      %v918 = vpack.c.b16 %v860, %v859
      %v919 = vpack.c.b16 %v862, %v861
      %v920 = vpack.c.b16 %v864, %v863
      %v921 = vpack.c.b16 %v866, %v865
      %v922 = vpack.c.b16 %v868, %v867
      %v923 = vpack.c.b16 %v870, %v869
      %v924 = vpack.c.b16 %v872, %v871
      %v925 = vpack.c.b16 %v874, %v873
      %v926 = vpack.c.b16 %v876, %v875
      %v927 = vpack.c.b16 %v878, %v877
      %v928 = vpack.c.b16 %v880, %v879
      %v929 = vpack.c.b16 %v882, %v881
      %v930 = vpack.c.b16 %v884, %v883
      %v931 = vpack.c.b16 %v886, %v885
      %v932 = vpack.c.b16 %v888, %v887
      %v933 = vpack.c.b16 %v890, %v889
      %v934 = vpack.c.b16 %v892, %v891
      %v935 = vpack.c.b16 %v894, %v893
      %v936 = vpack.c.b16 %v896, %v895
      %v937 = vpack.c.b16 %v898, %v897
      %v938 = vpack.c.b16 %v900, %v899
      %v939 = vpack.c.b16 %v902, %v901
      %v940 = vpack.c.b16 %v904, %v903
      %v941 = vpack.c.b16 %v906, %v905
      %v942 = vpack.c.b16 %v908, %v907
      %v943 = vpack.c.b16 %v910, %v909
      %v944 = vpack.c.b16 %v912, %v911
      %977 = vmatprep.subr.bf16.mxu0 0
      %978 = vmatpush1.bf16.msra.mxu0 %v913
      %979 = vmatprep.subr.bf16.mxu0 0
      %980 = vmatpush1.bf16.msra.mxu0 %v914
      %981 = vmatprep.subr.bf16.mxu0 0
      %982 = vmatpush1.bf16.msra.mxu0 %v915
      %983 = vmatprep.subr.bf16.mxu0 0
      %984 = vmatpush1.bf16.msra.mxu0 %v916
      %985 = vmatprep.subr.bf16.mxu0 0
      %986 = vmatpush1.bf16.msra.mxu0 %v917
      %987 = vmatprep.subr.bf16.mxu0 0
      %988 = vmatpush1.bf16.msra.mxu0 %v918
      %989 = vmatprep.subr.bf16.mxu0 0
      %990 = vmatpush1.bf16.msra.mxu0 %v919
      %991 = vmatprep.subr.bf16.mxu0 0
      %992 = vmatpush1.bf16.msra.mxu0 %v920
      %993 = vmatprep.subr.bf16.mxu0 0
      %994 = vmatpush1.bf16.msra.mxu0 %v921
      %995 = vmatprep.subr.bf16.mxu0 0
      %996 = vmatpush1.bf16.msra.mxu0 %v922
      %997 = vmatprep.subr.bf16.mxu0 0
      %998 = vmatpush1.bf16.msra.mxu0 %v923
      %999 = vmatprep.subr.bf16.mxu0 0
      %1000 = vmatpush1.bf16.msra.mxu0 %v924
      %1001 = vmatprep.subr.bf16.mxu0 0
      %1002 = vmatpush1.bf16.msra.mxu0 %v925
      %1003 = vmatprep.subr.bf16.mxu0 0
      %1004 = vmatpush1.bf16.msra.mxu0 %v926
      %1005 = vmatprep.subr.bf16.mxu0 0
      %1006 = vmatpush1.bf16.msra.mxu0 %v927
      %1007 = vmatprep.subr.bf16.mxu0 0
      %1008 = vmatpush1.bf16.msra.mxu0 %v928
      %1009 = vmatprep.mubr.bf16.mxu0 %v658
      %1010 = vmatmul.mubr.bf16.gmra.mrb[0].mxu0 %v657
      %v1011 = vpop.f32.mrb[0].mxu0
      %v1012 = vadd.f32 0.0, %v1011
      %v1013 = vpop.f32.mrb[0].mxu0
      %v1014 = vpop.f32.mrb[0].mxu0
      %v1015 = vadd.f32 0.0, %v1014
      %v1016 = vpop.f32.mrb[0].mxu0
      %1017 = vmatprep.mubr.bf16.mxu0 %v662
      %1018 = vmatmul.mubr.bf16.gmra.mrb[0].mxu0 %v661
      %v1019 = vpop.f32.mrb[0].mxu0
      %v1020 = vadd.f32 0.0, %v1019
      %v1021 = vpop.f32.mrb[0].mxu0
      %v1022 = vpop.f32.mrb[0].mxu0
      %v1023 = vadd.f32 0.0, %v1022
      %v1024 = vpop.f32.mrb[0].mxu0
      %1025 = vmatprep.mubr.bf16.mxu0 %v666
      %1026 = vmatmul.mubr.bf16.gmra.mrb[0].mxu0 %v665
      %v1027 = vpop.f32.mrb[0].mxu0
      %v1028 = vadd.f32 0.0, %v1027
      %v1029 = vpop.f32.mrb[0].mxu0
      %v1030 = vpop.f32.mrb[0].mxu0
      %v1031 = vadd.f32 0.0, %v1030
      %v1032 = vpop.f32.mrb[0].mxu0
      %1033 = vmatprep.mubr.bf16.mxu0 %v670
      %1034 = vmatmul.mubr.bf16.gmra.mrb[0].mxu0 %v669
      %v1035 = vpop.f32.mrb[0].mxu0
      %v1036 = vadd.f32 0.0, %v1035
      %v1037 = vpop.f32.mrb[0].mxu0
      %v1038 = vpop.f32.mrb[0].mxu0
      %v1039 = vadd.f32 0.0, %v1038
      %v1040 = vpop.f32.mrb[0].mxu0
      %1041 = vmatprep.mubr.bf16.mxu0 %v674
      %1042 = vmatmul.mubr.bf16.gmra.mrb[0].mxu0 %v673
      %v1043 = vpop.f32.mrb[0].mxu0
      %v1044 = vadd.f32 0.0, %v1043
      %v1045 = vpop.f32.mrb[0].mxu0
      %v1046 = vpop.f32.mrb[0].mxu0
      %v1047 = vadd.f32 0.0, %v1046
      %v1048 = vpop.f32.mrb[0].mxu0
      %1049 = vmatprep.mubr.bf16.mxu0 %v678
      %1050 = vmatmul.mubr.bf16.gmra.mrb[0].mxu0 %v677
      %v1051 = vpop.f32.mrb[0].mxu0
      %v1052 = vadd.f32 0.0, %v1051
      %v1053 = vpop.f32.mrb[0].mxu0
      %v1054 = vpop.f32.mrb[0].mxu0
      %v1055 = vadd.f32 0.0, %v1054
      %v1056 = vpop.f32.mrb[0].mxu0
      %1057 = vmatprep.mubr.bf16.mxu0 %v682
      %1058 = vmatmul.mubr.bf16.gmra.mrb[0].mxu0 %v681
      %v1059 = vpop.f32.mrb[0].mxu0
      %v1060 = vadd.f32 0.0, %v1059
      %v1061 = vpop.f32.mrb[0].mxu0
      %v1062 = vpop.f32.mrb[0].mxu0
      %v1063 = vadd.f32 0.0, %v1062
      %v1064 = vpop.f32.mrb[0].mxu0
      %1065 = vmatprep.mubr.bf16.mxu0 %v686
      %1066 = vmatmul.mubr.bf16.gmra.mrb[0].mxu0 %v685
      %v1067 = vpop.f32.mrb[0].mxu0
      %v1068 = vadd.f32 0.0, %v1067
      %v1069 = vpop.f32.mrb[0].mxu0
      %v1070 = vpop.f32.mrb[0].mxu0
      %v1071 = vadd.f32 0.0, %v1070
      %v1072 = vpop.f32.mrb[0].mxu0
      %1073 = vmatprep.mubr.bf16.mxu0 %v690
      %1074 = vmatmul.mubr.bf16.gmra.mrb[0].mxu0 %v689
      %v1075 = vpop.f32.mrb[0].mxu0
      %v1076 = vadd.f32 0.0, %v1075
      %v1077 = vpop.f32.mrb[0].mxu0
      %v1078 = vpop.f32.mrb[0].mxu0
      %v1079 = vadd.f32 0.0, %v1078
      %v1080 = vpop.f32.mrb[0].mxu0
      %1081 = vmatprep.mubr.bf16.mxu0 %v694
      %1082 = vmatmul.mubr.bf16.gmra.mrb[0].mxu0 %v693
      %v1083 = vpop.f32.mrb[0].mxu0
      %v1084 = vadd.f32 0.0, %v1083
      %v1085 = vpop.f32.mrb[0].mxu0
      %v1086 = vpop.f32.mrb[0].mxu0
      %v1087 = vadd.f32 0.0, %v1086
      %v1088 = vpop.f32.mrb[0].mxu0
      %1089 = vmatprep.mubr.bf16.mxu0 %v698
      %1090 = vmatmul.mubr.bf16.gmra.mrb[0].mxu0 %v697
      %v1091 = vpop.f32.mrb[0].mxu0
      %v1092 = vadd.f32 0.0, %v1091
      %v1093 = vpop.f32.mrb[0].mxu0
      %v1094 = vpop.f32.mrb[0].mxu0
      %v1095 = vadd.f32 0.0, %v1094
      %v1096 = vpop.f32.mrb[0].mxu0
      %1097 = vmatprep.mubr.bf16.mxu0 %v702
      %1098 = vmatmul.mubr.bf16.gmra.mrb[0].mxu0 %v701
      %v1099 = vpop.f32.mrb[0].mxu0
      %v1100 = vadd.f32 0.0, %v1099
      %v1101 = vpop.f32.mrb[0].mxu0
      %v1102 = vpop.f32.mrb[0].mxu0
      %v1103 = vadd.f32 0.0, %v1102
      %v1104 = vpop.f32.mrb[0].mxu0
      %1105 = vmatprep.mubr.bf16.mxu0 %v706
      %1106 = vmatmul.mubr.bf16.gmra.mrb[0].mxu0 %v705
      %v1107 = vpop.f32.mrb[0].mxu0
      %v1108 = vadd.f32 0.0, %v1107
      %v1109 = vpop.f32.mrb[0].mxu0
      %v1110 = vpop.f32.mrb[0].mxu0
      %v1111 = vadd.f32 0.0, %v1110
      %v1112 = vpop.f32.mrb[0].mxu0
      %1113 = vmatprep.mubr.bf16.mxu0 %v710
      %1114 = vmatmul.mubr.bf16.gmra.mrb[0].mxu0 %v709
      %v1115 = vpop.f32.mrb[0].mxu0
      %v1116 = vadd.f32 0.0, %v1115
      %v1117 = vpop.f32.mrb[0].mxu0
      %v1118 = vpop.f32.mrb[0].mxu0
      %v1119 = vadd.f32 0.0, %v1118
      %v1120 = vpop.f32.mrb[0].mxu0
      %1121 = vmatprep.mubr.bf16.mxu0 %v714
      %1122 = vmatmul.mubr.bf16.gmra.mrb[0].mxu0 %v713
      %v1123 = vpop.f32.mrb[0].mxu0
      %v1124 = vadd.f32 0.0, %v1123
      %v1125 = vpop.f32.mrb[0].mxu0
      %v1126 = vpop.f32.mrb[0].mxu0
      %v1127 = vadd.f32 0.0, %v1126
      %v1128 = vpop.f32.mrb[0].mxu0
      %1129 = vmatprep.mubr.bf16.mxu0 %v718
      %1130 = vmatmul.mubr.bf16.gmra.mrb[0].mxu0 %v717
      %v1131 = vpop.f32.mrb[0].mxu0
      %v1132 = vadd.f32 0.0, %v1131
      %v1133 = vpop.f32.mrb[0].mxu0
      %v1134 = vpop.f32.mrb[0].mxu0
      %v1135 = vadd.f32 0.0, %v1134
      %v1136 = vpop.f32.mrb[0].mxu0
      %1137 = vdwg.mxu0
      %1138 = vmatprep.subr.bf16.mxu0 0
      %1139 = vmatpush1.bf16.msra.mxu0 %v929
      %1140 = vmatprep.subr.bf16.mxu0 0
      %1141 = vmatpush1.bf16.msra.mxu0 %v930
      %1142 = vmatprep.subr.bf16.mxu0 0
      %1143 = vmatpush1.bf16.msra.mxu0 %v931
      %1144 = vmatprep.subr.bf16.mxu0 0
      %1145 = vmatpush1.bf16.msra.mxu0 %v932
      %1146 = vmatprep.subr.bf16.mxu0 0
      %1147 = vmatpush1.bf16.msra.mxu0 %v933
      %1148 = vmatprep.subr.bf16.mxu0 0
      %1149 = vmatpush1.bf16.msra.mxu0 %v934
      %1150 = vmatprep.subr.bf16.mxu0 0
      %1151 = vmatpush1.bf16.msra.mxu0 %v935
      %1152 = vmatprep.subr.bf16.mxu0 0
      %1153 = vmatpush1.bf16.msra.mxu0 %v936
      %1154 = vmatprep.subr.bf16.mxu0 0
      %1155 = vmatpush1.bf16.msra.mxu0 %v937
      %1156 = vmatprep.subr.bf16.mxu0 0
      %1157 = vmatpush1.bf16.msra.mxu0 %v938
      %1158 = vmatprep.subr.bf16.mxu0 0
      %1159 = vmatpush1.bf16.msra.mxu0 %v939
      %1160 = vmatprep.subr.bf16.mxu0 0
      %1161 = vmatpush1.bf16.msra.mxu0 %v940
      %1162 = vmatprep.subr.bf16.mxu0 0
      %1163 = vmatpush1.bf16.msra.mxu0 %v941
      %1164 = vmatprep.subr.bf16.mxu0 0
      %1165 = vmatpush1.bf16.msra.mxu0 %v942
      %1166 = vmatprep.subr.bf16.mxu0 0
      %1167 = vmatpush1.bf16.msra.mxu0 %v943
      %1168 = vmatprep.subr.bf16.mxu0 0
      %1169 = vmatpush1.bf16.msra.mxu0 %v944
      %1170 = vmatprep.mubr.bf16.mxu0 %v660
      %1171 = vmatmul.mubr.bf16.gmra.mrb[0].mxu0 %v659
      %v1172 = vpop.f32.mrb[0].mxu0
      %v1173 = vadd.f32 %v1012, %v1172
      %v1174 = vpop.f32.mrb[0].mxu0
      %v1175 = vpop.f32.mrb[0].mxu0
      %v1176 = vadd.f32 %v1015, %v1175
      %v1177 = vpop.f32.mrb[0].mxu0
      %1178 = vmatprep.mubr.bf16.mxu0 %v664
      %1179 = vmatmul.mubr.bf16.gmra.mrb[0].mxu0 %v663
      %v1180 = vpop.f32.mrb[0].mxu0
      %v1181 = vadd.f32 %v1020, %v1180
      %v1182 = vpop.f32.mrb[0].mxu0
      %v1183 = vpop.f32.mrb[0].mxu0
      %v1184 = vadd.f32 %v1023, %v1183
      %v1185 = vpop.f32.mrb[0].mxu0
      %1186 = vmatprep.mubr.bf16.mxu0 %v668
      %1187 = vmatmul.mubr.bf16.gmra.mrb[0].mxu0 %v667
      %v1188 = vpop.f32.mrb[0].mxu0
      %v1189 = vadd.f32 %v1028, %v1188
      %v1190 = vpop.f32.mrb[0].mxu0
      %v1191 = vpop.f32.mrb[0].mxu0
      %v1192 = vadd.f32 %v1031, %v1191
      %v1193 = vpop.f32.mrb[0].mxu0
      %1194 = vmatprep.mubr.bf16.mxu0 %v672
      %1195 = vmatmul.mubr.bf16.gmra.mrb[0].mxu0 %v671
      %v1196 = vpop.f32.mrb[0].mxu0
      %v1197 = vadd.f32 %v1036, %v1196
      %v1198 = vpop.f32.mrb[0].mxu0
      %v1199 = vpop.f32.mrb[0].mxu0
      %v1200 = vadd.f32 %v1039, %v1199
      %v1201 = vpop.f32.mrb[0].mxu0
      %1202 = vmatprep.mubr.bf16.mxu0 %v676
      %1203 = vmatmul.mubr.bf16.gmra.mrb[0].mxu0 %v675
      %v1204 = vpop.f32.mrb[0].mxu0
      %v1205 = vadd.f32 %v1044, %v1204
      %v1206 = vpop.f32.mrb[0].mxu0
      %v1207 = vpop.f32.mrb[0].mxu0
      %v1208 = vadd.f32 %v1047, %v1207
      %v1209 = vpop.f32.mrb[0].mxu0
      %1210 = vmatprep.mubr.bf16.mxu0 %v680
      %1211 = vmatmul.mubr.bf16.gmra.mrb[0].mxu0 %v679
      %v1212 = vpop.f32.mrb[0].mxu0
      %v1213 = vadd.f32 %v1052, %v1212
      %v1214 = vpop.f32.mrb[0].mxu0
      %v1215 = vpop.f32.mrb[0].mxu0
      %v1216 = vadd.f32 %v1055, %v1215
      %v1217 = vpop.f32.mrb[0].mxu0
      %1218 = vmatprep.mubr.bf16.mxu0 %v684
      %1219 = vmatmul.mubr.bf16.gmra.mrb[0].mxu0 %v683
      %v1220 = vpop.f32.mrb[0].mxu0
      %v1221 = vadd.f32 %v1060, %v1220
      %v1222 = vpop.f32.mrb[0].mxu0
      %v1223 = vpop.f32.mrb[0].mxu0
      %v1224 = vadd.f32 %v1063, %v1223
      %v1225 = vpop.f32.mrb[0].mxu0
      %1226 = vmatprep.mubr.bf16.mxu0 %v688
      %1227 = vmatmul.mubr.bf16.gmra.mrb[0].mxu0 %v687
      %v1228 = vpop.f32.mrb[0].mxu0
      %v1229 = vadd.f32 %v1068, %v1228
      %v1230 = vpop.f32.mrb[0].mxu0
      %v1231 = vpop.f32.mrb[0].mxu0
      %v1232 = vadd.f32 %v1071, %v1231
      %v1233 = vpop.f32.mrb[0].mxu0
      %1234 = vmatprep.mubr.bf16.mxu0 %v692
      %1235 = vmatmul.mubr.bf16.gmra.mrb[0].mxu0 %v691
      %v1236 = vpop.f32.mrb[0].mxu0
      %v1237 = vadd.f32 %v1076, %v1236
      %v1238 = vpop.f32.mrb[0].mxu0
      %v1239 = vpop.f32.mrb[0].mxu0
      %v1240 = vadd.f32 %v1079, %v1239
      %v1241 = vpop.f32.mrb[0].mxu0
      %1242 = vmatprep.mubr.bf16.mxu0 %v696
      %1243 = vmatmul.mubr.bf16.gmra.mrb[0].mxu0 %v695
      %v1244 = vpop.f32.mrb[0].mxu0
      %v1245 = vadd.f32 %v1084, %v1244
      %v1246 = vpop.f32.mrb[0].mxu0
      %v1247 = vpop.f32.mrb[0].mxu0
      %v1248 = vadd.f32 %v1087, %v1247
      %v1249 = vpop.f32.mrb[0].mxu0
      %1250 = vmatprep.mubr.bf16.mxu0 %v700
      %1251 = vmatmul.mubr.bf16.gmra.mrb[0].mxu0 %v699
      %v1252 = vpop.f32.mrb[0].mxu0
      %v1253 = vadd.f32 %v1092, %v1252
      %v1254 = vpop.f32.mrb[0].mxu0
      %v1255 = vpop.f32.mrb[0].mxu0
      %v1256 = vadd.f32 %v1095, %v1255
      %v1257 = vpop.f32.mrb[0].mxu0
      %1258 = vmatprep.mubr.bf16.mxu0 %v704
      %1259 = vmatmul.mubr.bf16.gmra.mrb[0].mxu0 %v703
      %v1260 = vpop.f32.mrb[0].mxu0
      %v1261 = vadd.f32 %v1100, %v1260
      %v1262 = vpop.f32.mrb[0].mxu0
      %v1263 = vpop.f32.mrb[0].mxu0
      %v1264 = vadd.f32 %v1103, %v1263
      %v1265 = vpop.f32.mrb[0].mxu0
      %1266 = vmatprep.mubr.bf16.mxu0 %v708
      %1267 = vmatmul.mubr.bf16.gmra.mrb[0].mxu0 %v707
      %v1268 = vpop.f32.mrb[0].mxu0
      %v1269 = vadd.f32 %v1108, %v1268
      %v1270 = vpop.f32.mrb[0].mxu0
      %v1271 = vpop.f32.mrb[0].mxu0
      %v1272 = vadd.f32 %v1111, %v1271
      %v1273 = vpop.f32.mrb[0].mxu0
      %1274 = vmatprep.mubr.bf16.mxu0 %v712
      %1275 = vmatmul.mubr.bf16.gmra.mrb[0].mxu0 %v711
      %v1276 = vpop.f32.mrb[0].mxu0
      %v1277 = vadd.f32 %v1116, %v1276
      %v1278 = vpop.f32.mrb[0].mxu0
      %v1279 = vpop.f32.mrb[0].mxu0
      %v1280 = vadd.f32 %v1119, %v1279
      %v1281 = vpop.f32.mrb[0].mxu0
      %1282 = vmatprep.mubr.bf16.mxu0 %v716
      %1283 = vmatmul.mubr.bf16.gmra.mrb[0].mxu0 %v715
      %v1284 = vpop.f32.mrb[0].mxu0
      %v1285 = vadd.f32 %v1124, %v1284
      %v1286 = vpop.f32.mrb[0].mxu0
      %v1287 = vpop.f32.mrb[0].mxu0
      %v1288 = vadd.f32 %v1127, %v1287
      %v1289 = vpop.f32.mrb[0].mxu0
      %1290 = vmatprep.mubr.bf16.mxu0 %v720
      %1291 = vmatmul.mubr.bf16.gmra.mrb[0].mxu0 %v719
      %v1292 = vpop.f32.mrb[0].mxu0
      %v1293 = vadd.f32 %v1132, %v1292
      %v1294 = vpop.f32.mrb[0].mxu0
      %v1295 = vpop.f32.mrb[0].mxu0
      %v1296 = vadd.f32 %v1135, %v1295
      %v1297 = vpop.f32.mrb[0].mxu0
      %1298 = vdwg.mxu0
      %v1299 = vadd.f32 %v305, %v1173
      %v1300 = vadd.f32 %v306, %v1176
      %v1301 = vadd.f32 %v307, %v1181
      %v1302 = vadd.f32 %v308, %v1184
      %v1303 = vadd.f32 %v309, %v1189
      %v1304 = vadd.f32 %v310, %v1192
      %v1305 = vadd.f32 %v311, %v1197
      %v1306 = vadd.f32 %v312, %v1200
      %v1307 = vadd.f32 %v313, %v1205
      %v1308 = vadd.f32 %v314, %v1208
      %v1309 = vadd.f32 %v315, %v1213
      %v1310 = vadd.f32 %v316, %v1216
      %v1311 = vadd.f32 %v317, %v1221
      %v1312 = vadd.f32 %v318, %v1224
      %v1313 = vadd.f32 %v319, %v1229
      %v1314 = vadd.f32 %v320, %v1232
      %v1315 = vadd.f32 %v321, %v1237
      %v1316 = vadd.f32 %v322, %v1240
      %v1317 = vadd.f32 %v323, %v1245
      %v1318 = vadd.f32 %v324, %v1248
      %v1319 = vadd.f32 %v325, %v1253
      %v1320 = vadd.f32 %v326, %v1256
      %v1321 = vadd.f32 %v327, %v1261
      %v1322 = vadd.f32 %v328, %v1264
      %v1323 = vadd.f32 %v329, %v1269
      %v1324 = vadd.f32 %v330, %v1272
      %v1325 = vadd.f32 %v331, %v1277
      %v1326 = vadd.f32 %v332, %v1280
      %v1327 = vadd.f32 %v333, %v1285
      %v1328 = vadd.f32 %v334, %v1288
      %v1329 = vadd.f32 %v335, %v1293
      %v1330 = vadd.f32 %v336, %v1296
      %vm1331 = vcmask 523264
      %1332 = vst.msk [vmem:[#allocation2] sm:$0xff] %vm1331, %v1299
      %1333 = vst.msk [vmem:[#allocation2 + $0x8] sm:$0xff] %vm1331, %v1300
      %1334 = vst.msk [vmem:[#allocation2 + $0x10] sm:$0xff] %vm1331, %v1301
      %1335 = vst.msk [vmem:[#allocation2 + $0x18] sm:$0xff] %vm1331, %v1302
      %1336 = vst.msk [vmem:[#allocation2 + $0x20] sm:$0xff] %vm1331, %v1303
      %1337 = vst.msk [vmem:[#allocation2 + $0x28] sm:$0xff] %vm1331, %v1304
      %1338 = vst.msk [vmem:[#allocation2 + $0x30] sm:$0xff] %vm1331, %v1305
      %1339 = vst.msk [vmem:[#allocation2 + $0x38] sm:$0xff] %vm1331, %v1306
      %1340 = vst.msk [vmem:[#allocation2 + $0x40] sm:$0xff] %vm1331, %v1307
      %1341 = vst.msk [vmem:[#allocation2 + $0x48] sm:$0xff] %vm1331, %v1308
      %1342 = vst.msk [vmem:[#allocation2 + $0x50] sm:$0xff] %vm1331, %v1309
      %1343 = vst.msk [vmem:[#allocation2 + $0x58] sm:$0xff] %vm1331, %v1310
      %1344 = vst.msk [vmem:[#allocation2 + $0x60] sm:$0xff] %vm1331, %v1311
      %1345 = vst.msk [vmem:[#allocation2 + $0x68] sm:$0xff] %vm1331, %v1312
      %1346 = vst.msk [vmem:[#allocation2 + $0x70] sm:$0xff] %vm1331, %v1313
      %1347 = vst.msk [vmem:[#allocation2 + $0x78] sm:$0xff] %vm1331, %v1314
      %1348 = vst.msk [vmem:[#allocation2 + $0x80] sm:$0xff] %vm1331, %v1315
      %1349 = vst.msk [vmem:[#allocation2 + $0x88] sm:$0xff] %vm1331, %v1316
      %1350 = vst.msk [vmem:[#allocation2 + $0x90] sm:$0xff] %vm1331, %v1317
      %1351 = vst.msk [vmem:[#allocation2 + $0x98] sm:$0xff] %vm1331, %v1318
      %1352 = vst.msk [vmem:[#allocation2 + $0xa0] sm:$0xff] %vm1331, %v1319
      %1353 = vst.msk [vmem:[#allocation2 + $0xa8] sm:$0xff] %vm1331, %v1320
      %1354 = vst.msk [vmem:[#allocation2 + $0xb0] sm:$0xff] %vm1331, %v1321
      %1355 = vst.msk [vmem:[#allocation2 + $0xb8] sm:$0xff] %vm1331, %v1322
      %1356 = vst.msk [vmem:[#allocation2 + $0xc0] sm:$0xff] %vm1331, %v1323
      %1357 = vst.msk [vmem:[#allocation2 + $0xc8] sm:$0xff] %vm1331, %v1324
      %1358 = vst.msk [vmem:[#allocation2 + $0xd0] sm:$0xff] %vm1331, %v1325
      %1359 = vst.msk [vmem:[#allocation2 + $0xd8] sm:$0xff] %vm1331, %v1326
      %1360 = vst.msk [vmem:[#allocation2 + $0xe0] sm:$0xff] %vm1331, %v1327
      %1361 = vst.msk [vmem:[#allocation2 + $0xe8] sm:$0xff] %vm1331, %v1328
      %1362 = vst.msk [vmem:[#allocation2 + $0xf0] sm:$0xff] %vm1331, %v1329
      %1363 = vst.msk [vmem:[#allocation2 + $0xf8] sm:$0xff] %vm1331, %v1330
      // Predicated region
      $region37: #{d_net128_forward.7} parent=31 // pred_check
        %p1364 = pneg %p268
      $region38: #{d_net128_forward.7} parent=31 // pred_check_branch
        %1366 = sbr.rel (%p1364) target = $region40
      $region39: #{d_net128_forward.7} parent=31 // pred_region
        %v1367 = vld [vmem:[#allocation2] sm:$0xff]
        %v1368 = vld [vmem:[#allocation2 + $0x8] sm:$0xff]
        %v1369 = vld [vmem:[#allocation2 + $0x10] sm:$0xff]
        %v1370 = vld [vmem:[#allocation2 + $0x18] sm:$0xff]
        %v1371 = vld [vmem:[#allocation2 + $0x20] sm:$0xff]
        %v1372 = vld [vmem:[#allocation2 + $0x28] sm:$0xff]
        %v1373 = vld [vmem:[#allocation2 + $0x30] sm:$0xff]
        %v1374 = vld [vmem:[#allocation2 + $0x38] sm:$0xff]
        %v1375 = vld [vmem:[#allocation2 + $0x40] sm:$0xff]
        %v1376 = vld [vmem:[#allocation2 + $0x48] sm:$0xff]
        %v1377 = vld [vmem:[#allocation2 + $0x50] sm:$0xff]
        %v1378 = vld [vmem:[#allocation2 + $0x58] sm:$0xff]
        %v1379 = vld [vmem:[#allocation2 + $0x60] sm:$0xff]
        %v1380 = vld [vmem:[#allocation2 + $0x68] sm:$0xff]
        %v1381 = vld [vmem:[#allocation2 + $0x70] sm:$0xff]
        %v1382 = vld [vmem:[#allocation2 + $0x78] sm:$0xff]
        %v1383 = vld [vmem:[#allocation2 + $0x80] sm:$0xff]
        %v1384 = vld [vmem:[#allocation2 + $0x88] sm:$0xff]
        %v1385 = vld [vmem:[#allocation2 + $0x90] sm:$0xff]
        %v1386 = vld [vmem:[#allocation2 + $0x98] sm:$0xff]
        %v1387 = vld [vmem:[#allocation2 + $0xa0] sm:$0xff]
        %v1388 = vld [vmem:[#allocation2 + $0xa8] sm:$0xff]
        %v1389 = vld [vmem:[#allocation2 + $0xb0] sm:$0xff]
        %v1390 = vld [vmem:[#allocation2 + $0xb8] sm:$0xff]
        %v1391 = vld [vmem:[#allocation2 + $0xc0] sm:$0xff]
        %v1392 = vld [vmem:[#allocation2 + $0xc8] sm:$0xff]
        %v1393 = vld [vmem:[#allocation2 + $0xd0] sm:$0xff]
        %v1394 = vld [vmem:[#allocation2 + $0xd8] sm:$0xff]
        %v1395 = vld [vmem:[#allocation2 + $0xe0] sm:$0xff]
        %v1396 = vld [vmem:[#allocation2 + $0xe8] sm:$0xff]
        %v1397 = vld [vmem:[#allocation2 + $0xf0] sm:$0xff]
        %v1398 = vld [vmem:[#allocation2 + $0xf8] sm:$0xff]
        %v1399 = vld [vmem:[%s257] sm:$0x1]
        %v1401 = vlaneseq
        %v1402 = vshrl.u32 %v1401, 7
        %v1403 = vsub.s32 0, %v1402
        %v1404 = vrot.slane %v1399, %v1403
        %v1406 = vadd.f32 %v1367, %v1404
        %v1407 = vadd.f32 %v1368, %v1404
        %v1408 = vadd.f32 %v1369, %v1404
        %v1409 = vadd.f32 %v1370, %v1404
        %v1410 = vadd.f32 %v1371, %v1404
        %v1411 = vadd.f32 %v1372, %v1404
        %v1412 = vadd.f32 %v1373, %v1404
        %v1413 = vadd.f32 %v1374, %v1404
        %v1414 = vadd.f32 %v1375, %v1404
        %v1415 = vadd.f32 %v1376, %v1404
        %v1416 = vadd.f32 %v1377, %v1404
        %v1417 = vadd.f32 %v1378, %v1404
        %v1418 = vadd.f32 %v1379, %v1404
        %v1419 = vadd.f32 %v1380, %v1404
        %v1420 = vadd.f32 %v1381, %v1404
        %v1421 = vadd.f32 %v1382, %v1404
        %v1422 = vadd.f32 %v1383, %v1404
        %v1423 = vadd.f32 %v1384, %v1404
        %v1424 = vadd.f32 %v1385, %v1404
        %v1425 = vadd.f32 %v1386, %v1404
        %v1426 = vadd.f32 %v1387, %v1404
        %v1427 = vadd.f32 %v1388, %v1404
        %v1428 = vadd.f32 %v1389, %v1404
        %v1429 = vadd.f32 %v1390, %v1404
        %v1430 = vadd.f32 %v1391, %v1404
        %v1431 = vadd.f32 %v1392, %v1404
        %v1432 = vadd.f32 %v1393, %v1404
        %v1433 = vadd.f32 %v1394, %v1404
        %v1434 = vadd.f32 %v1395, %v1404
        %v1435 = vadd.f32 %v1396, %v1404
        %v1436 = vadd.f32 %v1397, %v1404
        %v1437 = vadd.f32 %v1398, %v1404
        %vm1438 = vcmp.gt.f32.partialorder %v1406, 0.0
        %vm1439 = vcmp.gt.f32.partialorder %v1407, 0.0
        %vm1440 = vcmp.gt.f32.partialorder %v1408, 0.0
        %vm1441 = vcmp.gt.f32.partialorder %v1409, 0.0
        %vm1442 = vcmp.gt.f32.partialorder %v1410, 0.0
        %vm1443 = vcmp.gt.f32.partialorder %v1411, 0.0
        %vm1444 = vcmp.gt.f32.partialorder %v1412, 0.0
        %vm1445 = vcmp.gt.f32.partialorder %v1413, 0.0
        %vm1446 = vcmp.gt.f32.partialorder %v1414, 0.0
        %vm1447 = vcmp.gt.f32.partialorder %v1415, 0.0
        %vm1448 = vcmp.gt.f32.partialorder %v1416, 0.0
        %vm1449 = vcmp.gt.f32.partialorder %v1417, 0.0
        %vm1450 = vcmp.gt.f32.partialorder %v1418, 0.0
        %vm1451 = vcmp.gt.f32.partialorder %v1419, 0.0
        %vm1452 = vcmp.gt.f32.partialorder %v1420, 0.0
        %vm1453 = vcmp.gt.f32.partialorder %v1421, 0.0
        %vm1454 = vcmp.gt.f32.partialorder %v1422, 0.0
        %vm1455 = vcmp.gt.f32.partialorder %v1423, 0.0
        %vm1456 = vcmp.gt.f32.partialorder %v1424, 0.0
        %vm1457 = vcmp.gt.f32.partialorder %v1425, 0.0
        %vm1458 = vcmp.gt.f32.partialorder %v1426, 0.0
        %vm1459 = vcmp.gt.f32.partialorder %v1427, 0.0
        %vm1460 = vcmp.gt.f32.partialorder %v1428, 0.0
        %vm1461 = vcmp.gt.f32.partialorder %v1429, 0.0
        %vm1462 = vcmp.gt.f32.partialorder %v1430, 0.0
        %vm1463 = vcmp.gt.f32.partialorder %v1431, 0.0
        %vm1464 = vcmp.gt.f32.partialorder %v1432, 0.0
        %vm1465 = vcmp.gt.f32.partialorder %v1433, 0.0
        %vm1466 = vcmp.gt.f32.partialorder %v1434, 0.0
        %vm1467 = vcmp.gt.f32.partialorder %v1435, 0.0
        %vm1468 = vcmp.gt.f32.partialorder %v1436, 0.0
        %vm1469 = vcmp.gt.f32.partialorder %v1437, 0.0
        %v1470 = vmul.f32 %v1406, 0.2
        %v1471 = vmul.f32 %v1407, 0.2
        %v1472 = vmul.f32 %v1408, 0.2
        %v1473 = vmul.f32 %v1409, 0.2
        %v1474 = vmul.f32 %v1410, 0.2
        %v1475 = vmul.f32 %v1411, 0.2
        %v1476 = vmul.f32 %v1412, 0.2
        %v1477 = vmul.f32 %v1413, 0.2
        %v1478 = vmul.f32 %v1414, 0.2
        %v1479 = vmul.f32 %v1415, 0.2
        %v1480 = vmul.f32 %v1416, 0.2
        %v1481 = vmul.f32 %v1417, 0.2
        %v1482 = vmul.f32 %v1418, 0.2
        %v1483 = vmul.f32 %v1419, 0.2
        %v1484 = vmul.f32 %v1420, 0.2
        %v1485 = vmul.f32 %v1421, 0.2
        %v1486 = vmul.f32 %v1422, 0.2
        %v1487 = vmul.f32 %v1423, 0.2
        %v1488 = vmul.f32 %v1424, 0.2
        %v1489 = vmul.f32 %v1425, 0.2
        %v1490 = vmul.f32 %v1426, 0.2
        %v1491 = vmul.f32 %v1427, 0.2
        %v1492 = vmul.f32 %v1428, 0.2
        %v1493 = vmul.f32 %v1429, 0.2
        %v1494 = vmul.f32 %v1430, 0.2
        %v1495 = vmul.f32 %v1431, 0.2
        %v1496 = vmul.f32 %v1432, 0.2
        %v1497 = vmul.f32 %v1433, 0.2
        %v1498 = vmul.f32 %v1434, 0.2
        %v1499 = vmul.f32 %v1435, 0.2
        %v1500 = vmul.f32 %v1436, 0.2
        %v1501 = vmul.f32 %v1437, 0.2
        %v1502 = vsel %vm1438, %v1406, %v1470
        %v1503 = vsel %vm1439, %v1407, %v1471
        %v1504 = vsel %vm1440, %v1408, %v1472
        %v1505 = vsel %vm1441, %v1409, %v1473
        %v1506 = vsel %vm1442, %v1410, %v1474
        %v1507 = vsel %vm1443, %v1411, %v1475
        %v1508 = vsel %vm1444, %v1412, %v1476
        %v1509 = vsel %vm1445, %v1413, %v1477
        %v1510 = vsel %vm1446, %v1414, %v1478
        %v1511 = vsel %vm1447, %v1415, %v1479
        %v1512 = vsel %vm1448, %v1416, %v1480
        %v1513 = vsel %vm1449, %v1417, %v1481
        %v1514 = vsel %vm1450, %v1418, %v1482
        %v1515 = vsel %vm1451, %v1419, %v1483
        %v1516 = vsel %vm1452, %v1420, %v1484
        %v1517 = vsel %vm1453, %v1421, %v1485
        %v1518 = vsel %vm1454, %v1422, %v1486
        %v1519 = vsel %vm1455, %v1423, %v1487
        %v1520 = vsel %vm1456, %v1424, %v1488
        %v1521 = vsel %vm1457, %v1425, %v1489
        %v1522 = vsel %vm1458, %v1426, %v1490
        %v1523 = vsel %vm1459, %v1427, %v1491
        %v1524 = vsel %vm1460, %v1428, %v1492
        %v1525 = vsel %vm1461, %v1429, %v1493
        %v1526 = vsel %vm1462, %v1430, %v1494
        %v1527 = vsel %vm1463, %v1431, %v1495
        %v1528 = vsel %vm1464, %v1432, %v1496
        %v1529 = vsel %vm1465, %v1433, %v1497
        %v1530 = vsel %vm1466, %v1434, %v1498
        %v1531 = vsel %vm1467, %v1435, %v1499
        %v1532 = vsel %vm1468, %v1436, %v1500
        %v1533 = vsel %vm1469, %v1437, %v1501
        %v1534 = vpack.c.bf16 %v1503, %v1502
        %v1535 = vpack.c.bf16 %v1505, %v1504
        %v1536 = vpack.c.bf16 %v1507, %v1506
        %v1537 = vpack.c.bf16 %v1509, %v1508
        %v1538 = vpack.c.bf16 %v1511, %v1510
        %v1539 = vpack.c.bf16 %v1513, %v1512
        %v1540 = vpack.c.bf16 %v1515, %v1514
        %v1541 = vpack.c.bf16 %v1517, %v1516
        %v1542 = vpack.c.bf16 %v1519, %v1518
        %v1543 = vpack.c.bf16 %v1521, %v1520
        %v1544 = vpack.c.bf16 %v1523, %v1522
        %v1545 = vpack.c.bf16 %v1525, %v1524
        %v1546 = vpack.c.bf16 %v1527, %v1526
        %v1547 = vpack.c.bf16 %v1529, %v1528
        %v1548 = vpack.c.bf16 %v1531, %v1530
        %v1549 = vpack.c.bf16 %v1533, %v1532
        %v1566 = vunpack.c.l.b16 %v1534
        %v1567 = vunpack.c.h.b16 %v1534
        %v1568 = vunpack.c.l.b16 %v1535
        %v1569 = vunpack.c.h.b16 %v1535
        %v1570 = vunpack.c.l.b16 %v1536
        %v1571 = vunpack.c.h.b16 %v1536
        %v1572 = vunpack.c.l.b16 %v1537
        %v1573 = vunpack.c.h.b16 %v1537
        %v1574 = vunpack.c.l.b16 %v1538
        %v1575 = vunpack.c.h.b16 %v1538
        %v1576 = vunpack.c.l.b16 %v1539
        %v1577 = vunpack.c.h.b16 %v1539
        %v1578 = vunpack.c.l.b16 %v1540
        %v1579 = vunpack.c.h.b16 %v1540
        %v1580 = vunpack.c.l.b16 %v1541
        %v1581 = vunpack.c.h.b16 %v1541
        %v1582 = vunpack.c.l.b16 %v1542
        %v1583 = vunpack.c.h.b16 %v1542
        %v1584 = vunpack.c.l.b16 %v1543
        %v1585 = vunpack.c.h.b16 %v1543
        %v1586 = vunpack.c.l.b16 %v1544
        %v1587 = vunpack.c.h.b16 %v1544
        %v1588 = vunpack.c.l.b16 %v1545
        %v1589 = vunpack.c.h.b16 %v1545
        %v1590 = vunpack.c.l.b16 %v1546
        %v1591 = vunpack.c.h.b16 %v1546
        %v1592 = vunpack.c.l.b16 %v1547
        %v1593 = vunpack.c.h.b16 %v1547
        %v1594 = vunpack.c.l.b16 %v1548
        %v1595 = vunpack.c.h.b16 %v1548
        %v1596 = vunpack.c.l.b16 %v1549
        %v1597 = vunpack.c.h.b16 %v1549
        %v1598 = vpack.c.b16 %v1566, %v1566
        %v1599 = vpack.c.b16 %v1567, %v1567
        %v1600 = vpack.c.b16 %v1568, %v1568
        %v1601 = vpack.c.b16 %v1569, %v1569
        %v1602 = vpack.c.b16 %v1570, %v1570
        %v1603 = vpack.c.b16 %v1571, %v1571
        %v1604 = vpack.c.b16 %v1572, %v1572
        %v1605 = vpack.c.b16 %v1573, %v1573
        %v1606 = vpack.c.b16 %v1574, %v1574
        %v1607 = vpack.c.b16 %v1575, %v1575
        %v1608 = vpack.c.b16 %v1576, %v1576
        %v1609 = vpack.c.b16 %v1577, %v1577
        %v1610 = vpack.c.b16 %v1578, %v1578
        %v1611 = vpack.c.b16 %v1579, %v1579
        %v1612 = vpack.c.b16 %v1580, %v1580
        %v1613 = vpack.c.b16 %v1581, %v1581
        %v1614 = vpack.c.b16 %v1582, %v1582
        %v1615 = vpack.c.b16 %v1583, %v1583
        %v1616 = vpack.c.b16 %v1584, %v1584
        %v1617 = vpack.c.b16 %v1585, %v1585
        %v1618 = vpack.c.b16 %v1586, %v1586
        %v1619 = vpack.c.b16 %v1587, %v1587
        %v1620 = vpack.c.b16 %v1588, %v1588
        %v1621 = vpack.c.b16 %v1589, %v1589
        %v1622 = vpack.c.b16 %v1590, %v1590
        %v1623 = vpack.c.b16 %v1591, %v1591
        %v1624 = vpack.c.b16 %v1592, %v1592
        %v1625 = vpack.c.b16 %v1593, %v1593
        %v1626 = vpack.c.b16 %v1594, %v1594
        %v1627 = vpack.c.b16 %v1595, %v1595
        %v1628 = vpack.c.b16 %v1596, %v1596
        %v1629 = vpack.c.b16 %v1597, %v1597
        %vm1662 = vcmask 519168
        %1663 = vst.msk [vmem:[%s265] sm:$0xf] %vm1662, %v1598
        %1664 = vst.msk [vmem:[%s265 + $0x4] sm:$0xf] %vm1662, %v1599
        %1665 = vst.msk [vmem:[%s265 + $0x8] sm:$0xf] %vm1662, %v1600
        %1666 = vst.msk [vmem:[%s265 + $0xc] sm:$0xf] %vm1662, %v1601
        %1667 = vst.msk [vmem:[%s265 + $0x10] sm:$0xf] %vm1662, %v1602
        %1668 = vst.msk [vmem:[%s265 + $0x14] sm:$0xf] %vm1662, %v1603
        %1669 = vst.msk [vmem:[%s265 + $0x18] sm:$0xf] %vm1662, %v1604
        %1670 = vst.msk [vmem:[%s265 + $0x1c] sm:$0xf] %vm1662, %v1605
        %1671 = vst.msk [vmem:[%s265 + $0x20] sm:$0xf] %vm1662, %v1606
        %1672 = vst.msk [vmem:[%s265 + $0x24] sm:$0xf] %vm1662, %v1607
        %1673 = vst.msk [vmem:[%s265 + $0x28] sm:$0xf] %vm1662, %v1608
        %1674 = vst.msk [vmem:[%s265 + $0x2c] sm:$0xf] %vm1662, %v1609
        %1675 = vst.msk [vmem:[%s265 + $0x30] sm:$0xf] %vm1662, %v1610
        %1676 = vst.msk [vmem:[%s265 + $0x34] sm:$0xf] %vm1662, %v1611
        %1677 = vst.msk [vmem:[%s265 + $0x38] sm:$0xf] %vm1662, %v1612
        %1678 = vst.msk [vmem:[%s265 + $0x3c] sm:$0xf] %vm1662, %v1613
        %1679 = vst.msk [vmem:[%s265 + $0x40] sm:$0xf] %vm1662, %v1614
        %1680 = vst.msk [vmem:[%s265 + $0x44] sm:$0xf] %vm1662, %v1615
        %1681 = vst.msk [vmem:[%s265 + $0x48] sm:$0xf] %vm1662, %v1616
        %1682 = vst.msk [vmem:[%s265 + $0x4c] sm:$0xf] %vm1662, %v1617
        %1683 = vst.msk [vmem:[%s265 + $0x50] sm:$0xf] %vm1662, %v1618
        %1684 = vst.msk [vmem:[%s265 + $0x54] sm:$0xf] %vm1662, %v1619
        %1685 = vst.msk [vmem:[%s265 + $0x58] sm:$0xf] %vm1662, %v1620
        %1686 = vst.msk [vmem:[%s265 + $0x5c] sm:$0xf] %vm1662, %v1621
        %1687 = vst.msk [vmem:[%s265 + $0x60] sm:$0xf] %vm1662, %v1622
        %1688 = vst.msk [vmem:[%s265 + $0x64] sm:$0xf] %vm1662, %v1623
        %1689 = vst.msk [vmem:[%s265 + $0x68] sm:$0xf] %vm1662, %v1624
        %1690 = vst.msk [vmem:[%s265 + $0x6c] sm:$0xf] %vm1662, %v1625
        %1691 = vst.msk [vmem:[%s265 + $0x70] sm:$0xf] %vm1662, %v1626
        %1692 = vst.msk [vmem:[%s265 + $0x74] sm:$0xf] %vm1662, %v1627
        %1693 = vst.msk [vmem:[%s265 + $0x78] sm:$0xf] %vm1662, %v1628
        %1694 = vst.msk [vmem:[%s265 + $0x7c] sm:$0xf] %vm1662, %v1629
      $region40: #{d_net128_forward.7} parent=31 // pred_fallthru
        _
      %s1695 = smul.u32 32, %s19
      %p1696 = scmp.lt.s32.totalorder %s1695, 255
      %s1697 = scalar_select %p1696, %s1695, 255
      %p1698 = scmp.lt.s32.totalorder %s20, 0
      %s1699 = scalar_select %p1698, %s20, 0
      %s1700 = sadd.s32 %s1699, %s1697
      %s1701 = smul.addr %s1700, 4
      %s1702 = scalar_lea.vmem %s3, %s1701
      // Predicated region
      $region41: #{d_net128_forward.7} parent=31 // pred_check
        %p1703 = pneg %p135
      $region42: #{d_net128_forward.7} parent=31 // pred_check_branch
        %1705 = sbr.rel (%p1703) target = $region44
      $region43: #{d_net128_forward.7} parent=31 // pred_region
        %s1706 = smul.u32 32, %s19
      $region44: #{d_net128_forward.7} parent=31 // pred_fallthru
        _
    $region32: #{d_net128_forward.7} parent=5 // pred_fallthru
      _
    %p1707 = scmp.le.s32.totalorder 2, %s9
    // Predicated region
    $region45: #{d_net128_forward.7} parent=5 // pred_check
      %p1708 = pneg %p1707
    $region46: #{d_net128_forward.7} parent=5 // pred_check_branch
      %1710 = sbr.rel (%p1708) target = $region48
    $region47: #{d_net128_forward.7} parent=5 // pred_region
      %s1711 = ssub.s32 %s9, 2
      // Predicated region
      $region49: #{d_net128_forward.7} parent=47 // pred_check
        %p1712 = pneg %p141
      $region50: #{d_net128_forward.7} parent=47 // pred_check_branch
        %1714 = sbr.rel (%p1712) target = $region52
      $region51: #{d_net128_forward.7} parent=47 // pred_region
        %s1715 = smul.u32 32, %s22
        %p1716 = scmp.lt.s32.totalorder %s1715, 255
        %s1717 = scalar_select %p1716, %s1715, 255
        %p1718 = scmp.lt.s32.totalorder %s23, 0
        %s1719 = scalar_select %p1718, %s23, 0
        %s1720 = sadd.s32 %s1719, %s1717
        %s1721 = smul.addr %s1720, 4
        %s1722 = scalar_lea.vmem %s3, %s1721
      $region52: #{d_net128_forward.7} parent=47 // pred_fallthru
        _
    $region48: #{d_net128_forward.7} parent=5 // pred_fallthru
      _
  $region6: #{d_net128_forward.7} parent=0 // loop_footer
    %s13 = sadd.s32 1, %s9
  $region7: #{d_net128_forward.7} parent=0 // loop_footer_branch
    %8 = sbr.rel target = $region3
  $region8: #{d_net128_forward.7} parent=0 // loop_exit
    _

// kernel: d_net128_forward.8
$region0: #{d_net128_forward.8}
  #allocation0 [shape = 'u32[]', space=smem, size = 0x4, offset = 0x4, fixed_abs, tag = 'smem constant byte address 0x4 - core index']
  #allocation1 [shape = 'u32[144,128]{1,0:T(1,128)}', space=vmem, size = 0x12000, scoped, tag = 'internal scratch']
  #allocation2 [shape = 'f32[256,128]{1,0:T(8,128)}', space=vmem, size = 0x20000, scoped, tag = 'scratch operand']
  %s0 = inlined_call_operand.vmem [shape: bf16[512,1024], index: 0, kind: input, shape index: {}]
  %s1 = inlined_call_operand.vmem [shape: bf16[1024,128], index: 1, kind: input, shape index: {}]
  %s2 = inlined_call_operand.vmem [shape: f32[1,128], index: 2, kind: input, shape index: {}]
  %s3 = inlined_call_operand.vmem [shape: bf16[512,128], index: 3, kind: output, shape index: {}]
  %s4 = sld [smem:[#allocation0]]
  $region76: #{d_net128_forward.8} parent=0
    _
  %s6 = ssub.s32 1, %s4
  %s7 = scalar_select 0, %s6, %s4
  $region1: #{d_net128_forward.8} parent=0
    #allocation3 [shape = 'u8[524288]{0}', space=vmem, size = 0x80000, scoped, tag = 'input window, operand 0']
    loop: start=0, step=1, limit=6
    $region2: #{d_net128_forward.8} parent=1 // loop_pre_header
      _
    $region3: #{d_net128_forward.8} parent=1 // loop_header
      %s9 = sphi 0, %s13
      %p10 = scmp.ge.s32.totalorder %s9, 6
      %s16 = sphi 0, %s35
      %s17 = sphi 0, %s31
      %s18 = sphi 0, %s27
      %s19 = sphi 0, %s16
      %s20 = sphi 0, %s17
      %s21 = sphi 0, %s18
      %s22 = sphi 0, %s19
      %s23 = sphi 0, %s20
      %s24 = sphi 0, %s21
      %s40 = sphi 0, %s42
      %s43 = sphi 0, %s40
      %s44 = sphi 0, %s43
      %s60 = sphi 0, %s44
      %s68 = sphi 0, %s70
      %s71 = sphi 0, %s68
      %s72 = sphi 0, %s71
      %s88 = sphi 0, %s72
      %s94 = sphi 0, %s96
      %s97 = sphi 0, %s94
      %s98 = sphi 0, %s97
      %s114 = sphi 0, %s98
      %s122 = sphi 0, %s124
      %s125 = sphi 0, %s122
      %s126 = sphi 0, %s125
      %s142 = sphi 0, %s126
    $region4: #{d_net128_forward.8} parent=1 // loop_header_branch
      %12 = sbr.rel (%p10) target = $region8
    $region5: #{d_net128_forward.8} parent=1 // loop_body
      %s14 = ssub.s32 %s9, 1
      %s15 = ssub.s32 %s9, 2
      %s25 = sadd.s32 1, %s18
      %p26 = scmp.ge.s32.totalorder %s25, 2
      %s27 = scalar_select %p26, 0, %s25
      %s28 = sadd.s32 1, %s17
      %s29 = scalar_select %p26, %s28, %s17
      %p30 = scmp.ge.s32.totalorder %s29, 1
      %s31 = scalar_select %p30, 0, %s29
      %s32 = sadd.s32 1, %s16
      %s33 = scalar_select %p30, %s32, %s16
      %p34 = scmp.ge.s32.totalorder %s33, 2
      %s35 = scalar_select %p34, 0, %s33
      %s36 = ssub.s32 %s16, %s35
      %s37 = ssub.s32 %s18, %s27
      %s38 = sor.u32 %s36, %s37
      %p39 = scmp.eq.s32.totalorder %s38, 0
      %s41 = sadd.s32 %s40, 1
      %s42 = scalar_select %p39, %s40, %s41
      %p45 = pneg %p39
      %p46 = scmp.eq.s32.totalorder %s9, 3
      %p47 = por %p45, %p46
      %p48 = scmp.ne.s32.totalorder %s40, %s43
      %p49 = scmp.eq.s32.totalorder %s9, 0
      %p50 = por %p48, %p49
      %p51 = scmp.ne.s32.totalorder %s40, %s43
      %p52 = scmp.eq.s32.totalorder %s14, 3
      %p53 = por %p51, %p52
      %p54 = scmp.ne.s32.totalorder %s43, %s44
      %p55 = scmp.eq.s32.totalorder %s14, 0
      %p56 = por %p54, %p55
      %p57 = scmp.ne.s32.totalorder %s43, %s44
      %p58 = scmp.eq.s32.totalorder %s15, 3
      %p59 = por %p57, %p58
      %p61 = scmp.ne.s32.totalorder %s44, %s60
      %p62 = scmp.eq.s32.totalorder %s15, 0
      %p63 = por %p61, %p62
      %s64 = ssub.s32 %s18, %s27
      %s65 = ssub.s32 %s17, %s31
      %s66 = sor.u32 %s64, %s65
      %p67 = scmp.eq.s32.totalorder %s66, 0
      %s69 = sadd.s32 %s68, 1
      %s70 = scalar_select %p67, %s68, %s69
      %p73 = pneg %p67
      %p74 = scmp.eq.s32.totalorder %s9, 3
      %p75 = por %p73, %p74
      %p76 = scmp.ne.s32.totalorder %s68, %s71
      %p77 = scmp.eq.s32.totalorder %s9, 0
      %p78 = por %p76, %p77
      %p79 = scmp.ne.s32.totalorder %s68, %s71
      %p80 = scmp.eq.s32.totalorder %s14, 3
      %p81 = por %p79, %p80
      %p82 = scmp.ne.s32.totalorder %s71, %s72
      %p83 = scmp.eq.s32.totalorder %s14, 0
      %p84 = por %p82, %p83
      %p85 = scmp.ne.s32.totalorder %s71, %s72
      %p86 = scmp.eq.s32.totalorder %s15, 3
      %p87 = por %p85, %p86
      %p89 = scmp.ne.s32.totalorder %s72, %s88
      %p90 = scmp.eq.s32.totalorder %s15, 0
      %p91 = por %p89, %p90
      %s92 = ssub.s32 %s17, %s31
      %p93 = scmp.eq.s32.totalorder %s92, 0
      %s95 = sadd.s32 %s94, 1
      %s96 = scalar_select %p93, %s94, %s95
      %p99 = pneg %p93
      %p100 = scmp.eq.s32.totalorder %s9, 3
      %p101 = por %p99, %p100
      %p102 = scmp.ne.s32.totalorder %s94, %s97
      %p103 = scmp.eq.s32.totalorder %s9, 0
      %p104 = por %p102, %p103
      %p105 = scmp.ne.s32.totalorder %s94, %s97
      %p106 = scmp.eq.s32.totalorder %s14, 3
      %p107 = por %p105, %p106
      %p108 = scmp.ne.s32.totalorder %s97, %s98
      %p109 = scmp.eq.s32.totalorder %s14, 0
      %p110 = por %p108, %p109
      %p111 = scmp.ne.s32.totalorder %s97, %s98
      %p112 = scmp.eq.s32.totalorder %s15, 3
      %p113 = por %p111, %p112
      %p115 = scmp.ne.s32.totalorder %s98, %s114
      %p116 = scmp.eq.s32.totalorder %s15, 0
      %p117 = por %p115, %p116
      %s118 = ssub.s32 %s16, %s35
      %s119 = ssub.s32 %s17, %s31
      %s120 = sor.u32 %s118, %s119
      %p121 = scmp.eq.s32.totalorder %s120, 0
      %s123 = sadd.s32 %s122, 1
      %s124 = scalar_select %p121, %s122, %s123
      %p127 = pneg %p121
      %p128 = scmp.eq.s32.totalorder %s9, 3
      %p129 = por %p127, %p128
      %p130 = scmp.ne.s32.totalorder %s122, %s125
      %p131 = scmp.eq.s32.totalorder %s9, 0
      %p132 = por %p130, %p131
      %p133 = scmp.ne.s32.totalorder %s122, %s125
      %p134 = scmp.eq.s32.totalorder %s14, 3
      %p135 = por %p133, %p134
      %p136 = scmp.ne.s32.totalorder %s125, %s126
      %p137 = scmp.eq.s32.totalorder %s14, 0
      %p138 = por %p136, %p137
      %p139 = scmp.ne.s32.totalorder %s125, %s126
      %p140 = scmp.eq.s32.totalorder %s15, 3
      %p141 = por %p139, %p140
      %p143 = scmp.ne.s32.totalorder %s126, %s142
      %p144 = scmp.eq.s32.totalorder %s15, 0
      %p145 = por %p143, %p144
      %p146 = scmp.le.s32.totalorder 1, %s9
      %p147 = scmp.lt.s32.totalorder %s9, 5
      %p148 = pnand %p146, %p147
      %p149 = pneg %p148
      // Predicated region
      $region9: #{d_net128_forward.8} parent=5 // pred_check
        _
      $region10: #{d_net128_forward.8} parent=5 // pred_check_branch
        %151 = sbr.rel (%p148) target = $region12
      $region11: #{d_net128_forward.8} parent=5 // pred_region
        %s152 = ssub.s32 %s9, 1
        // Predicated region
        $region13: #{d_net128_forward.8} parent=11 // pred_check
          %p153 = pneg %p110
        $region14: #{d_net128_forward.8} parent=11 // pred_check_branch
          %155 = sbr.rel (%p153) target = $region16
        $region15: #{d_net128_forward.8} parent=11 // pred_region
          %p156 = scmp.lt.s32.totalorder %s20, 0
          %s157 = scalar_select %p156, %s20, 0
          %s158 = scalar_lea.vmem %s2, %s157
        $region16: #{d_net128_forward.8} parent=11 // pred_fallthru
          _
      $region12: #{d_net128_forward.8} parent=5 // pred_fallthru
        _
      %p159 = scmp.lt.s32.totalorder %s9, 4
      // Predicated region
      $region17: #{d_net128_forward.8} parent=5 // pred_check
        %p160 = pneg %p159
      $region18: #{d_net128_forward.8} parent=5 // pred_check_branch
        %162 = sbr.rel (%p160) target = $region20
      $region19: #{d_net128_forward.8} parent=5 // pred_region
        // Predicated region
        $region21: #{d_net128_forward.8} parent=19 // pred_check
          %p163 = pneg %p50
        $region22: #{d_net128_forward.8} parent=19 // pred_check_branch
          %165 = sbr.rel (%p163) target = $region24
        $region23: #{d_net128_forward.8} parent=19 // pred_region
          %s166 = sand.u32 %s40, 1
          %s167 = sand.u32 %s40, 1
          %s168 = smul.addr %s167, 512
          %s169 = scalar_lea.vmem [#allocation3], %s168
          %s170 = smul.u32 32, %s16
          %s171 = smul.u32 4, %s18
          %s172 = smul.addr %s170, 8
          %s173 = sadd.s32 %s171, %s172
          %s174 = smul.addr %s173, 4
          %s175 = scalar_lea.vmem %s0, %s174
          // Predicated region
          $region25: #{d_net128_forward.8} parent=23 // pred_check
            _
          $region26: #{d_net128_forward.8} parent=23 // pred_check_branch
            %177 = sbr.rel (0) target = $region28
          $region27: #{d_net128_forward.8} parent=23 // pred_region
            // Predicated region
            $region29: #{d_net128_forward.8} parent=27 // pred_check
              _
            $region30: #{d_net128_forward.8} parent=27 // pred_check_branch
              %179 = sbr.rel (0) target = $region32
            $region31: #{d_net128_forward.8} parent=27 // pred_region
              loop: start=0, step=1, limit=1
              $region33: #{d_net128_forward.8} parent=31 // loop_pre_header
                _
              $region34: #{d_net128_forward.8} parent=31 // loop_header
                %s181 = sphi 0, %s185
                %p182 = scmp.ge.s32.totalorder %s181, 1
                %s186 = sphi %s175, %s175
                %s187 = sphi %s169, %s169
              $region35: #{d_net128_forward.8} parent=31 // loop_header_branch
                %184 = sbr.rel (%p182) target = $region39
              $region36: #{d_net128_forward.8} parent=31 // loop_body
                %v188 = vld [vmem:[%s186] sm:$0xff]
                %189 = vst [vmem:[%s187] sm:$0xff] %v188
                %v190 = vld [vmem:[%s186 + $0x8] sm:$0xff]
                %191 = vst [vmem:[%s187 + $0x8] sm:$0xff] %v190
                %v192 = vld [vmem:[%s186 + $0x20] sm:$0xff]
                %193 = vst [vmem:[%s187 + $0x10] sm:$0xff] %v192
                %v194 = vld [vmem:[%s186 + $0x28] sm:$0xff]
                %195 = vst [vmem:[%s187 + $0x18] sm:$0xff] %v194
                %v196 = vld [vmem:[%s186 + $0x40] sm:$0xff]
                %197 = vst [vmem:[%s187 + $0x20] sm:$0xff] %v196
                %v198 = vld [vmem:[%s186 + $0x48] sm:$0xff]
                %199 = vst [vmem:[%s187 + $0x28] sm:$0xff] %v198
                %v200 = vld [vmem:[%s186 + $0x60] sm:$0xff]
                %201 = vst [vmem:[%s187 + $0x30] sm:$0xff] %v200
                %v202 = vld [vmem:[%s186 + $0x68] sm:$0xff]
                %203 = vst [vmem:[%s187 + $0x38] sm:$0xff] %v202
                %v204 = vld [vmem:[%s186 + $0x80] sm:$0xff]
                %205 = vst [vmem:[%s187 + $0x40] sm:$0xff] %v204
                %v206 = vld [vmem:[%s186 + $0x88] sm:$0xff]
                %207 = vst [vmem:[%s187 + $0x48] sm:$0xff] %v206
                %v208 = vld [vmem:[%s186 + $0xa0] sm:$0xff]
                %209 = vst [vmem:[%s187 + $0x50] sm:$0xff] %v208
                %v210 = vld [vmem:[%s186 + $0xa8] sm:$0xff]
                %211 = vst [vmem:[%s187 + $0x58] sm:$0xff] %v210
                %v212 = vld [vmem:[%s186 + $0xc0] sm:$0xff]
                %213 = vst [vmem:[%s187 + $0x60] sm:$0xff] %v212
                %v214 = vld [vmem:[%s186 + $0xc8] sm:$0xff]
                %215 = vst [vmem:[%s187 + $0x68] sm:$0xff] %v214
                %v216 = vld [vmem:[%s186 + $0xe0] sm:$0xff]
                %217 = vst [vmem:[%s187 + $0x70] sm:$0xff] %v216
                %v218 = vld [vmem:[%s186 + $0xe8] sm:$0xff]
                %219 = vst [vmem:[%s187 + $0x78] sm:$0xff] %v218
                %v220 = vld [vmem:[%s186 + $0x100] sm:$0xff]
                %221 = vst [vmem:[%s187 + $0x80] sm:$0xff] %v220
                %v222 = vld [vmem:[%s186 + $0x108] sm:$0xff]
                %223 = vst [vmem:[%s187 + $0x88] sm:$0xff] %v222
                %v224 = vld [vmem:[%s186 + $0x120] sm:$0xff]
                %225 = vst [vmem:[%s187 + $0x90] sm:$0xff] %v224
                %v226 = vld [vmem:[%s186 + $0x128] sm:$0xff]
                %227 = vst [vmem:[%s187 + $0x98] sm:$0xff] %v226
                %v228 = vld [vmem:[%s186 + $0x140] sm:$0xff]
                %229 = vst [vmem:[%s187 + $0xa0] sm:$0xff] %v228
                %v230 = vld [vmem:[%s186 + $0x148] sm:$0xff]
                %231 = vst [vmem:[%s187 + $0xa8] sm:$0xff] %v230
                %v232 = vld [vmem:[%s186 + $0x160] sm:$0xff]
                %233 = vst [vmem:[%s187 + $0xb0] sm:$0xff] %v232
                %v234 = vld [vmem:[%s186 + $0x168] sm:$0xff]
                %235 = vst [vmem:[%s187 + $0xb8] sm:$0xff] %v234
                %v236 = vld [vmem:[%s186 + $0x180] sm:$0xff]
                %237 = vst [vmem:[%s187 + $0xc0] sm:$0xff] %v236
                %v238 = vld [vmem:[%s186 + $0x188] sm:$0xff]
                %239 = vst [vmem:[%s187 + $0xc8] sm:$0xff] %v238
                %v240 = vld [vmem:[%s186 + $0x1a0] sm:$0xff]
                %241 = vst [vmem:[%s187 + $0xd0] sm:$0xff] %v240
                %v242 = vld [vmem:[%s186 + $0x1a8] sm:$0xff]
                %243 = vst [vmem:[%s187 + $0xd8] sm:$0xff] %v242
                %v244 = vld [vmem:[%s186 + $0x1c0] sm:$0xff]
                %245 = vst [vmem:[%s187 + $0xe0] sm:$0xff] %v244
                %v246 = vld [vmem:[%s186 + $0x1c8] sm:$0xff]
                %247 = vst [vmem:[%s187 + $0xe8] sm:$0xff] %v246
                %v248 = vld [vmem:[%s186 + $0x1e0] sm:$0xff]
                %249 = vst [vmem:[%s187 + $0xf0] sm:$0xff] %v248
                %v250 = vld [vmem:[%s186 + $0x1e8] sm:$0xff]
                %251 = vst [vmem:[%s187 + $0xf8] sm:$0xff] %v250
                %v252 = vld [vmem:[%s186 + $0x200] sm:$0xff]
                %253 = vst [vmem:[%s187 + $0x100] sm:$0xff] %v252
                %v254 = vld [vmem:[%s186 + $0x208] sm:$0xff]
                %255 = vst [vmem:[%s187 + $0x108] sm:$0xff] %v254
                %v256 = vld [vmem:[%s186 + $0x220] sm:$0xff]
                %257 = vst [vmem:[%s187 + $0x110] sm:$0xff] %v256
                %v258 = vld [vmem:[%s186 + $0x228] sm:$0xff]
                %259 = vst [vmem:[%s187 + $0x118] sm:$0xff] %v258
                %v260 = vld [vmem:[%s186 + $0x240] sm:$0xff]
                %261 = vst [vmem:[%s187 + $0x120] sm:$0xff] %v260
                %v262 = vld [vmem:[%s186 + $0x248] sm:$0xff]
                %263 = vst [vmem:[%s187 + $0x128] sm:$0xff] %v262
                %v264 = vld [vmem:[%s186 + $0x260] sm:$0xff]
                %265 = vst [vmem:[%s187 + $0x130] sm:$0xff] %v264
                %v266 = vld [vmem:[%s186 + $0x268] sm:$0xff]
                %267 = vst [vmem:[%s187 + $0x138] sm:$0xff] %v266
                %v268 = vld [vmem:[%s186 + $0x280] sm:$0xff]
                %269 = vst [vmem:[%s187 + $0x140] sm:$0xff] %v268
                %v270 = vld [vmem:[%s186 + $0x288] sm:$0xff]
                %271 = vst [vmem:[%s187 + $0x148] sm:$0xff] %v270
                %v272 = vld [vmem:[%s186 + $0x2a0] sm:$0xff]
                %273 = vst [vmem:[%s187 + $0x150] sm:$0xff] %v272
                %v274 = vld [vmem:[%s186 + $0x2a8] sm:$0xff]
                %275 = vst [vmem:[%s187 + $0x158] sm:$0xff] %v274
                %v276 = vld [vmem:[%s186 + $0x2c0] sm:$0xff]
                %277 = vst [vmem:[%s187 + $0x160] sm:$0xff] %v276
                %v278 = vld [vmem:[%s186 + $0x2c8] sm:$0xff]
                %279 = vst [vmem:[%s187 + $0x168] sm:$0xff] %v278
                %v280 = vld [vmem:[%s186 + $0x2e0] sm:$0xff]
                %281 = vst [vmem:[%s187 + $0x170] sm:$0xff] %v280
                %v282 = vld [vmem:[%s186 + $0x2e8] sm:$0xff]
                %283 = vst [vmem:[%s187 + $0x178] sm:$0xff] %v282
                %v284 = vld [vmem:[%s186 + $0x300] sm:$0xff]
                %285 = vst [vmem:[%s187 + $0x180] sm:$0xff] %v284
                %v286 = vld [vmem:[%s186 + $0x308] sm:$0xff]
                %287 = vst [vmem:[%s187 + $0x188] sm:$0xff] %v286
                %v288 = vld [vmem:[%s186 + $0x320] sm:$0xff]
                %289 = vst [vmem:[%s187 + $0x190] sm:$0xff] %v288
                %v290 = vld [vmem:[%s186 + $0x328] sm:$0xff]
                %291 = vst [vmem:[%s187 + $0x198] sm:$0xff] %v290
                %v292 = vld [vmem:[%s186 + $0x340] sm:$0xff]
                %293 = vst [vmem:[%s187 + $0x1a0] sm:$0xff] %v292
                %v294 = vld [vmem:[%s186 + $0x348] sm:$0xff]
                %295 = vst [vmem:[%s187 + $0x1a8] sm:$0xff] %v294
                %v296 = vld [vmem:[%s186 + $0x360] sm:$0xff]
                %297 = vst [vmem:[%s187 + $0x1b0] sm:$0xff] %v296
                %v298 = vld [vmem:[%s186 + $0x368] sm:$0xff]
                %299 = vst [vmem:[%s187 + $0x1b8] sm:$0xff] %v298
                %v300 = vld [vmem:[%s186 + $0x380] sm:$0xff]
                %301 = vst [vmem:[%s187 + $0x1c0] sm:$0xff] %v300
                %v302 = vld [vmem:[%s186 + $0x388] sm:$0xff]
                %303 = vst [vmem:[%s187 + $0x1c8] sm:$0xff] %v302
                %v304 = vld [vmem:[%s186 + $0x3a0] sm:$0xff]
                %305 = vst [vmem:[%s187 + $0x1d0] sm:$0xff] %v304
                %v306 = vld [vmem:[%s186 + $0x3a8] sm:$0xff]
                %307 = vst [vmem:[%s187 + $0x1d8] sm:$0xff] %v306
                %v308 = vld [vmem:[%s186 + $0x3c0] sm:$0xff]
                %309 = vst [vmem:[%s187 + $0x1e0] sm:$0xff] %v308
                %v310 = vld [vmem:[%s186 + $0x3c8] sm:$0xff]
                %311 = vst [vmem:[%s187 + $0x1e8] sm:$0xff] %v310
                %v312 = vld [vmem:[%s186 + $0x3e0] sm:$0xff]
                %313 = vst [vmem:[%s187 + $0x1f0] sm:$0xff] %v312
                %v314 = vld [vmem:[%s186 + $0x3e8] sm:$0xff]
                %315 = vst [vmem:[%s187 + $0x1f8] sm:$0xff] %v314
              $region37: #{d_net128_forward.8} parent=31 // loop_footer
                %s185 = sadd.s32 1, %s181
              $region38: #{d_net128_forward.8} parent=31 // loop_footer_branch
                %180 = sbr.rel target = $region34
              $region39: #{d_net128_forward.8} parent=31 // loop_exit
                _
            $region32: #{d_net128_forward.8} parent=27 // pred_fallthru
              _
            // Predicated region
            $region40: #{d_net128_forward.8} parent=27 // pred_check
              _
            $region41: #{d_net128_forward.8} parent=27 // pred_check_branch
              %317 = sbr.rel target = $region43
            $region42: #{d_net128_forward.8} parent=27 // pred_region
              _
            $region43: #{d_net128_forward.8} parent=27 // pred_fallthru
              _
          $region28: #{d_net128_forward.8} parent=23 // pred_fallthru
            _
          %318 = vnop
        $region24: #{d_net128_forward.8} parent=19 // pred_fallthru
          _
        // Predicated region
        $region44: #{d_net128_forward.8} parent=19 // pred_check
          %p319 = pneg %p78
        $region45: #{d_net128_forward.8} parent=19 // pred_check_branch
          %321 = sbr.rel (%p319) target = $region47
        $region46: #{d_net128_forward.8} parent=19 // pred_region
          %s322 = smul.u32 64, %s18
          %p323 = scmp.lt.s32.totalorder %s322, 127
          %s324 = scalar_select %p323, %s322, 127
          %p325 = scmp.lt.s32.totalorder %s17, 0
          %s326 = scalar_select %p325, %s17, 0
          %s327 = sadd.s32 %s326, %s324
          %s328 = smul.addr %s327, 4
          %s329 = scalar_lea.vmem %s1, %s328
          %s330 = smul.u32 64, %s18
        $region47: #{d_net128_forward.8} parent=19 // pred_fallthru
          _
      $region20: #{d_net128_forward.8} parent=5 // pred_fallthru
        _
      %p331 = scmp.le.s32.totalorder 1, %s9
      %p332 = scmp.lt.s32.totalorder %s9, 5
      %p333 = pnand %p331, %p332
      %p334 = pneg %p333
      // Predicated region
      $region48: #{d_net128_forward.8} parent=5 // pred_check
        _
      $region49: #{d_net128_forward.8} parent=5 // pred_check_branch
        %336 = sbr.rel (%p333) target = $region51
      $region50: #{d_net128_forward.8} parent=5 // pred_region
        %s337 = ssub.s32 %s9, 1
        %s338 = sand.u32 %s43, 1
        %s339 = sand.u32 %s43, 1
        %s340 = smul.addr %s339, 512
        %s341 = scalar_lea.vmem [#allocation3], %s340
        // Predicated region
        $region52: #{d_net128_forward.8} parent=50 // pred_check
          %p342 = pneg %p56
        $region53: #{d_net128_forward.8} parent=50 // pred_check_branch
          %344 = sbr.rel (%p342) target = $region55
        $region54: #{d_net128_forward.8} parent=50 // pred_region
          _
        $region55: #{d_net128_forward.8} parent=50 // pred_fallthru
          _
        %s345 = sand.u32 %s43, 1
        %s346 = sand.u32 %s43, 1
        %s347 = smul.addr %s346, 512
        %s348 = scalar_lea.vmem [#allocation3], %s347
        %p349 = pneg %p56
        %p350 = pneg %p53
        %s351 = smul.u32 64, %s21
        %p352 = scmp.lt.s32.totalorder %s351, 127
        %s353 = scalar_select %p352, %s351, 127
        %p354 = scmp.lt.s32.totalorder %s20, 0
        %s355 = scalar_select %p354, %s20, 0
        %s356 = sadd.s32 %s355, %s353
        %s357 = smul.addr %s356, 4
        %s358 = scalar_lea.vmem %s1, %s357
        %p359 = pneg %p84
        %p360 = pneg %p81
        %p361 = scmp.lt.s32.totalorder %s20, 0
        %s362 = scalar_select %p361, %s20, 0
        %s363 = scalar_lea.vmem %s2, %s362
        %p364 = pneg %p110
        %p365 = pneg %p107
        %p366 = pneg %p138
        %p367 = pneg %p135
        %s368 = smul.u32 32, %s19
        %p369 = scmp.lt.s32.totalorder %s368, 63
        %s370 = scalar_select %p369, %s368, 63
        %p371 = scmp.lt.s32.totalorder %s20, 0
        %s372 = scalar_select %p371, %s20, 0
        %s373 = sadd.s32 %s372, %s370
        %s374 = smul.addr %s373, 4
        %s375 = scalar_lea.vmem %s3, %s374
        %s376 = smul.u32 32, %s19
        %s377 = smul.u32 4, %s21
        %s378 = smul.u32 64, %s21
        %p379 = scmp.lt.s32.totalorder %s378, 127
        %s380 = scalar_select %p379, %s378, 127
        %p381 = scmp.lt.s32.totalorder %s20, 0
        %s382 = scalar_select %p381, %s20, 0
        %s383 = sadd.s32 %s382, %s380
        %s384 = smul.addr %s383, 4
        %s385 = scalar_lea.vmem %s1, %s384
        %s386 = smul.u32 64, %s21
        %p387 = scmp.lt.s32.totalorder %s20, 0
        %s388 = scalar_select %p387, %s20, 0
        %s389 = scalar_lea.vmem %s2, %s388
        %s390 = smul.u32 32, %s19
        %p391 = scmp.lt.s32.totalorder %s390, 63
        %s392 = scalar_select %p391, %s390, 63
        %p393 = scmp.lt.s32.totalorder %s20, 0
        %s394 = scalar_select %p393, %s20, 0
        %s395 = sadd.s32 %s394, %s392
        %s396 = smul.addr %s395, 4
        %s397 = scalar_lea.vmem %s3, %s396
        %s398 = smul.u32 32, %s19
        %p400 = scmp.eq.s32.totalorder %s21, 0
        // Predicated region
        $region56: #{d_net128_forward.8} parent=50 // pred_check
          %p401 = pneg %p400
        $region57: #{d_net128_forward.8} parent=50 // pred_check_branch
          %403 = sbr.rel (%p401) target = $region59
        $region58: #{d_net128_forward.8} parent=50 // pred_region
          %404 = vst [vmem:[#allocation2] sm:$0xff] 0.0
          %405 = vst [vmem:[#allocation2 + $0x8] sm:$0xff] 0.0
          %406 = vst [vmem:[#allocation2 + $0x10] sm:$0xff] 0.0
          %407 = vst [vmem:[#allocation2 + $0x18] sm:$0xff] 0.0
          %408 = vst [vmem:[#allocation2 + $0x20] sm:$0xff] 0.0
          %409 = vst [vmem:[#allocation2 + $0x28] sm:$0xff] 0.0
          %410 = vst [vmem:[#allocation2 + $0x30] sm:$0xff] 0.0
          %411 = vst [vmem:[#allocation2 + $0x38] sm:$0xff] 0.0
          %412 = vst [vmem:[#allocation2 + $0x40] sm:$0xff] 0.0
          %413 = vst [vmem:[#allocation2 + $0x48] sm:$0xff] 0.0
          %414 = vst [vmem:[#allocation2 + $0x50] sm:$0xff] 0.0
          %415 = vst [vmem:[#allocation2 + $0x58] sm:$0xff] 0.0
          %416 = vst [vmem:[#allocation2 + $0x60] sm:$0xff] 0.0
          %417 = vst [vmem:[#allocation2 + $0x68] sm:$0xff] 0.0
          %418 = vst [vmem:[#allocation2 + $0x70] sm:$0xff] 0.0
          %419 = vst [vmem:[#allocation2 + $0x78] sm:$0xff] 0.0
          %420 = vst [vmem:[#allocation2 + $0x80] sm:$0xff] 0.0
          %421 = vst [vmem:[#allocation2 + $0x88] sm:$0xff] 0.0
          %422 = vst [vmem:[#allocation2 + $0x90] sm:$0xff] 0.0
          %423 = vst [vmem:[#allocation2 + $0x98] sm:$0xff] 0.0
          %424 = vst [vmem:[#allocation2 + $0xa0] sm:$0xff] 0.0
          %425 = vst [vmem:[#allocation2 + $0xa8] sm:$0xff] 0.0
          %426 = vst [vmem:[#allocation2 + $0xb0] sm:$0xff] 0.0
          %427 = vst [vmem:[#allocation2 + $0xb8] sm:$0xff] 0.0
          %428 = vst [vmem:[#allocation2 + $0xc0] sm:$0xff] 0.0
          %429 = vst [vmem:[#allocation2 + $0xc8] sm:$0xff] 0.0
          %430 = vst [vmem:[#allocation2 + $0xd0] sm:$0xff] 0.0
          %431 = vst [vmem:[#allocation2 + $0xd8] sm:$0xff] 0.0
          %432 = vst [vmem:[#allocation2 + $0xe0] sm:$0xff] 0.0
          %433 = vst [vmem:[#allocation2 + $0xe8] sm:$0xff] 0.0
          %434 = vst [vmem:[#allocation2 + $0xf0] sm:$0xff] 0.0
          %435 = vst [vmem:[#allocation2 + $0xf8] sm:$0xff] 0.0
        $region59: #{d_net128_forward.8} parent=50 // pred_fallthru
          _
        %v436 = vld [vmem:[#allocation2] sm:$0xff]
        %v437 = vld [vmem:[#allocation2 + $0x8] sm:$0xff]
        %v438 = vld [vmem:[#allocation2 + $0x10] sm:$0xff]
        %v439 = vld [vmem:[#allocation2 + $0x18] sm:$0xff]
        %v440 = vld [vmem:[#allocation2 + $0x20] sm:$0xff]
        %v441 = vld [vmem:[#allocation2 + $0x28] sm:$0xff]
        %v442 = vld [vmem:[#allocation2 + $0x30] sm:$0xff]
        %v443 = vld [vmem:[#allocation2 + $0x38] sm:$0xff]
        %v444 = vld [vmem:[#allocation2 + $0x40] sm:$0xff]
        %v445 = vld [vmem:[#allocation2 + $0x48] sm:$0xff]
        %v446 = vld [vmem:[#allocation2 + $0x50] sm:$0xff]
        %v447 = vld [vmem:[#allocation2 + $0x58] sm:$0xff]
        %v448 = vld [vmem:[#allocation2 + $0x60] sm:$0xff]
        %v449 = vld [vmem:[#allocation2 + $0x68] sm:$0xff]
        %v450 = vld [vmem:[#allocation2 + $0x70] sm:$0xff]
        %v451 = vld [vmem:[#allocation2 + $0x78] sm:$0xff]
        %v452 = vld [vmem:[#allocation2 + $0x80] sm:$0xff]
        %v453 = vld [vmem:[#allocation2 + $0x88] sm:$0xff]
        %v454 = vld [vmem:[#allocation2 + $0x90] sm:$0xff]
        %v455 = vld [vmem:[#allocation2 + $0x98] sm:$0xff]
        %v456 = vld [vmem:[#allocation2 + $0xa0] sm:$0xff]
        %v457 = vld [vmem:[#allocation2 + $0xa8] sm:$0xff]
        %v458 = vld [vmem:[#allocation2 + $0xb0] sm:$0xff]
        %v459 = vld [vmem:[#allocation2 + $0xb8] sm:$0xff]
        %v460 = vld [vmem:[#allocation2 + $0xc0] sm:$0xff]
        %v461 = vld [vmem:[#allocation2 + $0xc8] sm:$0xff]
        %v462 = vld [vmem:[#allocation2 + $0xd0] sm:$0xff]
        %v463 = vld [vmem:[#allocation2 + $0xd8] sm:$0xff]
        %v464 = vld [vmem:[#allocation2 + $0xe0] sm:$0xff]
        %v465 = vld [vmem:[#allocation2 + $0xe8] sm:$0xff]
        %v466 = vld [vmem:[#allocation2 + $0xf0] sm:$0xff]
        %v467 = vld [vmem:[#allocation2 + $0xf8] sm:$0xff]
        %v468 = vld [vmem:[%s341] sm:$0xff]
        %v469 = vld [vmem:[%s341 + $0x8] sm:$0xff]
        %v470 = vld [vmem:[%s341 + $0x10] sm:$0xff]
        %v471 = vld [vmem:[%s341 + $0x18] sm:$0xff]
        %v472 = vld [vmem:[%s341 + $0x20] sm:$0xff]
        %v473 = vld [vmem:[%s341 + $0x28] sm:$0xff]
        %v474 = vld [vmem:[%s341 + $0x30] sm:$0xff]
        %v475 = vld [vmem:[%s341 + $0x38] sm:$0xff]
        %v476 = vld [vmem:[%s341 + $0x40] sm:$0xff]
        %v477 = vld [vmem:[%s341 + $0x48] sm:$0xff]
        %v478 = vld [vmem:[%s341 + $0x50] sm:$0xff]
        %v479 = vld [vmem:[%s341 + $0x58] sm:$0xff]
        %v480 = vld [vmem:[%s341 + $0x60] sm:$0xff]
        %v481 = vld [vmem:[%s341 + $0x68] sm:$0xff]
        %v482 = vld [vmem:[%s341 + $0x70] sm:$0xff]
        %v483 = vld [vmem:[%s341 + $0x78] sm:$0xff]
        %v484 = vld [vmem:[%s341 + $0x80] sm:$0xff]
        %v485 = vld [vmem:[%s341 + $0x88] sm:$0xff]
        %v486 = vld [vmem:[%s341 + $0x90] sm:$0xff]
        %v487 = vld [vmem:[%s341 + $0x98] sm:$0xff]
        %v488 = vld [vmem:[%s341 + $0xa0] sm:$0xff]
        %v489 = vld [vmem:[%s341 + $0xa8] sm:$0xff]
        %v490 = vld [vmem:[%s341 + $0xb0] sm:$0xff]
        %v491 = vld [vmem:[%s341 + $0xb8] sm:$0xff]
        %v492 = vld [vmem:[%s341 + $0xc0] sm:$0xff]
        %v493 = vld [vmem:[%s341 + $0xc8] sm:$0xff]
        %v494 = vld [vmem:[%s341 + $0xd0] sm:$0xff]
        %v495 = vld [vmem:[%s341 + $0xd8] sm:$0xff]
        %v496 = vld [vmem:[%s341 + $0xe0] sm:$0xff]
        %v497 = vld [vmem:[%s341 + $0xe8] sm:$0xff]
        %v498 = vld [vmem:[%s341 + $0xf0] sm:$0xff]
        %v499 = vld [vmem:[%s341 + $0xf8] sm:$0xff]
        %v500 = vld [vmem:[%s341 + $0x100] sm:$0xff]
        %v501 = vld [vmem:[%s341 + $0x108] sm:$0xff]
        %v502 = vld [vmem:[%s341 + $0x110] sm:$0xff]
        %v503 = vld [vmem:[%s341 + $0x118] sm:$0xff]
        %v504 = vld [vmem:[%s341 + $0x120] sm:$0xff]
        %v505 = vld [vmem:[%s341 + $0x128] sm:$0xff]
        %v506 = vld [vmem:[%s341 + $0x130] sm:$0xff]
        %v507 = vld [vmem:[%s341 + $0x138] sm:$0xff]
        %v508 = vld [vmem:[%s341 + $0x140] sm:$0xff]
        %v509 = vld [vmem:[%s341 + $0x148] sm:$0xff]
        %v510 = vld [vmem:[%s341 + $0x150] sm:$0xff]
        %v511 = vld [vmem:[%s341 + $0x158] sm:$0xff]
        %v512 = vld [vmem:[%s341 + $0x160] sm:$0xff]
        %v513 = vld [vmem:[%s341 + $0x168] sm:$0xff]
        %v514 = vld [vmem:[%s341 + $0x170] sm:$0xff]
        %v515 = vld [vmem:[%s341 + $0x178] sm:$0xff]
        %v516 = vld [vmem:[%s341 + $0x180] sm:$0xff]
        %v517 = vld [vmem:[%s341 + $0x188] sm:$0xff]
        %v518 = vld [vmem:[%s341 + $0x190] sm:$0xff]
        %v519 = vld [vmem:[%s341 + $0x198] sm:$0xff]
        %v520 = vld [vmem:[%s341 + $0x1a0] sm:$0xff]
        %v521 = vld [vmem:[%s341 + $0x1a8] sm:$0xff]
        %v522 = vld [vmem:[%s341 + $0x1b0] sm:$0xff]
        %v523 = vld [vmem:[%s341 + $0x1b8] sm:$0xff]
        %v524 = vld [vmem:[%s341 + $0x1c0] sm:$0xff]
        %v525 = vld [vmem:[%s341 + $0x1c8] sm:$0xff]
        %v526 = vld [vmem:[%s341 + $0x1d0] sm:$0xff]
        %v527 = vld [vmem:[%s341 + $0x1d8] sm:$0xff]
        %v528 = vld [vmem:[%s341 + $0x1e0] sm:$0xff]
        %v529 = vld [vmem:[%s341 + $0x1e8] sm:$0xff]
        %v530 = vld [vmem:[%s341 + $0x1f0] sm:$0xff]
        %v531 = vld [vmem:[%s341 + $0x1f8] sm:$0xff]
        %v532 = vld [vmem:[%s385] sm:$0xf]
        %v533 = vld [vmem:[%s385 + $0x4] sm:$0xf]
        %v534 = vld [vmem:[%s385 + $0x8] sm:$0xf]
        %v535 = vld [vmem:[%s385 + $0xc] sm:$0xf]
        %v536 = vld [vmem:[%s385 + $0x10] sm:$0xf]
        %v537 = vld [vmem:[%s385 + $0x14] sm:$0xf]
        %v538 = vld [vmem:[%s385 + $0x18] sm:$0xf]
        %v539 = vld [vmem:[%s385 + $0x1c] sm:$0xf]
        %v540 = vld [vmem:[%s385 + $0x20] sm:$0xf]
        %v541 = vld [vmem:[%s385 + $0x24] sm:$0xf]
        %v542 = vld [vmem:[%s385 + $0x28] sm:$0xf]
        %v543 = vld [vmem:[%s385 + $0x2c] sm:$0xf]
        %v544 = vld [vmem:[%s385 + $0x30] sm:$0xf]
        %v545 = vld [vmem:[%s385 + $0x34] sm:$0xf]
        %v546 = vld [vmem:[%s385 + $0x38] sm:$0xf]
        %v547 = vld [vmem:[%s385 + $0x3c] sm:$0xf]
        %v548 = vld [vmem:[%s385 + $0x40] sm:$0xf]
        %v549 = vld [vmem:[%s385 + $0x44] sm:$0xf]
        %v550 = vld [vmem:[%s385 + $0x48] sm:$0xf]
        %v551 = vld [vmem:[%s385 + $0x4c] sm:$0xf]
        %v552 = vld [vmem:[%s385 + $0x50] sm:$0xf]
        %v553 = vld [vmem:[%s385 + $0x54] sm:$0xf]
        %v554 = vld [vmem:[%s385 + $0x58] sm:$0xf]
        %v555 = vld [vmem:[%s385 + $0x5c] sm:$0xf]
        %v556 = vld [vmem:[%s385 + $0x60] sm:$0xf]
        %v557 = vld [vmem:[%s385 + $0x64] sm:$0xf]
        %v558 = vld [vmem:[%s385 + $0x68] sm:$0xf]
        %v559 = vld [vmem:[%s385 + $0x6c] sm:$0xf]
        %v560 = vld [vmem:[%s385 + $0x70] sm:$0xf]
        %v561 = vld [vmem:[%s385 + $0x74] sm:$0xf]
        %v562 = vld [vmem:[%s385 + $0x78] sm:$0xf]
        %v563 = vld [vmem:[%s385 + $0x7c] sm:$0xf]
        %v564 = vld [vmem:[%s385 + $0x80] sm:$0xf]
        %v565 = vld [vmem:[%s385 + $0x84] sm:$0xf]
        %v566 = vld [vmem:[%s385 + $0x88] sm:$0xf]
        %v567 = vld [vmem:[%s385 + $0x8c] sm:$0xf]
        %v568 = vld [vmem:[%s385 + $0x90] sm:$0xf]
        %v569 = vld [vmem:[%s385 + $0x94] sm:$0xf]
        %v570 = vld [vmem:[%s385 + $0x98] sm:$0xf]
        %v571 = vld [vmem:[%s385 + $0x9c] sm:$0xf]
        %v572 = vld [vmem:[%s385 + $0xa0] sm:$0xf]
        %v573 = vld [vmem:[%s385 + $0xa4] sm:$0xf]
        %v574 = vld [vmem:[%s385 + $0xa8] sm:$0xf]
        %v575 = vld [vmem:[%s385 + $0xac] sm:$0xf]
        %v576 = vld [vmem:[%s385 + $0xb0] sm:$0xf]
        %v577 = vld [vmem:[%s385 + $0xb4] sm:$0xf]
        %v578 = vld [vmem:[%s385 + $0xb8] sm:$0xf]
        %v579 = vld [vmem:[%s385 + $0xbc] sm:$0xf]
        %v580 = vld [vmem:[%s385 + $0xc0] sm:$0xf]
        %v581 = vld [vmem:[%s385 + $0xc4] sm:$0xf]
        %v582 = vld [vmem:[%s385 + $0xc8] sm:$0xf]
        %v583 = vld [vmem:[%s385 + $0xcc] sm:$0xf]
        %v584 = vld [vmem:[%s385 + $0xd0] sm:$0xf]
        %v585 = vld [vmem:[%s385 + $0xd4] sm:$0xf]
        %v586 = vld [vmem:[%s385 + $0xd8] sm:$0xf]
        %v587 = vld [vmem:[%s385 + $0xdc] sm:$0xf]
        %v588 = vld [vmem:[%s385 + $0xe0] sm:$0xf]
        %v589 = vld [vmem:[%s385 + $0xe4] sm:$0xf]
        %v590 = vld [vmem:[%s385 + $0xe8] sm:$0xf]
        %v591 = vld [vmem:[%s385 + $0xec] sm:$0xf]
        %v592 = vld [vmem:[%s385 + $0xf0] sm:$0xf]
        %v593 = vld [vmem:[%s385 + $0xf4] sm:$0xf]
        %v594 = vld [vmem:[%s385 + $0xf8] sm:$0xf]
        %v595 = vld [vmem:[%s385 + $0xfc] sm:$0xf]
        %v660 = vunpack.c.l.b16 %v468
        %v661 = vunpack.c.h.b16 %v468
        %v662 = vunpack.c.l.b16 %v469
        %v663 = vunpack.c.h.b16 %v469
        %v664 = vunpack.c.l.b16 %v470
        %v665 = vunpack.c.h.b16 %v470
        %v666 = vunpack.c.l.b16 %v471
        %v667 = vunpack.c.h.b16 %v471
        %v668 = vunpack.c.l.b16 %v472
        %v669 = vunpack.c.h.b16 %v472
        %v670 = vunpack.c.l.b16 %v473
        %v671 = vunpack.c.h.b16 %v473
        %v672 = vunpack.c.l.b16 %v474
        %v673 = vunpack.c.h.b16 %v474
        %v674 = vunpack.c.l.b16 %v475
        %v675 = vunpack.c.h.b16 %v475
        %v676 = vunpack.c.l.b16 %v476
        %v677 = vunpack.c.h.b16 %v476
        %v678 = vunpack.c.l.b16 %v477
        %v679 = vunpack.c.h.b16 %v477
        %v680 = vunpack.c.l.b16 %v478
        %v681 = vunpack.c.h.b16 %v478
        %v682 = vunpack.c.l.b16 %v479
        %v683 = vunpack.c.h.b16 %v479
        %v684 = vunpack.c.l.b16 %v480
        %v685 = vunpack.c.h.b16 %v480
        %v686 = vunpack.c.l.b16 %v481
        %v687 = vunpack.c.h.b16 %v481
        %v688 = vunpack.c.l.b16 %v482
        %v689 = vunpack.c.h.b16 %v482
        %v690 = vunpack.c.l.b16 %v483
        %v691 = vunpack.c.h.b16 %v483
        %v692 = vunpack.c.l.b16 %v484
        %v693 = vunpack.c.h.b16 %v484
        %v694 = vunpack.c.l.b16 %v485
        %v695 = vunpack.c.h.b16 %v485
        %v696 = vunpack.c.l.b16 %v486
        %v697 = vunpack.c.h.b16 %v486
        %v698 = vunpack.c.l.b16 %v487
        %v699 = vunpack.c.h.b16 %v487
        %v700 = vunpack.c.l.b16 %v488
        %v701 = vunpack.c.h.b16 %v488
        %v702 = vunpack.c.l.b16 %v489
        %v703 = vunpack.c.h.b16 %v489
        %v704 = vunpack.c.l.b16 %v490
        %v705 = vunpack.c.h.b16 %v490
        %v706 = vunpack.c.l.b16 %v491
        %v707 = vunpack.c.h.b16 %v491
        %v708 = vunpack.c.l.b16 %v492
        %v709 = vunpack.c.h.b16 %v492
        %v710 = vunpack.c.l.b16 %v493
        %v711 = vunpack.c.h.b16 %v493
        %v712 = vunpack.c.l.b16 %v494
        %v713 = vunpack.c.h.b16 %v494
        %v714 = vunpack.c.l.b16 %v495
        %v715 = vunpack.c.h.b16 %v495
        %v716 = vunpack.c.l.b16 %v496
        %v717 = vunpack.c.h.b16 %v496
        %v718 = vunpack.c.l.b16 %v497
        %v719 = vunpack.c.h.b16 %v497
        %v720 = vunpack.c.l.b16 %v498
        %v721 = vunpack.c.h.b16 %v498
        %v722 = vunpack.c.l.b16 %v499
        %v723 = vunpack.c.h.b16 %v499
        %v724 = vunpack.c.l.b16 %v500
        %v725 = vunpack.c.h.b16 %v500
        %v726 = vunpack.c.l.b16 %v501
        %v727 = vunpack.c.h.b16 %v501
        %v728 = vunpack.c.l.b16 %v502
        %v729 = vunpack.c.h.b16 %v502
        %v730 = vunpack.c.l.b16 %v503
        %v731 = vunpack.c.h.b16 %v503
        %v732 = vunpack.c.l.b16 %v504
        %v733 = vunpack.c.h.b16 %v504
        %v734 = vunpack.c.l.b16 %v505
        %v735 = vunpack.c.h.b16 %v505
        %v736 = vunpack.c.l.b16 %v506
        %v737 = vunpack.c.h.b16 %v506
        %v738 = vunpack.c.l.b16 %v507
        %v739 = vunpack.c.h.b16 %v507
        %v740 = vunpack.c.l.b16 %v508
        %v741 = vunpack.c.h.b16 %v508
        %v742 = vunpack.c.l.b16 %v509
        %v743 = vunpack.c.h.b16 %v509
        %v744 = vunpack.c.l.b16 %v510
        %v745 = vunpack.c.h.b16 %v510
        %v746 = vunpack.c.l.b16 %v511
        %v747 = vunpack.c.h.b16 %v511
        %v748 = vunpack.c.l.b16 %v512
        %v749 = vunpack.c.h.b16 %v512
        %v750 = vunpack.c.l.b16 %v513
        %v751 = vunpack.c.h.b16 %v513
        %v752 = vunpack.c.l.b16 %v514
        %v753 = vunpack.c.h.b16 %v514
        %v754 = vunpack.c.l.b16 %v515
        %v755 = vunpack.c.h.b16 %v515
        %v756 = vunpack.c.l.b16 %v516
        %v757 = vunpack.c.h.b16 %v516
        %v758 = vunpack.c.l.b16 %v517
        %v759 = vunpack.c.h.b16 %v517
        %v760 = vunpack.c.l.b16 %v518
        %v761 = vunpack.c.h.b16 %v518
        %v762 = vunpack.c.l.b16 %v519
        %v763 = vunpack.c.h.b16 %v519
        %v764 = vunpack.c.l.b16 %v520
        %v765 = vunpack.c.h.b16 %v520
        %v766 = vunpack.c.l.b16 %v521
        %v767 = vunpack.c.h.b16 %v521
        %v768 = vunpack.c.l.b16 %v522
        %v769 = vunpack.c.h.b16 %v522
        %v770 = vunpack.c.l.b16 %v523
        %v771 = vunpack.c.h.b16 %v523
        %v772 = vunpack.c.l.b16 %v524
        %v773 = vunpack.c.h.b16 %v524
        %v774 = vunpack.c.l.b16 %v525
        %v775 = vunpack.c.h.b16 %v525
        %v776 = vunpack.c.l.b16 %v526
        %v777 = vunpack.c.h.b16 %v526
        %v778 = vunpack.c.l.b16 %v527
        %v779 = vunpack.c.h.b16 %v527
        %v780 = vunpack.c.l.b16 %v528
        %v781 = vunpack.c.h.b16 %v528
        %v782 = vunpack.c.l.b16 %v529
        %v783 = vunpack.c.h.b16 %v529
        %v784 = vunpack.c.l.b16 %v530
        %v785 = vunpack.c.h.b16 %v530
        %v786 = vunpack.c.l.b16 %v531
        %v787 = vunpack.c.h.b16 %v531
        %v788 = vpack.c.b16 %v664, %v660
        %v789 = vpack.c.b16 %v665, %v661
        %v790 = vpack.c.b16 %v666, %v662
        %v791 = vpack.c.b16 %v667, %v663
        %v792 = vpack.c.b16 %v672, %v668
        %v793 = vpack.c.b16 %v673, %v669
        %v794 = vpack.c.b16 %v674, %v670
        %v795 = vpack.c.b16 %v675, %v671
        %v796 = vpack.c.b16 %v680, %v676
        %v797 = vpack.c.b16 %v681, %v677
        %v798 = vpack.c.b16 %v682, %v678
        %v799 = vpack.c.b16 %v683, %v679
        %v800 = vpack.c.b16 %v688, %v684
        %v801 = vpack.c.b16 %v689, %v685
        %v802 = vpack.c.b16 %v690, %v686
        %v803 = vpack.c.b16 %v691, %v687
        %v804 = vpack.c.b16 %v696, %v692
        %v805 = vpack.c.b16 %v697, %v693
        %v806 = vpack.c.b16 %v698, %v694
        %v807 = vpack.c.b16 %v699, %v695
        %v808 = vpack.c.b16 %v704, %v700
        %v809 = vpack.c.b16 %v705, %v701
        %v810 = vpack.c.b16 %v706, %v702
        %v811 = vpack.c.b16 %v707, %v703
        %v812 = vpack.c.b16 %v712, %v708
        %v813 = vpack.c.b16 %v713, %v709
        %v814 = vpack.c.b16 %v714, %v710
        %v815 = vpack.c.b16 %v715, %v711
        %v816 = vpack.c.b16 %v720, %v716
        %v817 = vpack.c.b16 %v721, %v717
        %v818 = vpack.c.b16 %v722, %v718
        %v819 = vpack.c.b16 %v723, %v719
        %v820 = vpack.c.b16 %v728, %v724
        %v821 = vpack.c.b16 %v729, %v725
        %v822 = vpack.c.b16 %v730, %v726
        %v823 = vpack.c.b16 %v731, %v727
        %v824 = vpack.c.b16 %v736, %v732
        %v825 = vpack.c.b16 %v737, %v733
        %v826 = vpack.c.b16 %v738, %v734
        %v827 = vpack.c.b16 %v739, %v735
        %v828 = vpack.c.b16 %v744, %v740
        %v829 = vpack.c.b16 %v745, %v741
        %v830 = vpack.c.b16 %v746, %v742
        %v831 = vpack.c.b16 %v747, %v743
        %v832 = vpack.c.b16 %v752, %v748
        %v833 = vpack.c.b16 %v753, %v749
        %v834 = vpack.c.b16 %v754, %v750
        %v835 = vpack.c.b16 %v755, %v751
        %v836 = vpack.c.b16 %v760, %v756
        %v837 = vpack.c.b16 %v761, %v757
        %v838 = vpack.c.b16 %v762, %v758
        %v839 = vpack.c.b16 %v763, %v759
        %v840 = vpack.c.b16 %v768, %v764
        %v841 = vpack.c.b16 %v769, %v765
        %v842 = vpack.c.b16 %v770, %v766
        %v843 = vpack.c.b16 %v771, %v767
        %v844 = vpack.c.b16 %v776, %v772
        %v845 = vpack.c.b16 %v777, %v773
        %v846 = vpack.c.b16 %v778, %v774
        %v847 = vpack.c.b16 %v779, %v775
        %v848 = vpack.c.b16 %v784, %v780
        %v849 = vpack.c.b16 %v785, %v781
        %v850 = vpack.c.b16 %v786, %v782
        %v851 = vpack.c.b16 %v787, %v783
        %v980 = vunpack.c.l.b16 %v532
        %v981 = vunpack.c.l.b16 %v533
        %v982 = vunpack.c.l.b16 %v534
        %v983 = vunpack.c.l.b16 %v535
        %v984 = vunpack.c.l.b16 %v536
        %v985 = vunpack.c.l.b16 %v537
        %v986 = vunpack.c.l.b16 %v538
        %v987 = vunpack.c.l.b16 %v539
        %v988 = vunpack.c.l.b16 %v540
        %v989 = vunpack.c.l.b16 %v541
        %v990 = vunpack.c.l.b16 %v542
        %v991 = vunpack.c.l.b16 %v543
        %v992 = vunpack.c.l.b16 %v544
        %v993 = vunpack.c.l.b16 %v545
        %v994 = vunpack.c.l.b16 %v546
        %v995 = vunpack.c.l.b16 %v547
        %v996 = vunpack.c.l.b16 %v548
        %v997 = vunpack.c.l.b16 %v549
        %v998 = vunpack.c.l.b16 %v550
        %v999 = vunpack.c.l.b16 %v551
        %v1000 = vunpack.c.l.b16 %v552
        %v1001 = vunpack.c.l.b16 %v553
        %v1002 = vunpack.c.l.b16 %v554
        %v1003 = vunpack.c.l.b16 %v555
        %v1004 = vunpack.c.l.b16 %v556
        %v1005 = vunpack.c.l.b16 %v557
        %v1006 = vunpack.c.l.b16 %v558
        %v1007 = vunpack.c.l.b16 %v559
        %v1008 = vunpack.c.l.b16 %v560
        %v1009 = vunpack.c.l.b16 %v561
        %v1010 = vunpack.c.l.b16 %v562
        %v1011 = vunpack.c.l.b16 %v563
        %v1012 = vunpack.c.l.b16 %v564
        %v1013 = vunpack.c.l.b16 %v565
        %v1014 = vunpack.c.l.b16 %v566
        %v1015 = vunpack.c.l.b16 %v567
        %v1016 = vunpack.c.l.b16 %v568
        %v1017 = vunpack.c.l.b16 %v569
        %v1018 = vunpack.c.l.b16 %v570
        %v1019 = vunpack.c.l.b16 %v571
        %v1020 = vunpack.c.l.b16 %v572
        %v1021 = vunpack.c.l.b16 %v573
        %v1022 = vunpack.c.l.b16 %v574
        %v1023 = vunpack.c.l.b16 %v575
        %v1024 = vunpack.c.l.b16 %v576
        %v1025 = vunpack.c.l.b16 %v577
        %v1026 = vunpack.c.l.b16 %v578
        %v1027 = vunpack.c.l.b16 %v579
        %v1028 = vunpack.c.l.b16 %v580
        %v1029 = vunpack.c.l.b16 %v581
        %v1030 = vunpack.c.l.b16 %v582
        %v1031 = vunpack.c.l.b16 %v583
        %v1032 = vunpack.c.l.b16 %v584
        %v1033 = vunpack.c.l.b16 %v585
        %v1034 = vunpack.c.l.b16 %v586
        %v1035 = vunpack.c.l.b16 %v587
        %v1036 = vunpack.c.l.b16 %v588
        %v1037 = vunpack.c.l.b16 %v589
        %v1038 = vunpack.c.l.b16 %v590
        %v1039 = vunpack.c.l.b16 %v591
        %v1040 = vunpack.c.l.b16 %v592
        %v1041 = vunpack.c.l.b16 %v593
        %v1042 = vunpack.c.l.b16 %v594
        %v1043 = vunpack.c.l.b16 %v595
        %v1044 = vpack.c.b16 %v981, %v980
        %v1045 = vpack.c.b16 %v983, %v982
        %v1046 = vpack.c.b16 %v985, %v984
        %v1047 = vpack.c.b16 %v987, %v986
        %v1048 = vpack.c.b16 %v989, %v988
        %v1049 = vpack.c.b16 %v991, %v990
        %v1050 = vpack.c.b16 %v993, %v992
        %v1051 = vpack.c.b16 %v995, %v994
        %v1052 = vpack.c.b16 %v997, %v996
        %v1053 = vpack.c.b16 %v999, %v998
        %v1054 = vpack.c.b16 %v1001, %v1000
        %v1055 = vpack.c.b16 %v1003, %v1002
        %v1056 = vpack.c.b16 %v1005, %v1004
        %v1057 = vpack.c.b16 %v1007, %v1006
        %v1058 = vpack.c.b16 %v1009, %v1008
        %v1059 = vpack.c.b16 %v1011, %v1010
        %v1060 = vpack.c.b16 %v1013, %v1012
        %v1061 = vpack.c.b16 %v1015, %v1014
        %v1062 = vpack.c.b16 %v1017, %v1016
        %v1063 = vpack.c.b16 %v1019, %v1018
        %v1064 = vpack.c.b16 %v1021, %v1020
        %v1065 = vpack.c.b16 %v1023, %v1022
        %v1066 = vpack.c.b16 %v1025, %v1024
        %v1067 = vpack.c.b16 %v1027, %v1026
        %v1068 = vpack.c.b16 %v1029, %v1028
        %v1069 = vpack.c.b16 %v1031, %v1030
        %v1070 = vpack.c.b16 %v1033, %v1032
        %v1071 = vpack.c.b16 %v1035, %v1034
        %v1072 = vpack.c.b16 %v1037, %v1036
        %v1073 = vpack.c.b16 %v1039, %v1038
        %v1074 = vpack.c.b16 %v1041, %v1040
        %v1075 = vpack.c.b16 %v1043, %v1042
        %1108 = vmatprep.subr.bf16.mxu0 0
        %1109 = vmatpush1.bf16.msra.mxu0 %v1044
        %1110 = vmatprep.subr.bf16.mxu0 0
        %1111 = vmatpush1.bf16.msra.mxu0 %v1045
        %1112 = vmatprep.subr.bf16.mxu0 0
        %1113 = vmatpush1.bf16.msra.mxu0 %v1046
        %1114 = vmatprep.subr.bf16.mxu0 0
        %1115 = vmatpush1.bf16.msra.mxu0 %v1047
        %1116 = vmatprep.subr.bf16.mxu0 0
        %1117 = vmatpush1.bf16.msra.mxu0 %v1048
        %1118 = vmatprep.subr.bf16.mxu0 0
        %1119 = vmatpush1.bf16.msra.mxu0 %v1049
        %1120 = vmatprep.subr.bf16.mxu0 0
        %1121 = vmatpush1.bf16.msra.mxu0 %v1050
        %1122 = vmatprep.subr.bf16.mxu0 0
        %1123 = vmatpush1.bf16.msra.mxu0 %v1051
        %1124 = vmatprep.subr.bf16.mxu0 0
        %1125 = vmatpush1.bf16.msra.mxu0 %v1052
        %1126 = vmatprep.subr.bf16.mxu0 0
        %1127 = vmatpush1.bf16.msra.mxu0 %v1053
        %1128 = vmatprep.subr.bf16.mxu0 0
        %1129 = vmatpush1.bf16.msra.mxu0 %v1054
        %1130 = vmatprep.subr.bf16.mxu0 0
        %1131 = vmatpush1.bf16.msra.mxu0 %v1055
        %1132 = vmatprep.subr.bf16.mxu0 0
        %1133 = vmatpush1.bf16.msra.mxu0 %v1056
        %1134 = vmatprep.subr.bf16.mxu0 0
        %1135 = vmatpush1.bf16.msra.mxu0 %v1057
        %1136 = vmatprep.subr.bf16.mxu0 0
        %1137 = vmatpush1.bf16.msra.mxu0 %v1058
        %1138 = vmatprep.subr.bf16.mxu0 0
        %1139 = vmatpush1.bf16.msra.mxu0 %v1059
        %1140 = vmatprep.mubr.bf16.mxu0 %v789
        %1141 = vmatmul.mubr.bf16.gmra.mrb[0].mxu0 %v788
        %v1142 = vpop.f32.mrb[0].mxu0
        %v1143 = vadd.f32 0.0, %v1142
        %v1144 = vpop.f32.mrb[0].mxu0
        %v1145 = vpop.f32.mrb[0].mxu0
        %v1146 = vadd.f32 0.0, %v1145
        %v1147 = vpop.f32.mrb[0].mxu0
        %1148 = vmatprep.mubr.bf16.mxu0 %v793
        %1149 = vmatmul.mubr.bf16.gmra.mrb[0].mxu0 %v792
        %v1150 = vpop.f32.mrb[0].mxu0
        %v1151 = vadd.f32 0.0, %v1150
        %v1152 = vpop.f32.mrb[0].mxu0
        %v1153 = vpop.f32.mrb[0].mxu0
        %v1154 = vadd.f32 0.0, %v1153
        %v1155 = vpop.f32.mrb[0].mxu0
        %1156 = vmatprep.mubr.bf16.mxu0 %v797
        %1157 = vmatmul.mubr.bf16.gmra.mrb[0].mxu0 %v796
        %v1158 = vpop.f32.mrb[0].mxu0
        %v1159 = vadd.f32 0.0, %v1158
        %v1160 = vpop.f32.mrb[0].mxu0
        %v1161 = vpop.f32.mrb[0].mxu0
        %v1162 = vadd.f32 0.0, %v1161
        %v1163 = vpop.f32.mrb[0].mxu0
        %1164 = vmatprep.mubr.bf16.mxu0 %v801
        %1165 = vmatmul.mubr.bf16.gmra.mrb[0].mxu0 %v800
        %v1166 = vpop.f32.mrb[0].mxu0
        %v1167 = vadd.f32 0.0, %v1166
        %v1168 = vpop.f32.mrb[0].mxu0
        %v1169 = vpop.f32.mrb[0].mxu0
        %v1170 = vadd.f32 0.0, %v1169
        %v1171 = vpop.f32.mrb[0].mxu0
        %1172 = vmatprep.mubr.bf16.mxu0 %v805
        %1173 = vmatmul.mubr.bf16.gmra.mrb[0].mxu0 %v804
        %v1174 = vpop.f32.mrb[0].mxu0
        %v1175 = vadd.f32 0.0, %v1174
        %v1176 = vpop.f32.mrb[0].mxu0
        %v1177 = vpop.f32.mrb[0].mxu0
        %v1178 = vadd.f32 0.0, %v1177
        %v1179 = vpop.f32.mrb[0].mxu0
        %1180 = vmatprep.mubr.bf16.mxu0 %v809
        %1181 = vmatmul.mubr.bf16.gmra.mrb[0].mxu0 %v808
        %v1182 = vpop.f32.mrb[0].mxu0
        %v1183 = vadd.f32 0.0, %v1182
        %v1184 = vpop.f32.mrb[0].mxu0
        %v1185 = vpop.f32.mrb[0].mxu0
        %v1186 = vadd.f32 0.0, %v1185
        %v1187 = vpop.f32.mrb[0].mxu0
        %1188 = vmatprep.mubr.bf16.mxu0 %v813
        %1189 = vmatmul.mubr.bf16.gmra.mrb[0].mxu0 %v812
        %v1190 = vpop.f32.mrb[0].mxu0
        %v1191 = vadd.f32 0.0, %v1190
        %v1192 = vpop.f32.mrb[0].mxu0
        %v1193 = vpop.f32.mrb[0].mxu0
        %v1194 = vadd.f32 0.0, %v1193
        %v1195 = vpop.f32.mrb[0].mxu0
        %1196 = vmatprep.mubr.bf16.mxu0 %v817
        %1197 = vmatmul.mubr.bf16.gmra.mrb[0].mxu0 %v816
        %v1198 = vpop.f32.mrb[0].mxu0
        %v1199 = vadd.f32 0.0, %v1198
        %v1200 = vpop.f32.mrb[0].mxu0
        %v1201 = vpop.f32.mrb[0].mxu0
        %v1202 = vadd.f32 0.0, %v1201
        %v1203 = vpop.f32.mrb[0].mxu0
        %1204 = vmatprep.mubr.bf16.mxu0 %v821
        %1205 = vmatmul.mubr.bf16.gmra.mrb[0].mxu0 %v820
        %v1206 = vpop.f32.mrb[0].mxu0
        %v1207 = vadd.f32 0.0, %v1206
        %v1208 = vpop.f32.mrb[0].mxu0
        %v1209 = vpop.f32.mrb[0].mxu0
        %v1210 = vadd.f32 0.0, %v1209
        %v1211 = vpop.f32.mrb[0].mxu0
        %1212 = vmatprep.mubr.bf16.mxu0 %v825
        %1213 = vmatmul.mubr.bf16.gmra.mrb[0].mxu0 %v824
        %v1214 = vpop.f32.mrb[0].mxu0
        %v1215 = vadd.f32 0.0, %v1214
        %v1216 = vpop.f32.mrb[0].mxu0
        %v1217 = vpop.f32.mrb[0].mxu0
        %v1218 = vadd.f32 0.0, %v1217
        %v1219 = vpop.f32.mrb[0].mxu0
        %1220 = vmatprep.mubr.bf16.mxu0 %v829
        %1221 = vmatmul.mubr.bf16.gmra.mrb[0].mxu0 %v828
        %v1222 = vpop.f32.mrb[0].mxu0
        %v1223 = vadd.f32 0.0, %v1222
        %v1224 = vpop.f32.mrb[0].mxu0
        %v1225 = vpop.f32.mrb[0].mxu0
        %v1226 = vadd.f32 0.0, %v1225
        %v1227 = vpop.f32.mrb[0].mxu0
        %1228 = vmatprep.mubr.bf16.mxu0 %v833
        %1229 = vmatmul.mubr.bf16.gmra.mrb[0].mxu0 %v832
        %v1230 = vpop.f32.mrb[0].mxu0
        %v1231 = vadd.f32 0.0, %v1230
        %v1232 = vpop.f32.mrb[0].mxu0
        %v1233 = vpop.f32.mrb[0].mxu0
        %v1234 = vadd.f32 0.0, %v1233
        %v1235 = vpop.f32.mrb[0].mxu0
        %1236 = vmatprep.mubr.bf16.mxu0 %v837
        %1237 = vmatmul.mubr.bf16.gmra.mrb[0].mxu0 %v836
        %v1238 = vpop.f32.mrb[0].mxu0
        %v1239 = vadd.f32 0.0, %v1238
        %v1240 = vpop.f32.mrb[0].mxu0
        %v1241 = vpop.f32.mrb[0].mxu0
        %v1242 = vadd.f32 0.0, %v1241
        %v1243 = vpop.f32.mrb[0].mxu0
        %1244 = vmatprep.mubr.bf16.mxu0 %v841
        %1245 = vmatmul.mubr.bf16.gmra.mrb[0].mxu0 %v840
        %v1246 = vpop.f32.mrb[0].mxu0
        %v1247 = vadd.f32 0.0, %v1246
        %v1248 = vpop.f32.mrb[0].mxu0
        %v1249 = vpop.f32.mrb[0].mxu0
        %v1250 = vadd.f32 0.0, %v1249
        %v1251 = vpop.f32.mrb[0].mxu0
        %1252 = vmatprep.mubr.bf16.mxu0 %v845
        %1253 = vmatmul.mubr.bf16.gmra.mrb[0].mxu0 %v844
        %v1254 = vpop.f32.mrb[0].mxu0
        %v1255 = vadd.f32 0.0, %v1254
        %v1256 = vpop.f32.mrb[0].mxu0
        %v1257 = vpop.f32.mrb[0].mxu0
        %v1258 = vadd.f32 0.0, %v1257
        %v1259 = vpop.f32.mrb[0].mxu0
        %1260 = vmatprep.mubr.bf16.mxu0 %v849
        %1261 = vmatmul.mubr.bf16.gmra.mrb[0].mxu0 %v848
        %v1262 = vpop.f32.mrb[0].mxu0
        %v1263 = vadd.f32 0.0, %v1262
        %v1264 = vpop.f32.mrb[0].mxu0
        %v1265 = vpop.f32.mrb[0].mxu0
        %v1266 = vadd.f32 0.0, %v1265
        %v1267 = vpop.f32.mrb[0].mxu0
        %1268 = vdwg.mxu0
        %1269 = vmatprep.subr.bf16.mxu0 0
        %1270 = vmatpush1.bf16.msra.mxu0 %v1060
        %1271 = vmatprep.subr.bf16.mxu0 0
        %1272 = vmatpush1.bf16.msra.mxu0 %v1061
        %1273 = vmatprep.subr.bf16.mxu0 0
        %1274 = vmatpush1.bf16.msra.mxu0 %v1062
        %1275 = vmatprep.subr.bf16.mxu0 0
        %1276 = vmatpush1.bf16.msra.mxu0 %v1063
        %1277 = vmatprep.subr.bf16.mxu0 0
        %1278 = vmatpush1.bf16.msra.mxu0 %v1064
        %1279 = vmatprep.subr.bf16.mxu0 0
        %1280 = vmatpush1.bf16.msra.mxu0 %v1065
        %1281 = vmatprep.subr.bf16.mxu0 0
        %1282 = vmatpush1.bf16.msra.mxu0 %v1066
        %1283 = vmatprep.subr.bf16.mxu0 0
        %1284 = vmatpush1.bf16.msra.mxu0 %v1067
        %1285 = vmatprep.subr.bf16.mxu0 0
        %1286 = vmatpush1.bf16.msra.mxu0 %v1068
        %1287 = vmatprep.subr.bf16.mxu0 0
        %1288 = vmatpush1.bf16.msra.mxu0 %v1069
        %1289 = vmatprep.subr.bf16.mxu0 0
        %1290 = vmatpush1.bf16.msra.mxu0 %v1070
        %1291 = vmatprep.subr.bf16.mxu0 0
        %1292 = vmatpush1.bf16.msra.mxu0 %v1071
        %1293 = vmatprep.subr.bf16.mxu0 0
        %1294 = vmatpush1.bf16.msra.mxu0 %v1072
        %1295 = vmatprep.subr.bf16.mxu0 0
        %1296 = vmatpush1.bf16.msra.mxu0 %v1073
        %1297 = vmatprep.subr.bf16.mxu0 0
        %1298 = vmatpush1.bf16.msra.mxu0 %v1074
        %1299 = vmatprep.subr.bf16.mxu0 0
        %1300 = vmatpush1.bf16.msra.mxu0 %v1075
        %1301 = vmatprep.mubr.bf16.mxu0 %v791
        %1302 = vmatmul.mubr.bf16.gmra.mrb[0].mxu0 %v790
        %v1303 = vpop.f32.mrb[0].mxu0
        %v1304 = vadd.f32 %v1143, %v1303
        %v1305 = vpop.f32.mrb[0].mxu0
        %v1306 = vpop.f32.mrb[0].mxu0
        %v1307 = vadd.f32 %v1146, %v1306
        %v1308 = vpop.f32.mrb[0].mxu0
        %1309 = vmatprep.mubr.bf16.mxu0 %v795
        %1310 = vmatmul.mubr.bf16.gmra.mrb[0].mxu0 %v794
        %v1311 = vpop.f32.mrb[0].mxu0
        %v1312 = vadd.f32 %v1151, %v1311
        %v1313 = vpop.f32.mrb[0].mxu0
        %v1314 = vpop.f32.mrb[0].mxu0
        %v1315 = vadd.f32 %v1154, %v1314
        %v1316 = vpop.f32.mrb[0].mxu0
        %1317 = vmatprep.mubr.bf16.mxu0 %v799
        %1318 = vmatmul.mubr.bf16.gmra.mrb[0].mxu0 %v798
        %v1319 = vpop.f32.mrb[0].mxu0
        %v1320 = vadd.f32 %v1159, %v1319
        %v1321 = vpop.f32.mrb[0].mxu0
        %v1322 = vpop.f32.mrb[0].mxu0
        %v1323 = vadd.f32 %v1162, %v1322
        %v1324 = vpop.f32.mrb[0].mxu0
        %1325 = vmatprep.mubr.bf16.mxu0 %v803
        %1326 = vmatmul.mubr.bf16.gmra.mrb[0].mxu0 %v802
        %v1327 = vpop.f32.mrb[0].mxu0
        %v1328 = vadd.f32 %v1167, %v1327
        %v1329 = vpop.f32.mrb[0].mxu0
        %v1330 = vpop.f32.mrb[0].mxu0
        %v1331 = vadd.f32 %v1170, %v1330
        %v1332 = vpop.f32.mrb[0].mxu0
        %1333 = vmatprep.mubr.bf16.mxu0 %v807
        %1334 = vmatmul.mubr.bf16.gmra.mrb[0].mxu0 %v806
        %v1335 = vpop.f32.mrb[0].mxu0
        %v1336 = vadd.f32 %v1175, %v1335
        %v1337 = vpop.f32.mrb[0].mxu0
        %v1338 = vpop.f32.mrb[0].mxu0
        %v1339 = vadd.f32 %v1178, %v1338
        %v1340 = vpop.f32.mrb[0].mxu0
        %1341 = vmatprep.mubr.bf16.mxu0 %v811
        %1342 = vmatmul.mubr.bf16.gmra.mrb[0].mxu0 %v810
        %v1343 = vpop.f32.mrb[0].mxu0
        %v1344 = vadd.f32 %v1183, %v1343
        %v1345 = vpop.f32.mrb[0].mxu0
        %v1346 = vpop.f32.mrb[0].mxu0
        %v1347 = vadd.f32 %v1186, %v1346
        %v1348 = vpop.f32.mrb[0].mxu0
        %1349 = vmatprep.mubr.bf16.mxu0 %v815
        %1350 = vmatmul.mubr.bf16.gmra.mrb[0].mxu0 %v814
        %v1351 = vpop.f32.mrb[0].mxu0
        %v1352 = vadd.f32 %v1191, %v1351
        %v1353 = vpop.f32.mrb[0].mxu0
        %v1354 = vpop.f32.mrb[0].mxu0
        %v1355 = vadd.f32 %v1194, %v1354
        %v1356 = vpop.f32.mrb[0].mxu0
        %1357 = vmatprep.mubr.bf16.mxu0 %v819
        %1358 = vmatmul.mubr.bf16.gmra.mrb[0].mxu0 %v818
        %v1359 = vpop.f32.mrb[0].mxu0
        %v1360 = vadd.f32 %v1199, %v1359
        %v1361 = vpop.f32.mrb[0].mxu0
        %v1362 = vpop.f32.mrb[0].mxu0
        %v1363 = vadd.f32 %v1202, %v1362
        %v1364 = vpop.f32.mrb[0].mxu0
        %1365 = vmatprep.mubr.bf16.mxu0 %v823
        %1366 = vmatmul.mubr.bf16.gmra.mrb[0].mxu0 %v822
        %v1367 = vpop.f32.mrb[0].mxu0
        %v1368 = vadd.f32 %v1207, %v1367
        %v1369 = vpop.f32.mrb[0].mxu0
        %v1370 = vpop.f32.mrb[0].mxu0
        %v1371 = vadd.f32 %v1210, %v1370
        %v1372 = vpop.f32.mrb[0].mxu0
        %1373 = vmatprep.mubr.bf16.mxu0 %v827
        %1374 = vmatmul.mubr.bf16.gmra.mrb[0].mxu0 %v826
        %v1375 = vpop.f32.mrb[0].mxu0
        %v1376 = vadd.f32 %v1215, %v1375
        %v1377 = vpop.f32.mrb[0].mxu0
        %v1378 = vpop.f32.mrb[0].mxu0
        %v1379 = vadd.f32 %v1218, %v1378
        %v1380 = vpop.f32.mrb[0].mxu0
        %1381 = vmatprep.mubr.bf16.mxu0 %v831
        %1382 = vmatmul.mubr.bf16.gmra.mrb[0].mxu0 %v830
        %v1383 = vpop.f32.mrb[0].mxu0
        %v1384 = vadd.f32 %v1223, %v1383
        %v1385 = vpop.f32.mrb[0].mxu0
        %v1386 = vpop.f32.mrb[0].mxu0
        %v1387 = vadd.f32 %v1226, %v1386
        %v1388 = vpop.f32.mrb[0].mxu0
        %1389 = vmatprep.mubr.bf16.mxu0 %v835
        %1390 = vmatmul.mubr.bf16.gmra.mrb[0].mxu0 %v834
        %v1391 = vpop.f32.mrb[0].mxu0
        %v1392 = vadd.f32 %v1231, %v1391
        %v1393 = vpop.f32.mrb[0].mxu0
        %v1394 = vpop.f32.mrb[0].mxu0
        %v1395 = vadd.f32 %v1234, %v1394
        %v1396 = vpop.f32.mrb[0].mxu0
        %1397 = vmatprep.mubr.bf16.mxu0 %v839
        %1398 = vmatmul.mubr.bf16.gmra.mrb[0].mxu0 %v838
        %v1399 = vpop.f32.mrb[0].mxu0
        %v1400 = vadd.f32 %v1239, %v1399
        %v1401 = vpop.f32.mrb[0].mxu0
        %v1402 = vpop.f32.mrb[0].mxu0
        %v1403 = vadd.f32 %v1242, %v1402
        %v1404 = vpop.f32.mrb[0].mxu0
        %1405 = vmatprep.mubr.bf16.mxu0 %v843
        %1406 = vmatmul.mubr.bf16.gmra.mrb[0].mxu0 %v842
        %v1407 = vpop.f32.mrb[0].mxu0
        %v1408 = vadd.f32 %v1247, %v1407
        %v1409 = vpop.f32.mrb[0].mxu0
        %v1410 = vpop.f32.mrb[0].mxu0
        %v1411 = vadd.f32 %v1250, %v1410
        %v1412 = vpop.f32.mrb[0].mxu0
        %1413 = vmatprep.mubr.bf16.mxu0 %v847
        %1414 = vmatmul.mubr.bf16.gmra.mrb[0].mxu0 %v846
        %v1415 = vpop.f32.mrb[0].mxu0
        %v1416 = vadd.f32 %v1255, %v1415
        %v1417 = vpop.f32.mrb[0].mxu0
        %v1418 = vpop.f32.mrb[0].mxu0
        %v1419 = vadd.f32 %v1258, %v1418
        %v1420 = vpop.f32.mrb[0].mxu0
        %1421 = vmatprep.mubr.bf16.mxu0 %v851
        %1422 = vmatmul.mubr.bf16.gmra.mrb[0].mxu0 %v850
        %v1423 = vpop.f32.mrb[0].mxu0
        %v1424 = vadd.f32 %v1263, %v1423
        %v1425 = vpop.f32.mrb[0].mxu0
        %v1426 = vpop.f32.mrb[0].mxu0
        %v1427 = vadd.f32 %v1266, %v1426
        %v1428 = vpop.f32.mrb[0].mxu0
        %1429 = vdwg.mxu0
        %v1430 = vadd.f32 %v436, %v1304
        %v1431 = vadd.f32 %v437, %v1307
        %v1432 = vadd.f32 %v438, %v1312
        %v1433 = vadd.f32 %v439, %v1315
        %v1434 = vadd.f32 %v440, %v1320
        %v1435 = vadd.f32 %v441, %v1323
        %v1436 = vadd.f32 %v442, %v1328
        %v1437 = vadd.f32 %v443, %v1331
        %v1438 = vadd.f32 %v444, %v1336
        %v1439 = vadd.f32 %v445, %v1339
        %v1440 = vadd.f32 %v446, %v1344
        %v1441 = vadd.f32 %v447, %v1347
        %v1442 = vadd.f32 %v448, %v1352
        %v1443 = vadd.f32 %v449, %v1355
        %v1444 = vadd.f32 %v450, %v1360
        %v1445 = vadd.f32 %v451, %v1363
        %v1446 = vadd.f32 %v452, %v1368
        %v1447 = vadd.f32 %v453, %v1371
        %v1448 = vadd.f32 %v454, %v1376
        %v1449 = vadd.f32 %v455, %v1379
        %v1450 = vadd.f32 %v456, %v1384
        %v1451 = vadd.f32 %v457, %v1387
        %v1452 = vadd.f32 %v458, %v1392
        %v1453 = vadd.f32 %v459, %v1395
        %v1454 = vadd.f32 %v460, %v1400
        %v1455 = vadd.f32 %v461, %v1403
        %v1456 = vadd.f32 %v462, %v1408
        %v1457 = vadd.f32 %v463, %v1411
        %v1458 = vadd.f32 %v464, %v1416
        %v1459 = vadd.f32 %v465, %v1419
        %v1460 = vadd.f32 %v466, %v1424
        %v1461 = vadd.f32 %v467, %v1427
        %1462 = vst [vmem:[#allocation2] sm:$0xff] %v1430
        %1463 = vst [vmem:[#allocation2 + $0x8] sm:$0xff] %v1431
        %1464 = vst [vmem:[#allocation2 + $0x10] sm:$0xff] %v1432
        %1465 = vst [vmem:[#allocation2 + $0x18] sm:$0xff] %v1433
        %1466 = vst [vmem:[#allocation2 + $0x20] sm:$0xff] %v1434
        %1467 = vst [vmem:[#allocation2 + $0x28] sm:$0xff] %v1435
        %1468 = vst [vmem:[#allocation2 + $0x30] sm:$0xff] %v1436
        %1469 = vst [vmem:[#allocation2 + $0x38] sm:$0xff] %v1437
        %1470 = vst [vmem:[#allocation2 + $0x40] sm:$0xff] %v1438
        %1471 = vst [vmem:[#allocation2 + $0x48] sm:$0xff] %v1439
        %1472 = vst [vmem:[#allocation2 + $0x50] sm:$0xff] %v1440
        %1473 = vst [vmem:[#allocation2 + $0x58] sm:$0xff] %v1441
        %1474 = vst [vmem:[#allocation2 + $0x60] sm:$0xff] %v1442
        %1475 = vst [vmem:[#allocation2 + $0x68] sm:$0xff] %v1443
        %1476 = vst [vmem:[#allocation2 + $0x70] sm:$0xff] %v1444
        %1477 = vst [vmem:[#allocation2 + $0x78] sm:$0xff] %v1445
        %1478 = vst [vmem:[#allocation2 + $0x80] sm:$0xff] %v1446
        %1479 = vst [vmem:[#allocation2 + $0x88] sm:$0xff] %v1447
        %1480 = vst [vmem:[#allocation2 + $0x90] sm:$0xff] %v1448
        %1481 = vst [vmem:[#allocation2 + $0x98] sm:$0xff] %v1449
        %1482 = vst [vmem:[#allocation2 + $0xa0] sm:$0xff] %v1450
        %1483 = vst [vmem:[#allocation2 + $0xa8] sm:$0xff] %v1451
        %1484 = vst [vmem:[#allocation2 + $0xb0] sm:$0xff] %v1452
        %1485 = vst [vmem:[#allocation2 + $0xb8] sm:$0xff] %v1453
        %1486 = vst [vmem:[#allocation2 + $0xc0] sm:$0xff] %v1454
        %1487 = vst [vmem:[#allocation2 + $0xc8] sm:$0xff] %v1455
        %1488 = vst [vmem:[#allocation2 + $0xd0] sm:$0xff] %v1456
        %1489 = vst [vmem:[#allocation2 + $0xd8] sm:$0xff] %v1457
        %1490 = vst [vmem:[#allocation2 + $0xe0] sm:$0xff] %v1458
        %1491 = vst [vmem:[#allocation2 + $0xe8] sm:$0xff] %v1459
        %1492 = vst [vmem:[#allocation2 + $0xf0] sm:$0xff] %v1460
        %1493 = vst [vmem:[#allocation2 + $0xf8] sm:$0xff] %v1461
        %p1494 = scmp.eq.s32.totalorder %s21, 1
        // Predicated region
        $region60: #{d_net128_forward.8} parent=50 // pred_check
          %p1495 = pneg %p1494
        $region61: #{d_net128_forward.8} parent=50 // pred_check_branch
          %1497 = sbr.rel (%p1495) target = $region63
        $region62: #{d_net128_forward.8} parent=50 // pred_region
          %v1498 = vld [vmem:[#allocation2] sm:$0xff]
          %v1499 = vld [vmem:[#allocation2 + $0x8] sm:$0xff]
          %v1500 = vld [vmem:[#allocation2 + $0x10] sm:$0xff]
          %v1501 = vld [vmem:[#allocation2 + $0x18] sm:$0xff]
          %v1502 = vld [vmem:[#allocation2 + $0x20] sm:$0xff]
          %v1503 = vld [vmem:[#allocation2 + $0x28] sm:$0xff]
          %v1504 = vld [vmem:[#allocation2 + $0x30] sm:$0xff]
          %v1505 = vld [vmem:[#allocation2 + $0x38] sm:$0xff]
          %v1506 = vld [vmem:[#allocation2 + $0x40] sm:$0xff]
          %v1507 = vld [vmem:[#allocation2 + $0x48] sm:$0xff]
          %v1508 = vld [vmem:[#allocation2 + $0x50] sm:$0xff]
          %v1509 = vld [vmem:[#allocation2 + $0x58] sm:$0xff]
          %v1510 = vld [vmem:[#allocation2 + $0x60] sm:$0xff]
          %v1511 = vld [vmem:[#allocation2 + $0x68] sm:$0xff]
          %v1512 = vld [vmem:[#allocation2 + $0x70] sm:$0xff]
          %v1513 = vld [vmem:[#allocation2 + $0x78] sm:$0xff]
          %v1514 = vld [vmem:[#allocation2 + $0x80] sm:$0xff]
          %v1515 = vld [vmem:[#allocation2 + $0x88] sm:$0xff]
          %v1516 = vld [vmem:[#allocation2 + $0x90] sm:$0xff]
          %v1517 = vld [vmem:[#allocation2 + $0x98] sm:$0xff]
          %v1518 = vld [vmem:[#allocation2 + $0xa0] sm:$0xff]
          %v1519 = vld [vmem:[#allocation2 + $0xa8] sm:$0xff]
          %v1520 = vld [vmem:[#allocation2 + $0xb0] sm:$0xff]
          %v1521 = vld [vmem:[#allocation2 + $0xb8] sm:$0xff]
          %v1522 = vld [vmem:[#allocation2 + $0xc0] sm:$0xff]
          %v1523 = vld [vmem:[#allocation2 + $0xc8] sm:$0xff]
          %v1524 = vld [vmem:[#allocation2 + $0xd0] sm:$0xff]
          %v1525 = vld [vmem:[#allocation2 + $0xd8] sm:$0xff]
          %v1526 = vld [vmem:[#allocation2 + $0xe0] sm:$0xff]
          %v1527 = vld [vmem:[#allocation2 + $0xe8] sm:$0xff]
          %v1528 = vld [vmem:[#allocation2 + $0xf0] sm:$0xff]
          %v1529 = vld [vmem:[#allocation2 + $0xf8] sm:$0xff]
          %v1530 = vld [vmem:[%s389] sm:$0x1]
          %v1532 = vlaneseq
          %v1533 = vshrl.u32 %v1532, 7
          %v1534 = vsub.s32 0, %v1533
          %v1535 = vrot.slane %v1530, %v1534
          %v1537 = vadd.f32 %v1498, %v1535
          %v1538 = vadd.f32 %v1499, %v1535
          %v1539 = vadd.f32 %v1500, %v1535
          %v1540 = vadd.f32 %v1501, %v1535
          %v1541 = vadd.f32 %v1502, %v1535
          %v1542 = vadd.f32 %v1503, %v1535
          %v1543 = vadd.f32 %v1504, %v1535
          %v1544 = vadd.f32 %v1505, %v1535
          %v1545 = vadd.f32 %v1506, %v1535
          %v1546 = vadd.f32 %v1507, %v1535
          %v1547 = vadd.f32 %v1508, %v1535
          %v1548 = vadd.f32 %v1509, %v1535
          %v1549 = vadd.f32 %v1510, %v1535
          %v1550 = vadd.f32 %v1511, %v1535
          %v1551 = vadd.f32 %v1512, %v1535
          %v1552 = vadd.f32 %v1513, %v1535
          %v1553 = vadd.f32 %v1514, %v1535
          %v1554 = vadd.f32 %v1515, %v1535
          %v1555 = vadd.f32 %v1516, %v1535
          %v1556 = vadd.f32 %v1517, %v1535
          %v1557 = vadd.f32 %v1518, %v1535
          %v1558 = vadd.f32 %v1519, %v1535
          %v1559 = vadd.f32 %v1520, %v1535
          %v1560 = vadd.f32 %v1521, %v1535
          %v1561 = vadd.f32 %v1522, %v1535
          %v1562 = vadd.f32 %v1523, %v1535
          %v1563 = vadd.f32 %v1524, %v1535
          %v1564 = vadd.f32 %v1525, %v1535
          %v1565 = vadd.f32 %v1526, %v1535
          %v1566 = vadd.f32 %v1527, %v1535
          %v1567 = vadd.f32 %v1528, %v1535
          %v1568 = vadd.f32 %v1529, %v1535
          %vm1569 = vcmp.gt.f32.partialorder %v1537, 0.0
          %vm1570 = vcmp.gt.f32.partialorder %v1538, 0.0
          %vm1571 = vcmp.gt.f32.partialorder %v1539, 0.0
          %vm1572 = vcmp.gt.f32.partialorder %v1540, 0.0
          %vm1573 = vcmp.gt.f32.partialorder %v1541, 0.0
          %vm1574 = vcmp.gt.f32.partialorder %v1542, 0.0
          %vm1575 = vcmp.gt.f32.partialorder %v1543, 0.0
          %vm1576 = vcmp.gt.f32.partialorder %v1544, 0.0
          %vm1577 = vcmp.gt.f32.partialorder %v1545, 0.0
          %vm1578 = vcmp.gt.f32.partialorder %v1546, 0.0
          %vm1579 = vcmp.gt.f32.partialorder %v1547, 0.0
          %vm1580 = vcmp.gt.f32.partialorder %v1548, 0.0
          %vm1581 = vcmp.gt.f32.partialorder %v1549, 0.0
          %vm1582 = vcmp.gt.f32.partialorder %v1550, 0.0
          %vm1583 = vcmp.gt.f32.partialorder %v1551, 0.0
          %vm1584 = vcmp.gt.f32.partialorder %v1552, 0.0
          %vm1585 = vcmp.gt.f32.partialorder %v1553, 0.0
          %vm1586 = vcmp.gt.f32.partialorder %v1554, 0.0
          %vm1587 = vcmp.gt.f32.partialorder %v1555, 0.0
          %vm1588 = vcmp.gt.f32.partialorder %v1556, 0.0
          %vm1589 = vcmp.gt.f32.partialorder %v1557, 0.0
          %vm1590 = vcmp.gt.f32.partialorder %v1558, 0.0
          %vm1591 = vcmp.gt.f32.partialorder %v1559, 0.0
          %vm1592 = vcmp.gt.f32.partialorder %v1560, 0.0
          %vm1593 = vcmp.gt.f32.partialorder %v1561, 0.0
          %vm1594 = vcmp.gt.f32.partialorder %v1562, 0.0
          %vm1595 = vcmp.gt.f32.partialorder %v1563, 0.0
          %vm1596 = vcmp.gt.f32.partialorder %v1564, 0.0
          %vm1597 = vcmp.gt.f32.partialorder %v1565, 0.0
          %vm1598 = vcmp.gt.f32.partialorder %v1566, 0.0
          %vm1599 = vcmp.gt.f32.partialorder %v1567, 0.0
          %vm1600 = vcmp.gt.f32.partialorder %v1568, 0.0
          %v1601 = vmul.f32 %v1537, 0.2
          %v1602 = vmul.f32 %v1538, 0.2
          %v1603 = vmul.f32 %v1539, 0.2
          %v1604 = vmul.f32 %v1540, 0.2
          %v1605 = vmul.f32 %v1541, 0.2
          %v1606 = vmul.f32 %v1542, 0.2
          %v1607 = vmul.f32 %v1543, 0.2
          %v1608 = vmul.f32 %v1544, 0.2
          %v1609 = vmul.f32 %v1545, 0.2
          %v1610 = vmul.f32 %v1546, 0.2
          %v1611 = vmul.f32 %v1547, 0.2
          %v1612 = vmul.f32 %v1548, 0.2
          %v1613 = vmul.f32 %v1549, 0.2
          %v1614 = vmul.f32 %v1550, 0.2
          %v1615 = vmul.f32 %v1551, 0.2
          %v1616 = vmul.f32 %v1552, 0.2
          %v1617 = vmul.f32 %v1553, 0.2
          %v1618 = vmul.f32 %v1554, 0.2
          %v1619 = vmul.f32 %v1555, 0.2
          %v1620 = vmul.f32 %v1556, 0.2
          %v1621 = vmul.f32 %v1557, 0.2
          %v1622 = vmul.f32 %v1558, 0.2
          %v1623 = vmul.f32 %v1559, 0.2
          %v1624 = vmul.f32 %v1560, 0.2
          %v1625 = vmul.f32 %v1561, 0.2
          %v1626 = vmul.f32 %v1562, 0.2
          %v1627 = vmul.f32 %v1563, 0.2
          %v1628 = vmul.f32 %v1564, 0.2
          %v1629 = vmul.f32 %v1565, 0.2
          %v1630 = vmul.f32 %v1566, 0.2
          %v1631 = vmul.f32 %v1567, 0.2
          %v1632 = vmul.f32 %v1568, 0.2
          %v1633 = vsel %vm1569, %v1537, %v1601
          %v1634 = vsel %vm1570, %v1538, %v1602
          %v1635 = vsel %vm1571, %v1539, %v1603
          %v1636 = vsel %vm1572, %v1540, %v1604
          %v1637 = vsel %vm1573, %v1541, %v1605
          %v1638 = vsel %vm1574, %v1542, %v1606
          %v1639 = vsel %vm1575, %v1543, %v1607
          %v1640 = vsel %vm1576, %v1544, %v1608
          %v1641 = vsel %vm1577, %v1545, %v1609
          %v1642 = vsel %vm1578, %v1546, %v1610
          %v1643 = vsel %vm1579, %v1547, %v1611
          %v1644 = vsel %vm1580, %v1548, %v1612
          %v1645 = vsel %vm1581, %v1549, %v1613
          %v1646 = vsel %vm1582, %v1550, %v1614
          %v1647 = vsel %vm1583, %v1551, %v1615
          %v1648 = vsel %vm1584, %v1552, %v1616
          %v1649 = vsel %vm1585, %v1553, %v1617
          %v1650 = vsel %vm1586, %v1554, %v1618
          %v1651 = vsel %vm1587, %v1555, %v1619
          %v1652 = vsel %vm1588, %v1556, %v1620
          %v1653 = vsel %vm1589, %v1557, %v1621
          %v1654 = vsel %vm1590, %v1558, %v1622
          %v1655 = vsel %vm1591, %v1559, %v1623
          %v1656 = vsel %vm1592, %v1560, %v1624
          %v1657 = vsel %vm1593, %v1561, %v1625
          %v1658 = vsel %vm1594, %v1562, %v1626
          %v1659 = vsel %vm1595, %v1563, %v1627
          %v1660 = vsel %vm1596, %v1564, %v1628
          %v1661 = vsel %vm1597, %v1565, %v1629
          %v1662 = vsel %vm1598, %v1566, %v1630
          %v1663 = vsel %vm1599, %v1567, %v1631
          %v1664 = vsel %vm1600, %v1568, %v1632
          %v1665 = vpack.c.bf16 %v1634, %v1633
          %v1666 = vpack.c.bf16 %v1636, %v1635
          %v1667 = vpack.c.bf16 %v1638, %v1637
          %v1668 = vpack.c.bf16 %v1640, %v1639
          %v1669 = vpack.c.bf16 %v1642, %v1641
          %v1670 = vpack.c.bf16 %v1644, %v1643
          %v1671 = vpack.c.bf16 %v1646, %v1645
          %v1672 = vpack.c.bf16 %v1648, %v1647
          %v1673 = vpack.c.bf16 %v1650, %v1649
          %v1674 = vpack.c.bf16 %v1652, %v1651
          %v1675 = vpack.c.bf16 %v1654, %v1653
          %v1676 = vpack.c.bf16 %v1656, %v1655
          %v1677 = vpack.c.bf16 %v1658, %v1657
          %v1678 = vpack.c.bf16 %v1660, %v1659
          %v1679 = vpack.c.bf16 %v1662, %v1661
          %v1680 = vpack.c.bf16 %v1664, %v1663
          %v1697 = vunpack.c.l.b16 %v1665
          %v1698 = vunpack.c.h.b16 %v1665
          %v1699 = vunpack.c.l.b16 %v1666
          %v1700 = vunpack.c.h.b16 %v1666
          %v1701 = vunpack.c.l.b16 %v1667
          %v1702 = vunpack.c.h.b16 %v1667
          %v1703 = vunpack.c.l.b16 %v1668
          %v1704 = vunpack.c.h.b16 %v1668
          %v1705 = vunpack.c.l.b16 %v1669
          %v1706 = vunpack.c.h.b16 %v1669
          %v1707 = vunpack.c.l.b16 %v1670
          %v1708 = vunpack.c.h.b16 %v1670
          %v1709 = vunpack.c.l.b16 %v1671
          %v1710 = vunpack.c.h.b16 %v1671
          %v1711 = vunpack.c.l.b16 %v1672
          %v1712 = vunpack.c.h.b16 %v1672
          %v1713 = vunpack.c.l.b16 %v1673
          %v1714 = vunpack.c.h.b16 %v1673
          %v1715 = vunpack.c.l.b16 %v1674
          %v1716 = vunpack.c.h.b16 %v1674
          %v1717 = vunpack.c.l.b16 %v1675
          %v1718 = vunpack.c.h.b16 %v1675
          %v1719 = vunpack.c.l.b16 %v1676
          %v1720 = vunpack.c.h.b16 %v1676
          %v1721 = vunpack.c.l.b16 %v1677
          %v1722 = vunpack.c.h.b16 %v1677
          %v1723 = vunpack.c.l.b16 %v1678
          %v1724 = vunpack.c.h.b16 %v1678
          %v1725 = vunpack.c.l.b16 %v1679
          %v1726 = vunpack.c.h.b16 %v1679
          %v1727 = vunpack.c.l.b16 %v1680
          %v1728 = vunpack.c.h.b16 %v1680
          %v1729 = vpack.c.b16 %v1697, %v1697
          %v1730 = vpack.c.b16 %v1698, %v1698
          %v1731 = vpack.c.b16 %v1699, %v1699
          %v1732 = vpack.c.b16 %v1700, %v1700
          %v1733 = vpack.c.b16 %v1701, %v1701
          %v1734 = vpack.c.b16 %v1702, %v1702
          %v1735 = vpack.c.b16 %v1703, %v1703
          %v1736 = vpack.c.b16 %v1704, %v1704
          %v1737 = vpack.c.b16 %v1705, %v1705
          %v1738 = vpack.c.b16 %v1706, %v1706
          %v1739 = vpack.c.b16 %v1707, %v1707
          %v1740 = vpack.c.b16 %v1708, %v1708
          %v1741 = vpack.c.b16 %v1709, %v1709
          %v1742 = vpack.c.b16 %v1710, %v1710
          %v1743 = vpack.c.b16 %v1711, %v1711
          %v1744 = vpack.c.b16 %v1712, %v1712
          %v1745 = vpack.c.b16 %v1713, %v1713
          %v1746 = vpack.c.b16 %v1714, %v1714
          %v1747 = vpack.c.b16 %v1715, %v1715
          %v1748 = vpack.c.b16 %v1716, %v1716
          %v1749 = vpack.c.b16 %v1717, %v1717
          %v1750 = vpack.c.b16 %v1718, %v1718
          %v1751 = vpack.c.b16 %v1719, %v1719
          %v1752 = vpack.c.b16 %v1720, %v1720
          %v1753 = vpack.c.b16 %v1721, %v1721
          %v1754 = vpack.c.b16 %v1722, %v1722
          %v1755 = vpack.c.b16 %v1723, %v1723
          %v1756 = vpack.c.b16 %v1724, %v1724
          %v1757 = vpack.c.b16 %v1725, %v1725
          %v1758 = vpack.c.b16 %v1726, %v1726
          %v1759 = vpack.c.b16 %v1727, %v1727
          %v1760 = vpack.c.b16 %v1728, %v1728
          %1793 = vst [vmem:[%s397] sm:$0xf] %v1729
          %1794 = vst [vmem:[%s397 + $0x4] sm:$0xf] %v1730
          %1795 = vst [vmem:[%s397 + $0x8] sm:$0xf] %v1731
          %1796 = vst [vmem:[%s397 + $0xc] sm:$0xf] %v1732
          %1797 = vst [vmem:[%s397 + $0x10] sm:$0xf] %v1733
          %1798 = vst [vmem:[%s397 + $0x14] sm:$0xf] %v1734
          %1799 = vst [vmem:[%s397 + $0x18] sm:$0xf] %v1735
          %1800 = vst [vmem:[%s397 + $0x1c] sm:$0xf] %v1736
          %1801 = vst [vmem:[%s397 + $0x20] sm:$0xf] %v1737
          %1802 = vst [vmem:[%s397 + $0x24] sm:$0xf] %v1738
          %1803 = vst [vmem:[%s397 + $0x28] sm:$0xf] %v1739
          %1804 = vst [vmem:[%s397 + $0x2c] sm:$0xf] %v1740
          %1805 = vst [vmem:[%s397 + $0x30] sm:$0xf] %v1741
          %1806 = vst [vmem:[%s397 + $0x34] sm:$0xf] %v1742
          %1807 = vst [vmem:[%s397 + $0x38] sm:$0xf] %v1743
          %1808 = vst [vmem:[%s397 + $0x3c] sm:$0xf] %v1744
          %1809 = vst [vmem:[%s397 + $0x40] sm:$0xf] %v1745
          %1810 = vst [vmem:[%s397 + $0x44] sm:$0xf] %v1746
          %1811 = vst [vmem:[%s397 + $0x48] sm:$0xf] %v1747
          %1812 = vst [vmem:[%s397 + $0x4c] sm:$0xf] %v1748
          %1813 = vst [vmem:[%s397 + $0x50] sm:$0xf] %v1749
          %1814 = vst [vmem:[%s397 + $0x54] sm:$0xf] %v1750
          %1815 = vst [vmem:[%s397 + $0x58] sm:$0xf] %v1751
          %1816 = vst [vmem:[%s397 + $0x5c] sm:$0xf] %v1752
          %1817 = vst [vmem:[%s397 + $0x60] sm:$0xf] %v1753
          %1818 = vst [vmem:[%s397 + $0x64] sm:$0xf] %v1754
          %1819 = vst [vmem:[%s397 + $0x68] sm:$0xf] %v1755
          %1820 = vst [vmem:[%s397 + $0x6c] sm:$0xf] %v1756
          %1821 = vst [vmem:[%s397 + $0x70] sm:$0xf] %v1757
          %1822 = vst [vmem:[%s397 + $0x74] sm:$0xf] %v1758
          %1823 = vst [vmem:[%s397 + $0x78] sm:$0xf] %v1759
          %1824 = vst [vmem:[%s397 + $0x7c] sm:$0xf] %v1760
        $region63: #{d_net128_forward.8} parent=50 // pred_fallthru
          _
        %s1825 = smul.u32 32, %s19
        %p1826 = scmp.lt.s32.totalorder %s1825, 63
        %s1827 = scalar_select %p1826, %s1825, 63
        %p1828 = scmp.lt.s32.totalorder %s20, 0
        %s1829 = scalar_select %p1828, %s20, 0
        %s1830 = sadd.s32 %s1829, %s1827
        %s1831 = smul.addr %s1830, 4
        %s1832 = scalar_lea.vmem %s3, %s1831
        // Predicated region
        $region64: #{d_net128_forward.8} parent=50 // pred_check
          %p1833 = pneg %p135
        $region65: #{d_net128_forward.8} parent=50 // pred_check_branch
          %1835 = sbr.rel (%p1833) target = $region67
        $region66: #{d_net128_forward.8} parent=50 // pred_region
          %s1836 = smul.u32 32, %s19
        $region67: #{d_net128_forward.8} parent=50 // pred_fallthru
          _
      $region51: #{d_net128_forward.8} parent=5 // pred_fallthru
        _
      %p1837 = scmp.le.s32.totalorder 2, %s9
      // Predicated region
      $region68: #{d_net128_forward.8} parent=5 // pred_check
        %p1838 = pneg %p1837
      $region69: #{d_net128_forward.8} parent=5 // pred_check_branch
        %1840 = sbr.rel (%p1838) target = $region71
      $region70: #{d_net128_forward.8} parent=5 // pred_region
        %s1841 = ssub.s32 %s9, 2
        // Predicated region
        $region72: #{d_net128_forward.8} parent=70 // pred_check
          %p1842 = pneg %p141
        $region73: #{d_net128_forward.8} parent=70 // pred_check_branch
          %1844 = sbr.rel (%p1842) target = $region75
        $region74: #{d_net128_forward.8} parent=70 // pred_region
          %s1845 = smul.u32 32, %s22
          %p1846 = scmp.lt.s32.totalorder %s1845, 63
          %s1847 = scalar_select %p1846, %s1845, 63
          %p1848 = scmp.lt.s32.totalorder %s23, 0
          %s1849 = scalar_select %p1848, %s23, 0
          %s1850 = sadd.s32 %s1849, %s1847
          %s1851 = smul.addr %s1850, 4
          %s1852 = scalar_lea.vmem %s3, %s1851
        $region75: #{d_net128_forward.8} parent=70 // pred_fallthru
          _
      $region71: #{d_net128_forward.8} parent=5 // pred_fallthru
        _
    $region6: #{d_net128_forward.8} parent=1 // loop_footer
      %s13 = sadd.s32 1, %s9
    $region7: #{d_net128_forward.8} parent=1 // loop_footer_branch
      %8 = sbr.rel target = $region3
    $region8: #{d_net128_forward.8} parent=1 // loop_exit
      _

// kernel: d_net128_forward.9
$region0: #{d_net128_forward.9}
  #allocation0 [shape = 'u32[]', space=smem, size = 0x4, offset = 0x4, fixed_abs, tag = 'smem constant byte address 0x4 - core index']
  #allocation1 [shape = 'u32[144,128]{1,0:T(1,128)}', space=vmem, size = 0x12000, scoped, tag = 'internal scratch']
  #allocation2 [shape = 'f32[128,256]{1,0:T(8,128)}', space=vmem, size = 0x20000, scoped, tag = 'scratch operand']
  %s0 = inlined_call_operand.vmem [shape: bf16[128,2048], index: 0, kind: input, shape index: {}]
  %s1 = inlined_call_operand.vmem [shape: bf16[2048,256], index: 1, kind: input, shape index: {}]
  %s2 = inlined_call_operand.vmem [shape: f32[1,256], index: 2, kind: input, shape index: {}]
  %s3 = inlined_call_operand.vmem [shape: bf16[128,256], index: 3, kind: output, shape index: {}]
  %s4 = sld [smem:[#allocation0]]
  $region76: #{d_net128_forward.9} parent=0
    _
  %s6 = ssub.s32 1, %s4
  %s7 = scalar_select 0, %s6, %s4
  $region1: #{d_net128_forward.9} parent=0
    #allocation3 [shape = 'u8[262144]{0}', space=vmem, size = 0x40000, scoped, tag = 'input window, operand 0']
    loop: start=0, step=1, limit=6
    $region2: #{d_net128_forward.9} parent=1 // loop_pre_header
      _
    $region3: #{d_net128_forward.9} parent=1 // loop_header
      %s9 = sphi 0, %s13
      %p10 = scmp.ge.s32.totalorder %s9, 6
      %s16 = sphi 0, %s35
      %s17 = sphi 0, %s31
      %s18 = sphi 0, %s27
      %s19 = sphi 0, %s16
      %s20 = sphi 0, %s17
      %s21 = sphi 0, %s18
      %s22 = sphi 0, %s19
      %s23 = sphi 0, %s20
      %s24 = sphi 0, %s21
      %s40 = sphi 0, %s42
      %s43 = sphi 0, %s40
      %s44 = sphi 0, %s43
      %s60 = sphi 0, %s44
      %s68 = sphi 0, %s70
      %s71 = sphi 0, %s68
      %s72 = sphi 0, %s71
      %s88 = sphi 0, %s72
      %s94 = sphi 0, %s96
      %s97 = sphi 0, %s94
      %s98 = sphi 0, %s97
      %s114 = sphi 0, %s98
      %s122 = sphi 0, %s124
      %s125 = sphi 0, %s122
      %s126 = sphi 0, %s125
      %s142 = sphi 0, %s126
    $region4: #{d_net128_forward.9} parent=1 // loop_header_branch
      %12 = sbr.rel (%p10) target = $region8
    $region5: #{d_net128_forward.9} parent=1 // loop_body
      %s14 = ssub.s32 %s9, 1
      %s15 = ssub.s32 %s9, 2
      %s25 = sadd.s32 1, %s18
      %p26 = scmp.ge.s32.totalorder %s25, 4
      %s27 = scalar_select %p26, 0, %s25
      %s28 = sadd.s32 1, %s17
      %s29 = scalar_select %p26, %s28, %s17
      %p30 = scmp.ge.s32.totalorder %s29, 1
      %s31 = scalar_select %p30, 0, %s29
      %s32 = sadd.s32 1, %s16
      %s33 = scalar_select %p30, %s32, %s16
      %p34 = scmp.ge.s32.totalorder %s33, 1
      %s35 = scalar_select %p34, 0, %s33
      %s36 = ssub.s32 %s16, %s35
      %s37 = ssub.s32 %s18, %s27
      %s38 = sor.u32 %s36, %s37
      %p39 = scmp.eq.s32.totalorder %s38, 0
      %s41 = sadd.s32 %s40, 1
      %s42 = scalar_select %p39, %s40, %s41
      %p45 = pneg %p39
      %p46 = scmp.eq.s32.totalorder %s9, 3
      %p47 = por %p45, %p46
      %p48 = scmp.ne.s32.totalorder %s40, %s43
      %p49 = scmp.eq.s32.totalorder %s9, 0
      %p50 = por %p48, %p49
      %p51 = scmp.ne.s32.totalorder %s40, %s43
      %p52 = scmp.eq.s32.totalorder %s14, 3
      %p53 = por %p51, %p52
      %p54 = scmp.ne.s32.totalorder %s43, %s44
      %p55 = scmp.eq.s32.totalorder %s14, 0
      %p56 = por %p54, %p55
      %p57 = scmp.ne.s32.totalorder %s43, %s44
      %p58 = scmp.eq.s32.totalorder %s15, 3
      %p59 = por %p57, %p58
      %p61 = scmp.ne.s32.totalorder %s44, %s60
      %p62 = scmp.eq.s32.totalorder %s15, 0
      %p63 = por %p61, %p62
      %s64 = ssub.s32 %s18, %s27
      %s65 = ssub.s32 %s17, %s31
      %s66 = sor.u32 %s64, %s65
      %p67 = scmp.eq.s32.totalorder %s66, 0
      %s69 = sadd.s32 %s68, 1
      %s70 = scalar_select %p67, %s68, %s69
      %p73 = pneg %p67
      %p74 = scmp.eq.s32.totalorder %s9, 3
      %p75 = por %p73, %p74
      %p76 = scmp.ne.s32.totalorder %s68, %s71
      %p77 = scmp.eq.s32.totalorder %s9, 0
      %p78 = por %p76, %p77
      %p79 = scmp.ne.s32.totalorder %s68, %s71
      %p80 = scmp.eq.s32.totalorder %s14, 3
      %p81 = por %p79, %p80
      %p82 = scmp.ne.s32.totalorder %s71, %s72
      %p83 = scmp.eq.s32.totalorder %s14, 0
      %p84 = por %p82, %p83
      %p85 = scmp.ne.s32.totalorder %s71, %s72
      %p86 = scmp.eq.s32.totalorder %s15, 3
      %p87 = por %p85, %p86
      %p89 = scmp.ne.s32.totalorder %s72, %s88
      %p90 = scmp.eq.s32.totalorder %s15, 0
      %p91 = por %p89, %p90
      %s92 = ssub.s32 %s17, %s31
      %p93 = scmp.eq.s32.totalorder %s92, 0
      %s95 = sadd.s32 %s94, 1
      %s96 = scalar_select %p93, %s94, %s95
      %p99 = pneg %p93
      %p100 = scmp.eq.s32.totalorder %s9, 3
      %p101 = por %p99, %p100
      %p102 = scmp.ne.s32.totalorder %s94, %s97
      %p103 = scmp.eq.s32.totalorder %s9, 0
      %p104 = por %p102, %p103
      %p105 = scmp.ne.s32.totalorder %s94, %s97
      %p106 = scmp.eq.s32.totalorder %s14, 3
      %p107 = por %p105, %p106
      %p108 = scmp.ne.s32.totalorder %s97, %s98
      %p109 = scmp.eq.s32.totalorder %s14, 0
      %p110 = por %p108, %p109
      %p111 = scmp.ne.s32.totalorder %s97, %s98
      %p112 = scmp.eq.s32.totalorder %s15, 3
      %p113 = por %p111, %p112
      %p115 = scmp.ne.s32.totalorder %s98, %s114
      %p116 = scmp.eq.s32.totalorder %s15, 0
      %p117 = por %p115, %p116
      %s118 = ssub.s32 %s16, %s35
      %s119 = ssub.s32 %s17, %s31
      %s120 = sor.u32 %s118, %s119
      %p121 = scmp.eq.s32.totalorder %s120, 0
      %s123 = sadd.s32 %s122, 1
      %s124 = scalar_select %p121, %s122, %s123
      %p127 = pneg %p121
      %p128 = scmp.eq.s32.totalorder %s9, 3
      %p129 = por %p127, %p128
      %p130 = scmp.ne.s32.totalorder %s122, %s125
      %p131 = scmp.eq.s32.totalorder %s9, 0
      %p132 = por %p130, %p131
      %p133 = scmp.ne.s32.totalorder %s122, %s125
      %p134 = scmp.eq.s32.totalorder %s14, 3
      %p135 = por %p133, %p134
      %p136 = scmp.ne.s32.totalorder %s125, %s126
      %p137 = scmp.eq.s32.totalorder %s14, 0
      %p138 = por %p136, %p137
      %p139 = scmp.ne.s32.totalorder %s125, %s126
      %p140 = scmp.eq.s32.totalorder %s15, 3
      %p141 = por %p139, %p140
      %p143 = scmp.ne.s32.totalorder %s126, %s142
      %p144 = scmp.eq.s32.totalorder %s15, 0
      %p145 = por %p143, %p144
      %p146 = scmp.le.s32.totalorder 1, %s9
      %p147 = scmp.lt.s32.totalorder %s9, 5
      %p148 = pnand %p146, %p147
      %p149 = pneg %p148
      // Predicated region
      $region9: #{d_net128_forward.9} parent=5 // pred_check
        _
      $region10: #{d_net128_forward.9} parent=5 // pred_check_branch
        %151 = sbr.rel (%p148) target = $region12
      $region11: #{d_net128_forward.9} parent=5 // pred_region
        %s152 = ssub.s32 %s9, 1
        // Predicated region
        $region13: #{d_net128_forward.9} parent=11 // pred_check
          %p153 = pneg %p110
        $region14: #{d_net128_forward.9} parent=11 // pred_check_branch
          %155 = sbr.rel (%p153) target = $region16
        $region15: #{d_net128_forward.9} parent=11 // pred_region
          %s156 = smul.u32 2, %s20
          %p157 = scmp.lt.s32.totalorder %s156, 1
          %s158 = scalar_select %p157, %s156, 1
          %s159 = scalar_lea.vmem %s2, %s158
          %s160 = smul.u32 2, %s20
        $region16: #{d_net128_forward.9} parent=11 // pred_fallthru
          _
      $region12: #{d_net128_forward.9} parent=5 // pred_fallthru
        _
      %p161 = scmp.lt.s32.totalorder %s9, 4
      // Predicated region
      $region17: #{d_net128_forward.9} parent=5 // pred_check
        %p162 = pneg %p161
      $region18: #{d_net128_forward.9} parent=5 // pred_check_branch
        %164 = sbr.rel (%p162) target = $region20
      $region19: #{d_net128_forward.9} parent=5 // pred_region
        // Predicated region
        $region21: #{d_net128_forward.9} parent=19 // pred_check
          %p165 = pneg %p50
        $region22: #{d_net128_forward.9} parent=19 // pred_check_branch
          %167 = sbr.rel (%p165) target = $region24
        $region23: #{d_net128_forward.9} parent=19 // pred_region
          %s168 = sand.u32 %s40, 1
          %s169 = sand.u32 %s40, 1
          %s170 = smul.addr %s169, 256
          %s171 = scalar_lea.vmem [#allocation3], %s170
          %s172 = smul.u32 16, %s16
          %s173 = smul.u32 4, %s18
          %s174 = smul.addr %s172, 16
          %s175 = sadd.s32 %s173, %s174
          %s176 = smul.addr %s175, 4
          %s177 = scalar_lea.vmem %s0, %s176
          // Predicated region
          $region25: #{d_net128_forward.9} parent=23 // pred_check
            _
          $region26: #{d_net128_forward.9} parent=23 // pred_check_branch
            %179 = sbr.rel (0) target = $region28
          $region27: #{d_net128_forward.9} parent=23 // pred_region
            // Predicated region
            $region29: #{d_net128_forward.9} parent=27 // pred_check
              _
            $region30: #{d_net128_forward.9} parent=27 // pred_check_branch
              %181 = sbr.rel (0) target = $region32
            $region31: #{d_net128_forward.9} parent=27 // pred_region
              loop: start=0, step=1, limit=1
              $region33: #{d_net128_forward.9} parent=31 // loop_pre_header
                _
              $region34: #{d_net128_forward.9} parent=31 // loop_header
                %s183 = sphi 0, %s187
                %p184 = scmp.ge.s32.totalorder %s183, 1
                %s188 = sphi %s177, %s177
                %s189 = sphi %s171, %s171
              $region35: #{d_net128_forward.9} parent=31 // loop_header_branch
                %186 = sbr.rel (%p184) target = $region39
              $region36: #{d_net128_forward.9} parent=31 // loop_body
                %v190 = vld [vmem:[%s188] sm:$0xff]
                %191 = vst [vmem:[%s189] sm:$0xff] %v190
                %v192 = vld [vmem:[%s188 + $0x8] sm:$0xff]
                %193 = vst [vmem:[%s189 + $0x8] sm:$0xff] %v192
                %v194 = vld [vmem:[%s188 + $0x40] sm:$0xff]
                %195 = vst [vmem:[%s189 + $0x10] sm:$0xff] %v194
                %v196 = vld [vmem:[%s188 + $0x48] sm:$0xff]
                %197 = vst [vmem:[%s189 + $0x18] sm:$0xff] %v196
                %v198 = vld [vmem:[%s188 + $0x80] sm:$0xff]
                %199 = vst [vmem:[%s189 + $0x20] sm:$0xff] %v198
                %v200 = vld [vmem:[%s188 + $0x88] sm:$0xff]
                %201 = vst [vmem:[%s189 + $0x28] sm:$0xff] %v200
                %v202 = vld [vmem:[%s188 + $0xc0] sm:$0xff]
                %203 = vst [vmem:[%s189 + $0x30] sm:$0xff] %v202
                %v204 = vld [vmem:[%s188 + $0xc8] sm:$0xff]
                %205 = vst [vmem:[%s189 + $0x38] sm:$0xff] %v204
                %v206 = vld [vmem:[%s188 + $0x100] sm:$0xff]
                %207 = vst [vmem:[%s189 + $0x40] sm:$0xff] %v206
                %v208 = vld [vmem:[%s188 + $0x108] sm:$0xff]
                %209 = vst [vmem:[%s189 + $0x48] sm:$0xff] %v208
                %v210 = vld [vmem:[%s188 + $0x140] sm:$0xff]
                %211 = vst [vmem:[%s189 + $0x50] sm:$0xff] %v210
                %v212 = vld [vmem:[%s188 + $0x148] sm:$0xff]
                %213 = vst [vmem:[%s189 + $0x58] sm:$0xff] %v212
                %v214 = vld [vmem:[%s188 + $0x180] sm:$0xff]
                %215 = vst [vmem:[%s189 + $0x60] sm:$0xff] %v214
                %v216 = vld [vmem:[%s188 + $0x188] sm:$0xff]
                %217 = vst [vmem:[%s189 + $0x68] sm:$0xff] %v216
                %v218 = vld [vmem:[%s188 + $0x1c0] sm:$0xff]
                %219 = vst [vmem:[%s189 + $0x70] sm:$0xff] %v218
                %v220 = vld [vmem:[%s188 + $0x1c8] sm:$0xff]
                %221 = vst [vmem:[%s189 + $0x78] sm:$0xff] %v220
                %v222 = vld [vmem:[%s188 + $0x200] sm:$0xff]
                %223 = vst [vmem:[%s189 + $0x80] sm:$0xff] %v222
                %v224 = vld [vmem:[%s188 + $0x208] sm:$0xff]
                %225 = vst [vmem:[%s189 + $0x88] sm:$0xff] %v224
                %v226 = vld [vmem:[%s188 + $0x240] sm:$0xff]
                %227 = vst [vmem:[%s189 + $0x90] sm:$0xff] %v226
                %v228 = vld [vmem:[%s188 + $0x248] sm:$0xff]
                %229 = vst [vmem:[%s189 + $0x98] sm:$0xff] %v228
                %v230 = vld [vmem:[%s188 + $0x280] sm:$0xff]
                %231 = vst [vmem:[%s189 + $0xa0] sm:$0xff] %v230
                %v232 = vld [vmem:[%s188 + $0x288] sm:$0xff]
                %233 = vst [vmem:[%s189 + $0xa8] sm:$0xff] %v232
                %v234 = vld [vmem:[%s188 + $0x2c0] sm:$0xff]
                %235 = vst [vmem:[%s189 + $0xb0] sm:$0xff] %v234
                %v236 = vld [vmem:[%s188 + $0x2c8] sm:$0xff]
                %237 = vst [vmem:[%s189 + $0xb8] sm:$0xff] %v236
                %v238 = vld [vmem:[%s188 + $0x300] sm:$0xff]
                %239 = vst [vmem:[%s189 + $0xc0] sm:$0xff] %v238
                %v240 = vld [vmem:[%s188 + $0x308] sm:$0xff]
                %241 = vst [vmem:[%s189 + $0xc8] sm:$0xff] %v240
                %v242 = vld [vmem:[%s188 + $0x340] sm:$0xff]
                %243 = vst [vmem:[%s189 + $0xd0] sm:$0xff] %v242
                %v244 = vld [vmem:[%s188 + $0x348] sm:$0xff]
                %245 = vst [vmem:[%s189 + $0xd8] sm:$0xff] %v244
                %v246 = vld [vmem:[%s188 + $0x380] sm:$0xff]
                %247 = vst [vmem:[%s189 + $0xe0] sm:$0xff] %v246
                %v248 = vld [vmem:[%s188 + $0x388] sm:$0xff]
                %249 = vst [vmem:[%s189 + $0xe8] sm:$0xff] %v248
                %v250 = vld [vmem:[%s188 + $0x3c0] sm:$0xff]
                %251 = vst [vmem:[%s189 + $0xf0] sm:$0xff] %v250
                %v252 = vld [vmem:[%s188 + $0x3c8] sm:$0xff]
                %253 = vst [vmem:[%s189 + $0xf8] sm:$0xff] %v252
              $region37: #{d_net128_forward.9} parent=31 // loop_footer
                %s187 = sadd.s32 1, %s183
              $region38: #{d_net128_forward.9} parent=31 // loop_footer_branch
                %182 = sbr.rel target = $region34
              $region39: #{d_net128_forward.9} parent=31 // loop_exit
                _
            $region32: #{d_net128_forward.9} parent=27 // pred_fallthru
              _
            // Predicated region
            $region40: #{d_net128_forward.9} parent=27 // pred_check
              _
            $region41: #{d_net128_forward.9} parent=27 // pred_check_branch
              %255 = sbr.rel target = $region43
            $region42: #{d_net128_forward.9} parent=27 // pred_region
              _
            $region43: #{d_net128_forward.9} parent=27 // pred_fallthru
              _
          $region28: #{d_net128_forward.9} parent=23 // pred_fallthru
            _
          %256 = vnop
        $region24: #{d_net128_forward.9} parent=19 // pred_fallthru
          _
        // Predicated region
        $region44: #{d_net128_forward.9} parent=19 // pred_check
          %p257 = pneg %p78
        $region45: #{d_net128_forward.9} parent=19 // pred_check_branch
          %259 = sbr.rel (%p257) target = $region47
        $region46: #{d_net128_forward.9} parent=19 // pred_region
          %s260 = smul.u32 64, %s18
          %s261 = smul.u32 2, %s17
          %p262 = scmp.lt.s32.totalorder %s260, 255
          %s263 = scalar_select %p262, %s260, 255
          %p264 = scmp.lt.s32.totalorder %s261, 1
          %s265 = scalar_select %p264, %s261, 1
          %s266 = smul.addr %s263, 2
          %s267 = sadd.s32 %s265, %s266
          %s268 = smul.addr %s267, 4
          %s269 = scalar_lea.vmem %s1, %s268
          %s270 = smul.u32 64, %s18
          %s271 = smul.u32 2, %s17
        $region47: #{d_net128_forward.9} parent=19 // pred_fallthru
          _
      $region20: #{d_net128_forward.9} parent=5 // pred_fallthru
        _
      %p272 = scmp.le.s32.totalorder 1, %s9
      %p273 = scmp.lt.s32.totalorder %s9, 5
      %p274 = pnand %p272, %p273
      %p275 = pneg %p274
      // Predicated region
      $region48: #{d_net128_forward.9} parent=5 // pred_check
        _
      $region49: #{d_net128_forward.9} parent=5 // pred_check_branch
        %277 = sbr.rel (%p274) target = $region51
      $region50: #{d_net128_forward.9} parent=5 // pred_region
        %s278 = ssub.s32 %s9, 1
        %s279 = sand.u32 %s43, 1
        %s280 = sand.u32 %s43, 1
        %s281 = smul.addr %s280, 256
        %s282 = scalar_lea.vmem [#allocation3], %s281
        // Predicated region
        $region52: #{d_net128_forward.9} parent=50 // pred_check
          %p283 = pneg %p56
        $region53: #{d_net128_forward.9} parent=50 // pred_check_branch
          %285 = sbr.rel (%p283) target = $region55
        $region54: #{d_net128_forward.9} parent=50 // pred_region
          _
        $region55: #{d_net128_forward.9} parent=50 // pred_fallthru
          _
        %s286 = sand.u32 %s43, 1
        %s287 = sand.u32 %s43, 1
        %s288 = smul.addr %s287, 256
        %s289 = scalar_lea.vmem [#allocation3], %s288
        %p290 = pneg %p56
        %p291 = pneg %p53
        %s292 = smul.u32 64, %s21
        %s293 = smul.u32 2, %s20
        %p294 = scmp.lt.s32.totalorder %s292, 255
        %s295 = scalar_select %p294, %s292, 255
        %p296 = scmp.lt.s32.totalorder %s293, 1
        %s297 = scalar_select %p296, %s293, 1
        %s298 = smul.addr %s295, 2
        %s299 = sadd.s32 %s297, %s298
        %s300 = smul.addr %s299, 4
        %s301 = scalar_lea.vmem %s1, %s300
        %p302 = pneg %p84
        %p303 = pneg %p81
        %s304 = smul.u32 2, %s20
        %p305 = scmp.lt.s32.totalorder %s304, 1
        %s306 = scalar_select %p305, %s304, 1
        %s307 = scalar_lea.vmem %s2, %s306
        %p308 = pneg %p110
        %p309 = pneg %p107
        %p310 = pneg %p138
        %p311 = pneg %p135
        %s312 = smul.u32 16, %s19
        %s313 = smul.u32 2, %s20
        %p314 = scmp.lt.s32.totalorder %s312, 15
        %s315 = scalar_select %p314, %s312, 15
        %p316 = scmp.lt.s32.totalorder %s313, 1
        %s317 = scalar_select %p316, %s313, 1
        %s318 = smul.addr %s315, 2
        %s319 = sadd.s32 %s317, %s318
        %s320 = smul.addr %s319, 4
        %s321 = scalar_lea.vmem %s3, %s320
        %s322 = smul.u32 16, %s19
        %s323 = smul.u32 4, %s21
        %s324 = smul.u32 64, %s21
        %s325 = smul.u32 2, %s20
        %p326 = scmp.lt.s32.totalorder %s324, 255
        %s327 = scalar_select %p326, %s324, 255
        %p328 = scmp.lt.s32.totalorder %s325, 1
        %s329 = scalar_select %p328, %s325, 1
        %s330 = smul.addr %s327, 2
        %s331 = sadd.s32 %s329, %s330
        %s332 = smul.addr %s331, 4
        %s333 = scalar_lea.vmem %s1, %s332
        %s334 = smul.u32 64, %s21
        %s335 = smul.u32 2, %s20
        %s336 = smul.u32 2, %s20
        %p337 = scmp.lt.s32.totalorder %s336, 1
        %s338 = scalar_select %p337, %s336, 1
        %s339 = scalar_lea.vmem %s2, %s338
        %s340 = smul.u32 2, %s20
        %s341 = smul.u32 16, %s19
        %s342 = smul.u32 2, %s20
        %p343 = scmp.lt.s32.totalorder %s341, 15
        %s344 = scalar_select %p343, %s341, 15
        %p345 = scmp.lt.s32.totalorder %s342, 1
        %s346 = scalar_select %p345, %s342, 1
        %s347 = smul.addr %s344, 2
        %s348 = sadd.s32 %s346, %s347
        %s349 = smul.addr %s348, 4
        %s350 = scalar_lea.vmem %s3, %s349
        %s351 = smul.u32 16, %s19
        %s352 = smul.u32 2, %s20
        %p353 = scmp.eq.s32.totalorder %s21, 0
        // Predicated region
        $region56: #{d_net128_forward.9} parent=50 // pred_check
          %p354 = pneg %p353
        $region57: #{d_net128_forward.9} parent=50 // pred_check_branch
          %356 = sbr.rel (%p354) target = $region59
        $region58: #{d_net128_forward.9} parent=50 // pred_region
          %357 = vst [vmem:[#allocation2] sm:$0xff] 0.0
          %358 = vst [vmem:[#allocation2 + $0x8] sm:$0xff] 0.0
          %359 = vst [vmem:[#allocation2 + $0x10] sm:$0xff] 0.0
          %360 = vst [vmem:[#allocation2 + $0x18] sm:$0xff] 0.0
          %361 = vst [vmem:[#allocation2 + $0x20] sm:$0xff] 0.0
          %362 = vst [vmem:[#allocation2 + $0x28] sm:$0xff] 0.0
          %363 = vst [vmem:[#allocation2 + $0x30] sm:$0xff] 0.0
          %364 = vst [vmem:[#allocation2 + $0x38] sm:$0xff] 0.0
          %365 = vst [vmem:[#allocation2 + $0x40] sm:$0xff] 0.0
          %366 = vst [vmem:[#allocation2 + $0x48] sm:$0xff] 0.0
          %367 = vst [vmem:[#allocation2 + $0x50] sm:$0xff] 0.0
          %368 = vst [vmem:[#allocation2 + $0x58] sm:$0xff] 0.0
          %369 = vst [vmem:[#allocation2 + $0x60] sm:$0xff] 0.0
          %370 = vst [vmem:[#allocation2 + $0x68] sm:$0xff] 0.0
          %371 = vst [vmem:[#allocation2 + $0x70] sm:$0xff] 0.0
          %372 = vst [vmem:[#allocation2 + $0x78] sm:$0xff] 0.0
          %373 = vst [vmem:[#allocation2 + $0x80] sm:$0xff] 0.0
          %374 = vst [vmem:[#allocation2 + $0x88] sm:$0xff] 0.0
          %375 = vst [vmem:[#allocation2 + $0x90] sm:$0xff] 0.0
          %376 = vst [vmem:[#allocation2 + $0x98] sm:$0xff] 0.0
          %377 = vst [vmem:[#allocation2 + $0xa0] sm:$0xff] 0.0
          %378 = vst [vmem:[#allocation2 + $0xa8] sm:$0xff] 0.0
          %379 = vst [vmem:[#allocation2 + $0xb0] sm:$0xff] 0.0
          %380 = vst [vmem:[#allocation2 + $0xb8] sm:$0xff] 0.0
          %381 = vst [vmem:[#allocation2 + $0xc0] sm:$0xff] 0.0
          %382 = vst [vmem:[#allocation2 + $0xc8] sm:$0xff] 0.0
          %383 = vst [vmem:[#allocation2 + $0xd0] sm:$0xff] 0.0
          %384 = vst [vmem:[#allocation2 + $0xd8] sm:$0xff] 0.0
          %385 = vst [vmem:[#allocation2 + $0xe0] sm:$0xff] 0.0
          %386 = vst [vmem:[#allocation2 + $0xe8] sm:$0xff] 0.0
          %387 = vst [vmem:[#allocation2 + $0xf0] sm:$0xff] 0.0
          %388 = vst [vmem:[#allocation2 + $0xf8] sm:$0xff] 0.0
        $region59: #{d_net128_forward.9} parent=50 // pred_fallthru
          _
        %v389 = vld [vmem:[#allocation2] sm:$0xff]
        %v390 = vld [vmem:[#allocation2 + $0x8] sm:$0xff]
        %v391 = vld [vmem:[#allocation2 + $0x10] sm:$0xff]
        %v392 = vld [vmem:[#allocation2 + $0x18] sm:$0xff]
        %v393 = vld [vmem:[#allocation2 + $0x20] sm:$0xff]
        %v394 = vld [vmem:[#allocation2 + $0x28] sm:$0xff]
        %v395 = vld [vmem:[#allocation2 + $0x30] sm:$0xff]
        %v396 = vld [vmem:[#allocation2 + $0x38] sm:$0xff]
        %v397 = vld [vmem:[#allocation2 + $0x40] sm:$0xff]
        %v398 = vld [vmem:[#allocation2 + $0x48] sm:$0xff]
        %v399 = vld [vmem:[#allocation2 + $0x50] sm:$0xff]
        %v400 = vld [vmem:[#allocation2 + $0x58] sm:$0xff]
        %v401 = vld [vmem:[#allocation2 + $0x60] sm:$0xff]
        %v402 = vld [vmem:[#allocation2 + $0x68] sm:$0xff]
        %v403 = vld [vmem:[#allocation2 + $0x70] sm:$0xff]
        %v404 = vld [vmem:[#allocation2 + $0x78] sm:$0xff]
        %v405 = vld [vmem:[#allocation2 + $0x80] sm:$0xff]
        %v406 = vld [vmem:[#allocation2 + $0x88] sm:$0xff]
        %v407 = vld [vmem:[#allocation2 + $0x90] sm:$0xff]
        %v408 = vld [vmem:[#allocation2 + $0x98] sm:$0xff]
        %v409 = vld [vmem:[#allocation2 + $0xa0] sm:$0xff]
        %v410 = vld [vmem:[#allocation2 + $0xa8] sm:$0xff]
        %v411 = vld [vmem:[#allocation2 + $0xb0] sm:$0xff]
        %v412 = vld [vmem:[#allocation2 + $0xb8] sm:$0xff]
        %v413 = vld [vmem:[#allocation2 + $0xc0] sm:$0xff]
        %v414 = vld [vmem:[#allocation2 + $0xc8] sm:$0xff]
        %v415 = vld [vmem:[#allocation2 + $0xd0] sm:$0xff]
        %v416 = vld [vmem:[#allocation2 + $0xd8] sm:$0xff]
        %v417 = vld [vmem:[#allocation2 + $0xe0] sm:$0xff]
        %v418 = vld [vmem:[#allocation2 + $0xe8] sm:$0xff]
        %v419 = vld [vmem:[#allocation2 + $0xf0] sm:$0xff]
        %v420 = vld [vmem:[#allocation2 + $0xf8] sm:$0xff]
        %v421 = vld [vmem:[%s282] sm:$0xff]
        %v422 = vld [vmem:[%s282 + $0x8] sm:$0xff]
        %v423 = vld [vmem:[%s282 + $0x10] sm:$0xff]
        %v424 = vld [vmem:[%s282 + $0x18] sm:$0xff]
        %v425 = vld [vmem:[%s282 + $0x20] sm:$0xff]
        %v426 = vld [vmem:[%s282 + $0x28] sm:$0xff]
        %v427 = vld [vmem:[%s282 + $0x30] sm:$0xff]
        %v428 = vld [vmem:[%s282 + $0x38] sm:$0xff]
        %v429 = vld [vmem:[%s282 + $0x40] sm:$0xff]
        %v430 = vld [vmem:[%s282 + $0x48] sm:$0xff]
        %v431 = vld [vmem:[%s282 + $0x50] sm:$0xff]
        %v432 = vld [vmem:[%s282 + $0x58] sm:$0xff]
        %v433 = vld [vmem:[%s282 + $0x60] sm:$0xff]
        %v434 = vld [vmem:[%s282 + $0x68] sm:$0xff]
        %v435 = vld [vmem:[%s282 + $0x70] sm:$0xff]
        %v436 = vld [vmem:[%s282 + $0x78] sm:$0xff]
        %v437 = vld [vmem:[%s282 + $0x80] sm:$0xff]
        %v438 = vld [vmem:[%s282 + $0x88] sm:$0xff]
        %v439 = vld [vmem:[%s282 + $0x90] sm:$0xff]
        %v440 = vld [vmem:[%s282 + $0x98] sm:$0xff]
        %v441 = vld [vmem:[%s282 + $0xa0] sm:$0xff]
        %v442 = vld [vmem:[%s282 + $0xa8] sm:$0xff]
        %v443 = vld [vmem:[%s282 + $0xb0] sm:$0xff]
        %v444 = vld [vmem:[%s282 + $0xb8] sm:$0xff]
        %v445 = vld [vmem:[%s282 + $0xc0] sm:$0xff]
        %v446 = vld [vmem:[%s282 + $0xc8] sm:$0xff]
        %v447 = vld [vmem:[%s282 + $0xd0] sm:$0xff]
        %v448 = vld [vmem:[%s282 + $0xd8] sm:$0xff]
        %v449 = vld [vmem:[%s282 + $0xe0] sm:$0xff]
        %v450 = vld [vmem:[%s282 + $0xe8] sm:$0xff]
        %v451 = vld [vmem:[%s282 + $0xf0] sm:$0xff]
        %v452 = vld [vmem:[%s282 + $0xf8] sm:$0xff]
        %v453 = vld [vmem:[%s333] sm:$0xff]
        %v454 = vld [vmem:[%s333 + $0x8] sm:$0xff]
        %v455 = vld [vmem:[%s333 + $0x10] sm:$0xff]
        %v456 = vld [vmem:[%s333 + $0x18] sm:$0xff]
        %v457 = vld [vmem:[%s333 + $0x20] sm:$0xff]
        %v458 = vld [vmem:[%s333 + $0x28] sm:$0xff]
        %v459 = vld [vmem:[%s333 + $0x30] sm:$0xff]
        %v460 = vld [vmem:[%s333 + $0x38] sm:$0xff]
        %v461 = vld [vmem:[%s333 + $0x40] sm:$0xff]
        %v462 = vld [vmem:[%s333 + $0x48] sm:$0xff]
        %v463 = vld [vmem:[%s333 + $0x50] sm:$0xff]
        %v464 = vld [vmem:[%s333 + $0x58] sm:$0xff]
        %v465 = vld [vmem:[%s333 + $0x60] sm:$0xff]
        %v466 = vld [vmem:[%s333 + $0x68] sm:$0xff]
        %v467 = vld [vmem:[%s333 + $0x70] sm:$0xff]
        %v468 = vld [vmem:[%s333 + $0x78] sm:$0xff]
        %v469 = vld [vmem:[%s333 + $0x80] sm:$0xff]
        %v470 = vld [vmem:[%s333 + $0x88] sm:$0xff]
        %v471 = vld [vmem:[%s333 + $0x90] sm:$0xff]
        %v472 = vld [vmem:[%s333 + $0x98] sm:$0xff]
        %v473 = vld [vmem:[%s333 + $0xa0] sm:$0xff]
        %v474 = vld [vmem:[%s333 + $0xa8] sm:$0xff]
        %v475 = vld [vmem:[%s333 + $0xb0] sm:$0xff]
        %v476 = vld [vmem:[%s333 + $0xb8] sm:$0xff]
        %v477 = vld [vmem:[%s333 + $0xc0] sm:$0xff]
        %v478 = vld [vmem:[%s333 + $0xc8] sm:$0xff]
        %v479 = vld [vmem:[%s333 + $0xd0] sm:$0xff]
        %v480 = vld [vmem:[%s333 + $0xd8] sm:$0xff]
        %v481 = vld [vmem:[%s333 + $0xe0] sm:$0xff]
        %v482 = vld [vmem:[%s333 + $0xe8] sm:$0xff]
        %v483 = vld [vmem:[%s333 + $0xf0] sm:$0xff]
        %v484 = vld [vmem:[%s333 + $0xf8] sm:$0xff]
        %v485 = vld [vmem:[%s333 + $0x100] sm:$0xff]
        %v486 = vld [vmem:[%s333 + $0x108] sm:$0xff]
        %v487 = vld [vmem:[%s333 + $0x110] sm:$0xff]
        %v488 = vld [vmem:[%s333 + $0x118] sm:$0xff]
        %v489 = vld [vmem:[%s333 + $0x120] sm:$0xff]
        %v490 = vld [vmem:[%s333 + $0x128] sm:$0xff]
        %v491 = vld [vmem:[%s333 + $0x130] sm:$0xff]
        %v492 = vld [vmem:[%s333 + $0x138] sm:$0xff]
        %v493 = vld [vmem:[%s333 + $0x140] sm:$0xff]
        %v494 = vld [vmem:[%s333 + $0x148] sm:$0xff]
        %v495 = vld [vmem:[%s333 + $0x150] sm:$0xff]
        %v496 = vld [vmem:[%s333 + $0x158] sm:$0xff]
        %v497 = vld [vmem:[%s333 + $0x160] sm:$0xff]
        %v498 = vld [vmem:[%s333 + $0x168] sm:$0xff]
        %v499 = vld [vmem:[%s333 + $0x170] sm:$0xff]
        %v500 = vld [vmem:[%s333 + $0x178] sm:$0xff]
        %v501 = vld [vmem:[%s333 + $0x180] sm:$0xff]
        %v502 = vld [vmem:[%s333 + $0x188] sm:$0xff]
        %v503 = vld [vmem:[%s333 + $0x190] sm:$0xff]
        %v504 = vld [vmem:[%s333 + $0x198] sm:$0xff]
        %v505 = vld [vmem:[%s333 + $0x1a0] sm:$0xff]
        %v506 = vld [vmem:[%s333 + $0x1a8] sm:$0xff]
        %v507 = vld [vmem:[%s333 + $0x1b0] sm:$0xff]
        %v508 = vld [vmem:[%s333 + $0x1b8] sm:$0xff]
        %v509 = vld [vmem:[%s333 + $0x1c0] sm:$0xff]
        %v510 = vld [vmem:[%s333 + $0x1c8] sm:$0xff]
        %v511 = vld [vmem:[%s333 + $0x1d0] sm:$0xff]
        %v512 = vld [vmem:[%s333 + $0x1d8] sm:$0xff]
        %v513 = vld [vmem:[%s333 + $0x1e0] sm:$0xff]
        %v514 = vld [vmem:[%s333 + $0x1e8] sm:$0xff]
        %v515 = vld [vmem:[%s333 + $0x1f0] sm:$0xff]
        %v516 = vld [vmem:[%s333 + $0x1f8] sm:$0xff]
        %v549 = vunpack.c.l.b16 %v421
        %v550 = vunpack.c.h.b16 %v421
        %v551 = vunpack.c.l.b16 %v422
        %v552 = vunpack.c.h.b16 %v422
        %v553 = vunpack.c.l.b16 %v423
        %v554 = vunpack.c.h.b16 %v423
        %v555 = vunpack.c.l.b16 %v424
        %v556 = vunpack.c.h.b16 %v424
        %v557 = vunpack.c.l.b16 %v425
        %v558 = vunpack.c.h.b16 %v425
        %v559 = vunpack.c.l.b16 %v426
        %v560 = vunpack.c.h.b16 %v426
        %v561 = vunpack.c.l.b16 %v427
        %v562 = vunpack.c.h.b16 %v427
        %v563 = vunpack.c.l.b16 %v428
        %v564 = vunpack.c.h.b16 %v428
        %v565 = vunpack.c.l.b16 %v429
        %v566 = vunpack.c.h.b16 %v429
        %v567 = vunpack.c.l.b16 %v430
        %v568 = vunpack.c.h.b16 %v430
        %v569 = vunpack.c.l.b16 %v431
        %v570 = vunpack.c.h.b16 %v431
        %v571 = vunpack.c.l.b16 %v432
        %v572 = vunpack.c.h.b16 %v432
        %v573 = vunpack.c.l.b16 %v433
        %v574 = vunpack.c.h.b16 %v433
        %v575 = vunpack.c.l.b16 %v434
        %v576 = vunpack.c.h.b16 %v434
        %v577 = vunpack.c.l.b16 %v435
        %v578 = vunpack.c.h.b16 %v435
        %v579 = vunpack.c.l.b16 %v436
        %v580 = vunpack.c.h.b16 %v436
        %v581 = vunpack.c.l.b16 %v437
        %v582 = vunpack.c.h.b16 %v437
        %v583 = vunpack.c.l.b16 %v438
        %v584 = vunpack.c.h.b16 %v438
        %v585 = vunpack.c.l.b16 %v439
        %v586 = vunpack.c.h.b16 %v439
        %v587 = vunpack.c.l.b16 %v440
        %v588 = vunpack.c.h.b16 %v440
        %v589 = vunpack.c.l.b16 %v441
        %v590 = vunpack.c.h.b16 %v441
        %v591 = vunpack.c.l.b16 %v442
        %v592 = vunpack.c.h.b16 %v442
        %v593 = vunpack.c.l.b16 %v443
        %v594 = vunpack.c.h.b16 %v443
        %v595 = vunpack.c.l.b16 %v444
        %v596 = vunpack.c.h.b16 %v444
        %v597 = vunpack.c.l.b16 %v445
        %v598 = vunpack.c.h.b16 %v445
        %v599 = vunpack.c.l.b16 %v446
        %v600 = vunpack.c.h.b16 %v446
        %v601 = vunpack.c.l.b16 %v447
        %v602 = vunpack.c.h.b16 %v447
        %v603 = vunpack.c.l.b16 %v448
        %v604 = vunpack.c.h.b16 %v448
        %v605 = vunpack.c.l.b16 %v449
        %v606 = vunpack.c.h.b16 %v449
        %v607 = vunpack.c.l.b16 %v450
        %v608 = vunpack.c.h.b16 %v450
        %v609 = vunpack.c.l.b16 %v451
        %v610 = vunpack.c.h.b16 %v451
        %v611 = vunpack.c.l.b16 %v452
        %v612 = vunpack.c.h.b16 %v452
        %v613 = vpack.c.b16 %v553, %v549
        %v614 = vpack.c.b16 %v554, %v550
        %v615 = vpack.c.b16 %v555, %v551
        %v616 = vpack.c.b16 %v556, %v552
        %v617 = vpack.c.b16 %v561, %v557
        %v618 = vpack.c.b16 %v562, %v558
        %v619 = vpack.c.b16 %v563, %v559
        %v620 = vpack.c.b16 %v564, %v560
        %v621 = vpack.c.b16 %v569, %v565
        %v622 = vpack.c.b16 %v570, %v566
        %v623 = vpack.c.b16 %v571, %v567
        %v624 = vpack.c.b16 %v572, %v568
        %v625 = vpack.c.b16 %v577, %v573
        %v626 = vpack.c.b16 %v578, %v574
        %v627 = vpack.c.b16 %v579, %v575
        %v628 = vpack.c.b16 %v580, %v576
        %v629 = vpack.c.b16 %v585, %v581
        %v630 = vpack.c.b16 %v586, %v582
        %v631 = vpack.c.b16 %v587, %v583
        %v632 = vpack.c.b16 %v588, %v584
        %v633 = vpack.c.b16 %v593, %v589
        %v634 = vpack.c.b16 %v594, %v590
        %v635 = vpack.c.b16 %v595, %v591
        %v636 = vpack.c.b16 %v596, %v592
        %v637 = vpack.c.b16 %v601, %v597
        %v638 = vpack.c.b16 %v602, %v598
        %v639 = vpack.c.b16 %v603, %v599
        %v640 = vpack.c.b16 %v604, %v600
        %v641 = vpack.c.b16 %v609, %v605
        %v642 = vpack.c.b16 %v610, %v606
        %v643 = vpack.c.b16 %v611, %v607
        %v644 = vpack.c.b16 %v612, %v608
        %v741 = vunpack.c.l.b16 %v453
        %v742 = vunpack.c.h.b16 %v453
        %v743 = vunpack.c.l.b16 %v454
        %v744 = vunpack.c.h.b16 %v454
        %v745 = vunpack.c.l.b16 %v455
        %v746 = vunpack.c.h.b16 %v455
        %v747 = vunpack.c.l.b16 %v456
        %v748 = vunpack.c.h.b16 %v456
        %v749 = vunpack.c.l.b16 %v457
        %v750 = vunpack.c.h.b16 %v457
        %v751 = vunpack.c.l.b16 %v458
        %v752 = vunpack.c.h.b16 %v458
        %v753 = vunpack.c.l.b16 %v459
        %v754 = vunpack.c.h.b16 %v459
        %v755 = vunpack.c.l.b16 %v460
        %v756 = vunpack.c.h.b16 %v460
        %v757 = vunpack.c.l.b16 %v461
        %v758 = vunpack.c.h.b16 %v461
        %v759 = vunpack.c.l.b16 %v462
        %v760 = vunpack.c.h.b16 %v462
        %v761 = vunpack.c.l.b16 %v463
        %v762 = vunpack.c.h.b16 %v463
        %v763 = vunpack.c.l.b16 %v464
        %v764 = vunpack.c.h.b16 %v464
        %v765 = vunpack.c.l.b16 %v465
        %v766 = vunpack.c.h.b16 %v465
        %v767 = vunpack.c.l.b16 %v466
        %v768 = vunpack.c.h.b16 %v466
        %v769 = vunpack.c.l.b16 %v467
        %v770 = vunpack.c.h.b16 %v467
        %v771 = vunpack.c.l.b16 %v468
        %v772 = vunpack.c.h.b16 %v468
        %v773 = vunpack.c.l.b16 %v469
        %v774 = vunpack.c.h.b16 %v469
        %v775 = vunpack.c.l.b16 %v470
        %v776 = vunpack.c.h.b16 %v470
        %v777 = vunpack.c.l.b16 %v471
        %v778 = vunpack.c.h.b16 %v471
        %v779 = vunpack.c.l.b16 %v472
        %v780 = vunpack.c.h.b16 %v472
        %v781 = vunpack.c.l.b16 %v473
        %v782 = vunpack.c.h.b16 %v473
        %v783 = vunpack.c.l.b16 %v474
        %v784 = vunpack.c.h.b16 %v474
        %v785 = vunpack.c.l.b16 %v475
        %v786 = vunpack.c.h.b16 %v475
        %v787 = vunpack.c.l.b16 %v476
        %v788 = vunpack.c.h.b16 %v476
        %v789 = vunpack.c.l.b16 %v477
        %v790 = vunpack.c.h.b16 %v477
        %v791 = vunpack.c.l.b16 %v478
        %v792 = vunpack.c.h.b16 %v478
        %v793 = vunpack.c.l.b16 %v479
        %v794 = vunpack.c.h.b16 %v479
        %v795 = vunpack.c.l.b16 %v480
        %v796 = vunpack.c.h.b16 %v480
        %v797 = vunpack.c.l.b16 %v481
        %v798 = vunpack.c.h.b16 %v481
        %v799 = vunpack.c.l.b16 %v482
        %v800 = vunpack.c.h.b16 %v482
        %v801 = vunpack.c.l.b16 %v483
        %v802 = vunpack.c.h.b16 %v483
        %v803 = vunpack.c.l.b16 %v484
        %v804 = vunpack.c.h.b16 %v484
        %v805 = vunpack.c.l.b16 %v485
        %v806 = vunpack.c.h.b16 %v485
        %v807 = vunpack.c.l.b16 %v486
        %v808 = vunpack.c.h.b16 %v486
        %v809 = vunpack.c.l.b16 %v487
        %v810 = vunpack.c.h.b16 %v487
        %v811 = vunpack.c.l.b16 %v488
        %v812 = vunpack.c.h.b16 %v488
        %v813 = vunpack.c.l.b16 %v489
        %v814 = vunpack.c.h.b16 %v489
        %v815 = vunpack.c.l.b16 %v490
        %v816 = vunpack.c.h.b16 %v490
        %v817 = vunpack.c.l.b16 %v491
        %v818 = vunpack.c.h.b16 %v491
        %v819 = vunpack.c.l.b16 %v492
        %v820 = vunpack.c.h.b16 %v492
        %v821 = vunpack.c.l.b16 %v493
        %v822 = vunpack.c.h.b16 %v493
        %v823 = vunpack.c.l.b16 %v494
        %v824 = vunpack.c.h.b16 %v494
        %v825 = vunpack.c.l.b16 %v495
        %v826 = vunpack.c.h.b16 %v495
        %v827 = vunpack.c.l.b16 %v496
        %v828 = vunpack.c.h.b16 %v496
        %v829 = vunpack.c.l.b16 %v497
        %v830 = vunpack.c.h.b16 %v497
        %v831 = vunpack.c.l.b16 %v498
        %v832 = vunpack.c.h.b16 %v498
        %v833 = vunpack.c.l.b16 %v499
        %v834 = vunpack.c.h.b16 %v499
        %v835 = vunpack.c.l.b16 %v500
        %v836 = vunpack.c.h.b16 %v500
        %v837 = vunpack.c.l.b16 %v501
        %v838 = vunpack.c.h.b16 %v501
        %v839 = vunpack.c.l.b16 %v502
        %v840 = vunpack.c.h.b16 %v502
        %v841 = vunpack.c.l.b16 %v503
        %v842 = vunpack.c.h.b16 %v503
        %v843 = vunpack.c.l.b16 %v504
        %v844 = vunpack.c.h.b16 %v504
        %v845 = vunpack.c.l.b16 %v505
        %v846 = vunpack.c.h.b16 %v505
        %v847 = vunpack.c.l.b16 %v506
        %v848 = vunpack.c.h.b16 %v506
        %v849 = vunpack.c.l.b16 %v507
        %v850 = vunpack.c.h.b16 %v507
        %v851 = vunpack.c.l.b16 %v508
        %v852 = vunpack.c.h.b16 %v508
        %v853 = vunpack.c.l.b16 %v509
        %v854 = vunpack.c.h.b16 %v509
        %v855 = vunpack.c.l.b16 %v510
        %v856 = vunpack.c.h.b16 %v510
        %v857 = vunpack.c.l.b16 %v511
        %v858 = vunpack.c.h.b16 %v511
        %v859 = vunpack.c.l.b16 %v512
        %v860 = vunpack.c.h.b16 %v512
        %v861 = vunpack.c.l.b16 %v513
        %v862 = vunpack.c.h.b16 %v513
        %v863 = vunpack.c.l.b16 %v514
        %v864 = vunpack.c.h.b16 %v514
        %v865 = vunpack.c.l.b16 %v515
        %v866 = vunpack.c.h.b16 %v515
        %v867 = vunpack.c.l.b16 %v516
        %v868 = vunpack.c.h.b16 %v516
        %v869 = vpack.c.b16 %v743, %v741
        %v870 = vpack.c.b16 %v744, %v742
        %v871 = vpack.c.b16 %v747, %v745
        %v872 = vpack.c.b16 %v748, %v746
        %v873 = vpack.c.b16 %v751, %v749
        %v874 = vpack.c.b16 %v752, %v750
        %v875 = vpack.c.b16 %v755, %v753
        %v876 = vpack.c.b16 %v756, %v754
        %v877 = vpack.c.b16 %v759, %v757
        %v878 = vpack.c.b16 %v760, %v758
        %v879 = vpack.c.b16 %v763, %v761
        %v880 = vpack.c.b16 %v764, %v762
        %v881 = vpack.c.b16 %v767, %v765
        %v882 = vpack.c.b16 %v768, %v766
        %v883 = vpack.c.b16 %v771, %v769
        %v884 = vpack.c.b16 %v772, %v770
        %v885 = vpack.c.b16 %v775, %v773
        %v886 = vpack.c.b16 %v776, %v774
        %v887 = vpack.c.b16 %v779, %v777
        %v888 = vpack.c.b16 %v780, %v778
        %v889 = vpack.c.b16 %v783, %v781
        %v890 = vpack.c.b16 %v784, %v782
        %v891 = vpack.c.b16 %v787, %v785
        %v892 = vpack.c.b16 %v788, %v786
        %v893 = vpack.c.b16 %v791, %v789
        %v894 = vpack.c.b16 %v792, %v790
        %v895 = vpack.c.b16 %v795, %v793
        %v896 = vpack.c.b16 %v796, %v794
        %v897 = vpack.c.b16 %v799, %v797
        %v898 = vpack.c.b16 %v800, %v798
        %v899 = vpack.c.b16 %v803, %v801
        %v900 = vpack.c.b16 %v804, %v802
        %v901 = vpack.c.b16 %v807, %v805
        %v902 = vpack.c.b16 %v808, %v806
        %v903 = vpack.c.b16 %v811, %v809
        %v904 = vpack.c.b16 %v812, %v810
        %v905 = vpack.c.b16 %v815, %v813
        %v906 = vpack.c.b16 %v816, %v814
        %v907 = vpack.c.b16 %v819, %v817
        %v908 = vpack.c.b16 %v820, %v818
        %v909 = vpack.c.b16 %v823, %v821
        %v910 = vpack.c.b16 %v824, %v822
        %v911 = vpack.c.b16 %v827, %v825
        %v912 = vpack.c.b16 %v828, %v826
        %v913 = vpack.c.b16 %v831, %v829
        %v914 = vpack.c.b16 %v832, %v830
        %v915 = vpack.c.b16 %v835, %v833
        %v916 = vpack.c.b16 %v836, %v834
        %v917 = vpack.c.b16 %v839, %v837
        %v918 = vpack.c.b16 %v840, %v838
        %v919 = vpack.c.b16 %v843, %v841
        %v920 = vpack.c.b16 %v844, %v842
        %v921 = vpack.c.b16 %v847, %v845
        %v922 = vpack.c.b16 %v848, %v846
        %v923 = vpack.c.b16 %v851, %v849
        %v924 = vpack.c.b16 %v852, %v850
        %v925 = vpack.c.b16 %v855, %v853
        %v926 = vpack.c.b16 %v856, %v854
        %v927 = vpack.c.b16 %v859, %v857
        %v928 = vpack.c.b16 %v860, %v858
        %v929 = vpack.c.b16 %v863, %v861
        %v930 = vpack.c.b16 %v864, %v862
        %v931 = vpack.c.b16 %v867, %v865
        %v932 = vpack.c.b16 %v868, %v866
        %997 = vmatprep.subr.bf16.mxu0 %v870
        %998 = vmatpush1.bf16.msra.mxu0 %v869
        %999 = vmatprep.subr.bf16.mxu0 %v872
        %1000 = vmatpush1.bf16.msra.mxu0 %v871
        %1001 = vmatprep.subr.bf16.mxu0 %v874
        %1002 = vmatpush1.bf16.msra.mxu0 %v873
        %1003 = vmatprep.subr.bf16.mxu0 %v876
        %1004 = vmatpush1.bf16.msra.mxu0 %v875
        %1005 = vmatprep.subr.bf16.mxu0 %v878
        %1006 = vmatpush1.bf16.msra.mxu0 %v877
        %1007 = vmatprep.subr.bf16.mxu0 %v880
        %1008 = vmatpush1.bf16.msra.mxu0 %v879
        %1009 = vmatprep.subr.bf16.mxu0 %v882
        %1010 = vmatpush1.bf16.msra.mxu0 %v881
        %1011 = vmatprep.subr.bf16.mxu0 %v884
        %1012 = vmatpush1.bf16.msra.mxu0 %v883
        %1013 = vmatprep.subr.bf16.mxu0 %v886
        %1014 = vmatpush1.bf16.msra.mxu0 %v885
        %1015 = vmatprep.subr.bf16.mxu0 %v888
        %1016 = vmatpush1.bf16.msra.mxu0 %v887
        %1017 = vmatprep.subr.bf16.mxu0 %v890
        %1018 = vmatpush1.bf16.msra.mxu0 %v889
        %1019 = vmatprep.subr.bf16.mxu0 %v892
        %1020 = vmatpush1.bf16.msra.mxu0 %v891
        %1021 = vmatprep.subr.bf16.mxu0 %v894
        %1022 = vmatpush1.bf16.msra.mxu0 %v893
        %1023 = vmatprep.subr.bf16.mxu0 %v896
        %1024 = vmatpush1.bf16.msra.mxu0 %v895
        %1025 = vmatprep.subr.bf16.mxu0 %v898
        %1026 = vmatpush1.bf16.msra.mxu0 %v897
        %1027 = vmatprep.subr.bf16.mxu0 %v900
        %1028 = vmatpush1.bf16.msra.mxu0 %v899
        %1029 = vmatprep.mubr.bf16.mxu0 %v614
        %1030 = vmatmul.mubr.bf16.gmra.mrb[0].mxu0 %v613
        %v1031 = vpop.f32.mrb[0].mxu0
        %v1032 = vadd.f32 0.0, %v1031
        %v1033 = vpop.f32.mrb[0].mxu0
        %v1034 = vadd.f32 0.0, %v1033
        %v1035 = vpop.f32.mrb[0].mxu0
        %v1036 = vadd.f32 0.0, %v1035
        %v1037 = vpop.f32.mrb[0].mxu0
        %v1038 = vadd.f32 0.0, %v1037
        %1039 = vmatprep.mubr.bf16.mxu0 %v618
        %1040 = vmatmul.mubr.bf16.gmra.mrb[0].mxu0 %v617
        %v1041 = vpop.f32.mrb[0].mxu0
        %v1042 = vadd.f32 0.0, %v1041
        %v1043 = vpop.f32.mrb[0].mxu0
        %v1044 = vadd.f32 0.0, %v1043
        %v1045 = vpop.f32.mrb[0].mxu0
        %v1046 = vadd.f32 0.0, %v1045
        %v1047 = vpop.f32.mrb[0].mxu0
        %v1048 = vadd.f32 0.0, %v1047
        %1049 = vmatprep.mubr.bf16.mxu0 %v622
        %1050 = vmatmul.mubr.bf16.gmra.mrb[0].mxu0 %v621
        %v1051 = vpop.f32.mrb[0].mxu0
        %v1052 = vadd.f32 0.0, %v1051
        %v1053 = vpop.f32.mrb[0].mxu0
        %v1054 = vadd.f32 0.0, %v1053
        %v1055 = vpop.f32.mrb[0].mxu0
        %v1056 = vadd.f32 0.0, %v1055
        %v1057 = vpop.f32.mrb[0].mxu0
        %v1058 = vadd.f32 0.0, %v1057
        %1059 = vmatprep.mubr.bf16.mxu0 %v626
        %1060 = vmatmul.mubr.bf16.gmra.mrb[0].mxu0 %v625
        %v1061 = vpop.f32.mrb[0].mxu0
        %v1062 = vadd.f32 0.0, %v1061
        %v1063 = vpop.f32.mrb[0].mxu0
        %v1064 = vadd.f32 0.0, %v1063
        %v1065 = vpop.f32.mrb[0].mxu0
        %v1066 = vadd.f32 0.0, %v1065
        %v1067 = vpop.f32.mrb[0].mxu0
        %v1068 = vadd.f32 0.0, %v1067
        %1069 = vmatprep.mubr.bf16.mxu0 %v630
        %1070 = vmatmul.mubr.bf16.gmra.mrb[0].mxu0 %v629
        %v1071 = vpop.f32.mrb[0].mxu0
        %v1072 = vadd.f32 0.0, %v1071
        %v1073 = vpop.f32.mrb[0].mxu0
        %v1074 = vadd.f32 0.0, %v1073
        %v1075 = vpop.f32.mrb[0].mxu0
        %v1076 = vadd.f32 0.0, %v1075
        %v1077 = vpop.f32.mrb[0].mxu0
        %v1078 = vadd.f32 0.0, %v1077
        %1079 = vmatprep.mubr.bf16.mxu0 %v634
        %1080 = vmatmul.mubr.bf16.gmra.mrb[0].mxu0 %v633
        %v1081 = vpop.f32.mrb[0].mxu0
        %v1082 = vadd.f32 0.0, %v1081
        %v1083 = vpop.f32.mrb[0].mxu0
        %v1084 = vadd.f32 0.0, %v1083
        %v1085 = vpop.f32.mrb[0].mxu0
        %v1086 = vadd.f32 0.0, %v1085
        %v1087 = vpop.f32.mrb[0].mxu0
        %v1088 = vadd.f32 0.0, %v1087
        %1089 = vmatprep.mubr.bf16.mxu0 %v638
        %1090 = vmatmul.mubr.bf16.gmra.mrb[0].mxu0 %v637
        %v1091 = vpop.f32.mrb[0].mxu0
        %v1092 = vadd.f32 0.0, %v1091
        %v1093 = vpop.f32.mrb[0].mxu0
        %v1094 = vadd.f32 0.0, %v1093
        %v1095 = vpop.f32.mrb[0].mxu0
        %v1096 = vadd.f32 0.0, %v1095
        %v1097 = vpop.f32.mrb[0].mxu0
        %v1098 = vadd.f32 0.0, %v1097
        %1099 = vmatprep.mubr.bf16.mxu0 %v642
        %1100 = vmatmul.mubr.bf16.gmra.mrb[0].mxu0 %v641
        %v1101 = vpop.f32.mrb[0].mxu0
        %v1102 = vadd.f32 0.0, %v1101
        %v1103 = vpop.f32.mrb[0].mxu0
        %v1104 = vadd.f32 0.0, %v1103
        %v1105 = vpop.f32.mrb[0].mxu0
        %v1106 = vadd.f32 0.0, %v1105
        %v1107 = vpop.f32.mrb[0].mxu0
        %v1108 = vadd.f32 0.0, %v1107
        %1109 = vdwg.mxu0
        %1110 = vmatprep.subr.bf16.mxu0 %v902
        %1111 = vmatpush1.bf16.msra.mxu0 %v901
        %1112 = vmatprep.subr.bf16.mxu0 %v904
        %1113 = vmatpush1.bf16.msra.mxu0 %v903
        %1114 = vmatprep.subr.bf16.mxu0 %v906
        %1115 = vmatpush1.bf16.msra.mxu0 %v905
        %1116 = vmatprep.subr.bf16.mxu0 %v908
        %1117 = vmatpush1.bf16.msra.mxu0 %v907
        %1118 = vmatprep.subr.bf16.mxu0 %v910
        %1119 = vmatpush1.bf16.msra.mxu0 %v909
        %1120 = vmatprep.subr.bf16.mxu0 %v912
        %1121 = vmatpush1.bf16.msra.mxu0 %v911
        %1122 = vmatprep.subr.bf16.mxu0 %v914
        %1123 = vmatpush1.bf16.msra.mxu0 %v913
        %1124 = vmatprep.subr.bf16.mxu0 %v916
        %1125 = vmatpush1.bf16.msra.mxu0 %v915
        %1126 = vmatprep.subr.bf16.mxu0 %v918
        %1127 = vmatpush1.bf16.msra.mxu0 %v917
        %1128 = vmatprep.subr.bf16.mxu0 %v920
        %1129 = vmatpush1.bf16.msra.mxu0 %v919
        %1130 = vmatprep.subr.bf16.mxu0 %v922
        %1131 = vmatpush1.bf16.msra.mxu0 %v921
        %1132 = vmatprep.subr.bf16.mxu0 %v924
        %1133 = vmatpush1.bf16.msra.mxu0 %v923
        %1134 = vmatprep.subr.bf16.mxu0 %v926
        %1135 = vmatpush1.bf16.msra.mxu0 %v925
        %1136 = vmatprep.subr.bf16.mxu0 %v928
        %1137 = vmatpush1.bf16.msra.mxu0 %v927
        %1138 = vmatprep.subr.bf16.mxu0 %v930
        %1139 = vmatpush1.bf16.msra.mxu0 %v929
        %1140 = vmatprep.subr.bf16.mxu0 %v932
        %1141 = vmatpush1.bf16.msra.mxu0 %v931
        %1142 = vmatprep.mubr.bf16.mxu0 %v616
        %1143 = vmatmul.mubr.bf16.gmra.mrb[0].mxu0 %v615
        %v1144 = vpop.f32.mrb[0].mxu0
        %v1145 = vadd.f32 %v1032, %v1144
        %v1146 = vpop.f32.mrb[0].mxu0
        %v1147 = vadd.f32 %v1034, %v1146
        %v1148 = vpop.f32.mrb[0].mxu0
        %v1149 = vadd.f32 %v1036, %v1148
        %v1150 = vpop.f32.mrb[0].mxu0
        %v1151 = vadd.f32 %v1038, %v1150
        %1152 = vmatprep.mubr.bf16.mxu0 %v620
        %1153 = vmatmul.mubr.bf16.gmra.mrb[0].mxu0 %v619
        %v1154 = vpop.f32.mrb[0].mxu0
        %v1155 = vadd.f32 %v1042, %v1154
        %v1156 = vpop.f32.mrb[0].mxu0
        %v1157 = vadd.f32 %v1044, %v1156
        %v1158 = vpop.f32.mrb[0].mxu0
        %v1159 = vadd.f32 %v1046, %v1158
        %v1160 = vpop.f32.mrb[0].mxu0
        %v1161 = vadd.f32 %v1048, %v1160
        %1162 = vmatprep.mubr.bf16.mxu0 %v624
        %1163 = vmatmul.mubr.bf16.gmra.mrb[0].mxu0 %v623
        %v1164 = vpop.f32.mrb[0].mxu0
        %v1165 = vadd.f32 %v1052, %v1164
        %v1166 = vpop.f32.mrb[0].mxu0
        %v1167 = vadd.f32 %v1054, %v1166
        %v1168 = vpop.f32.mrb[0].mxu0
        %v1169 = vadd.f32 %v1056, %v1168
        %v1170 = vpop.f32.mrb[0].mxu0
        %v1171 = vadd.f32 %v1058, %v1170
        %1172 = vmatprep.mubr.bf16.mxu0 %v628
        %1173 = vmatmul.mubr.bf16.gmra.mrb[0].mxu0 %v627
        %v1174 = vpop.f32.mrb[0].mxu0
        %v1175 = vadd.f32 %v1062, %v1174
        %v1176 = vpop.f32.mrb[0].mxu0
        %v1177 = vadd.f32 %v1064, %v1176
        %v1178 = vpop.f32.mrb[0].mxu0
        %v1179 = vadd.f32 %v1066, %v1178
        %v1180 = vpop.f32.mrb[0].mxu0
        %v1181 = vadd.f32 %v1068, %v1180
        %1182 = vmatprep.mubr.bf16.mxu0 %v632
        %1183 = vmatmul.mubr.bf16.gmra.mrb[0].mxu0 %v631
        %v1184 = vpop.f32.mrb[0].mxu0
        %v1185 = vadd.f32 %v1072, %v1184
        %v1186 = vpop.f32.mrb[0].mxu0
        %v1187 = vadd.f32 %v1074, %v1186
        %v1188 = vpop.f32.mrb[0].mxu0
        %v1189 = vadd.f32 %v1076, %v1188
        %v1190 = vpop.f32.mrb[0].mxu0
        %v1191 = vadd.f32 %v1078, %v1190
        %1192 = vmatprep.mubr.bf16.mxu0 %v636
        %1193 = vmatmul.mubr.bf16.gmra.mrb[0].mxu0 %v635
        %v1194 = vpop.f32.mrb[0].mxu0
        %v1195 = vadd.f32 %v1082, %v1194
        %v1196 = vpop.f32.mrb[0].mxu0
        %v1197 = vadd.f32 %v1084, %v1196
        %v1198 = vpop.f32.mrb[0].mxu0
        %v1199 = vadd.f32 %v1086, %v1198
        %v1200 = vpop.f32.mrb[0].mxu0
        %v1201 = vadd.f32 %v1088, %v1200
        %1202 = vmatprep.mubr.bf16.mxu0 %v640
        %1203 = vmatmul.mubr.bf16.gmra.mrb[0].mxu0 %v639
        %v1204 = vpop.f32.mrb[0].mxu0
        %v1205 = vadd.f32 %v1092, %v1204
        %v1206 = vpop.f32.mrb[0].mxu0
        %v1207 = vadd.f32 %v1094, %v1206
        %v1208 = vpop.f32.mrb[0].mxu0
        %v1209 = vadd.f32 %v1096, %v1208
        %v1210 = vpop.f32.mrb[0].mxu0
        %v1211 = vadd.f32 %v1098, %v1210
        %1212 = vmatprep.mubr.bf16.mxu0 %v644
        %1213 = vmatmul.mubr.bf16.gmra.mrb[0].mxu0 %v643
        %v1214 = vpop.f32.mrb[0].mxu0
        %v1215 = vadd.f32 %v1102, %v1214
        %v1216 = vpop.f32.mrb[0].mxu0
        %v1217 = vadd.f32 %v1104, %v1216
        %v1218 = vpop.f32.mrb[0].mxu0
        %v1219 = vadd.f32 %v1106, %v1218
        %v1220 = vpop.f32.mrb[0].mxu0
        %v1221 = vadd.f32 %v1108, %v1220
        %1222 = vdwg.mxu0
        %v1223 = vadd.f32 %v389, %v1145
        %v1224 = vadd.f32 %v390, %v1147
        %v1225 = vadd.f32 %v391, %v1149
        %v1226 = vadd.f32 %v392, %v1151
        %v1227 = vadd.f32 %v393, %v1155
        %v1228 = vadd.f32 %v394, %v1157
        %v1229 = vadd.f32 %v395, %v1159
        %v1230 = vadd.f32 %v396, %v1161
        %v1231 = vadd.f32 %v397, %v1165
        %v1232 = vadd.f32 %v398, %v1167
        %v1233 = vadd.f32 %v399, %v1169
        %v1234 = vadd.f32 %v400, %v1171
        %v1235 = vadd.f32 %v401, %v1175
        %v1236 = vadd.f32 %v402, %v1177
        %v1237 = vadd.f32 %v403, %v1179
        %v1238 = vadd.f32 %v404, %v1181
        %v1239 = vadd.f32 %v405, %v1185
        %v1240 = vadd.f32 %v406, %v1187
        %v1241 = vadd.f32 %v407, %v1189
        %v1242 = vadd.f32 %v408, %v1191
        %v1243 = vadd.f32 %v409, %v1195
        %v1244 = vadd.f32 %v410, %v1197
        %v1245 = vadd.f32 %v411, %v1199
        %v1246 = vadd.f32 %v412, %v1201
        %v1247 = vadd.f32 %v413, %v1205
        %v1248 = vadd.f32 %v414, %v1207
        %v1249 = vadd.f32 %v415, %v1209
        %v1250 = vadd.f32 %v416, %v1211
        %v1251 = vadd.f32 %v417, %v1215
        %v1252 = vadd.f32 %v418, %v1217
        %v1253 = vadd.f32 %v419, %v1219
        %v1254 = vadd.f32 %v420, %v1221
        %1255 = vst [vmem:[#allocation2] sm:$0xff] %v1223
        %1256 = vst [vmem:[#allocation2 + $0x8] sm:$0xff] %v1224
        %1257 = vst [vmem:[#allocation2 + $0x10] sm:$0xff] %v1225
        %1258 = vst [vmem:[#allocation2 + $0x18] sm:$0xff] %v1226
        %1259 = vst [vmem:[#allocation2 + $0x20] sm:$0xff] %v1227
        %1260 = vst [vmem:[#allocation2 + $0x28] sm:$0xff] %v1228
        %1261 = vst [vmem:[#allocation2 + $0x30] sm:$0xff] %v1229
        %1262 = vst [vmem:[#allocation2 + $0x38] sm:$0xff] %v1230
        %1263 = vst [vmem:[#allocation2 + $0x40] sm:$0xff] %v1231
        %1264 = vst [vmem:[#allocation2 + $0x48] sm:$0xff] %v1232
        %1265 = vst [vmem:[#allocation2 + $0x50] sm:$0xff] %v1233
        %1266 = vst [vmem:[#allocation2 + $0x58] sm:$0xff] %v1234
        %1267 = vst [vmem:[#allocation2 + $0x60] sm:$0xff] %v1235
        %1268 = vst [vmem:[#allocation2 + $0x68] sm:$0xff] %v1236
        %1269 = vst [vmem:[#allocation2 + $0x70] sm:$0xff] %v1237
        %1270 = vst [vmem:[#allocation2 + $0x78] sm:$0xff] %v1238
        %1271 = vst [vmem:[#allocation2 + $0x80] sm:$0xff] %v1239
        %1272 = vst [vmem:[#allocation2 + $0x88] sm:$0xff] %v1240
        %1273 = vst [vmem:[#allocation2 + $0x90] sm:$0xff] %v1241
        %1274 = vst [vmem:[#allocation2 + $0x98] sm:$0xff] %v1242
        %1275 = vst [vmem:[#allocation2 + $0xa0] sm:$0xff] %v1243
        %1276 = vst [vmem:[#allocation2 + $0xa8] sm:$0xff] %v1244
        %1277 = vst [vmem:[#allocation2 + $0xb0] sm:$0xff] %v1245
        %1278 = vst [vmem:[#allocation2 + $0xb8] sm:$0xff] %v1246
        %1279 = vst [vmem:[#allocation2 + $0xc0] sm:$0xff] %v1247
        %1280 = vst [vmem:[#allocation2 + $0xc8] sm:$0xff] %v1248
        %1281 = vst [vmem:[#allocation2 + $0xd0] sm:$0xff] %v1249
        %1282 = vst [vmem:[#allocation2 + $0xd8] sm:$0xff] %v1250
        %1283 = vst [vmem:[#allocation2 + $0xe0] sm:$0xff] %v1251
        %1284 = vst [vmem:[#allocation2 + $0xe8] sm:$0xff] %v1252
        %1285 = vst [vmem:[#allocation2 + $0xf0] sm:$0xff] %v1253
        %1286 = vst [vmem:[#allocation2 + $0xf8] sm:$0xff] %v1254
        %p1287 = scmp.eq.s32.totalorder %s21, 3
        // Predicated region
        $region60: #{d_net128_forward.9} parent=50 // pred_check
          %p1288 = pneg %p1287
        $region61: #{d_net128_forward.9} parent=50 // pred_check_branch
          %1290 = sbr.rel (%p1288) target = $region63
        $region62: #{d_net128_forward.9} parent=50 // pred_region
          %v1291 = vld [vmem:[#allocation2] sm:$0xff]
          %v1292 = vld [vmem:[#allocation2 + $0x8] sm:$0xff]
          %v1293 = vld [vmem:[#allocation2 + $0x10] sm:$0xff]
          %v1294 = vld [vmem:[#allocation2 + $0x18] sm:$0xff]
          %v1295 = vld [vmem:[#allocation2 + $0x20] sm:$0xff]
          %v1296 = vld [vmem:[#allocation2 + $0x28] sm:$0xff]
          %v1297 = vld [vmem:[#allocation2 + $0x30] sm:$0xff]
          %v1298 = vld [vmem:[#allocation2 + $0x38] sm:$0xff]
          %v1299 = vld [vmem:[#allocation2 + $0x40] sm:$0xff]
          %v1300 = vld [vmem:[#allocation2 + $0x48] sm:$0xff]
          %v1301 = vld [vmem:[#allocation2 + $0x50] sm:$0xff]
          %v1302 = vld [vmem:[#allocation2 + $0x58] sm:$0xff]
          %v1303 = vld [vmem:[#allocation2 + $0x60] sm:$0xff]
          %v1304 = vld [vmem:[#allocation2 + $0x68] sm:$0xff]
          %v1305 = vld [vmem:[#allocation2 + $0x70] sm:$0xff]
          %v1306 = vld [vmem:[#allocation2 + $0x78] sm:$0xff]
          %v1307 = vld [vmem:[#allocation2 + $0x80] sm:$0xff]
          %v1308 = vld [vmem:[#allocation2 + $0x88] sm:$0xff]
          %v1309 = vld [vmem:[#allocation2 + $0x90] sm:$0xff]
          %v1310 = vld [vmem:[#allocation2 + $0x98] sm:$0xff]
          %v1311 = vld [vmem:[#allocation2 + $0xa0] sm:$0xff]
          %v1312 = vld [vmem:[#allocation2 + $0xa8] sm:$0xff]
          %v1313 = vld [vmem:[#allocation2 + $0xb0] sm:$0xff]
          %v1314 = vld [vmem:[#allocation2 + $0xb8] sm:$0xff]
          %v1315 = vld [vmem:[#allocation2 + $0xc0] sm:$0xff]
          %v1316 = vld [vmem:[#allocation2 + $0xc8] sm:$0xff]
          %v1317 = vld [vmem:[#allocation2 + $0xd0] sm:$0xff]
          %v1318 = vld [vmem:[#allocation2 + $0xd8] sm:$0xff]
          %v1319 = vld [vmem:[#allocation2 + $0xe0] sm:$0xff]
          %v1320 = vld [vmem:[#allocation2 + $0xe8] sm:$0xff]
          %v1321 = vld [vmem:[#allocation2 + $0xf0] sm:$0xff]
          %v1322 = vld [vmem:[#allocation2 + $0xf8] sm:$0xff]
          %v1323 = vld [vmem:[%s339] sm:$0x3]
          %v1325 = vlaneseq
          %v1326 = vshrl.u32 %v1325, 7
          %v1327 = vsub.s32 0, %v1326
          %v1328 = vrot.slane %v1323, %v1327
          %v1329 = vlaneseq
          %v1330 = vshrl.u32 %v1329, 7
          %v1331 = vsub.s32 1, %v1330
          %v1332 = vrot.slane %v1323, %v1331
          %v1335 = vadd.f32 %v1291, %v1328
          %v1336 = vadd.f32 %v1292, %v1332
          %v1337 = vadd.f32 %v1293, %v1328
          %v1338 = vadd.f32 %v1294, %v1332
          %v1339 = vadd.f32 %v1295, %v1328
          %v1340 = vadd.f32 %v1296, %v1332
          %v1341 = vadd.f32 %v1297, %v1328
          %v1342 = vadd.f32 %v1298, %v1332
          %v1343 = vadd.f32 %v1299, %v1328
          %v1344 = vadd.f32 %v1300, %v1332
          %v1345 = vadd.f32 %v1301, %v1328
          %v1346 = vadd.f32 %v1302, %v1332
          %v1347 = vadd.f32 %v1303, %v1328
          %v1348 = vadd.f32 %v1304, %v1332
          %v1349 = vadd.f32 %v1305, %v1328
          %v1350 = vadd.f32 %v1306, %v1332
          %v1351 = vadd.f32 %v1307, %v1328
          %v1352 = vadd.f32 %v1308, %v1332
          %v1353 = vadd.f32 %v1309, %v1328
          %v1354 = vadd.f32 %v1310, %v1332
          %v1355 = vadd.f32 %v1311, %v1328
          %v1356 = vadd.f32 %v1312, %v1332
          %v1357 = vadd.f32 %v1313, %v1328
          %v1358 = vadd.f32 %v1314, %v1332
          %v1359 = vadd.f32 %v1315, %v1328
          %v1360 = vadd.f32 %v1316, %v1332
          %v1361 = vadd.f32 %v1317, %v1328
          %v1362 = vadd.f32 %v1318, %v1332
          %v1363 = vadd.f32 %v1319, %v1328
          %v1364 = vadd.f32 %v1320, %v1332
          %v1365 = vadd.f32 %v1321, %v1328
          %v1366 = vadd.f32 %v1322, %v1332
          %vm1367 = vcmp.gt.f32.partialorder %v1335, 0.0
          %vm1368 = vcmp.gt.f32.partialorder %v1336, 0.0
          %vm1369 = vcmp.gt.f32.partialorder %v1337, 0.0
          %vm1370 = vcmp.gt.f32.partialorder %v1338, 0.0
          %vm1371 = vcmp.gt.f32.partialorder %v1339, 0.0
          %vm1372 = vcmp.gt.f32.partialorder %v1340, 0.0
          %vm1373 = vcmp.gt.f32.partialorder %v1341, 0.0
          %vm1374 = vcmp.gt.f32.partialorder %v1342, 0.0
          %vm1375 = vcmp.gt.f32.partialorder %v1343, 0.0
          %vm1376 = vcmp.gt.f32.partialorder %v1344, 0.0
          %vm1377 = vcmp.gt.f32.partialorder %v1345, 0.0
          %vm1378 = vcmp.gt.f32.partialorder %v1346, 0.0
          %vm1379 = vcmp.gt.f32.partialorder %v1347, 0.0
          %vm1380 = vcmp.gt.f32.partialorder %v1348, 0.0
          %vm1381 = vcmp.gt.f32.partialorder %v1349, 0.0
          %vm1382 = vcmp.gt.f32.partialorder %v1350, 0.0
          %vm1383 = vcmp.gt.f32.partialorder %v1351, 0.0
          %vm1384 = vcmp.gt.f32.partialorder %v1352, 0.0
          %vm1385 = vcmp.gt.f32.partialorder %v1353, 0.0
          %vm1386 = vcmp.gt.f32.partialorder %v1354, 0.0
          %vm1387 = vcmp.gt.f32.partialorder %v1355, 0.0
          %vm1388 = vcmp.gt.f32.partialorder %v1356, 0.0
          %vm1389 = vcmp.gt.f32.partialorder %v1357, 0.0
          %vm1390 = vcmp.gt.f32.partialorder %v1358, 0.0
          %vm1391 = vcmp.gt.f32.partialorder %v1359, 0.0
          %vm1392 = vcmp.gt.f32.partialorder %v1360, 0.0
          %vm1393 = vcmp.gt.f32.partialorder %v1361, 0.0
          %vm1394 = vcmp.gt.f32.partialorder %v1362, 0.0
          %vm1395 = vcmp.gt.f32.partialorder %v1363, 0.0
          %vm1396 = vcmp.gt.f32.partialorder %v1364, 0.0
          %vm1397 = vcmp.gt.f32.partialorder %v1365, 0.0
          %vm1398 = vcmp.gt.f32.partialorder %v1366, 0.0
          %v1399 = vmul.f32 %v1335, 0.2
          %v1400 = vmul.f32 %v1336, 0.2
          %v1401 = vmul.f32 %v1337, 0.2
          %v1402 = vmul.f32 %v1338, 0.2
          %v1403 = vmul.f32 %v1339, 0.2
          %v1404 = vmul.f32 %v1340, 0.2
          %v1405 = vmul.f32 %v1341, 0.2
          %v1406 = vmul.f32 %v1342, 0.2
          %v1407 = vmul.f32 %v1343, 0.2
          %v1408 = vmul.f32 %v1344, 0.2
          %v1409 = vmul.f32 %v1345, 0.2
          %v1410 = vmul.f32 %v1346, 0.2
          %v1411 = vmul.f32 %v1347, 0.2
          %v1412 = vmul.f32 %v1348, 0.2
          %v1413 = vmul.f32 %v1349, 0.2
          %v1414 = vmul.f32 %v1350, 0.2
          %v1415 = vmul.f32 %v1351, 0.2
          %v1416 = vmul.f32 %v1352, 0.2
          %v1417 = vmul.f32 %v1353, 0.2
          %v1418 = vmul.f32 %v1354, 0.2
          %v1419 = vmul.f32 %v1355, 0.2
          %v1420 = vmul.f32 %v1356, 0.2
          %v1421 = vmul.f32 %v1357, 0.2
          %v1422 = vmul.f32 %v1358, 0.2
          %v1423 = vmul.f32 %v1359, 0.2
          %v1424 = vmul.f32 %v1360, 0.2
          %v1425 = vmul.f32 %v1361, 0.2
          %v1426 = vmul.f32 %v1362, 0.2
          %v1427 = vmul.f32 %v1363, 0.2
          %v1428 = vmul.f32 %v1364, 0.2
          %v1429 = vmul.f32 %v1365, 0.2
          %v1430 = vmul.f32 %v1366, 0.2
          %v1431 = vsel %vm1367, %v1335, %v1399
          %v1432 = vsel %vm1368, %v1336, %v1400
          %v1433 = vsel %vm1369, %v1337, %v1401
          %v1434 = vsel %vm1370, %v1338, %v1402
          %v1435 = vsel %vm1371, %v1339, %v1403
          %v1436 = vsel %vm1372, %v1340, %v1404
          %v1437 = vsel %vm1373, %v1341, %v1405
          %v1438 = vsel %vm1374, %v1342, %v1406
          %v1439 = vsel %vm1375, %v1343, %v1407
          %v1440 = vsel %vm1376, %v1344, %v1408
          %v1441 = vsel %vm1377, %v1345, %v1409
          %v1442 = vsel %vm1378, %v1346, %v1410
          %v1443 = vsel %vm1379, %v1347, %v1411
          %v1444 = vsel %vm1380, %v1348, %v1412
          %v1445 = vsel %vm1381, %v1349, %v1413
          %v1446 = vsel %vm1382, %v1350, %v1414
          %v1447 = vsel %vm1383, %v1351, %v1415
          %v1448 = vsel %vm1384, %v1352, %v1416
          %v1449 = vsel %vm1385, %v1353, %v1417
          %v1450 = vsel %vm1386, %v1354, %v1418
          %v1451 = vsel %vm1387, %v1355, %v1419
          %v1452 = vsel %vm1388, %v1356, %v1420
          %v1453 = vsel %vm1389, %v1357, %v1421
          %v1454 = vsel %vm1390, %v1358, %v1422
          %v1455 = vsel %vm1391, %v1359, %v1423
          %v1456 = vsel %vm1392, %v1360, %v1424
          %v1457 = vsel %vm1393, %v1361, %v1425
          %v1458 = vsel %vm1394, %v1362, %v1426
          %v1459 = vsel %vm1395, %v1363, %v1427
          %v1460 = vsel %vm1396, %v1364, %v1428
          %v1461 = vsel %vm1397, %v1365, %v1429
          %v1462 = vsel %vm1398, %v1366, %v1430
          %v1463 = vpack.c.bf16 %v1433, %v1431
          %v1464 = vpack.c.bf16 %v1434, %v1432
          %v1465 = vpack.c.bf16 %v1437, %v1435
          %v1466 = vpack.c.bf16 %v1438, %v1436
          %v1467 = vpack.c.bf16 %v1441, %v1439
          %v1468 = vpack.c.bf16 %v1442, %v1440
          %v1469 = vpack.c.bf16 %v1445, %v1443
          %v1470 = vpack.c.bf16 %v1446, %v1444
          %v1471 = vpack.c.bf16 %v1449, %v1447
          %v1472 = vpack.c.bf16 %v1450, %v1448
          %v1473 = vpack.c.bf16 %v1453, %v1451
          %v1474 = vpack.c.bf16 %v1454, %v1452
          %v1475 = vpack.c.bf16 %v1457, %v1455
          %v1476 = vpack.c.bf16 %v1458, %v1456
          %v1477 = vpack.c.bf16 %v1461, %v1459
          %v1478 = vpack.c.bf16 %v1462, %v1460
          %v1495 = vunpack.c.l.b16 %v1463
          %v1496 = vunpack.c.l.b16 %v1464
          %v1497 = vunpack.c.h.b16 %v1463
          %v1498 = vunpack.c.h.b16 %v1464
          %v1499 = vunpack.c.l.b16 %v1465
          %v1500 = vunpack.c.l.b16 %v1466
          %v1501 = vunpack.c.h.b16 %v1465
          %v1502 = vunpack.c.h.b16 %v1466
          %v1503 = vunpack.c.l.b16 %v1467
          %v1504 = vunpack.c.l.b16 %v1468
          %v1505 = vunpack.c.h.b16 %v1467
          %v1506 = vunpack.c.h.b16 %v1468
          %v1507 = vunpack.c.l.b16 %v1469
          %v1508 = vunpack.c.l.b16 %v1470
          %v1509 = vunpack.c.h.b16 %v1469
          %v1510 = vunpack.c.h.b16 %v1470
          %v1511 = vunpack.c.l.b16 %v1471
          %v1512 = vunpack.c.l.b16 %v1472
          %v1513 = vunpack.c.h.b16 %v1471
          %v1514 = vunpack.c.h.b16 %v1472
          %v1515 = vunpack.c.l.b16 %v1473
          %v1516 = vunpack.c.l.b16 %v1474
          %v1517 = vunpack.c.h.b16 %v1473
          %v1518 = vunpack.c.h.b16 %v1474
          %v1519 = vunpack.c.l.b16 %v1475
          %v1520 = vunpack.c.l.b16 %v1476
          %v1521 = vunpack.c.h.b16 %v1475
          %v1522 = vunpack.c.h.b16 %v1476
          %v1523 = vunpack.c.l.b16 %v1477
          %v1524 = vunpack.c.l.b16 %v1478
          %v1525 = vunpack.c.h.b16 %v1477
          %v1526 = vunpack.c.h.b16 %v1478
          %v1527 = vpack.c.b16 %v1496, %v1495
          %v1528 = vpack.c.b16 %v1498, %v1497
          %v1529 = vpack.c.b16 %v1500, %v1499
          %v1530 = vpack.c.b16 %v1502, %v1501
          %v1531 = vpack.c.b16 %v1504, %v1503
          %v1532 = vpack.c.b16 %v1506, %v1505
          %v1533 = vpack.c.b16 %v1508, %v1507
          %v1534 = vpack.c.b16 %v1510, %v1509
          %v1535 = vpack.c.b16 %v1512, %v1511
          %v1536 = vpack.c.b16 %v1514, %v1513
          %v1537 = vpack.c.b16 %v1516, %v1515
          %v1538 = vpack.c.b16 %v1518, %v1517
          %v1539 = vpack.c.b16 %v1520, %v1519
          %v1540 = vpack.c.b16 %v1522, %v1521
          %v1541 = vpack.c.b16 %v1524, %v1523
          %v1542 = vpack.c.b16 %v1526, %v1525
          %1559 = vst [vmem:[%s350] sm:$0xff] %v1527
          %1560 = vst [vmem:[%s350 + $0x8] sm:$0xff] %v1528
          %1561 = vst [vmem:[%s350 + $0x10] sm:$0xff] %v1529
          %1562 = vst [vmem:[%s350 + $0x18] sm:$0xff] %v1530
          %1563 = vst [vmem:[%s350 + $0x20] sm:$0xff] %v1531
          %1564 = vst [vmem:[%s350 + $0x28] sm:$0xff] %v1532
          %1565 = vst [vmem:[%s350 + $0x30] sm:$0xff] %v1533
          %1566 = vst [vmem:[%s350 + $0x38] sm:$0xff] %v1534
          %1567 = vst [vmem:[%s350 + $0x40] sm:$0xff] %v1535
          %1568 = vst [vmem:[%s350 + $0x48] sm:$0xff] %v1536
          %1569 = vst [vmem:[%s350 + $0x50] sm:$0xff] %v1537
          %1570 = vst [vmem:[%s350 + $0x58] sm:$0xff] %v1538
          %1571 = vst [vmem:[%s350 + $0x60] sm:$0xff] %v1539
          %1572 = vst [vmem:[%s350 + $0x68] sm:$0xff] %v1540
          %1573 = vst [vmem:[%s350 + $0x70] sm:$0xff] %v1541
          %1574 = vst [vmem:[%s350 + $0x78] sm:$0xff] %v1542
        $region63: #{d_net128_forward.9} parent=50 // pred_fallthru
          _
        %s1575 = smul.u32 16, %s19
        %s1576 = smul.u32 2, %s20
        %p1577 = scmp.lt.s32.totalorder %s1575, 15
        %s1578 = scalar_select %p1577, %s1575, 15
        %p1579 = scmp.lt.s32.totalorder %s1576, 1
        %s1580 = scalar_select %p1579, %s1576, 1
        %s1581 = smul.addr %s1578, 2
        %s1582 = sadd.s32 %s1580, %s1581
        %s1583 = smul.addr %s1582, 4
        %s1584 = scalar_lea.vmem %s3, %s1583
        // Predicated region
        $region64: #{d_net128_forward.9} parent=50 // pred_check
          %p1585 = pneg %p135
        $region65: #{d_net128_forward.9} parent=50 // pred_check_branch
          %1587 = sbr.rel (%p1585) target = $region67
        $region66: #{d_net128_forward.9} parent=50 // pred_region
          %s1588 = smul.u32 16, %s19
          %s1589 = smul.u32 2, %s20
        $region67: #{d_net128_forward.9} parent=50 // pred_fallthru
          _
        // Predicated region
        $region68: #{d_net128_forward.9} parent=50 // pred_check
          %p1590 = pneg %p135
        $region69: #{d_net128_forward.9} parent=50 // pred_check_branch
          %1592 = sbr.rel (%p1590) target = $region71
        $region70: #{d_net128_forward.9} parent=50 // pred_region
          %s1593 = smul.u32 16, %s19
          %s1594 = smul.u32 2, %s20
          %p1595 = scmp.lt.s32.totalorder %s1593, 15
          %s1596 = scalar_select %p1595, %s1593, 15
          %p1597 = scmp.lt.s32.totalorder %s1594, 1
          %s1598 = scalar_select %p1597, %s1594, 1
          %s1599 = smul.addr %s1596, 2
          %s1600 = sadd.s32 %s1598, %s1599
          %s1601 = smul.addr %s1600, 4
          %s1602 = scalar_lea.vmem %s3, %s1601
        $region71: #{d_net128_forward.9} parent=50 // pred_fallthru
          _
      $region51: #{d_net128_forward.9} parent=5 // pred_fallthru
        _
      %p1603 = scmp.le.s32.totalorder 2, %s9
      // Predicated region
      $region72: #{d_net128_forward.9} parent=5 // pred_check
        %p1604 = pneg %p1603
      $region73: #{d_net128_forward.9} parent=5 // pred_check_branch
        %1606 = sbr.rel (%p1604) target = $region75
      $region74: #{d_net128_forward.9} parent=5 // pred_region
        %s1607 = ssub.s32 %s9, 2
      $region75: #{d_net128_forward.9} parent=5 // pred_fallthru
        _
    $region6: #{d_net128_forward.9} parent=1 // loop_footer
      %s13 = sadd.s32 1, %s9
    $region7: #{d_net128_forward.9} parent=1 // loop_footer_branch
      %8 = sbr.rel target = $region3
    $region8: #{d_net128_forward.9} parent=1 // loop_exit
      _

// kernel: d_net128_forward.10
$region0: #{d_net128_forward.10}
  #allocation0 [shape = 'u32[]', space=smem, size = 0x4, offset = 0x4, fixed_abs, tag = 'smem constant byte address 0x4 - core index']
  #allocation1 [shape = 'u32[144,128]{1,0:T(1,128)}', space=vmem, size = 0x12000, scoped, tag = 'internal scratch']
  #allocation2 [shape = 'f32[32,256]{1,0:T(8,128)}', space=vmem, size = 0x8000, scoped, tag = 'scratch operand']
  %s0 = inlined_call_operand.vmem [shape: bf16[32,4096], index: 0, kind: input, shape index: {}]
  %s1 = inlined_call_operand.vmem [shape: bf16[4096,512], index: 1, kind: input, shape index: {}]
  %s2 = inlined_call_operand.vmem [shape: f32[1,512], index: 2, kind: input, shape index: {}]
  %s3 = inlined_call_operand.vmem [shape: bf16[32,512], index: 3, kind: output, shape index: {}]
  %s4 = sld [smem:[#allocation0]]
  $region148: #{d_net128_forward.10} parent=0
    _
  %s6 = ssub.s32 1, %s4
  %s7 = scalar_select 0, %s6, %s4
  $region1: #{d_net128_forward.10} parent=0
    #allocation3 [shape = 'u8[65536]{0}', space=vmem, size = 0x10000, scoped, tag = 'input window, operand 0']
    #allocation4 [shape = 'u8[524288]{0}', space=vmem, size = 0x80000, scoped, tag = 'input window, operand 1']
    #allocation5 [shape = 'u8[32768]{0}', space=vmem, size = 0x8000, scoped, tag = 'output window, operand 0']
    loop: start=0, step=1, limit=18
    $region2: #{d_net128_forward.10} parent=1 // loop_pre_header
      _
    $region3: #{d_net128_forward.10} parent=1 // loop_header
      %s9 = sphi 0, %s13
      %p10 = scmp.ge.s32.totalorder %s9, 18
      %s16 = sphi 0, %s35
      %s17 = sphi 0, %s31
      %s18 = sphi 0, %s27
      %s19 = sphi 0, %s16
      %s20 = sphi 0, %s17
      %s21 = sphi 0, %s18
      %s22 = sphi 0, %s19
      %s23 = sphi 0, %s20
      %s24 = sphi 0, %s21
      %s40 = sphi 0, %s42
      %s43 = sphi 0, %s40
      %s44 = sphi 0, %s43
      %s60 = sphi 0, %s44
      %s68 = sphi 0, %s70
      %s71 = sphi 0, %s68
      %s72 = sphi 0, %s71
      %s88 = sphi 0, %s72
      %s94 = sphi 0, %s96
      %s97 = sphi 0, %s94
      %s98 = sphi 0, %s97
      %s114 = sphi 0, %s98
      %s122 = sphi 0, %s124
      %s125 = sphi 0, %s122
      %s126 = sphi 0, %s125
      %s142 = sphi 0, %s126
    $region4: #{d_net128_forward.10} parent=1 // loop_header_branch
      %12 = sbr.rel (%p10) target = $region8
    $region5: #{d_net128_forward.10} parent=1 // loop_body
      %s14 = ssub.s32 %s9, 1
      %s15 = ssub.s32 %s9, 2
      %s25 = sadd.s32 1, %s18
      %p26 = scmp.ge.s32.totalorder %s25, 8
      %s27 = scalar_select %p26, 0, %s25
      %s28 = sadd.s32 1, %s17
      %s29 = scalar_select %p26, %s28, %s17
      %p30 = scmp.ge.s32.totalorder %s29, 2
      %s31 = scalar_select %p30, 0, %s29
      %s32 = sadd.s32 1, %s16
      %s33 = scalar_select %p30, %s32, %s16
      %p34 = scmp.ge.s32.totalorder %s33, 1
      %s35 = scalar_select %p34, 0, %s33
      %s36 = ssub.s32 %s16, %s35
      %s37 = ssub.s32 %s18, %s27
      %s38 = sor.u32 %s36, %s37
      %p39 = scmp.eq.s32.totalorder %s38, 0
      %s41 = sadd.s32 %s40, 1
      %s42 = scalar_select %p39, %s40, %s41
      %p45 = pneg %p39
      %p46 = scmp.eq.s32.totalorder %s9, 15
      %p47 = por %p45, %p46
      %p48 = scmp.ne.s32.totalorder %s40, %s43
      %p49 = scmp.eq.s32.totalorder %s9, 0
      %p50 = por %p48, %p49
      %p51 = scmp.ne.s32.totalorder %s40, %s43
      %p52 = scmp.eq.s32.totalorder %s14, 15
      %p53 = por %p51, %p52
      %p54 = scmp.ne.s32.totalorder %s43, %s44
      %p55 = scmp.eq.s32.totalorder %s14, 0
      %p56 = por %p54, %p55
      %p57 = scmp.ne.s32.totalorder %s43, %s44
      %p58 = scmp.eq.s32.totalorder %s15, 15
      %p59 = por %p57, %p58
      %p61 = scmp.ne.s32.totalorder %s44, %s60
      %p62 = scmp.eq.s32.totalorder %s15, 0
      %p63 = por %p61, %p62
      %s64 = ssub.s32 %s18, %s27
      %s65 = ssub.s32 %s17, %s31
      %s66 = sor.u32 %s64, %s65
      %p67 = scmp.eq.s32.totalorder %s66, 0
      %s69 = sadd.s32 %s68, 1
      %s70 = scalar_select %p67, %s68, %s69
      %p73 = pneg %p67
      %p74 = scmp.eq.s32.totalorder %s9, 15
      %p75 = por %p73, %p74
      %p76 = scmp.ne.s32.totalorder %s68, %s71
      %p77 = scmp.eq.s32.totalorder %s9, 0
      %p78 = por %p76, %p77
      %p79 = scmp.ne.s32.totalorder %s68, %s71
      %p80 = scmp.eq.s32.totalorder %s14, 15
      %p81 = por %p79, %p80
      %p82 = scmp.ne.s32.totalorder %s71, %s72
      %p83 = scmp.eq.s32.totalorder %s14, 0
      %p84 = por %p82, %p83
      %p85 = scmp.ne.s32.totalorder %s71, %s72
      %p86 = scmp.eq.s32.totalorder %s15, 15
      %p87 = por %p85, %p86
      %p89 = scmp.ne.s32.totalorder %s72, %s88
      %p90 = scmp.eq.s32.totalorder %s15, 0
      %p91 = por %p89, %p90
      %s92 = ssub.s32 %s17, %s31
      %p93 = scmp.eq.s32.totalorder %s92, 0
      %s95 = sadd.s32 %s94, 1
      %s96 = scalar_select %p93, %s94, %s95
      %p99 = pneg %p93
      %p100 = scmp.eq.s32.totalorder %s9, 15
      %p101 = por %p99, %p100
      %p102 = scmp.ne.s32.totalorder %s94, %s97
      %p103 = scmp.eq.s32.totalorder %s9, 0
      %p104 = por %p102, %p103
      %p105 = scmp.ne.s32.totalorder %s94, %s97
      %p106 = scmp.eq.s32.totalorder %s14, 15
      %p107 = por %p105, %p106
      %p108 = scmp.ne.s32.totalorder %s97, %s98
      %p109 = scmp.eq.s32.totalorder %s14, 0
      %p110 = por %p108, %p109
      %p111 = scmp.ne.s32.totalorder %s97, %s98
      %p112 = scmp.eq.s32.totalorder %s15, 15
      %p113 = por %p111, %p112
      %p115 = scmp.ne.s32.totalorder %s98, %s114
      %p116 = scmp.eq.s32.totalorder %s15, 0
      %p117 = por %p115, %p116
      %s118 = ssub.s32 %s16, %s35
      %s119 = ssub.s32 %s17, %s31
      %s120 = sor.u32 %s118, %s119
      %p121 = scmp.eq.s32.totalorder %s120, 0
      %s123 = sadd.s32 %s122, 1
      %s124 = scalar_select %p121, %s122, %s123
      %p127 = pneg %p121
      %p128 = scmp.eq.s32.totalorder %s9, 15
      %p129 = por %p127, %p128
      %p130 = scmp.ne.s32.totalorder %s122, %s125
      %p131 = scmp.eq.s32.totalorder %s9, 0
      %p132 = por %p130, %p131
      %p133 = scmp.ne.s32.totalorder %s122, %s125
      %p134 = scmp.eq.s32.totalorder %s14, 15
      %p135 = por %p133, %p134
      %p136 = scmp.ne.s32.totalorder %s125, %s126
      %p137 = scmp.eq.s32.totalorder %s14, 0
      %p138 = por %p136, %p137
      %p139 = scmp.ne.s32.totalorder %s125, %s126
      %p140 = scmp.eq.s32.totalorder %s15, 15
      %p141 = por %p139, %p140
      %p143 = scmp.ne.s32.totalorder %s126, %s142
      %p144 = scmp.eq.s32.totalorder %s15, 0
      %p145 = por %p143, %p144
      %p146 = scmp.le.s32.totalorder 1, %s9
      %p147 = scmp.lt.s32.totalorder %s9, 17
      %p148 = pnand %p146, %p147
      %p149 = pneg %p148
      // Predicated region
      $region9: #{d_net128_forward.10} parent=5 // pred_check
        _
      $region10: #{d_net128_forward.10} parent=5 // pred_check_branch
        %151 = sbr.rel (%p148) target = $region12
      $region11: #{d_net128_forward.10} parent=5 // pred_region
        %s152 = ssub.s32 %s9, 1
      $region12: #{d_net128_forward.10} parent=5 // pred_fallthru
        _
      %p153 = scmp.lt.s32.totalorder %s9, 16
      // Predicated region
      $region13: #{d_net128_forward.10} parent=5 // pred_check
        %p154 = pneg %p153
      $region14: #{d_net128_forward.10} parent=5 // pred_check_branch
        %156 = sbr.rel (%p154) target = $region16
      $region15: #{d_net128_forward.10} parent=5 // pred_region
        // Predicated region
        $region17: #{d_net128_forward.10} parent=15 // pred_check
          %p157 = pneg %p50
        $region18: #{d_net128_forward.10} parent=15 // pred_check_branch
          %159 = sbr.rel (%p157) target = $region20
        $region19: #{d_net128_forward.10} parent=15 // pred_region
          %s160 = sand.u32 %s40, 1
          %s161 = sand.u32 %s40, 1
          %s162 = smul.addr %s161, 64
          %s163 = scalar_lea.vmem [#allocation3], %s162
          %s164 = smul.u32 4, %s16
          %s165 = smul.u32 4, %s18
          %s166 = smul.addr %s164, 32
          %s167 = sadd.s32 %s165, %s166
          %s168 = smul.addr %s167, 4
          %s169 = scalar_lea.vmem %s0, %s168
          // Predicated region
          $region21: #{d_net128_forward.10} parent=19 // pred_check
            _
          $region22: #{d_net128_forward.10} parent=19 // pred_check_branch
            %171 = sbr.rel (0) target = $region24
          $region23: #{d_net128_forward.10} parent=19 // pred_region
            // Predicated region
            $region25: #{d_net128_forward.10} parent=23 // pred_check
              _
            $region26: #{d_net128_forward.10} parent=23 // pred_check_branch
              %173 = sbr.rel (0) target = $region28
            $region27: #{d_net128_forward.10} parent=23 // pred_region
              loop: start=0, step=1, limit=1
              $region29: #{d_net128_forward.10} parent=27 // loop_pre_header
                _
              $region30: #{d_net128_forward.10} parent=27 // loop_header
                %s175 = sphi 0, %s179
                %p176 = scmp.ge.s32.totalorder %s175, 1
                %s180 = sphi %s169, %s169
                %s181 = sphi %s163, %s163
              $region31: #{d_net128_forward.10} parent=27 // loop_header_branch
                %178 = sbr.rel (%p176) target = $region35
              $region32: #{d_net128_forward.10} parent=27 // loop_body
                %v182 = vld [vmem:[%s180] sm:$0xff]
                %183 = vst [vmem:[%s181] sm:$0xff] %v182
                %v184 = vld [vmem:[%s180 + $0x8] sm:$0xff]
                %185 = vst [vmem:[%s181 + $0x8] sm:$0xff] %v184
                %v186 = vld [vmem:[%s180 + $0x80] sm:$0xff]
                %187 = vst [vmem:[%s181 + $0x10] sm:$0xff] %v186
                %v188 = vld [vmem:[%s180 + $0x88] sm:$0xff]
                %189 = vst [vmem:[%s181 + $0x18] sm:$0xff] %v188
                %v190 = vld [vmem:[%s180 + $0x100] sm:$0xff]
                %191 = vst [vmem:[%s181 + $0x20] sm:$0xff] %v190
                %v192 = vld [vmem:[%s180 + $0x108] sm:$0xff]
                %193 = vst [vmem:[%s181 + $0x28] sm:$0xff] %v192
                %v194 = vld [vmem:[%s180 + $0x180] sm:$0xff]
                %195 = vst [vmem:[%s181 + $0x30] sm:$0xff] %v194
                %v196 = vld [vmem:[%s180 + $0x188] sm:$0xff]
                %197 = vst [vmem:[%s181 + $0x38] sm:$0xff] %v196
              $region33: #{d_net128_forward.10} parent=27 // loop_footer
                %s179 = sadd.s32 1, %s175
              $region34: #{d_net128_forward.10} parent=27 // loop_footer_branch
                %174 = sbr.rel target = $region30
              $region35: #{d_net128_forward.10} parent=27 // loop_exit
                _
            $region28: #{d_net128_forward.10} parent=23 // pred_fallthru
              _
            // Predicated region
            $region36: #{d_net128_forward.10} parent=23 // pred_check
              _
            $region37: #{d_net128_forward.10} parent=23 // pred_check_branch
              %199 = sbr.rel target = $region39
            $region38: #{d_net128_forward.10} parent=23 // pred_region
              _
            $region39: #{d_net128_forward.10} parent=23 // pred_fallthru
              _
          $region24: #{d_net128_forward.10} parent=19 // pred_fallthru
            _
          %200 = vnop
        $region20: #{d_net128_forward.10} parent=15 // pred_fallthru
          _
        // Predicated region
        $region40: #{d_net128_forward.10} parent=15 // pred_check
          %p201 = pneg %p78
        $region41: #{d_net128_forward.10} parent=15 // pred_check_branch
          %203 = sbr.rel (%p201) target = $region43
        $region42: #{d_net128_forward.10} parent=15 // pred_region
          %s204 = sand.u32 %s68, 1
          %s205 = sand.u32 %s68, 1
          %s206 = smul.addr %s205, 512
          %s207 = scalar_lea.vmem [#allocation4], %s206
          %s208 = smul.u32 64, %s18
          %s209 = smul.u32 2, %s17
          %s210 = smul.addr %s208, 4
          %s211 = sadd.s32 %s209, %s210
          %s212 = smul.addr %s211, 4
          %s213 = scalar_lea.vmem %s1, %s212
          // Predicated region
          $region44: #{d_net128_forward.10} parent=42 // pred_check
            _
          $region45: #{d_net128_forward.10} parent=42 // pred_check_branch
            %215 = sbr.rel (0) target = $region47
          $region46: #{d_net128_forward.10} parent=42 // pred_region
            // Predicated region
            $region48: #{d_net128_forward.10} parent=46 // pred_check
              _
            $region49: #{d_net128_forward.10} parent=46 // pred_check_branch
              %217 = sbr.rel (0) target = $region51
            $region50: #{d_net128_forward.10} parent=46 // pred_region
              // Predicated region
              $region63: #{d_net128_forward.10} parent=50 // pred_check
                _
              $region64: #{d_net128_forward.10} parent=50 // pred_check_branch
                %358 = sbr.rel (0) target = $region66
              $region65: #{d_net128_forward.10} parent=50 // pred_region
                loop: start=0, step=1, limit=1
                $region67: #{d_net128_forward.10} parent=65 // loop_pre_header
                  _
                $region68: #{d_net128_forward.10} parent=65 // loop_header
                  %s360 = sphi 0, %s364
                  %p361 = scmp.ge.s32.totalorder %s360, 1
                  %s365 = sphi %s213, %s213
                  %s366 = sphi %s207, %s207
                $region69: #{d_net128_forward.10} parent=65 // loop_header_branch
                  %363 = sbr.rel (%p361) target = $region73
                $region70: #{d_net128_forward.10} parent=65 // loop_body
                  %v367 = vld [vmem:[%s365] sm:$0xff]
                  %368 = vst [vmem:[%s366] sm:$0xff] %v367
                  %v369 = vld [vmem:[%s365 + $0x10] sm:$0xff]
                  %370 = vst [vmem:[%s366 + $0x8] sm:$0xff] %v369
                  %v371 = vld [vmem:[%s365 + $0x20] sm:$0xff]
                  %372 = vst [vmem:[%s366 + $0x10] sm:$0xff] %v371
                  %v373 = vld [vmem:[%s365 + $0x30] sm:$0xff]
                  %374 = vst [vmem:[%s366 + $0x18] sm:$0xff] %v373
                  %v375 = vld [vmem:[%s365 + $0x40] sm:$0xff]
                  %376 = vst [vmem:[%s366 + $0x20] sm:$0xff] %v375
                  %v377 = vld [vmem:[%s365 + $0x50] sm:$0xff]
                  %378 = vst [vmem:[%s366 + $0x28] sm:$0xff] %v377
                  %v379 = vld [vmem:[%s365 + $0x60] sm:$0xff]
                  %380 = vst [vmem:[%s366 + $0x30] sm:$0xff] %v379
                  %v381 = vld [vmem:[%s365 + $0x70] sm:$0xff]
                  %382 = vst [vmem:[%s366 + $0x38] sm:$0xff] %v381
                  %v383 = vld [vmem:[%s365 + $0x80] sm:$0xff]
                  %384 = vst [vmem:[%s366 + $0x40] sm:$0xff] %v383
                  %v385 = vld [vmem:[%s365 + $0x90] sm:$0xff]
                  %386 = vst [vmem:[%s366 + $0x48] sm:$0xff] %v385
                  %v387 = vld [vmem:[%s365 + $0xa0] sm:$0xff]
                  %388 = vst [vmem:[%s366 + $0x50] sm:$0xff] %v387
                  %v389 = vld [vmem:[%s365 + $0xb0] sm:$0xff]
                  %390 = vst [vmem:[%s366 + $0x58] sm:$0xff] %v389
                  %v391 = vld [vmem:[%s365 + $0xc0] sm:$0xff]
                  %392 = vst [vmem:[%s366 + $0x60] sm:$0xff] %v391
                  %v393 = vld [vmem:[%s365 + $0xd0] sm:$0xff]
                  %394 = vst [vmem:[%s366 + $0x68] sm:$0xff] %v393
                  %v395 = vld [vmem:[%s365 + $0xe0] sm:$0xff]
                  %396 = vst [vmem:[%s366 + $0x70] sm:$0xff] %v395
                  %v397 = vld [vmem:[%s365 + $0xf0] sm:$0xff]
                  %398 = vst [vmem:[%s366 + $0x78] sm:$0xff] %v397
                  %v399 = vld [vmem:[%s365 + $0x100] sm:$0xff]
                  %400 = vst [vmem:[%s366 + $0x80] sm:$0xff] %v399
                  %v401 = vld [vmem:[%s365 + $0x110] sm:$0xff]
                  %402 = vst [vmem:[%s366 + $0x88] sm:$0xff] %v401
                  %v403 = vld [vmem:[%s365 + $0x120] sm:$0xff]
                  %404 = vst [vmem:[%s366 + $0x90] sm:$0xff] %v403
                  %v405 = vld [vmem:[%s365 + $0x130] sm:$0xff]
                  %406 = vst [vmem:[%s366 + $0x98] sm:$0xff] %v405
                  %v407 = vld [vmem:[%s365 + $0x140] sm:$0xff]
                  %408 = vst [vmem:[%s366 + $0xa0] sm:$0xff] %v407
                  %v409 = vld [vmem:[%s365 + $0x150] sm:$0xff]
                  %410 = vst [vmem:[%s366 + $0xa8] sm:$0xff] %v409
                  %v411 = vld [vmem:[%s365 + $0x160] sm:$0xff]
                  %412 = vst [vmem:[%s366 + $0xb0] sm:$0xff] %v411
                  %v413 = vld [vmem:[%s365 + $0x170] sm:$0xff]
                  %414 = vst [vmem:[%s366 + $0xb8] sm:$0xff] %v413
                  %v415 = vld [vmem:[%s365 + $0x180] sm:$0xff]
                  %416 = vst [vmem:[%s366 + $0xc0] sm:$0xff] %v415
                  %v417 = vld [vmem:[%s365 + $0x190] sm:$0xff]
                  %418 = vst [vmem:[%s366 + $0xc8] sm:$0xff] %v417
                  %v419 = vld [vmem:[%s365 + $0x1a0] sm:$0xff]
                  %420 = vst [vmem:[%s366 + $0xd0] sm:$0xff] %v419
                  %v421 = vld [vmem:[%s365 + $0x1b0] sm:$0xff]
                  %422 = vst [vmem:[%s366 + $0xd8] sm:$0xff] %v421
                  %v423 = vld [vmem:[%s365 + $0x1c0] sm:$0xff]
                  %424 = vst [vmem:[%s366 + $0xe0] sm:$0xff] %v423
                  %v425 = vld [vmem:[%s365 + $0x1d0] sm:$0xff]
                  %426 = vst [vmem:[%s366 + $0xe8] sm:$0xff] %v425
                  %v427 = vld [vmem:[%s365 + $0x1e0] sm:$0xff]
                  %428 = vst [vmem:[%s366 + $0xf0] sm:$0xff] %v427
                  %v429 = vld [vmem:[%s365 + $0x1f0] sm:$0xff]
                  %430 = vst [vmem:[%s366 + $0xf8] sm:$0xff] %v429
                  %v431 = vld [vmem:[%s365 + $0x200] sm:$0xff]
                  %432 = vst [vmem:[%s366 + $0x100] sm:$0xff] %v431
                  %v433 = vld [vmem:[%s365 + $0x210] sm:$0xff]
                  %434 = vst [vmem:[%s366 + $0x108] sm:$0xff] %v433
                  %v435 = vld [vmem:[%s365 + $0x220] sm:$0xff]
                  %436 = vst [vmem:[%s366 + $0x110] sm:$0xff] %v435
                  %v437 = vld [vmem:[%s365 + $0x230] sm:$0xff]
                  %438 = vst [vmem:[%s366 + $0x118] sm:$0xff] %v437
                  %v439 = vld [vmem:[%s365 + $0x240] sm:$0xff]
                  %440 = vst [vmem:[%s366 + $0x120] sm:$0xff] %v439
                  %v441 = vld [vmem:[%s365 + $0x250] sm:$0xff]
                  %442 = vst [vmem:[%s366 + $0x128] sm:$0xff] %v441
                  %v443 = vld [vmem:[%s365 + $0x260] sm:$0xff]
                  %444 = vst [vmem:[%s366 + $0x130] sm:$0xff] %v443
                  %v445 = vld [vmem:[%s365 + $0x270] sm:$0xff]
                  %446 = vst [vmem:[%s366 + $0x138] sm:$0xff] %v445
                  %v447 = vld [vmem:[%s365 + $0x280] sm:$0xff]
                  %448 = vst [vmem:[%s366 + $0x140] sm:$0xff] %v447
                  %v449 = vld [vmem:[%s365 + $0x290] sm:$0xff]
                  %450 = vst [vmem:[%s366 + $0x148] sm:$0xff] %v449
                  %v451 = vld [vmem:[%s365 + $0x2a0] sm:$0xff]
                  %452 = vst [vmem:[%s366 + $0x150] sm:$0xff] %v451
                  %v453 = vld [vmem:[%s365 + $0x2b0] sm:$0xff]
                  %454 = vst [vmem:[%s366 + $0x158] sm:$0xff] %v453
                  %v455 = vld [vmem:[%s365 + $0x2c0] sm:$0xff]
                  %456 = vst [vmem:[%s366 + $0x160] sm:$0xff] %v455
                  %v457 = vld [vmem:[%s365 + $0x2d0] sm:$0xff]
                  %458 = vst [vmem:[%s366 + $0x168] sm:$0xff] %v457
                  %v459 = vld [vmem:[%s365 + $0x2e0] sm:$0xff]
                  %460 = vst [vmem:[%s366 + $0x170] sm:$0xff] %v459
                  %v461 = vld [vmem:[%s365 + $0x2f0] sm:$0xff]
                  %462 = vst [vmem:[%s366 + $0x178] sm:$0xff] %v461
                  %v463 = vld [vmem:[%s365 + $0x300] sm:$0xff]
                  %464 = vst [vmem:[%s366 + $0x180] sm:$0xff] %v463
                  %v465 = vld [vmem:[%s365 + $0x310] sm:$0xff]
                  %466 = vst [vmem:[%s366 + $0x188] sm:$0xff] %v465
                  %v467 = vld [vmem:[%s365 + $0x320] sm:$0xff]
                  %468 = vst [vmem:[%s366 + $0x190] sm:$0xff] %v467
                  %v469 = vld [vmem:[%s365 + $0x330] sm:$0xff]
                  %470 = vst [vmem:[%s366 + $0x198] sm:$0xff] %v469
                  %v471 = vld [vmem:[%s365 + $0x340] sm:$0xff]
                  %472 = vst [vmem:[%s366 + $0x1a0] sm:$0xff] %v471
                  %v473 = vld [vmem:[%s365 + $0x350] sm:$0xff]
                  %474 = vst [vmem:[%s366 + $0x1a8] sm:$0xff] %v473
                  %v475 = vld [vmem:[%s365 + $0x360] sm:$0xff]
                  %476 = vst [vmem:[%s366 + $0x1b0] sm:$0xff] %v475
                  %v477 = vld [vmem:[%s365 + $0x370] sm:$0xff]
                  %478 = vst [vmem:[%s366 + $0x1b8] sm:$0xff] %v477
                  %v479 = vld [vmem:[%s365 + $0x380] sm:$0xff]
                  %480 = vst [vmem:[%s366 + $0x1c0] sm:$0xff] %v479
                  %v481 = vld [vmem:[%s365 + $0x390] sm:$0xff]
                  %482 = vst [vmem:[%s366 + $0x1c8] sm:$0xff] %v481
                  %v483 = vld [vmem:[%s365 + $0x3a0] sm:$0xff]
                  %484 = vst [vmem:[%s366 + $0x1d0] sm:$0xff] %v483
                  %v485 = vld [vmem:[%s365 + $0x3b0] sm:$0xff]
                  %486 = vst [vmem:[%s366 + $0x1d8] sm:$0xff] %v485
                  %v487 = vld [vmem:[%s365 + $0x3c0] sm:$0xff]
                  %488 = vst [vmem:[%s366 + $0x1e0] sm:$0xff] %v487
                  %v489 = vld [vmem:[%s365 + $0x3d0] sm:$0xff]
                  %490 = vst [vmem:[%s366 + $0x1e8] sm:$0xff] %v489
                  %v491 = vld [vmem:[%s365 + $0x3e0] sm:$0xff]
                  %492 = vst [vmem:[%s366 + $0x1f0] sm:$0xff] %v491
                  %v493 = vld [vmem:[%s365 + $0x3f0] sm:$0xff]
                  %494 = vst [vmem:[%s366 + $0x1f8] sm:$0xff] %v493
                $region71: #{d_net128_forward.10} parent=65 // loop_footer
                  %s364 = sadd.s32 1, %s360
                $region72: #{d_net128_forward.10} parent=65 // loop_footer_branch
                  %359 = sbr.rel target = $region68
                $region73: #{d_net128_forward.10} parent=65 // loop_exit
                  _
              $region66: #{d_net128_forward.10} parent=50 // pred_fallthru
                _
              // Predicated region
              $region74: #{d_net128_forward.10} parent=50 // pred_check
                _
              $region75: #{d_net128_forward.10} parent=50 // pred_check_branch
                %496 = sbr.rel target = $region77
              $region76: #{d_net128_forward.10} parent=50 // pred_region
                _
              $region77: #{d_net128_forward.10} parent=50 // pred_fallthru
                _
            $region51: #{d_net128_forward.10} parent=46 // pred_fallthru
              _
            // Predicated region
            $region52: #{d_net128_forward.10} parent=46 // pred_check
              _
            $region53: #{d_net128_forward.10} parent=46 // pred_check_branch
              %219 = sbr.rel target = $region55
            $region54: #{d_net128_forward.10} parent=46 // pred_region
              loop: start=0, step=1, limit=1
              $region56: #{d_net128_forward.10} parent=54 // loop_pre_header
                _
              $region57: #{d_net128_forward.10} parent=54 // loop_header
                %s222 = sphi 0, %s226
                %p223 = scmp.ge.s32.totalorder %s222, 1
                %s227 = sphi %s213, %s213
                %s228 = sphi %s207, %s207
              $region58: #{d_net128_forward.10} parent=54 // loop_header_branch
                %225 = sbr.rel (%p223) target = $region62
              $region59: #{d_net128_forward.10} parent=54 // loop_body
                %v229 = vld [vmem:[%s227] sm:$0xff]
                %230 = vst [vmem:[%s228] sm:$0xff] %v229
                %v231 = vld [vmem:[%s227 + $0x10] sm:$0xff]
                %232 = vst [vmem:[%s228 + $0x8] sm:$0xff] %v231
                %v233 = vld [vmem:[%s227 + $0x20] sm:$0xff]
                %234 = vst [vmem:[%s228 + $0x10] sm:$0xff] %v233
                %v235 = vld [vmem:[%s227 + $0x30] sm:$0xff]
                %236 = vst [vmem:[%s228 + $0x18] sm:$0xff] %v235
                %v237 = vld [vmem:[%s227 + $0x40] sm:$0xff]
                %238 = vst [vmem:[%s228 + $0x20] sm:$0xff] %v237
                %v239 = vld [vmem:[%s227 + $0x50] sm:$0xff]
                %240 = vst [vmem:[%s228 + $0x28] sm:$0xff] %v239
                %v241 = vld [vmem:[%s227 + $0x60] sm:$0xff]
                %242 = vst [vmem:[%s228 + $0x30] sm:$0xff] %v241
                %v243 = vld [vmem:[%s227 + $0x70] sm:$0xff]
                %244 = vst [vmem:[%s228 + $0x38] sm:$0xff] %v243
                %v245 = vld [vmem:[%s227 + $0x80] sm:$0xff]
                %246 = vst [vmem:[%s228 + $0x40] sm:$0xff] %v245
                %v247 = vld [vmem:[%s227 + $0x90] sm:$0xff]
                %248 = vst [vmem:[%s228 + $0x48] sm:$0xff] %v247
                %v249 = vld [vmem:[%s227 + $0xa0] sm:$0xff]
                %250 = vst [vmem:[%s228 + $0x50] sm:$0xff] %v249
                %v251 = vld [vmem:[%s227 + $0xb0] sm:$0xff]
                %252 = vst [vmem:[%s228 + $0x58] sm:$0xff] %v251
                %v253 = vld [vmem:[%s227 + $0xc0] sm:$0xff]
                %254 = vst [vmem:[%s228 + $0x60] sm:$0xff] %v253
                %v255 = vld [vmem:[%s227 + $0xd0] sm:$0xff]
                %256 = vst [vmem:[%s228 + $0x68] sm:$0xff] %v255
                %v257 = vld [vmem:[%s227 + $0xe0] sm:$0xff]
                %258 = vst [vmem:[%s228 + $0x70] sm:$0xff] %v257
                %v259 = vld [vmem:[%s227 + $0xf0] sm:$0xff]
                %260 = vst [vmem:[%s228 + $0x78] sm:$0xff] %v259
                %v261 = vld [vmem:[%s227 + $0x100] sm:$0xff]
                %262 = vst [vmem:[%s228 + $0x80] sm:$0xff] %v261
                %v263 = vld [vmem:[%s227 + $0x110] sm:$0xff]
                %264 = vst [vmem:[%s228 + $0x88] sm:$0xff] %v263
                %v265 = vld [vmem:[%s227 + $0x120] sm:$0xff]
                %266 = vst [vmem:[%s228 + $0x90] sm:$0xff] %v265
                %v267 = vld [vmem:[%s227 + $0x130] sm:$0xff]
                %268 = vst [vmem:[%s228 + $0x98] sm:$0xff] %v267
                %v269 = vld [vmem:[%s227 + $0x140] sm:$0xff]
                %270 = vst [vmem:[%s228 + $0xa0] sm:$0xff] %v269
                %v271 = vld [vmem:[%s227 + $0x150] sm:$0xff]
                %272 = vst [vmem:[%s228 + $0xa8] sm:$0xff] %v271
                %v273 = vld [vmem:[%s227 + $0x160] sm:$0xff]
                %274 = vst [vmem:[%s228 + $0xb0] sm:$0xff] %v273
                %v275 = vld [vmem:[%s227 + $0x170] sm:$0xff]
                %276 = vst [vmem:[%s228 + $0xb8] sm:$0xff] %v275
                %v277 = vld [vmem:[%s227 + $0x180] sm:$0xff]
                %278 = vst [vmem:[%s228 + $0xc0] sm:$0xff] %v277
                %v279 = vld [vmem:[%s227 + $0x190] sm:$0xff]
                %280 = vst [vmem:[%s228 + $0xc8] sm:$0xff] %v279
                %v281 = vld [vmem:[%s227 + $0x1a0] sm:$0xff]
                %282 = vst [vmem:[%s228 + $0xd0] sm:$0xff] %v281
                %v283 = vld [vmem:[%s227 + $0x1b0] sm:$0xff]
                %284 = vst [vmem:[%s228 + $0xd8] sm:$0xff] %v283
                %v285 = vld [vmem:[%s227 + $0x1c0] sm:$0xff]
                %286 = vst [vmem:[%s228 + $0xe0] sm:$0xff] %v285
                %v287 = vld [vmem:[%s227 + $0x1d0] sm:$0xff]
                %288 = vst [vmem:[%s228 + $0xe8] sm:$0xff] %v287
                %v289 = vld [vmem:[%s227 + $0x1e0] sm:$0xff]
                %290 = vst [vmem:[%s228 + $0xf0] sm:$0xff] %v289
                %v291 = vld [vmem:[%s227 + $0x1f0] sm:$0xff]
                %292 = vst [vmem:[%s228 + $0xf8] sm:$0xff] %v291
                %v293 = vld [vmem:[%s227 + $0x200] sm:$0xff]
                %294 = vst [vmem:[%s228 + $0x100] sm:$0xff] %v293
                %v295 = vld [vmem:[%s227 + $0x210] sm:$0xff]
                %296 = vst [vmem:[%s228 + $0x108] sm:$0xff] %v295
                %v297 = vld [vmem:[%s227 + $0x220] sm:$0xff]
                %298 = vst [vmem:[%s228 + $0x110] sm:$0xff] %v297
                %v299 = vld [vmem:[%s227 + $0x230] sm:$0xff]
                %300 = vst [vmem:[%s228 + $0x118] sm:$0xff] %v299
                %v301 = vld [vmem:[%s227 + $0x240] sm:$0xff]
                %302 = vst [vmem:[%s228 + $0x120] sm:$0xff] %v301
                %v303 = vld [vmem:[%s227 + $0x250] sm:$0xff]
                %304 = vst [vmem:[%s228 + $0x128] sm:$0xff] %v303
                %v305 = vld [vmem:[%s227 + $0x260] sm:$0xff]
                %306 = vst [vmem:[%s228 + $0x130] sm:$0xff] %v305
                %v307 = vld [vmem:[%s227 + $0x270] sm:$0xff]
                %308 = vst [vmem:[%s228 + $0x138] sm:$0xff] %v307
                %v309 = vld [vmem:[%s227 + $0x280] sm:$0xff]
                %310 = vst [vmem:[%s228 + $0x140] sm:$0xff] %v309
                %v311 = vld [vmem:[%s227 + $0x290] sm:$0xff]
                %312 = vst [vmem:[%s228 + $0x148] sm:$0xff] %v311
                %v313 = vld [vmem:[%s227 + $0x2a0] sm:$0xff]
                %314 = vst [vmem:[%s228 + $0x150] sm:$0xff] %v313
                %v315 = vld [vmem:[%s227 + $0x2b0] sm:$0xff]
                %316 = vst [vmem:[%s228 + $0x158] sm:$0xff] %v315
                %v317 = vld [vmem:[%s227 + $0x2c0] sm:$0xff]
                %318 = vst [vmem:[%s228 + $0x160] sm:$0xff] %v317
                %v319 = vld [vmem:[%s227 + $0x2d0] sm:$0xff]
                %320 = vst [vmem:[%s228 + $0x168] sm:$0xff] %v319
                %v321 = vld [vmem:[%s227 + $0x2e0] sm:$0xff]
                %322 = vst [vmem:[%s228 + $0x170] sm:$0xff] %v321
                %v323 = vld [vmem:[%s227 + $0x2f0] sm:$0xff]
                %324 = vst [vmem:[%s228 + $0x178] sm:$0xff] %v323
                %v325 = vld [vmem:[%s227 + $0x300] sm:$0xff]
                %326 = vst [vmem:[%s228 + $0x180] sm:$0xff] %v325
                %v327 = vld [vmem:[%s227 + $0x310] sm:$0xff]
                %328 = vst [vmem:[%s228 + $0x188] sm:$0xff] %v327
                %v329 = vld [vmem:[%s227 + $0x320] sm:$0xff]
                %330 = vst [vmem:[%s228 + $0x190] sm:$0xff] %v329
                %v331 = vld [vmem:[%s227 + $0x330] sm:$0xff]
                %332 = vst [vmem:[%s228 + $0x198] sm:$0xff] %v331
                %v333 = vld [vmem:[%s227 + $0x340] sm:$0xff]
                %334 = vst [vmem:[%s228 + $0x1a0] sm:$0xff] %v333
                %v335 = vld [vmem:[%s227 + $0x350] sm:$0xff]
                %336 = vst [vmem:[%s228 + $0x1a8] sm:$0xff] %v335
                %v337 = vld [vmem:[%s227 + $0x360] sm:$0xff]
                %338 = vst [vmem:[%s228 + $0x1b0] sm:$0xff] %v337
                %v339 = vld [vmem:[%s227 + $0x370] sm:$0xff]
                %340 = vst [vmem:[%s228 + $0x1b8] sm:$0xff] %v339
                %v341 = vld [vmem:[%s227 + $0x380] sm:$0xff]
                %342 = vst [vmem:[%s228 + $0x1c0] sm:$0xff] %v341
                %v343 = vld [vmem:[%s227 + $0x390] sm:$0xff]
                %344 = vst [vmem:[%s228 + $0x1c8] sm:$0xff] %v343
                %v345 = vld [vmem:[%s227 + $0x3a0] sm:$0xff]
                %346 = vst [vmem:[%s228 + $0x1d0] sm:$0xff] %v345
                %v347 = vld [vmem:[%s227 + $0x3b0] sm:$0xff]
                %348 = vst [vmem:[%s228 + $0x1d8] sm:$0xff] %v347
                %v349 = vld [vmem:[%s227 + $0x3c0] sm:$0xff]
                %350 = vst [vmem:[%s228 + $0x1e0] sm:$0xff] %v349
                %v351 = vld [vmem:[%s227 + $0x3d0] sm:$0xff]
                %352 = vst [vmem:[%s228 + $0x1e8] sm:$0xff] %v351
                %v353 = vld [vmem:[%s227 + $0x3e0] sm:$0xff]
                %354 = vst [vmem:[%s228 + $0x1f0] sm:$0xff] %v353
                %v355 = vld [vmem:[%s227 + $0x3f0] sm:$0xff]
                %356 = vst [vmem:[%s228 + $0x1f8] sm:$0xff] %v355
              $region60: #{d_net128_forward.10} parent=54 // loop_footer
                %s226 = sadd.s32 1, %s222
              $region61: #{d_net128_forward.10} parent=54 // loop_footer_branch
                %221 = sbr.rel target = $region57
              $region62: #{d_net128_forward.10} parent=54 // loop_exit
                _
            $region55: #{d_net128_forward.10} parent=46 // pred_fallthru
              _
          $region47: #{d_net128_forward.10} parent=42 // pred_fallthru
            _
          %497 = vnop
        $region43: #{d_net128_forward.10} parent=15 // pred_fallthru
          _
        // Predicated region
        $region78: #{d_net128_forward.10} parent=15 // pred_check
          %p498 = pneg %p104
        $region79: #{d_net128_forward.10} parent=15 // pred_check_branch
          %500 = sbr.rel (%p498) target = $region81
        $region80: #{d_net128_forward.10} parent=15 // pred_region
          %s501 = smul.u32 2, %s17
          %p502 = scmp.lt.s32.totalorder %s501, 3
          %s503 = scalar_select %p502, %s501, 3
          %s504 = scalar_lea.vmem %s2, %s503
          %s505 = smul.u32 2, %s17
        $region81: #{d_net128_forward.10} parent=15 // pred_fallthru
          _
      $region16: #{d_net128_forward.10} parent=5 // pred_fallthru
        _
      %p506 = scmp.le.s32.totalorder 1, %s9
      %p507 = scmp.lt.s32.totalorder %s9, 17
      %p508 = pnand %p506, %p507
      %p509 = pneg %p508
      // Predicated region
      $region82: #{d_net128_forward.10} parent=5 // pred_check
        _
      $region83: #{d_net128_forward.10} parent=5 // pred_check_branch
        %511 = sbr.rel (%p508) target = $region85
      $region84: #{d_net128_forward.10} parent=5 // pred_region
        %s512 = ssub.s32 %s9, 1
        %s513 = sand.u32 %s43, 1
        %s514 = sand.u32 %s43, 1
        %s515 = smul.addr %s514, 64
        %s516 = scalar_lea.vmem [#allocation3], %s515
        // Predicated region
        $region86: #{d_net128_forward.10} parent=84 // pred_check
          %p517 = pneg %p56
        $region87: #{d_net128_forward.10} parent=84 // pred_check_branch
          %519 = sbr.rel (%p517) target = $region89
        $region88: #{d_net128_forward.10} parent=84 // pred_region
          _
        $region89: #{d_net128_forward.10} parent=84 // pred_fallthru
          _
        %s520 = sand.u32 %s71, 1
        %s521 = sand.u32 %s71, 1
        %s522 = smul.addr %s521, 512
        %s523 = scalar_lea.vmem [#allocation4], %s522
        // Predicated region
        $region90: #{d_net128_forward.10} parent=84 // pred_check
          %p524 = pneg %p84
        $region91: #{d_net128_forward.10} parent=84 // pred_check_branch
          %526 = sbr.rel (%p524) target = $region93
        $region92: #{d_net128_forward.10} parent=84 // pred_region
          _
        $region93: #{d_net128_forward.10} parent=84 // pred_fallthru
          _
        %s527 = sand.u32 %s43, 1
        %s528 = sand.u32 %s43, 1
        %s529 = smul.addr %s528, 64
        %s530 = scalar_lea.vmem [#allocation3], %s529
        %p531 = pneg %p56
        %p532 = pneg %p53
        %s533 = sand.u32 %s71, 1
        %s534 = sand.u32 %s71, 1
        %s535 = smul.addr %s534, 512
        %s536 = scalar_lea.vmem [#allocation4], %s535
        %p537 = pneg %p84
        %p538 = pneg %p81
        %s539 = smul.u32 2, %s20
        %p540 = scmp.lt.s32.totalorder %s539, 3
        %s541 = scalar_select %p540, %s539, 3
        %s542 = scalar_lea.vmem %s2, %s541
        %p543 = pneg %p110
        %p544 = pneg %p107
        %p545 = pneg %p138
        %p546 = pneg %p135
        %s547 = sand.u32 %s125, 1
        %s548 = sand.u32 %s125, 1
        %s549 = smul.addr %s548, 32
        %s550 = scalar_lea.vmem [#allocation5], %s549
        %s551 = smul.u32 4, %s19
        %s552 = smul.u32 4, %s21
        %s553 = smul.u32 64, %s21
        %s554 = smul.u32 2, %s20
        %s555 = smul.u32 2, %s20
        %p556 = scmp.lt.s32.totalorder %s555, 3
        %s557 = scalar_select %p556, %s555, 3
        %s558 = scalar_lea.vmem %s2, %s557
        %s559 = smul.u32 2, %s20
        %s560 = smul.u32 4, %s19
        %s561 = smul.u32 2, %s20
        %p562 = scmp.eq.s32.totalorder %s21, 0
        // Predicated region
        $region94: #{d_net128_forward.10} parent=84 // pred_check
          %p563 = pneg %p562
        $region95: #{d_net128_forward.10} parent=84 // pred_check_branch
          %565 = sbr.rel (%p563) target = $region97
        $region96: #{d_net128_forward.10} parent=84 // pred_region
          %566 = vst [vmem:[#allocation2] sm:$0xff] 0.0
          %567 = vst [vmem:[#allocation2 + $0x8] sm:$0xff] 0.0
          %568 = vst [vmem:[#allocation2 + $0x10] sm:$0xff] 0.0
          %569 = vst [vmem:[#allocation2 + $0x18] sm:$0xff] 0.0
          %570 = vst [vmem:[#allocation2 + $0x20] sm:$0xff] 0.0
          %571 = vst [vmem:[#allocation2 + $0x28] sm:$0xff] 0.0
          %572 = vst [vmem:[#allocation2 + $0x30] sm:$0xff] 0.0
          %573 = vst [vmem:[#allocation2 + $0x38] sm:$0xff] 0.0
        $region97: #{d_net128_forward.10} parent=84 // pred_fallthru
          _
        %v574 = vld [vmem:[#allocation2] sm:$0xff]
        %v575 = vld [vmem:[#allocation2 + $0x8] sm:$0xff]
        %v576 = vld [vmem:[#allocation2 + $0x10] sm:$0xff]
        %v577 = vld [vmem:[#allocation2 + $0x18] sm:$0xff]
        %v578 = vld [vmem:[#allocation2 + $0x20] sm:$0xff]
        %v579 = vld [vmem:[#allocation2 + $0x28] sm:$0xff]
        %v580 = vld [vmem:[#allocation2 + $0x30] sm:$0xff]
        %v581 = vld [vmem:[#allocation2 + $0x38] sm:$0xff]
        %v582 = vld [vmem:[%s516] sm:$0xff]
        %v583 = vld [vmem:[%s516 + $0x8] sm:$0xff]
        %v584 = vld [vmem:[%s516 + $0x10] sm:$0xff]
        %v585 = vld [vmem:[%s516 + $0x18] sm:$0xff]
        %v586 = vld [vmem:[%s516 + $0x20] sm:$0xff]
        %v587 = vld [vmem:[%s516 + $0x28] sm:$0xff]
        %v588 = vld [vmem:[%s516 + $0x30] sm:$0xff]
        %v589 = vld [vmem:[%s516 + $0x38] sm:$0xff]
        %v590 = vld [vmem:[%s523] sm:$0xff]
        %v591 = vld [vmem:[%s523 + $0x8] sm:$0xff]
        %v592 = vld [vmem:[%s523 + $0x10] sm:$0xff]
        %v593 = vld [vmem:[%s523 + $0x18] sm:$0xff]
        %v594 = vld [vmem:[%s523 + $0x20] sm:$0xff]
        %v595 = vld [vmem:[%s523 + $0x28] sm:$0xff]
        %v596 = vld [vmem:[%s523 + $0x30] sm:$0xff]
        %v597 = vld [vmem:[%s523 + $0x38] sm:$0xff]
        %v598 = vld [vmem:[%s523 + $0x40] sm:$0xff]
        %v599 = vld [vmem:[%s523 + $0x48] sm:$0xff]
        %v600 = vld [vmem:[%s523 + $0x50] sm:$0xff]
        %v601 = vld [vmem:[%s523 + $0x58] sm:$0xff]
        %v602 = vld [vmem:[%s523 + $0x60] sm:$0xff]
        %v603 = vld [vmem:[%s523 + $0x68] sm:$0xff]
        %v604 = vld [vmem:[%s523 + $0x70] sm:$0xff]
        %v605 = vld [vmem:[%s523 + $0x78] sm:$0xff]
        %v606 = vld [vmem:[%s523 + $0x80] sm:$0xff]
        %v607 = vld [vmem:[%s523 + $0x88] sm:$0xff]
        %v608 = vld [vmem:[%s523 + $0x90] sm:$0xff]
        %v609 = vld [vmem:[%s523 + $0x98] sm:$0xff]
        %v610 = vld [vmem:[%s523 + $0xa0] sm:$0xff]
        %v611 = vld [vmem:[%s523 + $0xa8] sm:$0xff]
        %v612 = vld [vmem:[%s523 + $0xb0] sm:$0xff]
        %v613 = vld [vmem:[%s523 + $0xb8] sm:$0xff]
        %v614 = vld [vmem:[%s523 + $0xc0] sm:$0xff]
        %v615 = vld [vmem:[%s523 + $0xc8] sm:$0xff]
        %v616 = vld [vmem:[%s523 + $0xd0] sm:$0xff]
        %v617 = vld [vmem:[%s523 + $0xd8] sm:$0xff]
        %v618 = vld [vmem:[%s523 + $0xe0] sm:$0xff]
        %v619 = vld [vmem:[%s523 + $0xe8] sm:$0xff]
        %v620 = vld [vmem:[%s523 + $0xf0] sm:$0xff]
        %v621 = vld [vmem:[%s523 + $0xf8] sm:$0xff]
        %v622 = vld [vmem:[%s523 + $0x100] sm:$0xff]
        %v623 = vld [vmem:[%s523 + $0x108] sm:$0xff]
        %v624 = vld [vmem:[%s523 + $0x110] sm:$0xff]
        %v625 = vld [vmem:[%s523 + $0x118] sm:$0xff]
        %v626 = vld [vmem:[%s523 + $0x120] sm:$0xff]
        %v627 = vld [vmem:[%s523 + $0x128] sm:$0xff]
        %v628 = vld [vmem:[%s523 + $0x130] sm:$0xff]
        %v629 = vld [vmem:[%s523 + $0x138] sm:$0xff]
        %v630 = vld [vmem:[%s523 + $0x140] sm:$0xff]
        %v631 = vld [vmem:[%s523 + $0x148] sm:$0xff]
        %v632 = vld [vmem:[%s523 + $0x150] sm:$0xff]
        %v633 = vld [vmem:[%s523 + $0x158] sm:$0xff]
        %v634 = vld [vmem:[%s523 + $0x160] sm:$0xff]
        %v635 = vld [vmem:[%s523 + $0x168] sm:$0xff]
        %v636 = vld [vmem:[%s523 + $0x170] sm:$0xff]
        %v637 = vld [vmem:[%s523 + $0x178] sm:$0xff]
        %v638 = vld [vmem:[%s523 + $0x180] sm:$0xff]
        %v639 = vld [vmem:[%s523 + $0x188] sm:$0xff]
        %v640 = vld [vmem:[%s523 + $0x190] sm:$0xff]
        %v641 = vld [vmem:[%s523 + $0x198] sm:$0xff]
        %v642 = vld [vmem:[%s523 + $0x1a0] sm:$0xff]
        %v643 = vld [vmem:[%s523 + $0x1a8] sm:$0xff]
        %v644 = vld [vmem:[%s523 + $0x1b0] sm:$0xff]
        %v645 = vld [vmem:[%s523 + $0x1b8] sm:$0xff]
        %v646 = vld [vmem:[%s523 + $0x1c0] sm:$0xff]
        %v647 = vld [vmem:[%s523 + $0x1c8] sm:$0xff]
        %v648 = vld [vmem:[%s523 + $0x1d0] sm:$0xff]
        %v649 = vld [vmem:[%s523 + $0x1d8] sm:$0xff]
        %v650 = vld [vmem:[%s523 + $0x1e0] sm:$0xff]
        %v651 = vld [vmem:[%s523 + $0x1e8] sm:$0xff]
        %v652 = vld [vmem:[%s523 + $0x1f0] sm:$0xff]
        %v653 = vld [vmem:[%s523 + $0x1f8] sm:$0xff]
        %v662 = vunpack.c.l.b16 %v582
        %v663 = vunpack.c.h.b16 %v582
        %v664 = vunpack.c.l.b16 %v583
        %v665 = vunpack.c.h.b16 %v583
        %v666 = vunpack.c.l.b16 %v584
        %v667 = vunpack.c.h.b16 %v584
        %v668 = vunpack.c.l.b16 %v585
        %v669 = vunpack.c.h.b16 %v585
        %v670 = vunpack.c.l.b16 %v586
        %v671 = vunpack.c.h.b16 %v586
        %v672 = vunpack.c.l.b16 %v587
        %v673 = vunpack.c.h.b16 %v587
        %v674 = vunpack.c.l.b16 %v588
        %v675 = vunpack.c.h.b16 %v588
        %v676 = vunpack.c.l.b16 %v589
        %v677 = vunpack.c.h.b16 %v589
        %v678 = vpack.c.b16 %v666, %v662
        %v679 = vpack.c.b16 %v667, %v663
        %v680 = vpack.c.b16 %v668, %v664
        %v681 = vpack.c.b16 %v669, %v665
        %v682 = vpack.c.b16 %v674, %v670
        %v683 = vpack.c.b16 %v675, %v671
        %v684 = vpack.c.b16 %v676, %v672
        %v685 = vpack.c.b16 %v677, %v673
        %v758 = vunpack.c.l.b16 %v590
        %v759 = vunpack.c.h.b16 %v590
        %v760 = vunpack.c.l.b16 %v591
        %v761 = vunpack.c.h.b16 %v591
        %v762 = vunpack.c.l.b16 %v592
        %v763 = vunpack.c.h.b16 %v592
        %v764 = vunpack.c.l.b16 %v593
        %v765 = vunpack.c.h.b16 %v593
        %v766 = vunpack.c.l.b16 %v594
        %v767 = vunpack.c.h.b16 %v594
        %v768 = vunpack.c.l.b16 %v595
        %v769 = vunpack.c.h.b16 %v595
        %v770 = vunpack.c.l.b16 %v596
        %v771 = vunpack.c.h.b16 %v596
        %v772 = vunpack.c.l.b16 %v597
        %v773 = vunpack.c.h.b16 %v597
        %v774 = vunpack.c.l.b16 %v598
        %v775 = vunpack.c.h.b16 %v598
        %v776 = vunpack.c.l.b16 %v599
        %v777 = vunpack.c.h.b16 %v599
        %v778 = vunpack.c.l.b16 %v600
        %v779 = vunpack.c.h.b16 %v600
        %v780 = vunpack.c.l.b16 %v601
        %v781 = vunpack.c.h.b16 %v601
        %v782 = vunpack.c.l.b16 %v602
        %v783 = vunpack.c.h.b16 %v602
        %v784 = vunpack.c.l.b16 %v603
        %v785 = vunpack.c.h.b16 %v603
        %v786 = vunpack.c.l.b16 %v604
        %v787 = vunpack.c.h.b16 %v604
        %v788 = vunpack.c.l.b16 %v605
        %v789 = vunpack.c.h.b16 %v605
        %v790 = vunpack.c.l.b16 %v606
        %v791 = vunpack.c.h.b16 %v606
        %v792 = vunpack.c.l.b16 %v607
        %v793 = vunpack.c.h.b16 %v607
        %v794 = vunpack.c.l.b16 %v608
        %v795 = vunpack.c.h.b16 %v608
        %v796 = vunpack.c.l.b16 %v609
        %v797 = vunpack.c.h.b16 %v609
        %v798 = vunpack.c.l.b16 %v610
        %v799 = vunpack.c.h.b16 %v610
        %v800 = vunpack.c.l.b16 %v611
        %v801 = vunpack.c.h.b16 %v611
        %v802 = vunpack.c.l.b16 %v612
        %v803 = vunpack.c.h.b16 %v612
        %v804 = vunpack.c.l.b16 %v613
        %v805 = vunpack.c.h.b16 %v613
        %v806 = vunpack.c.l.b16 %v614
        %v807 = vunpack.c.h.b16 %v614
        %v808 = vunpack.c.l.b16 %v615
        %v809 = vunpack.c.h.b16 %v615
        %v810 = vunpack.c.l.b16 %v616
        %v811 = vunpack.c.h.b16 %v616
        %v812 = vunpack.c.l.b16 %v617
        %v813 = vunpack.c.h.b16 %v617
        %v814 = vunpack.c.l.b16 %v618
        %v815 = vunpack.c.h.b16 %v618
        %v816 = vunpack.c.l.b16 %v619
        %v817 = vunpack.c.h.b16 %v619
        %v818 = vunpack.c.l.b16 %v620
        %v819 = vunpack.c.h.b16 %v620
        %v820 = vunpack.c.l.b16 %v621
        %v821 = vunpack.c.h.b16 %v621
        %v822 = vunpack.c.l.b16 %v622
        %v823 = vunpack.c.h.b16 %v622
        %v824 = vunpack.c.l.b16 %v623
        %v825 = vunpack.c.h.b16 %v623
        %v826 = vunpack.c.l.b16 %v624
        %v827 = vunpack.c.h.b16 %v624
        %v828 = vunpack.c.l.b16 %v625
        %v829 = vunpack.c.h.b16 %v625
        %v830 = vunpack.c.l.b16 %v626
        %v831 = vunpack.c.h.b16 %v626
        %v832 = vunpack.c.l.b16 %v627
        %v833 = vunpack.c.h.b16 %v627
        %v834 = vunpack.c.l.b16 %v628
        %v835 = vunpack.c.h.b16 %v628
        %v836 = vunpack.c.l.b16 %v629
        %v837 = vunpack.c.h.b16 %v629
        %v838 = vunpack.c.l.b16 %v630
        %v839 = vunpack.c.h.b16 %v630
        %v840 = vunpack.c.l.b16 %v631
        %v841 = vunpack.c.h.b16 %v631
        %v842 = vunpack.c.l.b16 %v632
        %v843 = vunpack.c.h.b16 %v632
        %v844 = vunpack.c.l.b16 %v633
        %v845 = vunpack.c.h.b16 %v633
        %v846 = vunpack.c.l.b16 %v634
        %v847 = vunpack.c.h.b16 %v634
        %v848 = vunpack.c.l.b16 %v635
        %v849 = vunpack.c.h.b16 %v635
        %v850 = vunpack.c.l.b16 %v636
        %v851 = vunpack.c.h.b16 %v636
        %v852 = vunpack.c.l.b16 %v637
        %v853 = vunpack.c.h.b16 %v637
        %v854 = vunpack.c.l.b16 %v638
        %v855 = vunpack.c.h.b16 %v638
        %v856 = vunpack.c.l.b16 %v639
        %v857 = vunpack.c.h.b16 %v639
        %v858 = vunpack.c.l.b16 %v640
        %v859 = vunpack.c.h.b16 %v640
        %v860 = vunpack.c.l.b16 %v641
        %v861 = vunpack.c.h.b16 %v641
        %v862 = vunpack.c.l.b16 %v642
        %v863 = vunpack.c.h.b16 %v642
        %v864 = vunpack.c.l.b16 %v643
        %v865 = vunpack.c.h.b16 %v643
        %v866 = vunpack.c.l.b16 %v644
        %v867 = vunpack.c.h.b16 %v644
        %v868 = vunpack.c.l.b16 %v645
        %v869 = vunpack.c.h.b16 %v645
        %v870 = vunpack.c.l.b16 %v646
        %v871 = vunpack.c.h.b16 %v646
        %v872 = vunpack.c.l.b16 %v647
        %v873 = vunpack.c.h.b16 %v647
        %v874 = vunpack.c.l.b16 %v648
        %v875 = vunpack.c.h.b16 %v648
        %v876 = vunpack.c.l.b16 %v649
        %v877 = vunpack.c.h.b16 %v649
        %v878 = vunpack.c.l.b16 %v650
        %v879 = vunpack.c.h.b16 %v650
        %v880 = vunpack.c.l.b16 %v651
        %v881 = vunpack.c.h.b16 %v651
        %v882 = vunpack.c.l.b16 %v652
        %v883 = vunpack.c.h.b16 %v652
        %v884 = vunpack.c.l.b16 %v653
        %v885 = vunpack.c.h.b16 %v653
        %v886 = vpack.c.b16 %v760, %v758
        %v887 = vpack.c.b16 %v761, %v759
        %v888 = vpack.c.b16 %v764, %v762
        %v889 = vpack.c.b16 %v765, %v763
        %v890 = vpack.c.b16 %v768, %v766
        %v891 = vpack.c.b16 %v769, %v767
        %v892 = vpack.c.b16 %v772, %v770
        %v893 = vpack.c.b16 %v773, %v771
        %v894 = vpack.c.b16 %v776, %v774
        %v895 = vpack.c.b16 %v777, %v775
        %v896 = vpack.c.b16 %v780, %v778
        %v897 = vpack.c.b16 %v781, %v779
        %v898 = vpack.c.b16 %v784, %v782
        %v899 = vpack.c.b16 %v785, %v783
        %v900 = vpack.c.b16 %v788, %v786
        %v901 = vpack.c.b16 %v789, %v787
        %v902 = vpack.c.b16 %v792, %v790
        %v903 = vpack.c.b16 %v793, %v791
        %v904 = vpack.c.b16 %v796, %v794
        %v905 = vpack.c.b16 %v797, %v795
        %v906 = vpack.c.b16 %v800, %v798
        %v907 = vpack.c.b16 %v801, %v799
        %v908 = vpack.c.b16 %v804, %v802
        %v909 = vpack.c.b16 %v805, %v803
        %v910 = vpack.c.b16 %v808, %v806
        %v911 = vpack.c.b16 %v809, %v807
        %v912 = vpack.c.b16 %v812, %v810
        %v913 = vpack.c.b16 %v813, %v811
        %v914 = vpack.c.b16 %v816, %v814
        %v915 = vpack.c.b16 %v817, %v815
        %v916 = vpack.c.b16 %v820, %v818
        %v917 = vpack.c.b16 %v821, %v819
        %v918 = vpack.c.b16 %v824, %v822
        %v919 = vpack.c.b16 %v825, %v823
        %v920 = vpack.c.b16 %v828, %v826
        %v921 = vpack.c.b16 %v829, %v827
        %v922 = vpack.c.b16 %v832, %v830
        %v923 = vpack.c.b16 %v833, %v831
        %v924 = vpack.c.b16 %v836, %v834
        %v925 = vpack.c.b16 %v837, %v835
        %v926 = vpack.c.b16 %v840, %v838
        %v927 = vpack.c.b16 %v841, %v839
        %v928 = vpack.c.b16 %v844, %v842
        %v929 = vpack.c.b16 %v845, %v843
        %v930 = vpack.c.b16 %v848, %v846
        %v931 = vpack.c.b16 %v849, %v847
        %v932 = vpack.c.b16 %v852, %v850
        %v933 = vpack.c.b16 %v853, %v851
        %v934 = vpack.c.b16 %v856, %v854
        %v935 = vpack.c.b16 %v857, %v855
        %v936 = vpack.c.b16 %v860, %v858
        %v937 = vpack.c.b16 %v861, %v859
        %v938 = vpack.c.b16 %v864, %v862
        %v939 = vpack.c.b16 %v865, %v863
        %v940 = vpack.c.b16 %v868, %v866
        %v941 = vpack.c.b16 %v869, %v867
        %v942 = vpack.c.b16 %v872, %v870
        %v943 = vpack.c.b16 %v873, %v871
        %v944 = vpack.c.b16 %v876, %v874
        %v945 = vpack.c.b16 %v877, %v875
        %v946 = vpack.c.b16 %v880, %v878
        %v947 = vpack.c.b16 %v881, %v879
        %v948 = vpack.c.b16 %v884, %v882
        %v949 = vpack.c.b16 %v885, %v883
        %1014 = vmatprep.subr.bf16.mxu0 %v887
        %1015 = vmatpush1.bf16.msra.mxu0 %v886
        %1016 = vmatprep.subr.bf16.mxu0 %v889
        %1017 = vmatpush1.bf16.msra.mxu0 %v888
        %1018 = vmatprep.subr.bf16.mxu0 %v891
        %1019 = vmatpush1.bf16.msra.mxu0 %v890
        %1020 = vmatprep.subr.bf16.mxu0 %v893
        %1021 = vmatpush1.bf16.msra.mxu0 %v892
        %1022 = vmatprep.subr.bf16.mxu0 %v895
        %1023 = vmatpush1.bf16.msra.mxu0 %v894
        %1024 = vmatprep.subr.bf16.mxu0 %v897
        %1025 = vmatpush1.bf16.msra.mxu0 %v896
        %1026 = vmatprep.subr.bf16.mxu0 %v899
        %1027 = vmatpush1.bf16.msra.mxu0 %v898
        %1028 = vmatprep.subr.bf16.mxu0 %v901
        %1029 = vmatpush1.bf16.msra.mxu0 %v900
        %1030 = vmatprep.subr.bf16.mxu0 %v903
        %1031 = vmatpush1.bf16.msra.mxu0 %v902
        %1032 = vmatprep.subr.bf16.mxu0 %v905
        %1033 = vmatpush1.bf16.msra.mxu0 %v904
        %1034 = vmatprep.subr.bf16.mxu0 %v907
        %1035 = vmatpush1.bf16.msra.mxu0 %v906
        %1036 = vmatprep.subr.bf16.mxu0 %v909
        %1037 = vmatpush1.bf16.msra.mxu0 %v908
        %1038 = vmatprep.subr.bf16.mxu0 %v911
        %1039 = vmatpush1.bf16.msra.mxu0 %v910
        %1040 = vmatprep.subr.bf16.mxu0 %v913
        %1041 = vmatpush1.bf16.msra.mxu0 %v912
        %1042 = vmatprep.subr.bf16.mxu0 %v915
        %1043 = vmatpush1.bf16.msra.mxu0 %v914
        %1044 = vmatprep.subr.bf16.mxu0 %v917
        %1045 = vmatpush1.bf16.msra.mxu0 %v916
        %1046 = vmatprep.mubr.bf16.mxu0 %v679
        %1047 = vmatmul.mubr.bf16.gmra.mrb[0].mxu0 %v678
        %v1048 = vpop.f32.mrb[0].mxu0
        %v1049 = vadd.f32 0.0, %v1048
        %v1050 = vpop.f32.mrb[0].mxu0
        %v1051 = vadd.f32 0.0, %v1050
        %v1052 = vpop.f32.mrb[0].mxu0
        %v1053 = vadd.f32 0.0, %v1052
        %v1054 = vpop.f32.mrb[0].mxu0
        %v1055 = vadd.f32 0.0, %v1054
        %1056 = vmatprep.mubr.bf16.mxu0 %v683
        %1057 = vmatmul.mubr.bf16.gmra.mrb[0].mxu0 %v682
        %v1058 = vpop.f32.mrb[0].mxu0
        %v1059 = vadd.f32 0.0, %v1058
        %v1060 = vpop.f32.mrb[0].mxu0
        %v1061 = vadd.f32 0.0, %v1060
        %v1062 = vpop.f32.mrb[0].mxu0
        %v1063 = vadd.f32 0.0, %v1062
        %v1064 = vpop.f32.mrb[0].mxu0
        %v1065 = vadd.f32 0.0, %v1064
        %1066 = vdwg.mxu0
        %1067 = vmatprep.subr.bf16.mxu0 %v919
        %1068 = vmatpush1.bf16.msra.mxu0 %v918
        %1069 = vmatprep.subr.bf16.mxu0 %v921
        %1070 = vmatpush1.bf16.msra.mxu0 %v920
        %1071 = vmatprep.subr.bf16.mxu0 %v923
        %1072 = vmatpush1.bf16.msra.mxu0 %v922
        %1073 = vmatprep.subr.bf16.mxu0 %v925
        %1074 = vmatpush1.bf16.msra.mxu0 %v924
        %1075 = vmatprep.subr.bf16.mxu0 %v927
        %1076 = vmatpush1.bf16.msra.mxu0 %v926
        %1077 = vmatprep.subr.bf16.mxu0 %v929
        %1078 = vmatpush1.bf16.msra.mxu0 %v928
        %1079 = vmatprep.subr.bf16.mxu0 %v931
        %1080 = vmatpush1.bf16.msra.mxu0 %v930
        %1081 = vmatprep.subr.bf16.mxu0 %v933
        %1082 = vmatpush1.bf16.msra.mxu0 %v932
        %1083 = vmatprep.subr.bf16.mxu0 %v935
        %1084 = vmatpush1.bf16.msra.mxu0 %v934
        %1085 = vmatprep.subr.bf16.mxu0 %v937
        %1086 = vmatpush1.bf16.msra.mxu0 %v936
        %1087 = vmatprep.subr.bf16.mxu0 %v939
        %1088 = vmatpush1.bf16.msra.mxu0 %v938
        %1089 = vmatprep.subr.bf16.mxu0 %v941
        %1090 = vmatpush1.bf16.msra.mxu0 %v940
        %1091 = vmatprep.subr.bf16.mxu0 %v943
        %1092 = vmatpush1.bf16.msra.mxu0 %v942
        %1093 = vmatprep.subr.bf16.mxu0 %v945
        %1094 = vmatpush1.bf16.msra.mxu0 %v944
        %1095 = vmatprep.subr.bf16.mxu0 %v947
        %1096 = vmatpush1.bf16.msra.mxu0 %v946
        %1097 = vmatprep.subr.bf16.mxu0 %v949
        %1098 = vmatpush1.bf16.msra.mxu0 %v948
        %1099 = vmatprep.mubr.bf16.mxu0 %v681
        %1100 = vmatmul.mubr.bf16.gmra.mrb[0].mxu0 %v680
        %v1101 = vpop.f32.mrb[0].mxu0
        %v1102 = vadd.f32 %v1049, %v1101
        %v1103 = vpop.f32.mrb[0].mxu0
        %v1104 = vadd.f32 %v1051, %v1103
        %v1105 = vpop.f32.mrb[0].mxu0
        %v1106 = vadd.f32 %v1053, %v1105
        %v1107 = vpop.f32.mrb[0].mxu0
        %v1108 = vadd.f32 %v1055, %v1107
        %1109 = vmatprep.mubr.bf16.mxu0 %v685
        %1110 = vmatmul.mubr.bf16.gmra.mrb[0].mxu0 %v684
        %v1111 = vpop.f32.mrb[0].mxu0
        %v1112 = vadd.f32 %v1059, %v1111
        %v1113 = vpop.f32.mrb[0].mxu0
        %v1114 = vadd.f32 %v1061, %v1113
        %v1115 = vpop.f32.mrb[0].mxu0
        %v1116 = vadd.f32 %v1063, %v1115
        %v1117 = vpop.f32.mrb[0].mxu0
        %v1118 = vadd.f32 %v1065, %v1117
        %1119 = vdwg.mxu0
        %v1120 = vadd.f32 %v574, %v1102
        %v1121 = vadd.f32 %v575, %v1104
        %v1122 = vadd.f32 %v576, %v1106
        %v1123 = vadd.f32 %v577, %v1108
        %v1124 = vadd.f32 %v578, %v1112
        %v1125 = vadd.f32 %v579, %v1114
        %v1126 = vadd.f32 %v580, %v1116
        %v1127 = vadd.f32 %v581, %v1118
        %1128 = vst [vmem:[#allocation2] sm:$0xff] %v1120
        %1129 = vst [vmem:[#allocation2 + $0x8] sm:$0xff] %v1121
        %1130 = vst [vmem:[#allocation2 + $0x10] sm:$0xff] %v1122
        %1131 = vst [vmem:[#allocation2 + $0x18] sm:$0xff] %v1123
        %1132 = vst [vmem:[#allocation2 + $0x20] sm:$0xff] %v1124
        %1133 = vst [vmem:[#allocation2 + $0x28] sm:$0xff] %v1125
        %1134 = vst [vmem:[#allocation2 + $0x30] sm:$0xff] %v1126
        %1135 = vst [vmem:[#allocation2 + $0x38] sm:$0xff] %v1127
        %p1136 = scmp.eq.s32.totalorder %s21, 7
        // Predicated region
        $region98: #{d_net128_forward.10} parent=84 // pred_check
          %p1137 = pneg %p1136
        $region99: #{d_net128_forward.10} parent=84 // pred_check_branch
          %1139 = sbr.rel (%p1137) target = $region101
        $region100: #{d_net128_forward.10} parent=84 // pred_region
          %v1140 = vld [vmem:[#allocation2] sm:$0xff]
          %v1141 = vld [vmem:[#allocation2 + $0x8] sm:$0xff]
          %v1142 = vld [vmem:[#allocation2 + $0x10] sm:$0xff]
          %v1143 = vld [vmem:[#allocation2 + $0x18] sm:$0xff]
          %v1144 = vld [vmem:[#allocation2 + $0x20] sm:$0xff]
          %v1145 = vld [vmem:[#allocation2 + $0x28] sm:$0xff]
          %v1146 = vld [vmem:[#allocation2 + $0x30] sm:$0xff]
          %v1147 = vld [vmem:[#allocation2 + $0x38] sm:$0xff]
          %v1148 = vld [vmem:[%s558] sm:$0x3]
          %v1150 = vlaneseq
          %v1151 = vshrl.u32 %v1150, 7
          %v1152 = vsub.s32 0, %v1151
          %v1153 = vrot.slane %v1148, %v1152
          %v1154 = vlaneseq
          %v1155 = vshrl.u32 %v1154, 7
          %v1156 = vsub.s32 1, %v1155
          %v1157 = vrot.slane %v1148, %v1156
          %v1160 = vadd.f32 %v1140, %v1153
          %v1161 = vadd.f32 %v1141, %v1157
          %v1162 = vadd.f32 %v1142, %v1153
          %v1163 = vadd.f32 %v1143, %v1157
          %v1164 = vadd.f32 %v1144, %v1153
          %v1165 = vadd.f32 %v1145, %v1157
          %v1166 = vadd.f32 %v1146, %v1153
          %v1167 = vadd.f32 %v1147, %v1157
          %vm1168 = vcmp.gt.f32.partialorder %v1160, 0.0
          %vm1169 = vcmp.gt.f32.partialorder %v1161, 0.0
          %vm1170 = vcmp.gt.f32.partialorder %v1162, 0.0
          %vm1171 = vcmp.gt.f32.partialorder %v1163, 0.0
          %vm1172 = vcmp.gt.f32.partialorder %v1164, 0.0
          %vm1173 = vcmp.gt.f32.partialorder %v1165, 0.0
          %vm1174 = vcmp.gt.f32.partialorder %v1166, 0.0
          %vm1175 = vcmp.gt.f32.partialorder %v1167, 0.0
          %v1176 = vmul.f32 %v1160, 0.2
          %v1177 = vmul.f32 %v1161, 0.2
          %v1178 = vmul.f32 %v1162, 0.2
          %v1179 = vmul.f32 %v1163, 0.2
          %v1180 = vmul.f32 %v1164, 0.2
          %v1181 = vmul.f32 %v1165, 0.2
          %v1182 = vmul.f32 %v1166, 0.2
          %v1183 = vmul.f32 %v1167, 0.2
          %v1184 = vsel %vm1168, %v1160, %v1176
          %v1185 = vsel %vm1169, %v1161, %v1177
          %v1186 = vsel %vm1170, %v1162, %v1178
          %v1187 = vsel %vm1171, %v1163, %v1179
          %v1188 = vsel %vm1172, %v1164, %v1180
          %v1189 = vsel %vm1173, %v1165, %v1181
          %v1190 = vsel %vm1174, %v1166, %v1182
          %v1191 = vsel %vm1175, %v1167, %v1183
          %v1192 = vpack.c.bf16 %v1186, %v1184
          %v1193 = vpack.c.bf16 %v1187, %v1185
          %v1194 = vpack.c.bf16 %v1190, %v1188
          %v1195 = vpack.c.bf16 %v1191, %v1189
          %v1200 = vunpack.c.l.b16 %v1192
          %v1201 = vunpack.c.l.b16 %v1193
          %v1202 = vunpack.c.h.b16 %v1192
          %v1203 = vunpack.c.h.b16 %v1193
          %v1204 = vunpack.c.l.b16 %v1194
          %v1205 = vunpack.c.l.b16 %v1195
          %v1206 = vunpack.c.h.b16 %v1194
          %v1207 = vunpack.c.h.b16 %v1195
          %v1208 = vpack.c.b16 %v1201, %v1200
          %v1209 = vpack.c.b16 %v1203, %v1202
          %v1210 = vpack.c.b16 %v1205, %v1204
          %v1211 = vpack.c.b16 %v1207, %v1206
          %1216 = vst [vmem:[%s550] sm:$0xff] %v1208
          %1217 = vst [vmem:[%s550 + $0x8] sm:$0xff] %v1209
          %1218 = vst [vmem:[%s550 + $0x10] sm:$0xff] %v1210
          %1219 = vst [vmem:[%s550 + $0x18] sm:$0xff] %v1211
        $region101: #{d_net128_forward.10} parent=84 // pred_fallthru
          _
        %s1220 = sand.u32 %s125, 1
        %s1221 = sand.u32 %s125, 1
        %s1222 = smul.addr %s1221, 32
        %s1223 = scalar_lea.vmem [#allocation5], %s1222
        // Predicated region
        $region102: #{d_net128_forward.10} parent=84 // pred_check
          %p1224 = pneg %p135
        $region103: #{d_net128_forward.10} parent=84 // pred_check_branch
          %1226 = sbr.rel (%p1224) target = $region105
        $region104: #{d_net128_forward.10} parent=84 // pred_region
          %s1227 = smul.u32 4, %s19
          %s1228 = smul.u32 2, %s20
          %s1229 = smul.addr %s1227, 4
          %s1230 = sadd.s32 %s1228, %s1229
          %s1231 = smul.addr %s1230, 4
          %s1232 = scalar_lea.vmem %s3, %s1231
          // Predicated region
          $region106: #{d_net128_forward.10} parent=104 // pred_check
            _
          $region107: #{d_net128_forward.10} parent=104 // pred_check_branch
            %1234 = sbr.rel (0) target = $region109
          $region108: #{d_net128_forward.10} parent=104 // pred_region
            // Predicated region
            $region110: #{d_net128_forward.10} parent=108 // pred_check
              _
            $region111: #{d_net128_forward.10} parent=108 // pred_check_branch
              %1236 = sbr.rel (0) target = $region113
            $region112: #{d_net128_forward.10} parent=108 // pred_region
              // Predicated region
              $region125: #{d_net128_forward.10} parent=112 // pred_check
                _
              $region126: #{d_net128_forward.10} parent=112 // pred_check_branch
                %1257 = sbr.rel (0) target = $region128
              $region127: #{d_net128_forward.10} parent=112 // pred_region
                loop: start=0, step=1, limit=1
                $region129: #{d_net128_forward.10} parent=127 // loop_pre_header
                  _
                $region130: #{d_net128_forward.10} parent=127 // loop_header
                  %s1259 = sphi 0, %s1263
                  %p1260 = scmp.ge.s32.totalorder %s1259, 1
                  %s1264 = sphi %s1223, %s1223
                  %s1265 = sphi %s1232, %s1232
                $region131: #{d_net128_forward.10} parent=127 // loop_header_branch
                  %1262 = sbr.rel (%p1260) target = $region135
                $region132: #{d_net128_forward.10} parent=127 // loop_body
                  %v1266 = vld [vmem:[%s1264] sm:$0xff]
                  %1267 = vst [vmem:[%s1265] sm:$0xff] %v1266
                  %v1268 = vld [vmem:[%s1264 + $0x8] sm:$0xff]
                  %1269 = vst [vmem:[%s1265 + $0x10] sm:$0xff] %v1268
                  %v1270 = vld [vmem:[%s1264 + $0x10] sm:$0xff]
                  %1271 = vst [vmem:[%s1265 + $0x20] sm:$0xff] %v1270
                  %v1272 = vld [vmem:[%s1264 + $0x18] sm:$0xff]
                  %1273 = vst [vmem:[%s1265 + $0x30] sm:$0xff] %v1272
                $region133: #{d_net128_forward.10} parent=127 // loop_footer
                  %s1263 = sadd.s32 1, %s1259
                $region134: #{d_net128_forward.10} parent=127 // loop_footer_branch
                  %1258 = sbr.rel target = $region130
                $region135: #{d_net128_forward.10} parent=127 // loop_exit
                  _
              $region128: #{d_net128_forward.10} parent=112 // pred_fallthru
                _
              // Predicated region
              $region136: #{d_net128_forward.10} parent=112 // pred_check
                _
              $region137: #{d_net128_forward.10} parent=112 // pred_check_branch
                %1275 = sbr.rel target = $region139
              $region138: #{d_net128_forward.10} parent=112 // pred_region
                _
              $region139: #{d_net128_forward.10} parent=112 // pred_fallthru
                _
            $region113: #{d_net128_forward.10} parent=108 // pred_fallthru
              _
            // Predicated region
            $region114: #{d_net128_forward.10} parent=108 // pred_check
              _
            $region115: #{d_net128_forward.10} parent=108 // pred_check_branch
              %1238 = sbr.rel target = $region117
            $region116: #{d_net128_forward.10} parent=108 // pred_region
              loop: start=0, step=1, limit=1
              $region118: #{d_net128_forward.10} parent=116 // loop_pre_header
                _
              $region119: #{d_net128_forward.10} parent=116 // loop_header
                %s1241 = sphi 0, %s1245
                %p1242 = scmp.ge.s32.totalorder %s1241, 1
                %s1246 = sphi %s1223, %s1223
                %s1247 = sphi %s1232, %s1232
              $region120: #{d_net128_forward.10} parent=116 // loop_header_branch
                %1244 = sbr.rel (%p1242) target = $region124
              $region121: #{d_net128_forward.10} parent=116 // loop_body
                %v1248 = vld [vmem:[%s1246] sm:$0xff]
                %1249 = vst [vmem:[%s1247] sm:$0xff] %v1248
                %v1250 = vld [vmem:[%s1246 + $0x8] sm:$0xff]
                %1251 = vst [vmem:[%s1247 + $0x10] sm:$0xff] %v1250
                %v1252 = vld [vmem:[%s1246 + $0x10] sm:$0xff]
                %1253 = vst [vmem:[%s1247 + $0x20] sm:$0xff] %v1252
                %v1254 = vld [vmem:[%s1246 + $0x18] sm:$0xff]
                %1255 = vst [vmem:[%s1247 + $0x30] sm:$0xff] %v1254
              $region122: #{d_net128_forward.10} parent=116 // loop_footer
                %s1245 = sadd.s32 1, %s1241
              $region123: #{d_net128_forward.10} parent=116 // loop_footer_branch
                %1240 = sbr.rel target = $region119
              $region124: #{d_net128_forward.10} parent=116 // loop_exit
                _
            $region117: #{d_net128_forward.10} parent=108 // pred_fallthru
              _
          $region109: #{d_net128_forward.10} parent=104 // pred_fallthru
            _
          %1276 = vnop
        $region105: #{d_net128_forward.10} parent=84 // pred_fallthru
          _
      $region85: #{d_net128_forward.10} parent=5 // pred_fallthru
        _
      %p1277 = scmp.le.s32.totalorder 2, %s9
      // Predicated region
      $region140: #{d_net128_forward.10} parent=5 // pred_check
        %p1278 = pneg %p1277
      $region141: #{d_net128_forward.10} parent=5 // pred_check_branch
        %1280 = sbr.rel (%p1278) target = $region143
      $region142: #{d_net128_forward.10} parent=5 // pred_region
        %s1281 = ssub.s32 %s9, 2
        // Predicated region
        $region144: #{d_net128_forward.10} parent=142 // pred_check
          %p1282 = pneg %p141
        $region145: #{d_net128_forward.10} parent=142 // pred_check_branch
          %1284 = sbr.rel (%p1282) target = $region147
        $region146: #{d_net128_forward.10} parent=142 // pred_region
          %s1285 = sand.u32 %s126, 1
          %s1286 = sand.u32 %s126, 1
          %s1287 = smul.addr %s1286, 32
          %s1288 = scalar_lea.vmem [#allocation5], %s1287
        $region147: #{d_net128_forward.10} parent=142 // pred_fallthru
          _
      $region143: #{d_net128_forward.10} parent=5 // pred_fallthru
        _
    $region6: #{d_net128_forward.10} parent=1 // loop_footer
      %s13 = sadd.s32 1, %s9
    $region7: #{d_net128_forward.10} parent=1 // loop_footer_branch
      %8 = sbr.rel target = $region3
    $region8: #{d_net128_forward.10} parent=1 // loop_exit
      _

// kernel: d_net128_forward.11
$region0: #{d_net128_forward.11}
  #allocation0 [shape = 'u32[]', space=smem, size = 0x4, offset = 0x4, fixed_abs, tag = 'smem constant byte address 0x4 - core index']
  #allocation1 [shape = 'u32[144,128]{1,0:T(1,128)}', space=vmem, size = 0x12000, scoped, tag = 'internal scratch']
  #allocation2 [shape = 'f32[32,256]{1,0:T(8,128)}', space=vmem, size = 0x8000, scoped, tag = 'scratch operand']
  %s0 = inlined_call_operand.vmem [shape: bf16[32,4608], index: 0, kind: input, shape index: {}]
  %s1 = inlined_call_operand.vmem [shape: bf16[4608,256], index: 1, kind: input, shape index: {}]
  %s2 = inlined_call_operand.vmem [shape: f32[1,256], index: 2, kind: input, shape index: {}]
  %s3 = inlined_call_operand.vmem [shape: f32[32,256], index: 3, kind: output, shape index: {}]
  %s4 = sld [smem:[#allocation0]]
  $region76: #{d_net128_forward.11} parent=0
    _
  %s6 = ssub.s32 1, %s4
  %s7 = scalar_select 0, %s6, %s4
  $region1: #{d_net128_forward.11} parent=0
    #allocation3 [shape = 'u8[65536]{0}', space=vmem, size = 0x10000, scoped, tag = 'input window, operand 0']
    loop: start=0, step=1, limit=11
    $region2: #{d_net128_forward.11} parent=1 // loop_pre_header
      _
    $region3: #{d_net128_forward.11} parent=1 // loop_header
      %s9 = sphi 0, %s13
      %p10 = scmp.ge.s32.totalorder %s9, 11
      %s16 = sphi 0, %s35
      %s17 = sphi 0, %s31
      %s18 = sphi 0, %s27
      %s19 = sphi 0, %s16
      %s20 = sphi 0, %s17
      %s21 = sphi 0, %s18
      %s22 = sphi 0, %s19
      %s23 = sphi 0, %s20
      %s24 = sphi 0, %s21
      %s40 = sphi 0, %s42
      %s43 = sphi 0, %s40
      %s44 = sphi 0, %s43
      %s60 = sphi 0, %s44
      %s68 = sphi 0, %s70
      %s71 = sphi 0, %s68
      %s72 = sphi 0, %s71
      %s88 = sphi 0, %s72
      %s94 = sphi 0, %s96
      %s97 = sphi 0, %s94
      %s98 = sphi 0, %s97
      %s114 = sphi 0, %s98
      %s122 = sphi 0, %s124
      %s125 = sphi 0, %s122
      %s126 = sphi 0, %s125
      %s142 = sphi 0, %s126
    $region4: #{d_net128_forward.11} parent=1 // loop_header_branch
      %12 = sbr.rel (%p10) target = $region8
    $region5: #{d_net128_forward.11} parent=1 // loop_body
      %s14 = ssub.s32 %s9, 1
      %s15 = ssub.s32 %s9, 2
      %s25 = sadd.s32 1, %s18
      %p26 = scmp.ge.s32.totalorder %s25, 9
      %s27 = scalar_select %p26, 0, %s25
      %s28 = sadd.s32 1, %s17
      %s29 = scalar_select %p26, %s28, %s17
      %p30 = scmp.ge.s32.totalorder %s29, 1
      %s31 = scalar_select %p30, 0, %s29
      %s32 = sadd.s32 1, %s16
      %s33 = scalar_select %p30, %s32, %s16
      %p34 = scmp.ge.s32.totalorder %s33, 1
      %s35 = scalar_select %p34, 0, %s33
      %s36 = ssub.s32 %s16, %s35
      %s37 = ssub.s32 %s18, %s27
      %s38 = sor.u32 %s36, %s37
      %p39 = scmp.eq.s32.totalorder %s38, 0
      %s41 = sadd.s32 %s40, 1
      %s42 = scalar_select %p39, %s40, %s41
      %p45 = pneg %p39
      %p46 = scmp.eq.s32.totalorder %s9, 8
      %p47 = por %p45, %p46
      %p48 = scmp.ne.s32.totalorder %s40, %s43
      %p49 = scmp.eq.s32.totalorder %s9, 0
      %p50 = por %p48, %p49
      %p51 = scmp.ne.s32.totalorder %s40, %s43
      %p52 = scmp.eq.s32.totalorder %s14, 8
      %p53 = por %p51, %p52
      %p54 = scmp.ne.s32.totalorder %s43, %s44
      %p55 = scmp.eq.s32.totalorder %s14, 0
      %p56 = por %p54, %p55
      %p57 = scmp.ne.s32.totalorder %s43, %s44
      %p58 = scmp.eq.s32.totalorder %s15, 8
      %p59 = por %p57, %p58
      %p61 = scmp.ne.s32.totalorder %s44, %s60
      %p62 = scmp.eq.s32.totalorder %s15, 0
      %p63 = por %p61, %p62
      %s64 = ssub.s32 %s18, %s27
      %s65 = ssub.s32 %s17, %s31
      %s66 = sor.u32 %s64, %s65
      %p67 = scmp.eq.s32.totalorder %s66, 0
      %s69 = sadd.s32 %s68, 1
      %s70 = scalar_select %p67, %s68, %s69
      %p73 = pneg %p67
      %p74 = scmp.eq.s32.totalorder %s9, 8
      %p75 = por %p73, %p74
      %p76 = scmp.ne.s32.totalorder %s68, %s71
      %p77 = scmp.eq.s32.totalorder %s9, 0
      %p78 = por %p76, %p77
      %p79 = scmp.ne.s32.totalorder %s68, %s71
      %p80 = scmp.eq.s32.totalorder %s14, 8
      %p81 = por %p79, %p80
      %p82 = scmp.ne.s32.totalorder %s71, %s72
      %p83 = scmp.eq.s32.totalorder %s14, 0
      %p84 = por %p82, %p83
      %p85 = scmp.ne.s32.totalorder %s71, %s72
      %p86 = scmp.eq.s32.totalorder %s15, 8
      %p87 = por %p85, %p86
      %p89 = scmp.ne.s32.totalorder %s72, %s88
      %p90 = scmp.eq.s32.totalorder %s15, 0
      %p91 = por %p89, %p90
      %s92 = ssub.s32 %s17, %s31
      %p93 = scmp.eq.s32.totalorder %s92, 0
      %s95 = sadd.s32 %s94, 1
      %s96 = scalar_select %p93, %s94, %s95
      %p99 = pneg %p93
      %p100 = scmp.eq.s32.totalorder %s9, 8
      %p101 = por %p99, %p100
      %p102 = scmp.ne.s32.totalorder %s94, %s97
      %p103 = scmp.eq.s32.totalorder %s9, 0
      %p104 = por %p102, %p103
      %p105 = scmp.ne.s32.totalorder %s94, %s97
      %p106 = scmp.eq.s32.totalorder %s14, 8
      %p107 = por %p105, %p106
      %p108 = scmp.ne.s32.totalorder %s97, %s98
      %p109 = scmp.eq.s32.totalorder %s14, 0
      %p110 = por %p108, %p109
      %p111 = scmp.ne.s32.totalorder %s97, %s98
      %p112 = scmp.eq.s32.totalorder %s15, 8
      %p113 = por %p111, %p112
      %p115 = scmp.ne.s32.totalorder %s98, %s114
      %p116 = scmp.eq.s32.totalorder %s15, 0
      %p117 = por %p115, %p116
      %s118 = ssub.s32 %s16, %s35
      %s119 = ssub.s32 %s17, %s31
      %s120 = sor.u32 %s118, %s119
      %p121 = scmp.eq.s32.totalorder %s120, 0
      %s123 = sadd.s32 %s122, 1
      %s124 = scalar_select %p121, %s122, %s123
      %p127 = pneg %p121
      %p128 = scmp.eq.s32.totalorder %s9, 8
      %p129 = por %p127, %p128
      %p130 = scmp.ne.s32.totalorder %s122, %s125
      %p131 = scmp.eq.s32.totalorder %s9, 0
      %p132 = por %p130, %p131
      %p133 = scmp.ne.s32.totalorder %s122, %s125
      %p134 = scmp.eq.s32.totalorder %s14, 8
      %p135 = por %p133, %p134
      %p136 = scmp.ne.s32.totalorder %s125, %s126
      %p137 = scmp.eq.s32.totalorder %s14, 0
      %p138 = por %p136, %p137
      %p139 = scmp.ne.s32.totalorder %s125, %s126
      %p140 = scmp.eq.s32.totalorder %s15, 8
      %p141 = por %p139, %p140
      %p143 = scmp.ne.s32.totalorder %s126, %s142
      %p144 = scmp.eq.s32.totalorder %s15, 0
      %p145 = por %p143, %p144
      %p146 = scmp.le.s32.totalorder 1, %s9
      %p147 = scmp.lt.s32.totalorder %s9, 10
      %p148 = pnand %p146, %p147
      %p149 = pneg %p148
      // Predicated region
      $region9: #{d_net128_forward.11} parent=5 // pred_check
        _
      $region10: #{d_net128_forward.11} parent=5 // pred_check_branch
        %151 = sbr.rel (%p148) target = $region12
      $region11: #{d_net128_forward.11} parent=5 // pred_region
        %s152 = ssub.s32 %s9, 1
        // Predicated region
        $region13: #{d_net128_forward.11} parent=11 // pred_check
          %p153 = pneg %p110
        $region14: #{d_net128_forward.11} parent=11 // pred_check_branch
          %155 = sbr.rel (%p153) target = $region16
        $region15: #{d_net128_forward.11} parent=11 // pred_region
          %s156 = smul.u32 2, %s20
          %p157 = scmp.lt.s32.totalorder %s156, 1
          %s158 = scalar_select %p157, %s156, 1
          %s159 = scalar_lea.vmem %s2, %s158
          %s160 = smul.u32 2, %s20
        $region16: #{d_net128_forward.11} parent=11 // pred_fallthru
          _
      $region12: #{d_net128_forward.11} parent=5 // pred_fallthru
        _
      %p161 = scmp.lt.s32.totalorder %s9, 9
      // Predicated region
      $region17: #{d_net128_forward.11} parent=5 // pred_check
        %p162 = pneg %p161
      $region18: #{d_net128_forward.11} parent=5 // pred_check_branch
        %164 = sbr.rel (%p162) target = $region20
      $region19: #{d_net128_forward.11} parent=5 // pred_region
        // Predicated region
        $region21: #{d_net128_forward.11} parent=19 // pred_check
          %p165 = pneg %p50
        $region22: #{d_net128_forward.11} parent=19 // pred_check_branch
          %167 = sbr.rel (%p165) target = $region24
        $region23: #{d_net128_forward.11} parent=19 // pred_region
          %s168 = sand.u32 %s40, 1
          %s169 = sand.u32 %s40, 1
          %s170 = smul.addr %s169, 64
          %s171 = scalar_lea.vmem [#allocation3], %s170
          %s172 = smul.u32 4, %s16
          %s173 = smul.u32 4, %s18
          %s174 = smul.addr %s172, 36
          %s175 = sadd.s32 %s173, %s174
          %s176 = smul.addr %s175, 4
          %s177 = scalar_lea.vmem %s0, %s176
          // Predicated region
          $region25: #{d_net128_forward.11} parent=23 // pred_check
            _
          $region26: #{d_net128_forward.11} parent=23 // pred_check_branch
            %179 = sbr.rel (0) target = $region28
          $region27: #{d_net128_forward.11} parent=23 // pred_region
            // Predicated region
            $region29: #{d_net128_forward.11} parent=27 // pred_check
              _
            $region30: #{d_net128_forward.11} parent=27 // pred_check_branch
              %181 = sbr.rel (0) target = $region32
            $region31: #{d_net128_forward.11} parent=27 // pred_region
              loop: start=0, step=1, limit=1
              $region33: #{d_net128_forward.11} parent=31 // loop_pre_header
                _
              $region34: #{d_net128_forward.11} parent=31 // loop_header
                %s183 = sphi 0, %s187
                %p184 = scmp.ge.s32.totalorder %s183, 1
                %s188 = sphi %s177, %s177
                %s189 = sphi %s171, %s171
              $region35: #{d_net128_forward.11} parent=31 // loop_header_branch
                %186 = sbr.rel (%p184) target = $region39
              $region36: #{d_net128_forward.11} parent=31 // loop_body
                %v190 = vld [vmem:[%s188] sm:$0xff]
                %191 = vst [vmem:[%s189] sm:$0xff] %v190
                %v192 = vld [vmem:[%s188 + $0x8] sm:$0xff]
                %193 = vst [vmem:[%s189 + $0x8] sm:$0xff] %v192
                %v194 = vld [vmem:[%s188 + $0x90] sm:$0xff]
                %195 = vst [vmem:[%s189 + $0x10] sm:$0xff] %v194
                %v196 = vld [vmem:[%s188 + $0x98] sm:$0xff]
                %197 = vst [vmem:[%s189 + $0x18] sm:$0xff] %v196
                %v198 = vld [vmem:[%s188 + $0x120] sm:$0xff]
                %199 = vst [vmem:[%s189 + $0x20] sm:$0xff] %v198
                %v200 = vld [vmem:[%s188 + $0x128] sm:$0xff]
                %201 = vst [vmem:[%s189 + $0x28] sm:$0xff] %v200
                %v202 = vld [vmem:[%s188 + $0x1b0] sm:$0xff]
                %203 = vst [vmem:[%s189 + $0x30] sm:$0xff] %v202
                %v204 = vld [vmem:[%s188 + $0x1b8] sm:$0xff]
                %205 = vst [vmem:[%s189 + $0x38] sm:$0xff] %v204
              $region37: #{d_net128_forward.11} parent=31 // loop_footer
                %s187 = sadd.s32 1, %s183
              $region38: #{d_net128_forward.11} parent=31 // loop_footer_branch
                %182 = sbr.rel target = $region34
              $region39: #{d_net128_forward.11} parent=31 // loop_exit
                _
            $region32: #{d_net128_forward.11} parent=27 // pred_fallthru
              _
            // Predicated region
            $region40: #{d_net128_forward.11} parent=27 // pred_check
              _
            $region41: #{d_net128_forward.11} parent=27 // pred_check_branch
              %207 = sbr.rel target = $region43
            $region42: #{d_net128_forward.11} parent=27 // pred_region
              _
            $region43: #{d_net128_forward.11} parent=27 // pred_fallthru
              _
          $region28: #{d_net128_forward.11} parent=23 // pred_fallthru
            _
          %208 = vnop
        $region24: #{d_net128_forward.11} parent=19 // pred_fallthru
          _
        // Predicated region
        $region44: #{d_net128_forward.11} parent=19 // pred_check
          %p209 = pneg %p78
        $region45: #{d_net128_forward.11} parent=19 // pred_check_branch
          %211 = sbr.rel (%p209) target = $region47
        $region46: #{d_net128_forward.11} parent=19 // pred_region
          %s212 = smul.u32 64, %s18
          %s213 = smul.u32 2, %s17
          %p214 = scmp.lt.s32.totalorder %s212, 575
          %s215 = scalar_select %p214, %s212, 575
          %p216 = scmp.lt.s32.totalorder %s213, 1
          %s217 = scalar_select %p216, %s213, 1
          %s218 = smul.addr %s215, 2
          %s219 = sadd.s32 %s217, %s218
          %s220 = smul.addr %s219, 4
          %s221 = scalar_lea.vmem %s1, %s220
          %s222 = smul.u32 64, %s18
          %s223 = smul.u32 2, %s17
        $region47: #{d_net128_forward.11} parent=19 // pred_fallthru
          _
      $region20: #{d_net128_forward.11} parent=5 // pred_fallthru
        _
      %p224 = scmp.le.s32.totalorder 1, %s9
      %p225 = scmp.lt.s32.totalorder %s9, 10
      %p226 = pnand %p224, %p225
      %p227 = pneg %p226
      // Predicated region
      $region48: #{d_net128_forward.11} parent=5 // pred_check
        _
      $region49: #{d_net128_forward.11} parent=5 // pred_check_branch
        %229 = sbr.rel (%p226) target = $region51
      $region50: #{d_net128_forward.11} parent=5 // pred_region
        %s230 = ssub.s32 %s9, 1
        %s231 = sand.u32 %s43, 1
        %s232 = sand.u32 %s43, 1
        %s233 = smul.addr %s232, 64
        %s234 = scalar_lea.vmem [#allocation3], %s233
        // Predicated region
        $region52: #{d_net128_forward.11} parent=50 // pred_check
          %p235 = pneg %p56
        $region53: #{d_net128_forward.11} parent=50 // pred_check_branch
          %237 = sbr.rel (%p235) target = $region55
        $region54: #{d_net128_forward.11} parent=50 // pred_region
          _
        $region55: #{d_net128_forward.11} parent=50 // pred_fallthru
          _
        %s238 = sand.u32 %s43, 1
        %s239 = sand.u32 %s43, 1
        %s240 = smul.addr %s239, 64
        %s241 = scalar_lea.vmem [#allocation3], %s240
        %p242 = pneg %p56
        %p243 = pneg %p53
        %s244 = smul.u32 64, %s21
        %s245 = smul.u32 2, %s20
        %p246 = scmp.lt.s32.totalorder %s244, 575
        %s247 = scalar_select %p246, %s244, 575
        %p248 = scmp.lt.s32.totalorder %s245, 1
        %s249 = scalar_select %p248, %s245, 1
        %s250 = smul.addr %s247, 2
        %s251 = sadd.s32 %s249, %s250
        %s252 = smul.addr %s251, 4
        %s253 = scalar_lea.vmem %s1, %s252
        %p254 = pneg %p84
        %p255 = pneg %p81
        %s256 = smul.u32 2, %s20
        %p257 = scmp.lt.s32.totalorder %s256, 1
        %s258 = scalar_select %p257, %s256, 1
        %s259 = scalar_lea.vmem %s2, %s258
        %p260 = pneg %p110
        %p261 = pneg %p107
        %p262 = pneg %p138
        %p263 = pneg %p135
        %s264 = smul.u32 4, %s19
        %s265 = smul.u32 2, %s20
        %p266 = scmp.lt.s32.totalorder %s264, 3
        %s267 = scalar_select %p266, %s264, 3
        %p268 = scmp.lt.s32.totalorder %s265, 1
        %s269 = scalar_select %p268, %s265, 1
        %s270 = smul.addr %s267, 2
        %s271 = sadd.s32 %s269, %s270
        %s272 = smul.addr %s271, 8
        %s273 = scalar_lea.vmem %s3, %s272
        %s274 = smul.u32 4, %s19
        %s275 = smul.u32 4, %s21
        %s276 = smul.u32 64, %s21
        %s277 = smul.u32 2, %s20
        %p278 = scmp.lt.s32.totalorder %s276, 575
        %s279 = scalar_select %p278, %s276, 575
        %p280 = scmp.lt.s32.totalorder %s277, 1
        %s281 = scalar_select %p280, %s277, 1
        %s282 = smul.addr %s279, 2
        %s283 = sadd.s32 %s281, %s282
        %s284 = smul.addr %s283, 4
        %s285 = scalar_lea.vmem %s1, %s284
        %s286 = smul.u32 64, %s21
        %s287 = smul.u32 2, %s20
        %s288 = smul.u32 2, %s20
        %p289 = scmp.lt.s32.totalorder %s288, 1
        %s290 = scalar_select %p289, %s288, 1
        %s291 = scalar_lea.vmem %s2, %s290
        %s292 = smul.u32 2, %s20
        %s293 = smul.u32 4, %s19
        %s294 = smul.u32 2, %s20
        %p295 = scmp.lt.s32.totalorder %s293, 3
        %s296 = scalar_select %p295, %s293, 3
        %p297 = scmp.lt.s32.totalorder %s294, 1
        %s298 = scalar_select %p297, %s294, 1
        %s299 = smul.addr %s296, 2
        %s300 = sadd.s32 %s298, %s299
        %s301 = smul.addr %s300, 8
        %s302 = scalar_lea.vmem %s3, %s301
        %s303 = smul.u32 4, %s19
        %s304 = smul.u32 2, %s20
        %p305 = scmp.eq.s32.totalorder %s21, 0
        // Predicated region
        $region56: #{d_net128_forward.11} parent=50 // pred_check
          %p306 = pneg %p305
        $region57: #{d_net128_forward.11} parent=50 // pred_check_branch
          %308 = sbr.rel (%p306) target = $region59
        $region58: #{d_net128_forward.11} parent=50 // pred_region
          %309 = vst [vmem:[#allocation2] sm:$0xff] 0.0
          %310 = vst [vmem:[#allocation2 + $0x8] sm:$0xff] 0.0
          %311 = vst [vmem:[#allocation2 + $0x10] sm:$0xff] 0.0
          %312 = vst [vmem:[#allocation2 + $0x18] sm:$0xff] 0.0
          %313 = vst [vmem:[#allocation2 + $0x20] sm:$0xff] 0.0
          %314 = vst [vmem:[#allocation2 + $0x28] sm:$0xff] 0.0
          %315 = vst [vmem:[#allocation2 + $0x30] sm:$0xff] 0.0
          %316 = vst [vmem:[#allocation2 + $0x38] sm:$0xff] 0.0
        $region59: #{d_net128_forward.11} parent=50 // pred_fallthru
          _
        %v317 = vld [vmem:[#allocation2] sm:$0xff]
        %v318 = vld [vmem:[#allocation2 + $0x8] sm:$0xff]
        %v319 = vld [vmem:[#allocation2 + $0x10] sm:$0xff]
        %v320 = vld [vmem:[#allocation2 + $0x18] sm:$0xff]
        %v321 = vld [vmem:[#allocation2 + $0x20] sm:$0xff]
        %v322 = vld [vmem:[#allocation2 + $0x28] sm:$0xff]
        %v323 = vld [vmem:[#allocation2 + $0x30] sm:$0xff]
        %v324 = vld [vmem:[#allocation2 + $0x38] sm:$0xff]
        %v325 = vld [vmem:[%s234] sm:$0xff]
        %v326 = vld [vmem:[%s234 + $0x8] sm:$0xff]
        %v327 = vld [vmem:[%s234 + $0x10] sm:$0xff]
        %v328 = vld [vmem:[%s234 + $0x18] sm:$0xff]
        %v329 = vld [vmem:[%s234 + $0x20] sm:$0xff]
        %v330 = vld [vmem:[%s234 + $0x28] sm:$0xff]
        %v331 = vld [vmem:[%s234 + $0x30] sm:$0xff]
        %v332 = vld [vmem:[%s234 + $0x38] sm:$0xff]
        %v333 = vld [vmem:[%s285] sm:$0xff]
        %v334 = vld [vmem:[%s285 + $0x8] sm:$0xff]
        %v335 = vld [vmem:[%s285 + $0x10] sm:$0xff]
        %v336 = vld [vmem:[%s285 + $0x18] sm:$0xff]
        %v337 = vld [vmem:[%s285 + $0x20] sm:$0xff]
        %v338 = vld [vmem:[%s285 + $0x28] sm:$0xff]
        %v339 = vld [vmem:[%s285 + $0x30] sm:$0xff]
        %v340 = vld [vmem:[%s285 + $0x38] sm:$0xff]
        %v341 = vld [vmem:[%s285 + $0x40] sm:$0xff]
        %v342 = vld [vmem:[%s285 + $0x48] sm:$0xff]
        %v343 = vld [vmem:[%s285 + $0x50] sm:$0xff]
        %v344 = vld [vmem:[%s285 + $0x58] sm:$0xff]
        %v345 = vld [vmem:[%s285 + $0x60] sm:$0xff]
        %v346 = vld [vmem:[%s285 + $0x68] sm:$0xff]
        %v347 = vld [vmem:[%s285 + $0x70] sm:$0xff]
        %v348 = vld [vmem:[%s285 + $0x78] sm:$0xff]
        %v349 = vld [vmem:[%s285 + $0x80] sm:$0xff]
        %v350 = vld [vmem:[%s285 + $0x88] sm:$0xff]
        %v351 = vld [vmem:[%s285 + $0x90] sm:$0xff]
        %v352 = vld [vmem:[%s285 + $0x98] sm:$0xff]
        %v353 = vld [vmem:[%s285 + $0xa0] sm:$0xff]
        %v354 = vld [vmem:[%s285 + $0xa8] sm:$0xff]
        %v355 = vld [vmem:[%s285 + $0xb0] sm:$0xff]
        %v356 = vld [vmem:[%s285 + $0xb8] sm:$0xff]
        %v357 = vld [vmem:[%s285 + $0xc0] sm:$0xff]
        %v358 = vld [vmem:[%s285 + $0xc8] sm:$0xff]
        %v359 = vld [vmem:[%s285 + $0xd0] sm:$0xff]
        %v360 = vld [vmem:[%s285 + $0xd8] sm:$0xff]
        %v361 = vld [vmem:[%s285 + $0xe0] sm:$0xff]
        %v362 = vld [vmem:[%s285 + $0xe8] sm:$0xff]
        %v363 = vld [vmem:[%s285 + $0xf0] sm:$0xff]
        %v364 = vld [vmem:[%s285 + $0xf8] sm:$0xff]
        %v365 = vld [vmem:[%s285 + $0x100] sm:$0xff]
        %v366 = vld [vmem:[%s285 + $0x108] sm:$0xff]
        %v367 = vld [vmem:[%s285 + $0x110] sm:$0xff]
        %v368 = vld [vmem:[%s285 + $0x118] sm:$0xff]
        %v369 = vld [vmem:[%s285 + $0x120] sm:$0xff]
        %v370 = vld [vmem:[%s285 + $0x128] sm:$0xff]
        %v371 = vld [vmem:[%s285 + $0x130] sm:$0xff]
        %v372 = vld [vmem:[%s285 + $0x138] sm:$0xff]
        %v373 = vld [vmem:[%s285 + $0x140] sm:$0xff]
        %v374 = vld [vmem:[%s285 + $0x148] sm:$0xff]
        %v375 = vld [vmem:[%s285 + $0x150] sm:$0xff]
        %v376 = vld [vmem:[%s285 + $0x158] sm:$0xff]
        %v377 = vld [vmem:[%s285 + $0x160] sm:$0xff]
        %v378 = vld [vmem:[%s285 + $0x168] sm:$0xff]
        %v379 = vld [vmem:[%s285 + $0x170] sm:$0xff]
        %v380 = vld [vmem:[%s285 + $0x178] sm:$0xff]
        %v381 = vld [vmem:[%s285 + $0x180] sm:$0xff]
        %v382 = vld [vmem:[%s285 + $0x188] sm:$0xff]
        %v383 = vld [vmem:[%s285 + $0x190] sm:$0xff]
        %v384 = vld [vmem:[%s285 + $0x198] sm:$0xff]
        %v385 = vld [vmem:[%s285 + $0x1a0] sm:$0xff]
        %v386 = vld [vmem:[%s285 + $0x1a8] sm:$0xff]
        %v387 = vld [vmem:[%s285 + $0x1b0] sm:$0xff]
        %v388 = vld [vmem:[%s285 + $0x1b8] sm:$0xff]
        %v389 = vld [vmem:[%s285 + $0x1c0] sm:$0xff]
        %v390 = vld [vmem:[%s285 + $0x1c8] sm:$0xff]
        %v391 = vld [vmem:[%s285 + $0x1d0] sm:$0xff]
        %v392 = vld [vmem:[%s285 + $0x1d8] sm:$0xff]
        %v393 = vld [vmem:[%s285 + $0x1e0] sm:$0xff]
        %v394 = vld [vmem:[%s285 + $0x1e8] sm:$0xff]
        %v395 = vld [vmem:[%s285 + $0x1f0] sm:$0xff]
        %v396 = vld [vmem:[%s285 + $0x1f8] sm:$0xff]
        %v405 = vunpack.c.l.b16 %v325
        %v406 = vunpack.c.h.b16 %v325
        %v407 = vunpack.c.l.b16 %v326
        %v408 = vunpack.c.h.b16 %v326
        %v409 = vunpack.c.l.b16 %v327
        %v410 = vunpack.c.h.b16 %v327
        %v411 = vunpack.c.l.b16 %v328
        %v412 = vunpack.c.h.b16 %v328
        %v413 = vunpack.c.l.b16 %v329
        %v414 = vunpack.c.h.b16 %v329
        %v415 = vunpack.c.l.b16 %v330
        %v416 = vunpack.c.h.b16 %v330
        %v417 = vunpack.c.l.b16 %v331
        %v418 = vunpack.c.h.b16 %v331
        %v419 = vunpack.c.l.b16 %v332
        %v420 = vunpack.c.h.b16 %v332
        %v421 = vpack.c.b16 %v409, %v405
        %v422 = vpack.c.b16 %v410, %v406
        %v423 = vpack.c.b16 %v411, %v407
        %v424 = vpack.c.b16 %v412, %v408
        %v425 = vpack.c.b16 %v417, %v413
        %v426 = vpack.c.b16 %v418, %v414
        %v427 = vpack.c.b16 %v419, %v415
        %v428 = vpack.c.b16 %v420, %v416
        %v501 = vunpack.c.l.b16 %v333
        %v502 = vunpack.c.h.b16 %v333
        %v503 = vunpack.c.l.b16 %v334
        %v504 = vunpack.c.h.b16 %v334
        %v505 = vunpack.c.l.b16 %v335
        %v506 = vunpack.c.h.b16 %v335
        %v507 = vunpack.c.l.b16 %v336
        %v508 = vunpack.c.h.b16 %v336
        %v509 = vunpack.c.l.b16 %v337
        %v510 = vunpack.c.h.b16 %v337
        %v511 = vunpack.c.l.b16 %v338
        %v512 = vunpack.c.h.b16 %v338
        %v513 = vunpack.c.l.b16 %v339
        %v514 = vunpack.c.h.b16 %v339
        %v515 = vunpack.c.l.b16 %v340
        %v516 = vunpack.c.h.b16 %v340
        %v517 = vunpack.c.l.b16 %v341
        %v518 = vunpack.c.h.b16 %v341
        %v519 = vunpack.c.l.b16 %v342
        %v520 = vunpack.c.h.b16 %v342
        %v521 = vunpack.c.l.b16 %v343
        %v522 = vunpack.c.h.b16 %v343
        %v523 = vunpack.c.l.b16 %v344
        %v524 = vunpack.c.h.b16 %v344
        %v525 = vunpack.c.l.b16 %v345
        %v526 = vunpack.c.h.b16 %v345
        %v527 = vunpack.c.l.b16 %v346
        %v528 = vunpack.c.h.b16 %v346
        %v529 = vunpack.c.l.b16 %v347
        %v530 = vunpack.c.h.b16 %v347
        %v531 = vunpack.c.l.b16 %v348
        %v532 = vunpack.c.h.b16 %v348
        %v533 = vunpack.c.l.b16 %v349
        %v534 = vunpack.c.h.b16 %v349
        %v535 = vunpack.c.l.b16 %v350
        %v536 = vunpack.c.h.b16 %v350
        %v537 = vunpack.c.l.b16 %v351
        %v538 = vunpack.c.h.b16 %v351
        %v539 = vunpack.c.l.b16 %v352
        %v540 = vunpack.c.h.b16 %v352
        %v541 = vunpack.c.l.b16 %v353
        %v542 = vunpack.c.h.b16 %v353
        %v543 = vunpack.c.l.b16 %v354
        %v544 = vunpack.c.h.b16 %v354
        %v545 = vunpack.c.l.b16 %v355
        %v546 = vunpack.c.h.b16 %v355
        %v547 = vunpack.c.l.b16 %v356
        %v548 = vunpack.c.h.b16 %v356
        %v549 = vunpack.c.l.b16 %v357
        %v550 = vunpack.c.h.b16 %v357
        %v551 = vunpack.c.l.b16 %v358
        %v552 = vunpack.c.h.b16 %v358
        %v553 = vunpack.c.l.b16 %v359
        %v554 = vunpack.c.h.b16 %v359
        %v555 = vunpack.c.l.b16 %v360
        %v556 = vunpack.c.h.b16 %v360
        %v557 = vunpack.c.l.b16 %v361
        %v558 = vunpack.c.h.b16 %v361
        %v559 = vunpack.c.l.b16 %v362
        %v560 = vunpack.c.h.b16 %v362
        %v561 = vunpack.c.l.b16 %v363
        %v562 = vunpack.c.h.b16 %v363
        %v563 = vunpack.c.l.b16 %v364
        %v564 = vunpack.c.h.b16 %v364
        %v565 = vunpack.c.l.b16 %v365
        %v566 = vunpack.c.h.b16 %v365
        %v567 = vunpack.c.l.b16 %v366
        %v568 = vunpack.c.h.b16 %v366
        %v569 = vunpack.c.l.b16 %v367
        %v570 = vunpack.c.h.b16 %v367
        %v571 = vunpack.c.l.b16 %v368
        %v572 = vunpack.c.h.b16 %v368
        %v573 = vunpack.c.l.b16 %v369
        %v574 = vunpack.c.h.b16 %v369
        %v575 = vunpack.c.l.b16 %v370
        %v576 = vunpack.c.h.b16 %v370
        %v577 = vunpack.c.l.b16 %v371
        %v578 = vunpack.c.h.b16 %v371
        %v579 = vunpack.c.l.b16 %v372
        %v580 = vunpack.c.h.b16 %v372
        %v581 = vunpack.c.l.b16 %v373
        %v582 = vunpack.c.h.b16 %v373
        %v583 = vunpack.c.l.b16 %v374
        %v584 = vunpack.c.h.b16 %v374
        %v585 = vunpack.c.l.b16 %v375
        %v586 = vunpack.c.h.b16 %v375
        %v587 = vunpack.c.l.b16 %v376
        %v588 = vunpack.c.h.b16 %v376
        %v589 = vunpack.c.l.b16 %v377
        %v590 = vunpack.c.h.b16 %v377
        %v591 = vunpack.c.l.b16 %v378
        %v592 = vunpack.c.h.b16 %v378
        %v593 = vunpack.c.l.b16 %v379
        %v594 = vunpack.c.h.b16 %v379
        %v595 = vunpack.c.l.b16 %v380
        %v596 = vunpack.c.h.b16 %v380
        %v597 = vunpack.c.l.b16 %v381
        %v598 = vunpack.c.h.b16 %v381
        %v599 = vunpack.c.l.b16 %v382
        %v600 = vunpack.c.h.b16 %v382
        %v601 = vunpack.c.l.b16 %v383
        %v602 = vunpack.c.h.b16 %v383
        %v603 = vunpack.c.l.b16 %v384
        %v604 = vunpack.c.h.b16 %v384
        %v605 = vunpack.c.l.b16 %v385
        %v606 = vunpack.c.h.b16 %v385
        %v607 = vunpack.c.l.b16 %v386
        %v608 = vunpack.c.h.b16 %v386
        %v609 = vunpack.c.l.b16 %v387
        %v610 = vunpack.c.h.b16 %v387
        %v611 = vunpack.c.l.b16 %v388
        %v612 = vunpack.c.h.b16 %v388
        %v613 = vunpack.c.l.b16 %v389
        %v614 = vunpack.c.h.b16 %v389
        %v615 = vunpack.c.l.b16 %v390
        %v616 = vunpack.c.h.b16 %v390
        %v617 = vunpack.c.l.b16 %v391
        %v618 = vunpack.c.h.b16 %v391
        %v619 = vunpack.c.l.b16 %v392
        %v620 = vunpack.c.h.b16 %v392
        %v621 = vunpack.c.l.b16 %v393
        %v622 = vunpack.c.h.b16 %v393
        %v623 = vunpack.c.l.b16 %v394
        %v624 = vunpack.c.h.b16 %v394
        %v625 = vunpack.c.l.b16 %v395
        %v626 = vunpack.c.h.b16 %v395
        %v627 = vunpack.c.l.b16 %v396
        %v628 = vunpack.c.h.b16 %v396
        %v629 = vpack.c.b16 %v503, %v501
        %v630 = vpack.c.b16 %v504, %v502
        %v631 = vpack.c.b16 %v507, %v505
        %v632 = vpack.c.b16 %v508, %v506
        %v633 = vpack.c.b16 %v511, %v509
        %v634 = vpack.c.b16 %v512, %v510
        %v635 = vpack.c.b16 %v515, %v513
        %v636 = vpack.c.b16 %v516, %v514
        %v637 = vpack.c.b16 %v519, %v517
        %v638 = vpack.c.b16 %v520, %v518
        %v639 = vpack.c.b16 %v523, %v521
        %v640 = vpack.c.b16 %v524, %v522
        %v641 = vpack.c.b16 %v527, %v525
        %v642 = vpack.c.b16 %v528, %v526
        %v643 = vpack.c.b16 %v531, %v529
        %v644 = vpack.c.b16 %v532, %v530
        %v645 = vpack.c.b16 %v535, %v533
        %v646 = vpack.c.b16 %v536, %v534
        %v647 = vpack.c.b16 %v539, %v537
        %v648 = vpack.c.b16 %v540, %v538
        %v649 = vpack.c.b16 %v543, %v541
        %v650 = vpack.c.b16 %v544, %v542
        %v651 = vpack.c.b16 %v547, %v545
        %v652 = vpack.c.b16 %v548, %v546
        %v653 = vpack.c.b16 %v551, %v549
        %v654 = vpack.c.b16 %v552, %v550
        %v655 = vpack.c.b16 %v555, %v553
        %v656 = vpack.c.b16 %v556, %v554
        %v657 = vpack.c.b16 %v559, %v557
        %v658 = vpack.c.b16 %v560, %v558
        %v659 = vpack.c.b16 %v563, %v561
        %v660 = vpack.c.b16 %v564, %v562
        %v661 = vpack.c.b16 %v567, %v565
        %v662 = vpack.c.b16 %v568, %v566
        %v663 = vpack.c.b16 %v571, %v569
        %v664 = vpack.c.b16 %v572, %v570
        %v665 = vpack.c.b16 %v575, %v573
        %v666 = vpack.c.b16 %v576, %v574
        %v667 = vpack.c.b16 %v579, %v577
        %v668 = vpack.c.b16 %v580, %v578
        %v669 = vpack.c.b16 %v583, %v581
        %v670 = vpack.c.b16 %v584, %v582
        %v671 = vpack.c.b16 %v587, %v585
        %v672 = vpack.c.b16 %v588, %v586
        %v673 = vpack.c.b16 %v591, %v589
        %v674 = vpack.c.b16 %v592, %v590
        %v675 = vpack.c.b16 %v595, %v593
        %v676 = vpack.c.b16 %v596, %v594
        %v677 = vpack.c.b16 %v599, %v597
        %v678 = vpack.c.b16 %v600, %v598
        %v679 = vpack.c.b16 %v603, %v601
        %v680 = vpack.c.b16 %v604, %v602
        %v681 = vpack.c.b16 %v607, %v605
        %v682 = vpack.c.b16 %v608, %v606
        %v683 = vpack.c.b16 %v611, %v609
        %v684 = vpack.c.b16 %v612, %v610
        %v685 = vpack.c.b16 %v615, %v613
        %v686 = vpack.c.b16 %v616, %v614
        %v687 = vpack.c.b16 %v619, %v617
        %v688 = vpack.c.b16 %v620, %v618
        %v689 = vpack.c.b16 %v623, %v621
        %v690 = vpack.c.b16 %v624, %v622
        %v691 = vpack.c.b16 %v627, %v625
        %v692 = vpack.c.b16 %v628, %v626
        %757 = vmatprep.subr.bf16.mxu0 %v630
        %758 = vmatpush1.bf16.msra.mxu0 %v629
        %759 = vmatprep.subr.bf16.mxu0 %v632
        %760 = vmatpush1.bf16.msra.mxu0 %v631
        %761 = vmatprep.subr.bf16.mxu0 %v634
        %762 = vmatpush1.bf16.msra.mxu0 %v633
        %763 = vmatprep.subr.bf16.mxu0 %v636
        %764 = vmatpush1.bf16.msra.mxu0 %v635
        %765 = vmatprep.subr.bf16.mxu0 %v638
        %766 = vmatpush1.bf16.msra.mxu0 %v637
        %767 = vmatprep.subr.bf16.mxu0 %v640
        %768 = vmatpush1.bf16.msra.mxu0 %v639
        %769 = vmatprep.subr.bf16.mxu0 %v642
        %770 = vmatpush1.bf16.msra.mxu0 %v641
        %771 = vmatprep.subr.bf16.mxu0 %v644
        %772 = vmatpush1.bf16.msra.mxu0 %v643
        %773 = vmatprep.subr.bf16.mxu0 %v646
        %774 = vmatpush1.bf16.msra.mxu0 %v645
        %775 = vmatprep.subr.bf16.mxu0 %v648
        %776 = vmatpush1.bf16.msra.mxu0 %v647
        %777 = vmatprep.subr.bf16.mxu0 %v650
        %778 = vmatpush1.bf16.msra.mxu0 %v649
        %779 = vmatprep.subr.bf16.mxu0 %v652
        %780 = vmatpush1.bf16.msra.mxu0 %v651
        %781 = vmatprep.subr.bf16.mxu0 %v654
        %782 = vmatpush1.bf16.msra.mxu0 %v653
        %783 = vmatprep.subr.bf16.mxu0 %v656
        %784 = vmatpush1.bf16.msra.mxu0 %v655
        %785 = vmatprep.subr.bf16.mxu0 %v658
        %786 = vmatpush1.bf16.msra.mxu0 %v657
        %787 = vmatprep.subr.bf16.mxu0 %v660
        %788 = vmatpush1.bf16.msra.mxu0 %v659
        %789 = vmatprep.mubr.bf16.mxu0 %v422
        %790 = vmatmul.mubr.bf16.gmra.mrb[0].mxu0 %v421
        %v791 = vpop.f32.mrb[0].mxu0
        %v792 = vadd.f32 0.0, %v791
        %v793 = vpop.f32.mrb[0].mxu0
        %v794 = vadd.f32 0.0, %v793
        %v795 = vpop.f32.mrb[0].mxu0
        %v796 = vadd.f32 0.0, %v795
        %v797 = vpop.f32.mrb[0].mxu0
        %v798 = vadd.f32 0.0, %v797
        %799 = vmatprep.mubr.bf16.mxu0 %v426
        %800 = vmatmul.mubr.bf16.gmra.mrb[0].mxu0 %v425
        %v801 = vpop.f32.mrb[0].mxu0
        %v802 = vadd.f32 0.0, %v801
        %v803 = vpop.f32.mrb[0].mxu0
        %v804 = vadd.f32 0.0, %v803
        %v805 = vpop.f32.mrb[0].mxu0
        %v806 = vadd.f32 0.0, %v805
        %v807 = vpop.f32.mrb[0].mxu0
        %v808 = vadd.f32 0.0, %v807
        %809 = vdwg.mxu0
        %810 = vmatprep.subr.bf16.mxu0 %v662
        %811 = vmatpush1.bf16.msra.mxu0 %v661
        %812 = vmatprep.subr.bf16.mxu0 %v664
        %813 = vmatpush1.bf16.msra.mxu0 %v663
        %814 = vmatprep.subr.bf16.mxu0 %v666
        %815 = vmatpush1.bf16.msra.mxu0 %v665
        %816 = vmatprep.subr.bf16.mxu0 %v668
        %817 = vmatpush1.bf16.msra.mxu0 %v667
        %818 = vmatprep.subr.bf16.mxu0 %v670
        %819 = vmatpush1.bf16.msra.mxu0 %v669
        %820 = vmatprep.subr.bf16.mxu0 %v672
        %821 = vmatpush1.bf16.msra.mxu0 %v671
        %822 = vmatprep.subr.bf16.mxu0 %v674
        %823 = vmatpush1.bf16.msra.mxu0 %v673
        %824 = vmatprep.subr.bf16.mxu0 %v676
        %825 = vmatpush1.bf16.msra.mxu0 %v675
        %826 = vmatprep.subr.bf16.mxu0 %v678
        %827 = vmatpush1.bf16.msra.mxu0 %v677
        %828 = vmatprep.subr.bf16.mxu0 %v680
        %829 = vmatpush1.bf16.msra.mxu0 %v679
        %830 = vmatprep.subr.bf16.mxu0 %v682
        %831 = vmatpush1.bf16.msra.mxu0 %v681
        %832 = vmatprep.subr.bf16.mxu0 %v684
        %833 = vmatpush1.bf16.msra.mxu0 %v683
        %834 = vmatprep.subr.bf16.mxu0 %v686
        %835 = vmatpush1.bf16.msra.mxu0 %v685
        %836 = vmatprep.subr.bf16.mxu0 %v688
        %837 = vmatpush1.bf16.msra.mxu0 %v687
        %838 = vmatprep.subr.bf16.mxu0 %v690
        %839 = vmatpush1.bf16.msra.mxu0 %v689
        %840 = vmatprep.subr.bf16.mxu0 %v692
        %841 = vmatpush1.bf16.msra.mxu0 %v691
        %842 = vmatprep.mubr.bf16.mxu0 %v424
        %843 = vmatmul.mubr.bf16.gmra.mrb[0].mxu0 %v423
        %v844 = vpop.f32.mrb[0].mxu0
        %v845 = vadd.f32 %v792, %v844
        %v846 = vpop.f32.mrb[0].mxu0
        %v847 = vadd.f32 %v794, %v846
        %v848 = vpop.f32.mrb[0].mxu0
        %v849 = vadd.f32 %v796, %v848
        %v850 = vpop.f32.mrb[0].mxu0
        %v851 = vadd.f32 %v798, %v850
        %852 = vmatprep.mubr.bf16.mxu0 %v428
        %853 = vmatmul.mubr.bf16.gmra.mrb[0].mxu0 %v427
        %v854 = vpop.f32.mrb[0].mxu0
        %v855 = vadd.f32 %v802, %v854
        %v856 = vpop.f32.mrb[0].mxu0
        %v857 = vadd.f32 %v804, %v856
        %v858 = vpop.f32.mrb[0].mxu0
        %v859 = vadd.f32 %v806, %v858
        %v860 = vpop.f32.mrb[0].mxu0
        %v861 = vadd.f32 %v808, %v860
        %862 = vdwg.mxu0
        %v863 = vadd.f32 %v317, %v845
        %v864 = vadd.f32 %v318, %v847
        %v865 = vadd.f32 %v319, %v849
        %v866 = vadd.f32 %v320, %v851
        %v867 = vadd.f32 %v321, %v855
        %v868 = vadd.f32 %v322, %v857
        %v869 = vadd.f32 %v323, %v859
        %v870 = vadd.f32 %v324, %v861
        %871 = vst [vmem:[#allocation2] sm:$0xff] %v863
        %872 = vst [vmem:[#allocation2 + $0x8] sm:$0xff] %v864
        %873 = vst [vmem:[#allocation2 + $0x10] sm:$0xff] %v865
        %874 = vst [vmem:[#allocation2 + $0x18] sm:$0xff] %v866
        %875 = vst [vmem:[#allocation2 + $0x20] sm:$0xff] %v867
        %876 = vst [vmem:[#allocation2 + $0x28] sm:$0xff] %v868
        %877 = vst [vmem:[#allocation2 + $0x30] sm:$0xff] %v869
        %878 = vst [vmem:[#allocation2 + $0x38] sm:$0xff] %v870
        %p879 = scmp.eq.s32.totalorder %s21, 8
        // Predicated region
        $region60: #{d_net128_forward.11} parent=50 // pred_check
          %p880 = pneg %p879
        $region61: #{d_net128_forward.11} parent=50 // pred_check_branch
          %882 = sbr.rel (%p880) target = $region63
        $region62: #{d_net128_forward.11} parent=50 // pred_region
          %v883 = vld [vmem:[#allocation2] sm:$0xff]
          %v884 = vld [vmem:[#allocation2 + $0x8] sm:$0xff]
          %v885 = vld [vmem:[#allocation2 + $0x10] sm:$0xff]
          %v886 = vld [vmem:[#allocation2 + $0x18] sm:$0xff]
          %v887 = vld [vmem:[#allocation2 + $0x20] sm:$0xff]
          %v888 = vld [vmem:[#allocation2 + $0x28] sm:$0xff]
          %v889 = vld [vmem:[#allocation2 + $0x30] sm:$0xff]
          %v890 = vld [vmem:[#allocation2 + $0x38] sm:$0xff]
          %v891 = vld [vmem:[%s291] sm:$0x3]
          %v893 = vlaneseq
          %v894 = vshrl.u32 %v893, 7
          %v895 = vsub.s32 0, %v894
          %v896 = vrot.slane %v891, %v895
          %v897 = vlaneseq
          %v898 = vshrl.u32 %v897, 7
          %v899 = vsub.s32 1, %v898
          %v900 = vrot.slane %v891, %v899
          %v903 = vadd.f32 %v883, %v896
          %v904 = vadd.f32 %v884, %v900
          %v905 = vadd.f32 %v885, %v896
          %v906 = vadd.f32 %v886, %v900
          %v907 = vadd.f32 %v887, %v896
          %v908 = vadd.f32 %v888, %v900
          %v909 = vadd.f32 %v889, %v896
          %v910 = vadd.f32 %v890, %v900
          %vm911 = vcmp.gt.f32.partialorder %v903, 0.0
          %vm912 = vcmp.gt.f32.partialorder %v904, 0.0
          %vm913 = vcmp.gt.f32.partialorder %v905, 0.0
          %vm914 = vcmp.gt.f32.partialorder %v906, 0.0
          %vm915 = vcmp.gt.f32.partialorder %v907, 0.0
          %vm916 = vcmp.gt.f32.partialorder %v908, 0.0
          %vm917 = vcmp.gt.f32.partialorder %v909, 0.0
          %vm918 = vcmp.gt.f32.partialorder %v910, 0.0
          %v919 = vmul.f32 %v903, 0.2
          %v920 = vmul.f32 %v904, 0.2
          %v921 = vmul.f32 %v905, 0.2
          %v922 = vmul.f32 %v906, 0.2
          %v923 = vmul.f32 %v907, 0.2
          %v924 = vmul.f32 %v908, 0.2
          %v925 = vmul.f32 %v909, 0.2
          %v926 = vmul.f32 %v910, 0.2
          %v927 = vsel %vm911, %v903, %v919
          %v928 = vsel %vm912, %v904, %v920
          %v929 = vsel %vm913, %v905, %v921
          %v930 = vsel %vm914, %v906, %v922
          %v931 = vsel %vm915, %v907, %v923
          %v932 = vsel %vm916, %v908, %v924
          %v933 = vsel %vm917, %v909, %v925
          %v934 = vsel %vm918, %v910, %v926
          %935 = vst [vmem:[%s302] sm:$0xff] %v927
          %936 = vst [vmem:[%s302 + $0x8] sm:$0xff] %v928
          %937 = vst [vmem:[%s302 + $0x10] sm:$0xff] %v929
          %938 = vst [vmem:[%s302 + $0x18] sm:$0xff] %v930
          %939 = vst [vmem:[%s302 + $0x20] sm:$0xff] %v931
          %940 = vst [vmem:[%s302 + $0x28] sm:$0xff] %v932
          %941 = vst [vmem:[%s302 + $0x30] sm:$0xff] %v933
          %942 = vst [vmem:[%s302 + $0x38] sm:$0xff] %v934
        $region63: #{d_net128_forward.11} parent=50 // pred_fallthru
          _
        %s943 = smul.u32 4, %s19
        %s944 = smul.u32 2, %s20
        %p945 = scmp.lt.s32.totalorder %s943, 3
        %s946 = scalar_select %p945, %s943, 3
        %p947 = scmp.lt.s32.totalorder %s944, 1
        %s948 = scalar_select %p947, %s944, 1
        %s949 = smul.addr %s946, 2
        %s950 = sadd.s32 %s948, %s949
        %s951 = smul.addr %s950, 8
        %s952 = scalar_lea.vmem %s3, %s951
        // Predicated region
        $region64: #{d_net128_forward.11} parent=50 // pred_check
          %p953 = pneg %p135
        $region65: #{d_net128_forward.11} parent=50 // pred_check_branch
          %955 = sbr.rel (%p953) target = $region67
        $region66: #{d_net128_forward.11} parent=50 // pred_region
          %s956 = smul.u32 4, %s19
          %s957 = smul.u32 2, %s20
        $region67: #{d_net128_forward.11} parent=50 // pred_fallthru
          _
        // Predicated region
        $region68: #{d_net128_forward.11} parent=50 // pred_check
          %p958 = pneg %p135
        $region69: #{d_net128_forward.11} parent=50 // pred_check_branch
          %960 = sbr.rel (%p958) target = $region71
        $region70: #{d_net128_forward.11} parent=50 // pred_region
          %s961 = smul.u32 4, %s19
          %s962 = smul.u32 2, %s20
          %p963 = scmp.lt.s32.totalorder %s961, 3
          %s964 = scalar_select %p963, %s961, 3
          %p965 = scmp.lt.s32.totalorder %s962, 1
          %s966 = scalar_select %p965, %s962, 1
          %s967 = smul.addr %s964, 2
          %s968 = sadd.s32 %s966, %s967
          %s969 = smul.addr %s968, 8
          %s970 = scalar_lea.vmem %s3, %s969
        $region71: #{d_net128_forward.11} parent=50 // pred_fallthru
          _
      $region51: #{d_net128_forward.11} parent=5 // pred_fallthru
        _
      %p971 = scmp.le.s32.totalorder 2, %s9
      // Predicated region
      $region72: #{d_net128_forward.11} parent=5 // pred_check
        %p972 = pneg %p971
      $region73: #{d_net128_forward.11} parent=5 // pred_check_branch
        %974 = sbr.rel (%p972) target = $region75
      $region74: #{d_net128_forward.11} parent=5 // pred_region
        %s975 = ssub.s32 %s9, 2
      $region75: #{d_net128_forward.11} parent=5 // pred_fallthru
        _
    $region6: #{d_net128_forward.11} parent=1 // loop_footer
      %s13 = sadd.s32 1, %s9
    $region7: #{d_net128_forward.11} parent=1 // loop_footer_branch
      %8 = sbr.rel target = $region3
    $region8: #{d_net128_forward.11} parent=1 // loop_exit
      _

</llo_original>
